<compile_context>
chip_gen: v6e
topology: v6e:2x2x1
jax: 0.10.0
libtpu: 0.0.40
codegen_flags: <defaults>
</compile_context>

<pallas_src>
import functools

import jax
import jax.numpy as jnp
from jax.experimental import pallas as pl
from jax.experimental.pallas import tpu as pltpu


# ----------------------------------------------------------------------------
# Pallas kernels
# ----------------------------------------------------------------------------
def _matmul_epilogue(acc, ss_ref, res_ref, o_ref, act):
    y = acc * ss_ref[0:1, :] + ss_ref[1:2, :]          # folded BN scale/shift (f32)
    if res_ref is not None:
        y = y + res_ref[...].astype(jnp.float32)       # fused residual add
    if act == "relu":
        y = jnp.maximum(y, 0.0)
    o_ref[...] = y.astype(o_ref.dtype)


def _matmul_kernel(*refs, act, has_res, nk):
    """o = act(scale * (A @ B) + shift [+ residual]).

    A/B/residual are bf16; accumulation and the BN/residual epilogue are f32.
    Scale & shift arrive packed as one (2, tn) operand (row 0 = scale, 1 = shift).
    """
    if nk == 1:
        # Whole contraction in one K block: no accumulator scratch round trip.
        if has_res:
            a_ref, b_ref, ss_ref, res_ref, o_ref = refs
        else:
            a_ref, b_ref, ss_ref, o_ref = refs
            res_ref = None
        acc = jnp.dot(a_ref[...], b_ref[...], preferred_element_type=jnp.float32)
        _matmul_epilogue(acc, ss_ref, res_ref, o_ref, act)
    else:
        if has_res:
            a_ref, b_ref, ss_ref, res_ref, o_ref, acc_ref = refs
        else:
            a_ref, b_ref, ss_ref, o_ref, acc_ref = refs
            res_ref = None
        k = pl.program_id(2)

        @pl.when(k == 0)
        def _():
            acc_ref[...] = jnp.zeros_like(acc_ref)

        acc_ref[...] += jnp.dot(a_ref[...], b_ref[...],
                                preferred_element_type=jnp.float32)

        @pl.when(k == nk - 1)
        def _():
            _matmul_epilogue(acc_ref[...], ss_ref, res_ref, o_ref, act)


def _pose_head_kernel(x_ref, w_ref, b_ref, xg_ref, yg_ref, o_ref):
    """Fused PedRecPose2DHead: 1x1 conv -> sigmoid -> soft-argmax, per batch item.

    x_ref: (1, HW, C) features; w_ref: (C, J); b_ref: (1, J);
    xg/yg: (HW, 1) normalized coord grids; o_ref: (1, 3, J) -> rows (x, y, score).
    The heatmap lives only in vregs/VMEM (never written to HBM).
    """
    x = x_ref[0]                                                   # (HW, C) bf16
    hm = jnp.dot(x, w_ref[...], preferred_element_type=jnp.float32) + b_ref[...]
    p = 0.5 * (jnp.tanh(0.5 * hm) + 1.0)                           # stable sigmoid (EUP)
    tot = jnp.sum(p, axis=0, keepdims=True)                        # (1, J)
    inv = 1.0 / (tot + 1e-6)                                       # exact (coord precision)
    xs = jnp.sum(p * xg_ref[...], axis=0, keepdims=True) * inv
    ys = jnp.sum(p * yg_ref[...], axis=0, keepdims=True) * inv
    sc = jnp.max(p, axis=0, keepdims=True)                         # confidence score
    o_ref[0] = jnp.concatenate([xs, ys, sc], axis=0)               # (3, J)


# ----------------------------------------------------------------------------
# Tiling helpers
# ----------------------------------------------------------------------------
def _round_up(x, m):
    return (x + m - 1) // m * m


@functools.lru_cache(maxsize=1)
def _cores_per_chip():
    """TensorCores per chip (perf heuristic only): 2 on v4/v5p/v7x, else 1."""
    try:
        kind = jax.devices()[0].device_kind.lower()
    except Exception:
        return 1
    if "lite" in kind or "v5e" in kind or "v6e" in kind:
        return 1
    if "v4" in kind or "v5p" in kind or "v7" in kind or "7x" in kind:
        return 2
    return 1


def _vmem_limit(tm, tk, tn, nk, has_res, out_bytes):
    est = 2 * (tm * tk * 2 + tk * tn * 2 + 2 * tn * 4)       # double-buffered inputs
    if has_res:
        est += 2 * tm * tn * 2
    est += 2 * tm * tn * out_bytes                           # double-buffered output
    if nk > 1:
        est += tm * tn * 4                                   # f32 accumulator scratch
    est = 2 * est + (1 << 20)                                # 2x headroom + 1 MiB
    return int(max(16 << 20, min(est, 48 << 20)))


def matmul_scale_shift(a, b, scale, shift, act="none", residual=None,
                       out_dtype=jnp.float32):
    """out = act(scale * (a @ b) + shift [+ residual]); per-output-column scale/shift."""
    M, K = a.shape
    _, N = b.shape
    two_cores = _cores_per_chip() >= 2

    # N tiling: lane-dense 128-wide tiles when possible; narrow outputs keep the
    # full dimension as a single block (allowed: equals full array dim).
    if N >= 128:
        Np, tn = _round_up(N, 128), 128
    else:
        Np, tn = N, N
    n_steps_n = Np // tn

    # M tiling: 16-aligned (bf16 sublane packing), <=512 rows per tile; on
    # 2-TensorCore chips ensure at least 2 grid steps on a 'parallel' axis.
    tm = min(512, _round_up(M, 16))
    Mp = _round_up(M, tm)
    if two_cores and M >= 32 and (Mp // tm) * n_steps_n < 2:
        tm = max(16, _round_up(tm // 2, 16))
        Mp = _round_up(M, tm)

    Kp = _round_up(K, 128)
    if Kp <= 2048:
        tk = Kp                  # whole contraction in a single K step
    else:
        tk = max(c for c in range(128, 1025, 128) if Kp % c == 0)
    nk = Kp // tk

    # bf16 MXU inputs; accumulation stays f32 in-kernel.
    a_p = a.astype(jnp.bfloat16)
    b_p = b.astype(jnp.bfloat16)
    if (Mp, Kp) != (M, K):
        a_p = jnp.pad(a_p, ((0, Mp - M), (0, Kp - K)))
    if (Kp, Np) != (K, N):
        b_p = jnp.pad(b_p, ((0, Kp - K), (0, Np - N)))

    ss = jnp.stack([scale.astype(jnp.float32), shift.astype(jnp.float32)])   # (2, N)
    if Np != N:
        ss = jnp.pad(ss, ((0, 0), (0, Np - N)))

    inputs = [a_p, b_p, ss]
    in_specs = [
        pl.BlockSpec((tm, tk), lambda i, j, k: (i, k)),
        pl.BlockSpec((tk, tn), lambda i, j, k: (k, j)),
        pl.BlockSpec((2, tn), lambda i, j, k: (0, j)),
    ]
    has_res = residual is not None
    if has_res:
        r = residual.astype(jnp.bfloat16)
        if (Mp, Np) != (M, N):
            r = jnp.pad(r, ((0, Mp - M), (0, Np - N)))
        inputs.append(r)
        in_specs.append(pl.BlockSpec((tm, tn), lambda i, j, k: (i, j)))

    out_bytes = jnp.dtype(out_dtype).itemsize
    scratch = [] if nk == 1 else [pltpu.VMEM((tm, tn), jnp.float32)]

    out = pl.pallas_call(
        functools.partial(_matmul_kernel, act=act, has_res=has_res, nk=nk),
        out_shape=jax.ShapeDtypeStruct((Mp, Np), out_dtype),
        grid_spec=pltpu.PrefetchScalarGridSpec(
            num_scalar_prefetch=0,
            grid=(Mp // tm, Np // tn, nk),
            in_specs=in_specs,
            out_specs=pl.BlockSpec((tm, tn), lambda i, j, k: (i, j)),
            scratch_shapes=scratch,
        ),
        compiler_params=pltpu.CompilerParams(
            dimension_semantics=("parallel", "parallel", "arbitrary"),
            vmem_limit_bytes=_vmem_limit(tm, tk, tn, nk, has_res, out_bytes)),
    )(*inputs)
    if (Mp, Np) != (M, N):
        out = out[:M, :N]
    return out


# ----------------------------------------------------------------------------
# Conv / pooling glue (im2col + Pallas matmul)
# ----------------------------------------------------------------------------
def _im2col(x, kh, kw, stride, pad):
    # TODO(synk): patch gathering / maxpool window extraction stay in plain JAX
    # glue (an in-kernel 3x3 conv needs (H,W,C)->(H*W,C) reshapes / strided
    # Element-offset windows whose Mosaic lowering is shape-dependent); the
    # dense compute runs in the Pallas matmul kernel on bf16 cols.
    N, H, W, C = x.shape
    xp = jnp.pad(x, ((0, 0), (pad, pad), (pad, pad), (0, 0)))
    Hp, Wp = H + 2 * pad, W + 2 * pad
    Ho = (Hp - kh) // stride + 1
    Wo = (Wp - kw) // stride + 1
    patches = []
    for i in range(kh):
        for j in range(kw):
            patches.append(xp[:, i:i + stride * (Ho - 1) + 1:stride,
                               j:j + stride * (Wo - 1) + 1:stride, :])
    cols = jnp.concatenate(patches, axis=-1)          # (N, Ho, Wo, kh*kw*C)
    return cols.reshape(N * Ho * Wo, kh * kw * C), (N, Ho, Wo)


def conv2d_bn_act(x, w_hwio, scale, shift, stride, pad, act, residual=None,
                  out_dtype=jnp.bfloat16):
    kh, kw, cin, cout = w_hwio.shape
    cols, (n, ho, wo) = _im2col(x.astype(jnp.bfloat16), kh, kw, stride, pad)
    res2d = None if residual is None else residual.reshape(n * ho * wo, cout)
    out = matmul_scale_shift(cols, w_hwio.reshape(kh * kw * cin, cout),
                             scale, shift, act=act, residual=res2d,
                             out_dtype=out_dtype)
    return out.reshape(n, ho, wo, cout)


def maxpool2d_3x3_s2_p1(x):
    N, H, W, C = x.shape
    xp = jnp.pad(x, ((0, 0), (1, 1), (1, 1), (0, 0)), constant_values=-jnp.inf)
    Ho = (H + 2 - 3) // 2 + 1
    Wo = (W + 2 - 3) // 2 + 1
    out = jnp.full((N, Ho, Wo, C), -jnp.inf, x.dtype)
    for i in range(3):
        for j in range(3):
            out = jnp.maximum(out, xp[:, i:i + 2 * (Ho - 1) + 1:2,
                                        j:j + 2 * (Wo - 1) + 1:2, :])
    return out


def basic_block(x, bp):
    s = bp["stride"]
    out = conv2d_bn_act(x, bp["w1"], bp["bn1"][0], bp["bn1"][1],
                        stride=s, pad=1, act="relu")
    if "wd" in bp:
        identity = conv2d_bn_act(x, bp["wd"], bp["bnd"][0], bp["bnd"][1],
                                 stride=s, pad=0, act="none")
    else:
        identity = x
    # conv2 + BN + residual add + ReLU fused into a single Pallas matmul epilogue.
    return conv2d_bn_act(out, bp["w2"], bp["bn2"][0], bp["bn2"][1],
                         stride=1, pad=1, act="relu", residual=identity)


def deconv_bn_relu(x, dp):
    """ConvTranspose2d(k=4, s=2, p=1) + BN + ReLU via exact sub-pixel decomposition.

    All four stride-phase 2x2 convolutions are fused into ONE Pallas matmul:
    a shared 3x3-tap im2col (the union of the four phases' 2x2 tap windows)
    multiplied by a block-sparse (9*C, 4*cout) weight, giving a lane-dense
    (N*H*W, 4*cout) output that is pixel-shuffled back to (N, 2H, 2W, cout).
    """
    # TODO(synk): sub-pixel phase mapping is derived analytically (not checked
    # in-script against lax.conv_transpose).
    N, H, W, C = x.shape
    cout = dp["cout"]
    cols, _ = _im2col(x.astype(jnp.bfloat16), 3, 3, 1, 1)          # (N*H*W, 9*C)
    out = matmul_scale_shift(cols, dp["w9"], dp["scale4"], dp["shift4"],
                             act="relu", out_dtype=jnp.bfloat16)   # (N*H*W, 4*cout)
    y = out.reshape(N, H, W, 2, 2, cout)                           # (..., a, b, cout)
    y = jnp.transpose(y, (0, 1, 3, 2, 4, 5)).reshape(N, 2 * H, 2 * W, cout)
    return y


def _fuse_deconv_phases(w_hwio_equiv, scale, shift):
    """Build the block-sparse fused weight for the 4-phase ConvTranspose matmul.

    Phase (a, b) of the sub-pixel decomposition convolves the 1-padded input
    with weight sub-grid w[a::2, b::2]; its tap (di, dj) reads input offset
    (a+di, b+dj), which lies inside the shared 3x3 tap window.
    """
    k = w_hwio_equiv.shape[0]
    assert k == 4, "sub-pixel decomposition implemented for k=4, s=2, p=1"
    C, cout = w_hwio_equiv.shape[2], w_hwio_equiv.shape[3]
    w9 = jnp.zeros((9, C, 4, cout), jnp.float32)
    for a in (0, 1):
        for b in (0, 1):
            for di in (0, 1):
                for dj in (0, 1):
                    t = (a + di) * 3 + (b + dj)          # 3x3 tap index
                    p = a * 2 + b                        # output phase index
                    w9 = w9.at[t, :, p, :].set(w_hwio_equiv[a + 2 * di, b + 2 * dj])
    return w9.reshape(9 * C, 4 * cout), jnp.tile(scale, 4), jnp.tile(shift, 4)


# ----------------------------------------------------------------------------
# Pose head wrapper (fused 1x1 conv + sigmoid + soft-argmax)
# ----------------------------------------------------------------------------
def pose_2d_head_fused(x_nhwc, w_head_hwio, b_head):
    """Heatmap head on (N, Hm, Wm, C) features -> coords (N, J, 3)."""
    # TODO(synk): exact coordinate-decoding convention (pixel-center offset /
    # normalization / score) of the upstream PedRecPose2DHead may differ
    # slightly; DSNT-style sigmoid soft-argmax is used here.
    N, Hm, Wm, C = x_nhwc.shape
    J = b_head.shape[0]
    HW = Hm * Wm
    x2 = x_nhwc.reshape(N, HW, C).astype(jnp.bfloat16)
    w = w_head_hwio.reshape(C, J).astype(jnp.bfloat16)
    b = b_head.reshape(1, J).astype(jnp.float32)
    idx = jnp.arange(HW)
    xg = ((idx % Wm).astype(jnp.float32) / Wm).reshape(HW, 1)
    yg = ((idx // Wm).astype(jnp.float32) / Hm).reshape(HW, 1)

    out = pl.pallas_call(
        _pose_head_kernel,
        out_shape=jax.ShapeDtypeStruct((N, 3, J), jnp.float32),
        grid_spec=pltpu.PrefetchScalarGridSpec(
            num_scalar_prefetch=0,
            grid=(N,),
            in_specs=[
                pl.BlockSpec((1, HW, C), lambda n: (n, 0, 0)),
                pl.BlockSpec((C, J), lambda n: (0, 0)),
                pl.BlockSpec((1, J), lambda n: (0, 0)),
                pl.BlockSpec((HW, 1), lambda n: (0, 0)),
                pl.BlockSpec((HW, 1), lambda n: (0, 0)),
            ],
            out_specs=pl.BlockSpec((1, 3, J), lambda n: (n, 0, 0)),
        ),
        compiler_params=pltpu.CompilerParams(
            dimension_semantics=("parallel",)),
    )(x2, w, b, xg, yg)
    return jnp.transpose(out, (0, 2, 1))                 # (N, J, 3): x, y, score


# ----------------------------------------------------------------------------
# Parameter init (deterministic, synthetic)
# ----------------------------------------------------------------------------
def init_params(key, cfg):
    ks = iter(jax.random.split(key, 256))

    def nrm(shape, s=0.1):
        return s * jax.random.normal(next(ks), shape, dtype=jnp.float32)

    def bn_fold(c):
        gamma = 1.0 + nrm((c,))
        beta = nrm((c,))
        mean = nrm((c,))
        var = 1.0 + jnp.abs(nrm((c,)))
        scale = gamma / jnp.sqrt(var + 1e-5)
        shift = beta - mean * scale
        return scale, shift

    def conv_hwio(cout, cin, k):
        w_oihw = nrm((cout, cin, k, k))                    # nn.Conv2d layout
        return jnp.transpose(w_oihw, (2, 3, 1, 0))          # -> HWIO

    def deconv_hwio(cin, cout, k):
        w_t = nrm((cin, cout, k, k))                       # nn.ConvTranspose2d layout
        return jnp.transpose(w_t[:, :, ::-1, ::-1], (2, 3, 0, 1))  # -> HWIO (equiv conv)

    p = {}
    stem_c = cfg["stem"]
    p["stem_w"] = conv_hwio(stem_c, 3, 7)
    p["stem_scale"], p["stem_shift"] = bn_fold(stem_c)

    inplanes = stem_c
    stages = []
    for planes, nblocks, stride in zip(cfg["planes"], cfg["layers"], (1, 2, 2, 2)):
        blocks = []
        for b in range(nblocks):
            s = stride if b == 0 else 1
            bp = {"stride": s,
                  "w1": conv_hwio(planes, inplanes, 3), "bn1": bn_fold(planes),
                  "w2": conv_hwio(planes, planes, 3), "bn2": bn_fold(planes)}
            if s != 1 or inplanes != planes:
                bp["wd"] = conv_hwio(planes, inplanes, 1)
                bp["bnd"] = bn_fold(planes)
            inplanes = planes
            blocks.append(bp)
        stages.append(blocks)
    p["stages"] = stages

    dch = cfg["deconv_channels"]
    dec = []
    cin = inplanes
    for _ in range(cfg["deconv_layers"]):
        w_eq = deconv_hwio(cin, dch, cfg["deconv_kernel"])
        scale, shift = bn_fold(dch)
        w9, scale4, shift4 = _fuse_deconv_phases(w_eq, scale, shift)
        dec.append({"w9": w9, "scale4": scale4, "shift4": shift4, "cout": dch})
        cin = dch
    p["deconv"] = dec

    J = cfg["num_joints"]
    p["head_w"] = conv_hwio(J, dch, 1)
    p["head_b"] = nrm((J,))
    return p


# ----------------------------------------------------------------------------
# Full forward (PedRecNet.forward)
# ----------------------------------------------------------------------------
def pedrec_forward(params, x_nchw):
    x = jnp.transpose(x_nchw.astype(jnp.float32), (0, 2, 3, 1))   # NCHW -> NHWC

    # ResNetHeadless feature extractor (bf16 activations between layers)
    x = conv2d_bn_act(x, params["stem_w"], params["stem_scale"],
                      params["stem_shift"], stride=2, pad=3, act="relu")
    x = maxpool2d_3x3_s2_p1(x)
    for blocks in params["stages"]:
        for bp in blocks:
            x = basic_block(x, bp)

    # PedRecConvTransposeBase (shared deconv head, num_heads=1): 4-phase fused.
    for dp in params["deconv"]:
        x = deconv_bn_relu(x, dp)

    # PedRecPose2DHead: fused 1x1 conv -> sigmoid -> soft-argmax.
    pose_coords_2d = pose_2d_head_fused(x, params["head_w"], params["head_b"])
    return pose_coords_2d


if __name__ == "__main__":
    key = jax.random.PRNGKey(0)
    pkey, xkey = jax.random.split(key)
    cfg = dict(stem=16, planes=(16, 32, 64, 128), layers=(1, 1, 1, 1),
               deconv_channels=32, deconv_layers=3, deconv_kernel=4, num_joints=8)
    params = init_params(pkey, cfg)

    x = jax.random.normal(xkey, (2, 3, 64, 64), dtype=jnp.float32)   # NCHW input
    fwd = jax.jit(lambda inp: pedrec_forward(params, inp))
    coords = jax.block_until_ready(fwd(x))

    assert coords.shape == (2, cfg["num_joints"], 3), coords.shape
    assert bool(jnp.all(jnp.isfinite(coords)))
    print("KERNEL_OK")
</pallas_src>

<mosaic_0001>
module attributes {stable_mosaic.version = 11 : i64} {
  func.func @_matmul_kernel(%arg0: i32, %arg1: i32, %arg2: i32, %arg3: memref<512x256xbf16, #tpu.memory_space<vmem>>, %arg4: memref<256x16xbf16, #tpu.memory_space<vmem>>, %arg5: memref<2x16xf32, #tpu.memory_space<vmem>>, %arg6: memref<512x16xbf16, #tpu.memory_space<vmem>>) attributes {dimension_semantics = [#tpu.dimension_semantics<parallel>, #tpu.dimension_semantics<parallel>, #tpu.dimension_semantics<arbitrary>], iteration_bounds = array<i64: 4, 1, 1>, scalar_prefetch = 0 : i64, scratch_operands = 0 : i64, tpu.core_type = #tpu.core_type<tc>, window_params = [{transform_indices = @transform_0, window_bounds = array<i64: 512, 256>}, {transform_indices = @transform_1, window_bounds = array<i64: 256, 16>}, {transform_indices = @transform_2, window_bounds = array<i64: 2, 16>}, {transform_indices = @transform_3, window_bounds = array<i64: 512, 16>}]} {
    %c0 = arith.constant 0 : index
    %c0_0 = arith.constant 0 : index
    %0 = vector.load %arg3[%c0, %c0_0] : memref<512x256xbf16, #tpu.memory_space<vmem>>, vector<512x256xbf16>
    %c0_1 = arith.constant 0 : index
    %c0_2 = arith.constant 0 : index
    %1 = vector.load %arg4[%c0_1, %c0_2] : memref<256x16xbf16, #tpu.memory_space<vmem>>, vector<256x16xbf16>
    %cst = arith.constant dense<0.000000e+00> : vector<512x16xf32>
    %2 = tpu.matmul %0, %1, %cst {dimension_numbers = #tpu.dot_dimension_numbers<[1], [0], [0], [1], [0, 0, 1, 1], [], []>} : vector<512x256xbf16>, vector<256x16xbf16>, vector<512x16xf32> -> vector<512x16xf32>
    %c0_3 = arith.constant 0 : index
    %c0_4 = arith.constant 0 : index
    %3 = vector.load %arg5[%c0_3, %c0_4] : memref<2x16xf32, #tpu.memory_space<vmem>>, vector<1x16xf32>
    %4 = vector.broadcast %3 : vector<1x16xf32> to vector<512x16xf32>
    %5 = arith.mulf %2, %4 : vector<512x16xf32>
    %c1 = arith.constant 1 : index
    %c0_5 = arith.constant 0 : index
    %6 = vector.load %arg5[%c1, %c0_5] : memref<2x16xf32, #tpu.memory_space<vmem>>, vector<1x16xf32>
    %7 = vector.broadcast %6 : vector<1x16xf32> to vector<512x16xf32>
    %8 = arith.addf %5, %7 : vector<512x16xf32>
    %cst_6 = arith.constant 0.000000e+00 : f32
    %9 = vector.broadcast %cst_6 : f32 to vector<512x16xf32>
    %10 = arith.maximumf %8, %9 : vector<512x16xf32>
    %11 = arith.truncf %10 : vector<512x16xf32> to vector<512x16xbf16>
    %c0_7 = arith.constant 0 : index
    %c0_8 = arith.constant 0 : index
    %12 = vector.load %arg6[%c0_7, %c0_8] : memref<512x16xbf16, #tpu.memory_space<vmem>>, vector<512x16xbf16>
    tpu.vector_store %arg6[%c0_7, %c0_8], %11 {strides = array<i32>} : memref<512x16xbf16, #tpu.memory_space<vmem>>, vector<512x16xbf16>,
    return
  }
  func.func @transform_0(%arg0: i32, %arg1: i32, %arg2: i32) -> (i32, i32) {
    %c0_i32 = arith.constant 0 : i32
    return %arg0, %arg2 : i32, i32
  }
  func.func @transform_1(%arg0: i32, %arg1: i32, %arg2: i32) -> (i32, i32) {
    %c0_i32 = arith.constant 0 : i32
    return %arg2, %arg1 : i32, i32
  }
  func.func @transform_2(%arg0: i32, %arg1: i32, %arg2: i32) -> (i32, i32) {
    %c0_i32 = arith.constant 0 : i32
    %c0_i32_0 = arith.constant 0 : i32
    return %c0_i32, %arg1 : i32, i32
  }
  func.func @transform_3(%arg0: i32, %arg1: i32, %arg2: i32) -> (i32, i32) {
    %c0_i32 = arith.constant 0 : i32
    return %arg0, %arg1 : i32, i32
  }
}

module attributes {stable_mosaic.version = 11 : i64} {
  func.func @_matmul_kernel(%arg0: i32, %arg1: i32, %arg2: i32, %arg3: memref<512x256xbf16, #tpu.memory_space<vmem>>, %arg4: memref<256x16xbf16, #tpu.memory_space<vmem>>, %arg5: memref<2x16xf32, #tpu.memory_space<vmem>>, %arg6: memref<512x16xbf16, #tpu.memory_space<vmem>>) attributes {dimension_semantics = [#tpu.dimension_semantics<parallel>, #tpu.dimension_semantics<parallel>, #tpu.dimension_semantics<arbitrary>], iteration_bounds = array<i64: 1, 1, 1>, scalar_prefetch = 0 : i64, scratch_operands = 0 : i64, tpu.core_type = #tpu.core_type<tc>, window_params = [{transform_indices = @transform_0, window_bounds = array<i64: 512, 256>}, {transform_indices = @transform_1, window_bounds = array<i64: 256, 16>}, {transform_indices = @transform_2, window_bounds = array<i64: 2, 16>}, {transform_indices = @transform_3, window_bounds = array<i64: 512, 16>}]} {
    %c0 = arith.constant 0 : index
    %c0_0 = arith.constant 0 : index
    %0 = vector.load %arg3[%c0, %c0_0] : memref<512x256xbf16, #tpu.memory_space<vmem>>, vector<512x256xbf16>
    %c0_1 = arith.constant 0 : index
    %c0_2 = arith.constant 0 : index
    %1 = vector.load %arg4[%c0_1, %c0_2] : memref<256x16xbf16, #tpu.memory_space<vmem>>, vector<256x16xbf16>
    %cst = arith.constant dense<0.000000e+00> : vector<512x16xf32>
    %2 = tpu.matmul %0, %1, %cst {dimension_numbers = #tpu.dot_dimension_numbers<[1], [0], [0], [1], [0, 0, 1, 1], [], []>} : vector<512x256xbf16>, vector<256x16xbf16>, vector<512x16xf32> -> vector<512x16xf32>
    %c0_3 = arith.constant 0 : index
    %c0_4 = arith.constant 0 : index
    %3 = vector.load %arg5[%c0_3, %c0_4] : memref<2x16xf32, #tpu.memory_space<vmem>>, vector<1x16xf32>
    %4 = vector.broadcast %3 : vector<1x16xf32> to vector<512x16xf32>
    %5 = arith.mulf %2, %4 : vector<512x16xf32>
    %c1 = arith.constant 1 : index
    %c0_5 = arith.constant 0 : index
    %6 = vector.load %arg5[%c1, %c0_5] : memref<2x16xf32, #tpu.memory_space<vmem>>, vector<1x16xf32>
    %7 = vector.broadcast %6 : vector<1x16xf32> to vector<512x16xf32>
    %8 = arith.addf %5, %7 : vector<512x16xf32>
    %cst_6 = arith.constant 0.000000e+00 : f32
    %9 = vector.broadcast %cst_6 : f32 to vector<512x16xf32>
    %10 = arith.maximumf %8, %9 : vector<512x16xf32>
    %11 = arith.truncf %10 : vector<512x16xf32> to vector<512x16xbf16>
    %c0_7 = arith.constant 0 : index
    %c0_8 = arith.constant 0 : index
    %12 = vector.load %arg6[%c0_7, %c0_8] : memref<512x16xbf16, #tpu.memory_space<vmem>>, vector<512x16xbf16>
    tpu.vector_store %arg6[%c0_7, %c0_8], %11 {strides = array<i32>} : memref<512x16xbf16, #tpu.memory_space<vmem>>, vector<512x16xbf16>,
    return
  }
  func.func @transform_0(%arg0: i32, %arg1: i32, %arg2: i32) -> (i32, i32) {
    %c0_i32 = arith.constant 0 : i32
    return %arg0, %arg2 : i32, i32
  }
  func.func @transform_1(%arg0: i32, %arg1: i32, %arg2: i32) -> (i32, i32) {
    %c0_i32 = arith.constant 0 : i32
    return %arg2, %arg1 : i32, i32
  }
  func.func @transform_2(%arg0: i32, %arg1: i32, %arg2: i32) -> (i32, i32) {
    %c0_i32 = arith.constant 0 : i32
    %c0_i32_0 = arith.constant 0 : i32
    return %c0_i32, %arg1 : i32, i32
  }
  func.func @transform_3(%arg0: i32, %arg1: i32, %arg2: i32) -> (i32, i32) {
    %c0_i32 = arith.constant 0 : i32
    return %arg0, %arg1 : i32, i32
  }
}

module attributes {stable_mosaic.version = 11 : i64} {
  func.func @_matmul_kernel(%arg0: i32, %arg1: i32, %arg2: i32, %arg3: memref<512x256xbf16, #tpu.memory_space<vmem>>, %arg4: memref<256x16xbf16, #tpu.memory_space<vmem>>, %arg5: memref<2x16xf32, #tpu.memory_space<vmem>>, %arg6: memref<512x16xbf16, #tpu.memory_space<vmem>>, %arg7: memref<512x16xbf16, #tpu.memory_space<vmem>>) attributes {dimension_semantics = [#tpu.dimension_semantics<parallel>, #tpu.dimension_semantics<parallel>, #tpu.dimension_semantics<arbitrary>], iteration_bounds = array<i64: 1, 1, 1>, scalar_prefetch = 0 : i64, scratch_operands = 0 : i64, tpu.core_type = #tpu.core_type<tc>, window_params = [{transform_indices = @transform_0, window_bounds = array<i64: 512, 256>}, {transform_indices = @transform_1, window_bounds = array<i64: 256, 16>}, {transform_indices = @transform_2, window_bounds = array<i64: 2, 16>}, {transform_indices = @transform_3, window_bounds = array<i64: 512, 16>}, {transform_indices = @transform_4, window_bounds = array<i64: 512, 16>}]} {
    %c0 = arith.constant 0 : index
    %c0_0 = arith.constant 0 : index
    %0 = vector.load %arg3[%c0, %c0_0] : memref<512x256xbf16, #tpu.memory_space<vmem>>, vector<512x256xbf16>
    %c0_1 = arith.constant 0 : index
    %c0_2 = arith.constant 0 : index
    %1 = vector.load %arg4[%c0_1, %c0_2] : memref<256x16xbf16, #tpu.memory_space<vmem>>, vector<256x16xbf16>
    %cst = arith.constant dense<0.000000e+00> : vector<512x16xf32>
    %2 = tpu.matmul %0, %1, %cst {dimension_numbers = #tpu.dot_dimension_numbers<[1], [0], [0], [1], [0, 0, 1, 1], [], []>} : vector<512x256xbf16>, vector<256x16xbf16>, vector<512x16xf32> -> vector<512x16xf32>
    %c0_3 = arith.constant 0 : index
    %c0_4 = arith.constant 0 : index
    %3 = vector.load %arg5[%c0_3, %c0_4] : memref<2x16xf32, #tpu.memory_space<vmem>>, vector<1x16xf32>
    %4 = vector.broadcast %3 : vector<1x16xf32> to vector<512x16xf32>
    %5 = arith.mulf %2, %4 : vector<512x16xf32>
    %c1 = arith.constant 1 : index
    %c0_5 = arith.constant 0 : index
    %6 = vector.load %arg5[%c1, %c0_5] : memref<2x16xf32, #tpu.memory_space<vmem>>, vector<1x16xf32>
    %7 = vector.broadcast %6 : vector<1x16xf32> to vector<512x16xf32>
    %8 = arith.addf %5, %7 : vector<512x16xf32>
    %c0_6 = arith.constant 0 : index
    %c0_7 = arith.constant 0 : index
    %9 = vector.load %arg6[%c0_6, %c0_7] : memref<512x16xbf16, #tpu.memory_space<vmem>>, vector<512x16xbf16>
    %10 = arith.extf %9 : vector<512x16xbf16> to vector<512x16xf32>
    %11 = arith.addf %8, %10 : vector<512x16xf32>
    %cst_8 = arith.constant 0.000000e+00 : f32
    %12 = vector.broadcast %cst_8 : f32 to vector<512x16xf32>
    %13 = arith.maximumf %11, %12 : vector<512x16xf32>
    %14 = arith.truncf %13 : vector<512x16xf32> to vector<512x16xbf16>
    %c0_9 = arith.constant 0 : index
    %c0_10 = arith.constant 0 : index
    %15 = vector.load %arg7[%c0_9, %c0_10] : memref<512x16xbf16, #tpu.memory_space<vmem>>, vector<512x16xbf16>
    tpu.vector_store %arg7[%c0_9, %c0_10], %14 {strides = array<i32>} : memref<512x16xbf16, #tpu.memory_space<vmem>>, vector<512x16xbf16>,
    return
  }
  func.func @transform_0(%arg0: i32, %arg1: i32, %arg2: i32) -> (i32, i32) {
    %c0_i32 = arith.constant 0 : i32
    return %arg0, %arg2 : i32, i32
  }
  func.func @transform_1(%arg0: i32, %arg1: i32, %arg2: i32) -> (i32, i32) {
    %c0_i32 = arith.constant 0 : i32
    return %arg2, %arg1 : i32, i32
  }
  func.func @transform_2(%arg0: i32, %arg1: i32, %arg2: i32) -> (i32, i32) {
    %c0_i32 = arith.constant 0 : i32
    %c0_i32_0 = arith.constant 0 : i32
    return %c0_i32, %arg1 : i32, i32
  }
  func.func @transform_3(%arg0: i32, %arg1: i32, %arg2: i32) -> (i32, i32) {
    %c0_i32 = arith.constant 0 : i32
    return %arg0, %arg1 : i32, i32
  }
  func.func @transform_4(%arg0: i32, %arg1: i32, %arg2: i32) -> (i32, i32) {
    %c0_i32 = arith.constant 0 : i32
    return %arg0, %arg1 : i32, i32
  }
}

module attributes {stable_mosaic.version = 11 : i64} {
  func.func @_matmul_kernel(%arg0: i32, %arg1: i32, %arg2: i32, %arg3: memref<128x256xbf16, #tpu.memory_space<vmem>>, %arg4: memref<256x32xbf16, #tpu.memory_space<vmem>>, %arg5: memref<2x32xf32, #tpu.memory_space<vmem>>, %arg6: memref<128x32xbf16, #tpu.memory_space<vmem>>) attributes {dimension_semantics = [#tpu.dimension_semantics<parallel>, #tpu.dimension_semantics<parallel>, #tpu.dimension_semantics<arbitrary>], iteration_bounds = array<i64: 1, 1, 1>, scalar_prefetch = 0 : i64, scratch_operands = 0 : i64, tpu.core_type = #tpu.core_type<tc>, window_params = [{transform_indices = @transform_0, window_bounds = array<i64: 128, 256>}, {transform_indices = @transform_1, window_bounds = array<i64: 256, 32>}, {transform_indices = @transform_2, window_bounds = array<i64: 2, 32>}, {transform_indices = @transform_3, window_bounds = array<i64: 128, 32>}]} {
    %c0 = arith.constant 0 : index
    %c0_0 = arith.constant 0 : index
    %0 = vector.load %arg3[%c0, %c0_0] : memref<128x256xbf16, #tpu.memory_space<vmem>>, vector<128x256xbf16>
    %c0_1 = arith.constant 0 : index
    %c0_2 = arith.constant 0 : index
    %1 = vector.load %arg4[%c0_1, %c0_2] : memref<256x32xbf16, #tpu.memory_space<vmem>>, vector<256x32xbf16>
    %cst = arith.constant dense<0.000000e+00> : vector<128x32xf32>
    %2 = tpu.matmul %0, %1, %cst {dimension_numbers = #tpu.dot_dimension_numbers<[1], [0], [0], [1], [0, 0, 1, 1], [], []>} : vector<128x256xbf16>, vector<256x32xbf16>, vector<128x32xf32> -> vector<128x32xf32>
    %c0_3 = arith.constant 0 : index
    %c0_4 = arith.constant 0 : index
    %3 = vector.load %arg5[%c0_3, %c0_4] : memref<2x32xf32, #tpu.memory_space<vmem>>, vector<1x32xf32>
    %4 = vector.broadcast %3 : vector<1x32xf32> to vector<128x32xf32>
    %5 = arith.mulf %2, %4 : vector<128x32xf32>
    %c1 = arith.constant 1 : index
    %c0_5 = arith.constant 0 : index
    %6 = vector.load %arg5[%c1, %c0_5] : memref<2x32xf32, #tpu.memory_space<vmem>>, vector<1x32xf32>
    %7 = vector.broadcast %6 : vector<1x32xf32> to vector<128x32xf32>
    %8 = arith.addf %5, %7 : vector<128x32xf32>
    %cst_6 = arith.constant 0.000000e+00 : f32
    %9 = vector.broadcast %cst_6 : f32 to vector<128x32xf32>
    %10 = arith.maximumf %8, %9 : vector<128x32xf32>
    %11 = arith.truncf %10 : vector<128x32xf32> to vector<128x32xbf16>
    %c0_7 = arith.constant 0 : index
    %c0_8 = arith.constant 0 : index
    %12 = vector.load %arg6[%c0_7, %c0_8] : memref<128x32xbf16, #tpu.memory_space<vmem>>, vector<128x32xbf16>
    tpu.vector_store %arg6[%c0_7, %c0_8], %11 {strides = array<i32>} : memref<128x32xbf16, #tpu.memory_space<vmem>>, vector<128x32xbf16>,
    return
  }
  func.func @transform_0(%arg0: i32, %arg1: i32, %arg2: i32) -> (i32, i32) {
    %c0_i32 = arith.constant 0 : i32
    return %arg0, %arg2 : i32, i32
  }
  func.func @transform_1(%arg0: i32, %arg1: i32, %arg2: i32) -> (i32, i32) {
    %c0_i32 = arith.constant 0 : i32
    return %arg2, %arg1 : i32, i32
  }
  func.func @transform_2(%arg0: i32, %arg1: i32, %arg2: i32) -> (i32, i32) {
    %c0_i32 = arith.constant 0 : i32
    %c0_i32_0 = arith.constant 0 : i32
    return %c0_i32, %arg1 : i32, i32
  }
  func.func @transform_3(%arg0: i32, %arg1: i32, %arg2: i32) -> (i32, i32) {
    %c0_i32 = arith.constant 0 : i32
    return %arg0, %arg1 : i32, i32
  }
}

module attributes {stable_mosaic.version = 11 : i64} {
  func.func @_matmul_kernel(%arg0: i32, %arg1: i32, %arg2: i32, %arg3: memref<128x128xbf16, #tpu.memory_space<vmem>>, %arg4: memref<128x32xbf16, #tpu.memory_space<vmem>>, %arg5: memref<2x32xf32, #tpu.memory_space<vmem>>, %arg6: memref<128x32xbf16, #tpu.memory_space<vmem>>) attributes {dimension_semantics = [#tpu.dimension_semantics<parallel>, #tpu.dimension_semantics<parallel>, #tpu.dimension_semantics<arbitrary>], iteration_bounds = array<i64: 1, 1, 1>, scalar_prefetch = 0 : i64, scratch_operands = 0 : i64, tpu.core_type = #tpu.core_type<tc>, window_params = [{transform_indices = @transform_0, window_bounds = array<i64: 128, 128>}, {transform_indices = @transform_1, window_bounds = array<i64: 128, 32>}, {transform_indices = @transform_2, window_bounds = array<i64: 2, 32>}, {transform_indices = @transform_3, window_bounds = array<i64: 128, 32>}]} {
    %c0 = arith.constant 0 : index
    %c0_0 = arith.constant 0 : index
    %0 = vector.load %arg3[%c0, %c0_0] : memref<128x128xbf16, #tpu.memory_space<vmem>>, vector<128x128xbf16>
    %c0_1 = arith.constant 0 : index
    %c0_2 = arith.constant 0 : index
    %1 = vector.load %arg4[%c0_1, %c0_2] : memref<128x32xbf16, #tpu.memory_space<vmem>>, vector<128x32xbf16>
    %cst = arith.constant dense<0.000000e+00> : vector<128x32xf32>
    %2 = tpu.matmul %0, %1, %cst {dimension_numbers = #tpu.dot_dimension_numbers<[1], [0], [0], [1], [0, 0, 1, 1], [], []>} : vector<128x128xbf16>, vector<128x32xbf16>, vector<128x32xf32> -> vector<128x32xf32>
    %c0_3 = arith.constant 0 : index
    %c0_4 = arith.constant 0 : index
    %3 = vector.load %arg5[%c0_3, %c0_4] : memref<2x32xf32, #tpu.memory_space<vmem>>, vector<1x32xf32>
    %4 = vector.broadcast %3 : vector<1x32xf32> to vector<128x32xf32>
    %5 = arith.mulf %2, %4 : vector<128x32xf32>
    %c1 = arith.constant 1 : index
    %c0_5 = arith.constant 0 : index
    %6 = vector.load %arg5[%c1, %c0_5] : memref<2x32xf32, #tpu.memory_space<vmem>>, vector<1x32xf32>
    %7 = vector.broadcast %6 : vector<1x32xf32> to vector<128x32xf32>
    %8 = arith.addf %5, %7 : vector<128x32xf32>
    %9 = arith.truncf %8 : vector<128x32xf32> to vector<128x32xbf16>
    %c0_6 = arith.constant 0 : index
    %c0_7 = arith.constant 0 : index
    %10 = vector.load %arg6[%c0_6, %c0_7] : memref<128x32xbf16, #tpu.memory_space<vmem>>, vector<128x32xbf16>
    tpu.vector_store %arg6[%c0_6, %c0_7], %9 {strides = array<i32>} : memref<128x32xbf16, #tpu.memory_space<vmem>>, vector<128x32xbf16>,
    return
  }
  func.func @transform_0(%arg0: i32, %arg1: i32, %arg2: i32) -> (i32, i32) {
    %c0_i32 = arith.constant 0 : i32
    return %arg0, %arg2 : i32, i32
  }
  func.func @transform_1(%arg0: i32, %arg1: i32, %arg2: i32) -> (i32, i32) {
    %c0_i32 = arith.constant 0 : i32
    return %arg2, %arg1 : i32, i32
  }
  func.func @transform_2(%arg0: i32, %arg1: i32, %arg2: i32) -> (i32, i32) {
    %c0_i32 = arith.constant 0 : i32
    %c0_i32_0 = arith.constant 0 : i32
    return %c0_i32, %arg1 : i32, i32
  }
  func.func @transform_3(%arg0: i32, %arg1: i32, %arg2: i32) -> (i32, i32) {
    %c0_i32 = arith.constant 0 : i32
    return %arg0, %arg1 : i32, i32
  }
}

module attributes {stable_mosaic.version = 11 : i64} {
  func.func @_matmul_kernel(%arg0: i32, %arg1: i32, %arg2: i32, %arg3: memref<128x384xbf16, #tpu.memory_space<vmem>>, %arg4: memref<384x32xbf16, #tpu.memory_space<vmem>>, %arg5: memref<2x32xf32, #tpu.memory_space<vmem>>, %arg6: memref<128x32xbf16, #tpu.memory_space<vmem>>, %arg7: memref<128x32xbf16, #tpu.memory_space<vmem>>) attributes {dimension_semantics = [#tpu.dimension_semantics<parallel>, #tpu.dimension_semantics<parallel>, #tpu.dimension_semantics<arbitrary>], iteration_bounds = array<i64: 1, 1, 1>, scalar_prefetch = 0 : i64, scratch_operands = 0 : i64, tpu.core_type = #tpu.core_type<tc>, window_params = [{transform_indices = @transform_0, window_bounds = array<i64: 128, 384>}, {transform_indices = @transform_1, window_bounds = array<i64: 384, 32>}, {transform_indices = @transform_2, window_bounds = array<i64: 2, 32>}, {transform_indices = @transform_3, window_bounds = array<i64: 128, 32>}, {transform_indices = @transform_4, window_bounds = array<i64: 128, 32>}]} {
    %c0 = arith.constant 0 : index
    %c0_0 = arith.constant 0 : index
    %0 = vector.load %arg3[%c0, %c0_0] : memref<128x384xbf16, #tpu.memory_space<vmem>>, vector<128x384xbf16>
    %c0_1 = arith.constant 0 : index
    %c0_2 = arith.constant 0 : index
    %1 = vector.load %arg4[%c0_1, %c0_2] : memref<384x32xbf16, #tpu.memory_space<vmem>>, vector<384x32xbf16>
    %cst = arith.constant dense<0.000000e+00> : vector<128x32xf32>
    %2 = tpu.matmul %0, %1, %cst {dimension_numbers = #tpu.dot_dimension_numbers<[1], [0], [0], [1], [0, 0, 1, 1], [], []>} : vector<128x384xbf16>, vector<384x32xbf16>, vector<128x32xf32> -> vector<128x32xf32>
    %c0_3 = arith.constant 0 : index
    %c0_4 = arith.constant 0 : index
    %3 = vector.load %arg5[%c0_3, %c0_4] : memref<2x32xf32, #tpu.memory_space<vmem>>, vector<1x32xf32>
    %4 = vector.broadcast %3 : vector<1x32xf32> to vector<128x32xf32>
    %5 = arith.mulf %2, %4 : vector<128x32xf32>
    %c1 = arith.constant 1 : index
    %c0_5 = arith.constant 0 : index
    %6 = vector.load %arg5[%c1, %c0_5] : memref<2x32xf32, #tpu.memory_space<vmem>>, vector<1x32xf32>
    %7 = vector.broadcast %6 : vector<1x32xf32> to vector<128x32xf32>
    %8 = arith.addf %5, %7 : vector<128x32xf32>
    %c0_6 = arith.constant 0 : index
    %c0_7 = arith.constant 0 : index
    %9 = vector.load %arg6[%c0_6, %c0_7] : memref<128x32xbf16, #tpu.memory_space<vmem>>, vector<128x32xbf16>
    %10 = arith.extf %9 : vector<128x32xbf16> to vector<128x32xf32>
    %11 = arith.addf %8, %10 : vector<128x32xf32>
    %cst_8 = arith.constant 0.000000e+00 : f32
    %12 = vector.broadcast %cst_8 : f32 to vector<128x32xf32>
    %13 = arith.maximumf %11, %12 : vector<128x32xf32>
    %14 = arith.truncf %13 : vector<128x32xf32> to vector<128x32xbf16>
    %c0_9 = arith.constant 0 : index
    %c0_10 = arith.constant 0 : index
    %15 = vector.load %arg7[%c0_9, %c0_10] : memref<128x32xbf16, #tpu.memory_space<vmem>>, vector<128x32xbf16>
    tpu.vector_store %arg7[%c0_9, %c0_10], %14 {strides = array<i32>} : memref<128x32xbf16, #tpu.memory_space<vmem>>, vector<128x32xbf16>,
    return
  }
  func.func @transform_0(%arg0: i32, %arg1: i32, %arg2: i32) -> (i32, i32) {
    %c0_i32 = arith.constant 0 : i32
    return %arg0, %arg2 : i32, i32
  }
  func.func @transform_1(%arg0: i32, %arg1: i32, %arg2: i32) -> (i32, i32) {
    %c0_i32 = arith.constant 0 : i32
    return %arg2, %arg1 : i32, i32
  }
  func.func @transform_2(%arg0: i32, %arg1: i32, %arg2: i32) -> (i32, i32) {
    %c0_i32 = arith.constant 0 : i32
    %c0_i32_0 = arith.constant 0 : i32
    return %c0_i32, %arg1 : i32, i32
  }
  func.func @transform_3(%arg0: i32, %arg1: i32, %arg2: i32) -> (i32, i32) {
    %c0_i32 = arith.constant 0 : i32
    return %arg0, %arg1 : i32, i32
  }
  func.func @transform_4(%arg0: i32, %arg1: i32, %arg2: i32) -> (i32, i32) {
    %c0_i32 = arith.constant 0 : i32
    return %arg0, %arg1 : i32, i32
  }
}

module attributes {stable_mosaic.version = 11 : i64} {
  func.func @_matmul_kernel(%arg0: i32, %arg1: i32, %arg2: i32, %arg3: memref<32x384xbf16, #tpu.memory_space<vmem>>, %arg4: memref<384x64xbf16, #tpu.memory_space<vmem>>, %arg5: memref<2x64xf32, #tpu.memory_space<vmem>>, %arg6: memref<32x64xbf16, #tpu.memory_space<vmem>>) attributes {dimension_semantics = [#tpu.dimension_semantics<parallel>, #tpu.dimension_semantics<parallel>, #tpu.dimension_semantics<arbitrary>], iteration_bounds = array<i64: 1, 1, 1>, scalar_prefetch = 0 : i64, scratch_operands = 0 : i64, tpu.core_type = #tpu.core_type<tc>, window_params = [{transform_indices = @transform_0, window_bounds = array<i64: 32, 384>}, {transform_indices = @transform_1, window_bounds = array<i64: 384, 64>}, {transform_indices = @transform_2, window_bounds = array<i64: 2, 64>}, {transform_indices = @transform_3, window_bounds = array<i64: 32, 64>}]} {
    %c0 = arith.constant 0 : index
    %c0_0 = arith.constant 0 : index
    %0 = vector.load %arg3[%c0, %c0_0] : memref<32x384xbf16, #tpu.memory_space<vmem>>, vector<32x384xbf16>
    %c0_1 = arith.constant 0 : index
    %c0_2 = arith.constant 0 : index
    %1 = vector.load %arg4[%c0_1, %c0_2] : memref<384x64xbf16, #tpu.memory_space<vmem>>, vector<384x64xbf16>
    %cst = arith.constant dense<0.000000e+00> : vector<32x64xf32>
    %2 = tpu.matmul %0, %1, %cst {dimension_numbers = #tpu.dot_dimension_numbers<[1], [0], [0], [1], [0, 0, 1, 1], [], []>} : vector<32x384xbf16>, vector<384x64xbf16>, vector<32x64xf32> -> vector<32x64xf32>
    %c0_3 = arith.constant 0 : index
    %c0_4 = arith.constant 0 : index
    %3 = vector.load %arg5[%c0_3, %c0_4] : memref<2x64xf32, #tpu.memory_space<vmem>>, vector<1x64xf32>
    %4 = vector.broadcast %3 : vector<1x64xf32> to vector<32x64xf32>
    %5 = arith.mulf %2, %4 : vector<32x64xf32>
    %c1 = arith.constant 1 : index
    %c0_5 = arith.constant 0 : index
    %6 = vector.load %arg5[%c1, %c0_5] : memref<2x64xf32, #tpu.memory_space<vmem>>, vector<1x64xf32>
    %7 = vector.broadcast %6 : vector<1x64xf32> to vector<32x64xf32>
    %8 = arith.addf %5, %7 : vector<32x64xf32>
    %cst_6 = arith.constant 0.000000e+00 : f32
    %9 = vector.broadcast %cst_6 : f32 to vector<32x64xf32>
    %10 = arith.maximumf %8, %9 : vector<32x64xf32>
    %11 = arith.truncf %10 : vector<32x64xf32> to vector<32x64xbf16>
    %c0_7 = arith.constant 0 : index
    %c0_8 = arith.constant 0 : index
    %12 = vector.load %arg6[%c0_7, %c0_8] : memref<32x64xbf16, #tpu.memory_space<vmem>>, vector<32x64xbf16>
    tpu.vector_store %arg6[%c0_7, %c0_8], %11 {strides = array<i32>} : memref<32x64xbf16, #tpu.memory_space<vmem>>, vector<32x64xbf16>,
    return
  }
  func.func @transform_0(%arg0: i32, %arg1: i32, %arg2: i32) -> (i32, i32) {
    %c0_i32 = arith.constant 0 : i32
    return %arg0, %arg2 : i32, i32
  }
  func.func @transform_1(%arg0: i32, %arg1: i32, %arg2: i32) -> (i32, i32) {
    %c0_i32 = arith.constant 0 : i32
    return %arg2, %arg1 : i32, i32
  }
  func.func @transform_2(%arg0: i32, %arg1: i32, %arg2: i32) -> (i32, i32) {
    %c0_i32 = arith.constant 0 : i32
    %c0_i32_0 = arith.constant 0 : i32
    return %c0_i32, %arg1 : i32, i32
  }
  func.func @transform_3(%arg0: i32, %arg1: i32, %arg2: i32) -> (i32, i32) {
    %c0_i32 = arith.constant 0 : i32
    return %arg0, %arg1 : i32, i32
  }
}

module attributes {stable_mosaic.version = 11 : i64} {
  func.func @_matmul_kernel(%arg0: i32, %arg1: i32, %arg2: i32, %arg3: memref<32x640xbf16, #tpu.memory_space<vmem>>, %arg4: memref<640x64xbf16, #tpu.memory_space<vmem>>, %arg5: memref<2x64xf32, #tpu.memory_space<vmem>>, %arg6: memref<32x64xbf16, #tpu.memory_space<vmem>>, %arg7: memref<32x64xbf16, #tpu.memory_space<vmem>>) attributes {dimension_semantics = [#tpu.dimension_semantics<parallel>, #tpu.dimension_semantics<parallel>, #tpu.dimension_semantics<arbitrary>], iteration_bounds = array<i64: 1, 1, 1>, scalar_prefetch = 0 : i64, scratch_operands = 0 : i64, tpu.core_type = #tpu.core_type<tc>, window_params = [{transform_indices = @transform_0, window_bounds = array<i64: 32, 640>}, {transform_indices = @transform_1, window_bounds = array<i64: 640, 64>}, {transform_indices = @transform_2, window_bounds = array<i64: 2, 64>}, {transform_indices = @transform_3, window_bounds = array<i64: 32, 64>}, {transform_indices = @transform_4, window_bounds = array<i64: 32, 64>}]} {
    %c0 = arith.constant 0 : index
    %c0_0 = arith.constant 0 : index
    %0 = vector.load %arg3[%c0, %c0_0] : memref<32x640xbf16, #tpu.memory_space<vmem>>, vector<32x640xbf16>
    %c0_1 = arith.constant 0 : index
    %c0_2 = arith.constant 0 : index
    %1 = vector.load %arg4[%c0_1, %c0_2] : memref<640x64xbf16, #tpu.memory_space<vmem>>, vector<640x64xbf16>
    %cst = arith.constant dense<0.000000e+00> : vector<32x64xf32>
    %2 = tpu.matmul %0, %1, %cst {dimension_numbers = #tpu.dot_dimension_numbers<[1], [0], [0], [1], [0, 0, 1, 1], [], []>} : vector<32x640xbf16>, vector<640x64xbf16>, vector<32x64xf32> -> vector<32x64xf32>
    %c0_3 = arith.constant 0 : index
    %c0_4 = arith.constant 0 : index
    %3 = vector.load %arg5[%c0_3, %c0_4] : memref<2x64xf32, #tpu.memory_space<vmem>>, vector<1x64xf32>
    %4 = vector.broadcast %3 : vector<1x64xf32> to vector<32x64xf32>
    %5 = arith.mulf %2, %4 : vector<32x64xf32>
    %c1 = arith.constant 1 : index
    %c0_5 = arith.constant 0 : index
    %6 = vector.load %arg5[%c1, %c0_5] : memref<2x64xf32, #tpu.memory_space<vmem>>, vector<1x64xf32>
    %7 = vector.broadcast %6 : vector<1x64xf32> to vector<32x64xf32>
    %8 = arith.addf %5, %7 : vector<32x64xf32>
    %c0_6 = arith.constant 0 : index
    %c0_7 = arith.constant 0 : index
    %9 = vector.load %arg6[%c0_6, %c0_7] : memref<32x64xbf16, #tpu.memory_space<vmem>>, vector<32x64xbf16>
    %10 = arith.extf %9 : vector<32x64xbf16> to vector<32x64xf32>
    %11 = arith.addf %8, %10 : vector<32x64xf32>
    %cst_8 = arith.constant 0.000000e+00 : f32
    %12 = vector.broadcast %cst_8 : f32 to vector<32x64xf32>
    %13 = arith.maximumf %11, %12 : vector<32x64xf32>
    %14 = arith.truncf %13 : vector<32x64xf32> to vector<32x64xbf16>
    %c0_9 = arith.constant 0 : index
    %c0_10 = arith.constant 0 : index
    %15 = vector.load %arg7[%c0_9, %c0_10] : memref<32x64xbf16, #tpu.memory_space<vmem>>, vector<32x64xbf16>
    tpu.vector_store %arg7[%c0_9, %c0_10], %14 {strides = array<i32>} : memref<32x64xbf16, #tpu.memory_space<vmem>>, vector<32x64xbf16>,
    return
  }
  func.func @transform_0(%arg0: i32, %arg1: i32, %arg2: i32) -> (i32, i32) {
    %c0_i32 = arith.constant 0 : i32
    return %arg0, %arg2 : i32, i32
  }
  func.func @transform_1(%arg0: i32, %arg1: i32, %arg2: i32) -> (i32, i32) {
    %c0_i32 = arith.constant 0 : i32
    return %arg2, %arg1 : i32, i32
  }
  func.func @transform_2(%arg0: i32, %arg1: i32, %arg2: i32) -> (i32, i32) {
    %c0_i32 = arith.constant 0 : i32
    %c0_i32_0 = arith.constant 0 : i32
    return %c0_i32, %arg1 : i32, i32
  }
  func.func @transform_3(%arg0: i32, %arg1: i32, %arg2: i32) -> (i32, i32) {
    %c0_i32 = arith.constant 0 : i32
    return %arg0, %arg1 : i32, i32
  }
  func.func @transform_4(%arg0: i32, %arg1: i32, %arg2: i32) -> (i32, i32) {
    %c0_i32 = arith.constant 0 : i32
    return %arg0, %arg1 : i32, i32
  }
}

module attributes {stable_mosaic.version = 11 : i64} {
  func.func @_matmul_kernel(%arg0: i32, %arg1: i32, %arg2: i32, %arg3: memref<32x128xbf16, #tpu.memory_space<vmem>>, %arg4: memref<128x64xbf16, #tpu.memory_space<vmem>>, %arg5: memref<2x64xf32, #tpu.memory_space<vmem>>, %arg6: memref<32x64xbf16, #tpu.memory_space<vmem>>) attributes {dimension_semantics = [#tpu.dimension_semantics<parallel>, #tpu.dimension_semantics<parallel>, #tpu.dimension_semantics<arbitrary>], iteration_bounds = array<i64: 1, 1, 1>, scalar_prefetch = 0 : i64, scratch_operands = 0 : i64, tpu.core_type = #tpu.core_type<tc>, window_params = [{transform_indices = @transform_0, window_bounds = array<i64: 32, 128>}, {transform_indices = @transform_1, window_bounds = array<i64: 128, 64>}, {transform_indices = @transform_2, window_bounds = array<i64: 2, 64>}, {transform_indices = @transform_3, window_bounds = array<i64: 32, 64>}]} {
    %c0 = arith.constant 0 : index
    %c0_0 = arith.constant 0 : index
    %0 = vector.load %arg3[%c0, %c0_0] : memref<32x128xbf16, #tpu.memory_space<vmem>>, vector<32x128xbf16>
    %c0_1 = arith.constant 0 : index
    %c0_2 = arith.constant 0 : index
    %1 = vector.load %arg4[%c0_1, %c0_2] : memref<128x64xbf16, #tpu.memory_space<vmem>>, vector<128x64xbf16>
    %cst = arith.constant dense<0.000000e+00> : vector<32x64xf32>
    %2 = tpu.matmul %0, %1, %cst {dimension_numbers = #tpu.dot_dimension_numbers<[1], [0], [0], [1], [0, 0, 1, 1], [], []>} : vector<32x128xbf16>, vector<128x64xbf16>, vector<32x64xf32> -> vector<32x64xf32>
    %c0_3 = arith.constant 0 : index
    %c0_4 = arith.constant 0 : index
    %3 = vector.load %arg5[%c0_3, %c0_4] : memref<2x64xf32, #tpu.memory_space<vmem>>, vector<1x64xf32>
    %4 = vector.broadcast %3 : vector<1x64xf32> to vector<32x64xf32>
    %5 = arith.mulf %2, %4 : vector<32x64xf32>
    %c1 = arith.constant 1 : index
    %c0_5 = arith.constant 0 : index
    %6 = vector.load %arg5[%c1, %c0_5] : memref<2x64xf32, #tpu.memory_space<vmem>>, vector<1x64xf32>
    %7 = vector.broadcast %6 : vector<1x64xf32> to vector<32x64xf32>
    %8 = arith.addf %5, %7 : vector<32x64xf32>
    %9 = arith.truncf %8 : vector<32x64xf32> to vector<32x64xbf16>
    %c0_6 = arith.constant 0 : index
    %c0_7 = arith.constant 0 : index
    %10 = vector.load %arg6[%c0_6, %c0_7] : memref<32x64xbf16, #tpu.memory_space<vmem>>, vector<32x64xbf16>
    tpu.vector_store %arg6[%c0_6, %c0_7], %9 {strides = array<i32>} : memref<32x64xbf16, #tpu.memory_space<vmem>>, vector<32x64xbf16>,
    return
  }
  func.func @transform_0(%arg0: i32, %arg1: i32, %arg2: i32) -> (i32, i32) {
    %c0_i32 = arith.constant 0 : i32
    return %arg0, %arg2 : i32, i32
  }
  func.func @transform_1(%arg0: i32, %arg1: i32, %arg2: i32) -> (i32, i32) {
    %c0_i32 = arith.constant 0 : i32
    return %arg2, %arg1 : i32, i32
  }
  func.func @transform_2(%arg0: i32, %arg1: i32, %arg2: i32) -> (i32, i32) {
    %c0_i32 = arith.constant 0 : i32
    %c0_i32_0 = arith.constant 0 : i32
    return %c0_i32, %arg1 : i32, i32
  }
  func.func @transform_3(%arg0: i32, %arg1: i32, %arg2: i32) -> (i32, i32) {
    %c0_i32 = arith.constant 0 : i32
    return %arg0, %arg1 : i32, i32
  }
}

module attributes {stable_mosaic.version = 11 : i64} {
  func.func @_matmul_kernel(%arg0: i32, %arg1: i32, %arg2: i32, %arg3: memref<16x640xbf16, #tpu.memory_space<vmem>>, %arg4: memref<640x128xbf16, #tpu.memory_space<vmem>>, %arg5: memref<2x128xf32, #tpu.memory_space<vmem>>, %arg6: memref<16x128xbf16, #tpu.memory_space<vmem>>) attributes {dimension_semantics = [#tpu.dimension_semantics<parallel>, #tpu.dimension_semantics<parallel>, #tpu.dimension_semantics<arbitrary>], iteration_bounds = array<i64: 1, 1, 1>, scalar_prefetch = 0 : i64, scratch_operands = 0 : i64, tpu.core_type = #tpu.core_type<tc>, window_params = [{transform_indices = @transform_0, window_bounds = array<i64: 16, 640>}, {transform_indices = @transform_1, window_bounds = array<i64: 640, 128>}, {transform_indices = @transform_2, window_bounds = array<i64: 2, 128>}, {transform_indices = @transform_3, window_bounds = array<i64: 16, 128>}]} {
    %c0 = arith.constant 0 : index
    %c0_0 = arith.constant 0 : index
    %0 = vector.load %arg3[%c0, %c0_0] : memref<16x640xbf16, #tpu.memory_space<vmem>>, vector<16x640xbf16>
    %c0_1 = arith.constant 0 : index
    %c0_2 = arith.constant 0 : index
    %1 = vector.load %arg4[%c0_1, %c0_2] : memref<640x128xbf16, #tpu.memory_space<vmem>>, vector<640x128xbf16>
    %cst = arith.constant dense<0.000000e+00> : vector<16x128xf32>
    %2 = tpu.matmul %0, %1, %cst {dimension_numbers = #tpu.dot_dimension_numbers<[1], [0], [0], [1], [0, 0, 1, 1], [], []>} : vector<16x640xbf16>, vector<640x128xbf16>, vector<16x128xf32> -> vector<16x128xf32>
    %c0_3 = arith.constant 0 : index
    %c0_4 = arith.constant 0 : index
    %3 = vector.load %arg5[%c0_3, %c0_4] : memref<2x128xf32, #tpu.memory_space<vmem>>, vector<1x128xf32>
    %4 = vector.broadcast %3 : vector<1x128xf32> to vector<16x128xf32>
    %5 = arith.mulf %2, %4 : vector<16x128xf32>
    %c1 = arith.constant 1 : index
    %c0_5 = arith.constant 0 : index
    %6 = vector.load %arg5[%c1, %c0_5] : memref<2x128xf32, #tpu.memory_space<vmem>>, vector<1x128xf32>
    %7 = vector.broadcast %6 : vector<1x128xf32> to vector<16x128xf32>
    %8 = arith.addf %5, %7 : vector<16x128xf32>
    %cst_6 = arith.constant 0.000000e+00 : f32
    %9 = vector.broadcast %cst_6 : f32 to vector<16x128xf32>
    %10 = arith.maximumf %8, %9 : vector<16x128xf32>
    %11 = arith.truncf %10 : vector<16x128xf32> to vector<16x128xbf16>
    %c0_7 = arith.constant 0 : index
    %c0_8 = arith.constant 0 : index
    %12 = vector.load %arg6[%c0_7, %c0_8] : memref<16x128xbf16, #tpu.memory_space<vmem>>, vector<16x128xbf16>
    tpu.vector_store %arg6[%c0_7, %c0_8], %11 {strides = array<i32>} : memref<16x128xbf16, #tpu.memory_space<vmem>>, vector<16x128xbf16>,
    return
  }
  func.func @transform_0(%arg0: i32, %arg1: i32, %arg2: i32) -> (i32, i32) {
    %c0_i32 = arith.constant 0 : i32
    return %arg0, %arg2 : i32, i32
  }
  func.func @transform_1(%arg0: i32, %arg1: i32, %arg2: i32) -> (i32, i32) {
    %c0_i32 = arith.constant 0 : i32
    return %arg2, %arg1 : i32, i32
  }
  func.func @transform_2(%arg0: i32, %arg1: i32, %arg2: i32) -> (i32, i32) {
    %c0_i32 = arith.constant 0 : i32
    %c0_i32_0 = arith.constant 0 : i32
    return %c0_i32, %arg1 : i32, i32
  }
  func.func @transform_3(%arg0: i32, %arg1: i32, %arg2: i32) -> (i32, i32) {
    %c0_i32 = arith.constant 0 : i32
    return %arg0, %arg1 : i32, i32
  }
}

module attributes {stable_mosaic.version = 11 : i64} {
  func.func @_matmul_kernel(%arg0: i32, %arg1: i32, %arg2: i32, %arg3: memref<16x128xbf16, #tpu.memory_space<vmem>>, %arg4: memref<128x128xbf16, #tpu.memory_space<vmem>>, %arg5: memref<2x128xf32, #tpu.memory_space<vmem>>, %arg6: memref<16x128xbf16, #tpu.memory_space<vmem>>) attributes {dimension_semantics = [#tpu.dimension_semantics<parallel>, #tpu.dimension_semantics<parallel>, #tpu.dimension_semantics<arbitrary>], iteration_bounds = array<i64: 1, 1, 1>, scalar_prefetch = 0 : i64, scratch_operands = 0 : i64, tpu.core_type = #tpu.core_type<tc>, window_params = [{transform_indices = @transform_0, window_bounds = array<i64: 16, 128>}, {transform_indices = @transform_1, window_bounds = array<i64: 128, 128>}, {transform_indices = @transform_2, window_bounds = array<i64: 2, 128>}, {transform_indices = @transform_3, window_bounds = array<i64: 16, 128>}]} {
    %c0 = arith.constant 0 : index
    %c0_0 = arith.constant 0 : index
    %0 = vector.load %arg3[%c0, %c0_0] : memref<16x128xbf16, #tpu.memory_space<vmem>>, vector<16x128xbf16>
    %c0_1 = arith.constant 0 : index
    %c0_2 = arith.constant 0 : index
    %1 = vector.load %arg4[%c0_1, %c0_2] : memref<128x128xbf16, #tpu.memory_space<vmem>>, vector<128x128xbf16>
    %cst = arith.constant dense<0.000000e+00> : vector<16x128xf32>
    %2 = tpu.matmul %0, %1, %cst {dimension_numbers = #tpu.dot_dimension_numbers<[1], [0], [0], [1], [0, 0, 1, 1], [], []>} : vector<16x128xbf16>, vector<128x128xbf16>, vector<16x128xf32> -> vector<16x128xf32>
    %c0_3 = arith.constant 0 : index
    %c0_4 = arith.constant 0 : index
    %3 = vector.load %arg5[%c0_3, %c0_4] : memref<2x128xf32, #tpu.memory_space<vmem>>, vector<1x128xf32>
    %4 = vector.broadcast %3 : vector<1x128xf32> to vector<16x128xf32>
    %5 = arith.mulf %2, %4 : vector<16x128xf32>
    %c1 = arith.constant 1 : index
    %c0_5 = arith.constant 0 : index
    %6 = vector.load %arg5[%c1, %c0_5] : memref<2x128xf32, #tpu.memory_space<vmem>>, vector<1x128xf32>
    %7 = vector.broadcast %6 : vector<1x128xf32> to vector<16x128xf32>
    %8 = arith.addf %5, %7 : vector<16x128xf32>
    %9 = arith.truncf %8 : vector<16x128xf32> to vector<16x128xbf16>
    %c0_6 = arith.constant 0 : index
    %c0_7 = arith.constant 0 : index
    %10 = vector.load %arg6[%c0_6, %c0_7] : memref<16x128xbf16, #tpu.memory_space<vmem>>, vector<16x128xbf16>
    tpu.vector_store %arg6[%c0_6, %c0_7], %9 {strides = array<i32>} : memref<16x128xbf16, #tpu.memory_space<vmem>>, vector<16x128xbf16>,
    return
  }
  func.func @transform_0(%arg0: i32, %arg1: i32, %arg2: i32) -> (i32, i32) {
    %c0_i32 = arith.constant 0 : i32
    return %arg0, %arg2 : i32, i32
  }
  func.func @transform_1(%arg0: i32, %arg1: i32, %arg2: i32) -> (i32, i32) {
    %c0_i32 = arith.constant 0 : i32
    return %arg2, %arg1 : i32, i32
  }
  func.func @transform_2(%arg0: i32, %arg1: i32, %arg2: i32) -> (i32, i32) {
    %c0_i32 = arith.constant 0 : i32
    %c0_i32_0 = arith.constant 0 : i32
    return %c0_i32, %arg1 : i32, i32
  }
  func.func @transform_3(%arg0: i32, %arg1: i32, %arg2: i32) -> (i32, i32) {
    %c0_i32 = arith.constant 0 : i32
    return %arg0, %arg1 : i32, i32
  }
}

module attributes {stable_mosaic.version = 11 : i64} {
  func.func @_matmul_kernel(%arg0: i32, %arg1: i32, %arg2: i32, %arg3: memref<16x1152xbf16, #tpu.memory_space<vmem>>, %arg4: memref<1152x128xbf16, #tpu.memory_space<vmem>>, %arg5: memref<2x128xf32, #tpu.memory_space<vmem>>, %arg6: memref<16x128xbf16, #tpu.memory_space<vmem>>, %arg7: memref<16x128xbf16, #tpu.memory_space<vmem>>) attributes {dimension_semantics = [#tpu.dimension_semantics<parallel>, #tpu.dimension_semantics<parallel>, #tpu.dimension_semantics<arbitrary>], iteration_bounds = array<i64: 1, 1, 1>, scalar_prefetch = 0 : i64, scratch_operands = 0 : i64, tpu.core_type = #tpu.core_type<tc>, window_params = [{transform_indices = @transform_0, window_bounds = array<i64: 16, 1152>}, {transform_indices = @transform_1, window_bounds = array<i64: 1152, 128>}, {transform_indices = @transform_2, window_bounds = array<i64: 2, 128>}, {transform_indices = @transform_3, window_bounds = array<i64: 16, 128>}, {transform_indices = @transform_4, window_bounds = array<i64: 16, 128>}]} {
    %c0 = arith.constant 0 : index
    %c0_0 = arith.constant 0 : index
    %0 = vector.load %arg3[%c0, %c0_0] : memref<16x1152xbf16, #tpu.memory_space<vmem>>, vector<16x1152xbf16>
    %c0_1 = arith.constant 0 : index
    %c0_2 = arith.constant 0 : index
    %1 = vector.load %arg4[%c0_1, %c0_2] : memref<1152x128xbf16, #tpu.memory_space<vmem>>, vector<1152x128xbf16>
    %cst = arith.constant dense<0.000000e+00> : vector<16x128xf32>
    %2 = tpu.matmul %0, %1, %cst {dimension_numbers = #tpu.dot_dimension_numbers<[1], [0], [0], [1], [0, 0, 1, 1], [], []>} : vector<16x1152xbf16>, vector<1152x128xbf16>, vector<16x128xf32> -> vector<16x128xf32>
    %c0_3 = arith.constant 0 : index
    %c0_4 = arith.constant 0 : index
    %3 = vector.load %arg5[%c0_3, %c0_4] : memref<2x128xf32, #tpu.memory_space<vmem>>, vector<1x128xf32>
    %4 = vector.broadcast %3 : vector<1x128xf32> to vector<16x128xf32>
    %5 = arith.mulf %2, %4 : vector<16x128xf32>
    %c1 = arith.constant 1 : index
    %c0_5 = arith.constant 0 : index
    %6 = vector.load %arg5[%c1, %c0_5] : memref<2x128xf32, #tpu.memory_space<vmem>>, vector<1x128xf32>
    %7 = vector.broadcast %6 : vector<1x128xf32> to vector<16x128xf32>
    %8 = arith.addf %5, %7 : vector<16x128xf32>
    %c0_6 = arith.constant 0 : index
    %c0_7 = arith.constant 0 : index
    %9 = vector.load %arg6[%c0_6, %c0_7] : memref<16x128xbf16, #tpu.memory_space<vmem>>, vector<16x128xbf16>
    %10 = arith.extf %9 : vector<16x128xbf16> to vector<16x128xf32>
    %11 = arith.addf %8, %10 : vector<16x128xf32>
    %cst_8 = arith.constant 0.000000e+00 : f32
    %12 = vector.broadcast %cst_8 : f32 to vector<16x128xf32>
    %13 = arith.maximumf %11, %12 : vector<16x128xf32>
    %14 = arith.truncf %13 : vector<16x128xf32> to vector<16x128xbf16>
    %c0_9 = arith.constant 0 : index
    %c0_10 = arith.constant 0 : index
    %15 = vector.load %arg7[%c0_9, %c0_10] : memref<16x128xbf16, #tpu.memory_space<vmem>>, vector<16x128xbf16>
    tpu.vector_store %arg7[%c0_9, %c0_10], %14 {strides = array<i32>} : memref<16x128xbf16, #tpu.memory_space<vmem>>, vector<16x128xbf16>,
    return
  }
  func.func @transform_0(%arg0: i32, %arg1: i32, %arg2: i32) -> (i32, i32) {
    %c0_i32 = arith.constant 0 : i32
    return %arg0, %arg2 : i32, i32
  }
  func.func @transform_1(%arg0: i32, %arg1: i32, %arg2: i32) -> (i32, i32) {
    %c0_i32 = arith.constant 0 : i32
    return %arg2, %arg1 : i32, i32
  }
  func.func @transform_2(%arg0: i32, %arg1: i32, %arg2: i32) -> (i32, i32) {
    %c0_i32 = arith.constant 0 : i32
    %c0_i32_0 = arith.constant 0 : i32
    return %c0_i32, %arg1 : i32, i32
  }
  func.func @transform_3(%arg0: i32, %arg1: i32, %arg2: i32) -> (i32, i32) {
    %c0_i32 = arith.constant 0 : i32
    return %arg0, %arg1 : i32, i32
  }
  func.func @transform_4(%arg0: i32, %arg1: i32, %arg2: i32) -> (i32, i32) {
    %c0_i32 = arith.constant 0 : i32
    return %arg0, %arg1 : i32, i32
  }
}

module attributes {stable_mosaic.version = 11 : i64} {
  func.func @_matmul_kernel(%arg0: i32, %arg1: i32, %arg2: i32, %arg3: memref<16x1152xbf16, #tpu.memory_space<vmem>>, %arg4: memref<1152x128xbf16, #tpu.memory_space<vmem>>, %arg5: memref<2x128xf32, #tpu.memory_space<vmem>>, %arg6: memref<16x128xbf16, #tpu.memory_space<vmem>>) attributes {dimension_semantics = [#tpu.dimension_semantics<parallel>, #tpu.dimension_semantics<parallel>, #tpu.dimension_semantics<arbitrary>], iteration_bounds = array<i64: 1, 1, 1>, scalar_prefetch = 0 : i64, scratch_operands = 0 : i64, tpu.core_type = #tpu.core_type<tc>, window_params = [{transform_indices = @transform_0, window_bounds = array<i64: 16, 1152>}, {transform_indices = @transform_1, window_bounds = array<i64: 1152, 128>}, {transform_indices = @transform_2, window_bounds = array<i64: 2, 128>}, {transform_indices = @transform_3, window_bounds = array<i64: 16, 128>}]} {
    %c0 = arith.constant 0 : index
    %c0_0 = arith.constant 0 : index
    %0 = vector.load %arg3[%c0, %c0_0] : memref<16x1152xbf16, #tpu.memory_space<vmem>>, vector<16x1152xbf16>
    %c0_1 = arith.constant 0 : index
    %c0_2 = arith.constant 0 : index
    %1 = vector.load %arg4[%c0_1, %c0_2] : memref<1152x128xbf16, #tpu.memory_space<vmem>>, vector<1152x128xbf16>
    %cst = arith.constant dense<0.000000e+00> : vector<16x128xf32>
    %2 = tpu.matmul %0, %1, %cst {dimension_numbers = #tpu.dot_dimension_numbers<[1], [0], [0], [1], [0, 0, 1, 1], [], []>} : vector<16x1152xbf16>, vector<1152x128xbf16>, vector<16x128xf32> -> vector<16x128xf32>
    %c0_3 = arith.constant 0 : index
    %c0_4 = arith.constant 0 : index
    %3 = vector.load %arg5[%c0_3, %c0_4] : memref<2x128xf32, #tpu.memory_space<vmem>>, vector<1x128xf32>
    %4 = vector.broadcast %3 : vector<1x128xf32> to vector<16x128xf32>
    %5 = arith.mulf %2, %4 : vector<16x128xf32>
    %c1 = arith.constant 1 : index
    %c0_5 = arith.constant 0 : index
    %6 = vector.load %arg5[%c1, %c0_5] : memref<2x128xf32, #tpu.memory_space<vmem>>, vector<1x128xf32>
    %7 = vector.broadcast %6 : vector<1x128xf32> to vector<16x128xf32>
    %8 = arith.addf %5, %7 : vector<16x128xf32>
    %cst_6 = arith.constant 0.000000e+00 : f32
    %9 = vector.broadcast %cst_6 : f32 to vector<16x128xf32>
    %10 = arith.maximumf %8, %9 : vector<16x128xf32>
    %11 = arith.truncf %10 : vector<16x128xf32> to vector<16x128xbf16>
    %c0_7 = arith.constant 0 : index
    %c0_8 = arith.constant 0 : index
    %12 = vector.load %arg6[%c0_7, %c0_8] : memref<16x128xbf16, #tpu.memory_space<vmem>>, vector<16x128xbf16>
    tpu.vector_store %arg6[%c0_7, %c0_8], %11 {strides = array<i32>} : memref<16x128xbf16, #tpu.memory_space<vmem>>, vector<16x128xbf16>,
    return
  }
  func.func @transform_0(%arg0: i32, %arg1: i32, %arg2: i32) -> (i32, i32) {
    %c0_i32 = arith.constant 0 : i32
    return %arg0, %arg2 : i32, i32
  }
  func.func @transform_1(%arg0: i32, %arg1: i32, %arg2: i32) -> (i32, i32) {
    %c0_i32 = arith.constant 0 : i32
    return %arg2, %arg1 : i32, i32
  }
  func.func @transform_2(%arg0: i32, %arg1: i32, %arg2: i32) -> (i32, i32) {
    %c0_i32 = arith.constant 0 : i32
    %c0_i32_0 = arith.constant 0 : i32
    return %c0_i32, %arg1 : i32, i32
  }
  func.func @transform_3(%arg0: i32, %arg1: i32, %arg2: i32) -> (i32, i32) {
    %c0_i32 = arith.constant 0 : i32
    return %arg0, %arg1 : i32, i32
  }
}

module attributes {stable_mosaic.version = 11 : i64} {
  func.func @_matmul_kernel(%arg0: i32, %arg1: i32, %arg2: i32, %arg3: memref<32x384xbf16, #tpu.memory_space<vmem>>, %arg4: memref<384x128xbf16, #tpu.memory_space<vmem>>, %arg5: memref<2x128xf32, #tpu.memory_space<vmem>>, %arg6: memref<32x128xbf16, #tpu.memory_space<vmem>>) attributes {dimension_semantics = [#tpu.dimension_semantics<parallel>, #tpu.dimension_semantics<parallel>, #tpu.dimension_semantics<arbitrary>], iteration_bounds = array<i64: 1, 1, 1>, scalar_prefetch = 0 : i64, scratch_operands = 0 : i64, tpu.core_type = #tpu.core_type<tc>, window_params = [{transform_indices = @transform_0, window_bounds = array<i64: 32, 384>}, {transform_indices = @transform_1, window_bounds = array<i64: 384, 128>}, {transform_indices = @transform_2, window_bounds = array<i64: 2, 128>}, {transform_indices = @transform_3, window_bounds = array<i64: 32, 128>}]} {
    %c0 = arith.constant 0 : index
    %c0_0 = arith.constant 0 : index
    %0 = vector.load %arg3[%c0, %c0_0] : memref<32x384xbf16, #tpu.memory_space<vmem>>, vector<32x384xbf16>
    %c0_1 = arith.constant 0 : index
    %c0_2 = arith.constant 0 : index
    %1 = vector.load %arg4[%c0_1, %c0_2] : memref<384x128xbf16, #tpu.memory_space<vmem>>, vector<384x128xbf16>
    %cst = arith.constant dense<0.000000e+00> : vector<32x128xf32>
    %2 = tpu.matmul %0, %1, %cst {dimension_numbers = #tpu.dot_dimension_numbers<[1], [0], [0], [1], [0, 0, 1, 1], [], []>} : vector<32x384xbf16>, vector<384x128xbf16>, vector<32x128xf32> -> vector<32x128xf32>
    %c0_3 = arith.constant 0 : index
    %c0_4 = arith.constant 0 : index
    %3 = vector.load %arg5[%c0_3, %c0_4] : memref<2x128xf32, #tpu.memory_space<vmem>>, vector<1x128xf32>
    %4 = vector.broadcast %3 : vector<1x128xf32> to vector<32x128xf32>
    %5 = arith.mulf %2, %4 : vector<32x128xf32>
    %c1 = arith.constant 1 : index
    %c0_5 = arith.constant 0 : index
    %6 = vector.load %arg5[%c1, %c0_5] : memref<2x128xf32, #tpu.memory_space<vmem>>, vector<1x128xf32>
    %7 = vector.broadcast %6 : vector<1x128xf32> to vector<32x128xf32>
    %8 = arith.addf %5, %7 : vector<32x128xf32>
    %cst_6 = arith.constant 0.000000e+00 : f32
    %9 = vector.broadcast %cst_6 : f32 to vector<32x128xf32>
    %10 = arith.maximumf %8, %9 : vector<32x128xf32>
    %11 = arith.truncf %10 : vector<32x128xf32> to vector<32x128xbf16>
    %c0_7 = arith.constant 0 : index
    %c0_8 = arith.constant 0 : index
    %12 = vector.load %arg6[%c0_7, %c0_8] : memref<32x128xbf16, #tpu.memory_space<vmem>>, vector<32x128xbf16>
    tpu.vector_store %arg6[%c0_7, %c0_8], %11 {strides = array<i32>} : memref<32x128xbf16, #tpu.memory_space<vmem>>, vector<32x128xbf16>,
    return
  }
  func.func @transform_0(%arg0: i32, %arg1: i32, %arg2: i32) -> (i32, i32) {
    %c0_i32 = arith.constant 0 : i32
    return %arg0, %arg2 : i32, i32
  }
  func.func @transform_1(%arg0: i32, %arg1: i32, %arg2: i32) -> (i32, i32) {
    %c0_i32 = arith.constant 0 : i32
    return %arg2, %arg1 : i32, i32
  }
  func.func @transform_2(%arg0: i32, %arg1: i32, %arg2: i32) -> (i32, i32) {
    %c0_i32 = arith.constant 0 : i32
    %c0_i32_0 = arith.constant 0 : i32
    return %c0_i32, %arg1 : i32, i32
  }
  func.func @transform_3(%arg0: i32, %arg1: i32, %arg2: i32) -> (i32, i32) {
    %c0_i32 = arith.constant 0 : i32
    return %arg0, %arg1 : i32, i32
  }
}

module attributes {stable_mosaic.version = 11 : i64} {
  func.func @_matmul_kernel(%arg0: i32, %arg1: i32, %arg2: i32, %arg3: memref<128x384xbf16, #tpu.memory_space<vmem>>, %arg4: memref<384x128xbf16, #tpu.memory_space<vmem>>, %arg5: memref<2x128xf32, #tpu.memory_space<vmem>>, %arg6: memref<128x128xbf16, #tpu.memory_space<vmem>>) attributes {dimension_semantics = [#tpu.dimension_semantics<parallel>, #tpu.dimension_semantics<parallel>, #tpu.dimension_semantics<arbitrary>], iteration_bounds = array<i64: 1, 1, 1>, scalar_prefetch = 0 : i64, scratch_operands = 0 : i64, tpu.core_type = #tpu.core_type<tc>, window_params = [{transform_indices = @transform_0, window_bounds = array<i64: 128, 384>}, {transform_indices = @transform_1, window_bounds = array<i64: 384, 128>}, {transform_indices = @transform_2, window_bounds = array<i64: 2, 128>}, {transform_indices = @transform_3, window_bounds = array<i64: 128, 128>}]} {
    %c0 = arith.constant 0 : index
    %c0_0 = arith.constant 0 : index
    %0 = vector.load %arg3[%c0, %c0_0] : memref<128x384xbf16, #tpu.memory_space<vmem>>, vector<128x384xbf16>
    %c0_1 = arith.constant 0 : index
    %c0_2 = arith.constant 0 : index
    %1 = vector.load %arg4[%c0_1, %c0_2] : memref<384x128xbf16, #tpu.memory_space<vmem>>, vector<384x128xbf16>
    %cst = arith.constant dense<0.000000e+00> : vector<128x128xf32>
    %2 = tpu.matmul %0, %1, %cst {dimension_numbers = #tpu.dot_dimension_numbers<[1], [0], [0], [1], [0, 0, 1, 1], [], []>} : vector<128x384xbf16>, vector<384x128xbf16>, vector<128x128xf32> -> vector<128x128xf32>
    %c0_3 = arith.constant 0 : index
    %c0_4 = arith.constant 0 : index
    %3 = vector.load %arg5[%c0_3, %c0_4] : memref<2x128xf32, #tpu.memory_space<vmem>>, vector<1x128xf32>
    %4 = vector.broadcast %3 : vector<1x128xf32> to vector<128x128xf32>
    %5 = arith.mulf %2, %4 : vector<128x128xf32>
    %c1 = arith.constant 1 : index
    %c0_5 = arith.constant 0 : index
    %6 = vector.load %arg5[%c1, %c0_5] : memref<2x128xf32, #tpu.memory_space<vmem>>, vector<1x128xf32>
    %7 = vector.broadcast %6 : vector<1x128xf32> to vector<128x128xf32>
    %8 = arith.addf %5, %7 : vector<128x128xf32>
    %cst_6 = arith.constant 0.000000e+00 : f32
    %9 = vector.broadcast %cst_6 : f32 to vector<128x128xf32>
    %10 = arith.maximumf %8, %9 : vector<128x128xf32>
    %11 = arith.truncf %10 : vector<128x128xf32> to vector<128x128xbf16>
    %c0_7 = arith.constant 0 : index
    %c0_8 = arith.constant 0 : index
    %12 = vector.load %arg6[%c0_7, %c0_8] : memref<128x128xbf16, #tpu.memory_space<vmem>>, vector<128x128xbf16>
    tpu.vector_store %arg6[%c0_7, %c0_8], %11 {strides = array<i32>} : memref<128x128xbf16, #tpu.memory_space<vmem>>, vector<128x128xbf16>,
    return
  }
  func.func @transform_0(%arg0: i32, %arg1: i32, %arg2: i32) -> (i32, i32) {
    %c0_i32 = arith.constant 0 : i32
    return %arg0, %arg2 : i32, i32
  }
  func.func @transform_1(%arg0: i32, %arg1: i32, %arg2: i32) -> (i32, i32) {
    %c0_i32 = arith.constant 0 : i32
    return %arg2, %arg1 : i32, i32
  }
  func.func @transform_2(%arg0: i32, %arg1: i32, %arg2: i32) -> (i32, i32) {
    %c0_i32 = arith.constant 0 : i32
    %c0_i32_0 = arith.constant 0 : i32
    return %c0_i32, %arg1 : i32, i32
  }
  func.func @transform_3(%arg0: i32, %arg1: i32, %arg2: i32) -> (i32, i32) {
    %c0_i32 = arith.constant 0 : i32
    return %arg0, %arg1 : i32, i32
  }
}

module attributes {stable_mosaic.version = 11 : i64} {
  func.func @_pose_head_kernel(%arg0: i32, %arg1: memref<1x256x32xbf16, #tpu.memory_space<vmem>>, %arg2: memref<32x8xbf16, #tpu.memory_space<vmem>>, %arg3: memref<1x8xf32, #tpu.memory_space<vmem>>, %arg4: memref<256x1xf32, #tpu.memory_space<vmem>>, %arg5: memref<256x1xf32, #tpu.memory_space<vmem>>, %arg6: memref<1x3x8xf32, #tpu.memory_space<vmem>>) attributes {dimension_semantics = [#tpu.dimension_semantics<parallel>], iteration_bounds = array<i64: 2>, scalar_prefetch = 0 : i64, scratch_operands = 0 : i64, tpu.core_type = #tpu.core_type<tc>, window_params = [{transform_indices = @transform_0, window_bounds = array<i64: 1, 256, 32>}, {pipeline_mode = #tpu.pipeline_mode<synchronous>, transform_indices = @transform_1, window_bounds = array<i64: 32, 8>}, {pipeline_mode = #tpu.pipeline_mode<synchronous>, transform_indices = @transform_2, window_bounds = array<i64: 1, 8>}, {pipeline_mode = #tpu.pipeline_mode<synchronous>, transform_indices = @transform_3, window_bounds = array<i64: 256, 1>}, {pipeline_mode = #tpu.pipeline_mode<synchronous>, transform_indices = @transform_4, window_bounds = array<i64: 256, 1>}, {transform_indices = @transform_5, window_bounds = array<i64: 1, 3, 8>}]} {
    %c0 = arith.constant 0 : index
    %c0_0 = arith.constant 0 : index
    %c0_1 = arith.constant 0 : index
    %0 = vector.load %arg1[%c0, %c0_0, %c0_1] : memref<1x256x32xbf16, #tpu.memory_space<vmem>>, vector<1x256x32xbf16>
    %1 = vector.shape_cast %0 : vector<1x256x32xbf16> to vector<256x32xbf16>
    %c0_2 = arith.constant 0 : index
    %c0_3 = arith.constant 0 : index
    %2 = vector.load %arg2[%c0_2, %c0_3] : memref<32x8xbf16, #tpu.memory_space<vmem>>, vector<32x8xbf16>
    %cst = arith.constant dense<0.000000e+00> : vector<256x8xf32>
    %3 = tpu.matmul %1, %2, %cst {dimension_numbers = #tpu.dot_dimension_numbers<[1], [0], [0], [1], [0, 0, 1, 1], [], []>} : vector<256x32xbf16>, vector<32x8xbf16>, vector<256x8xf32> -> vector<256x8xf32>
    %c0_4 = arith.constant 0 : index
    %c0_5 = arith.constant 0 : index
    %4 = vector.load %arg3[%c0_4, %c0_5] : memref<1x8xf32, #tpu.memory_space<vmem>>, vector<1x8xf32>
    %5 = vector.broadcast %4 : vector<1x8xf32> to vector<256x8xf32>
    %6 = arith.addf %3, %5 : vector<256x8xf32>
    %cst_6 = arith.constant 5.000000e-01 : f32
    %7 = vector.broadcast %cst_6 : f32 to vector<256x8xf32>
    %8 = arith.mulf %7, %6 : vector<256x8xf32>
    %9 = math.tanh %8 : vector<256x8xf32>
    %cst_7 = arith.constant 1.000000e+00 : f32
    %10 = vector.broadcast %cst_7 : f32 to vector<256x8xf32>
    %11 = arith.addf %9, %10 : vector<256x8xf32>
    %cst_8 = arith.constant 5.000000e-01 : f32
    %12 = vector.broadcast %cst_8 : f32 to vector<256x8xf32>
    %13 = arith.mulf %12, %11 : vector<256x8xf32>
    %cst_9 = arith.constant dense<0.000000e+00> : vector<8xf32>
    %14 = vector.multi_reduction <add>, %13, %cst_9 [0] : vector<256x8xf32> to vector<8xf32>
    %15 = vector.shape_cast %14 : vector<8xf32> to vector<1x8xf32>
    %cst_10 = arith.constant 9.99999997E-7 : f32
    %16 = vector.broadcast %cst_10 : f32 to vector<1x8xf32>
    %17 = arith.addf %15, %16 : vector<1x8xf32>
    %cst_11 = arith.constant 1.000000e+00 : f32
    %18 = vector.broadcast %cst_11 : f32 to vector<1x8xf32>
    %19 = arith.divf %18, %17 : vector<1x8xf32>
    %c0_12 = arith.constant 0 : index
    %c0_13 = arith.constant 0 : index
    %20 = vector.load %arg4[%c0_12, %c0_13] : memref<256x1xf32, #tpu.memory_space<vmem>>, vector<256x1xf32>
    %21 = vector.broadcast %20 : vector<256x1xf32> to vector<256x8xf32>
    %22 = arith.mulf %13, %21 : vector<256x8xf32>
    %cst_14 = arith.constant dense<0.000000e+00> : vector<8xf32>
    %23 = vector.multi_reduction <add>, %22, %cst_14 [0] : vector<256x8xf32> to vector<8xf32>
    %24 = vector.shape_cast %23 : vector<8xf32> to vector<1x8xf32>
    %25 = arith.mulf %24, %19 : vector<1x8xf32>
    %c0_15 = arith.constant 0 : index
    %c0_16 = arith.constant 0 : index
    %26 = vector.load %arg5[%c0_15, %c0_16] : memref<256x1xf32, #tpu.memory_space<vmem>>, vector<256x1xf32>
    %27 = vector.broadcast %26 : vector<256x1xf32> to vector<256x8xf32>
    %28 = arith.mulf %13, %27 : vector<256x8xf32>
    %cst_17 = arith.constant dense<0.000000e+00> : vector<8xf32>
    %29 = vector.multi_reduction <add>, %28, %cst_17 [0] : vector<256x8xf32> to vector<8xf32>
    %30 = vector.shape_cast %29 : vector<8xf32> to vector<1x8xf32>
    %31 = arith.mulf %30, %19 : vector<1x8xf32>
    %cst_18 = arith.constant dense<0xFF800000> : vector<8xf32>
    %32 = vector.multi_reduction <maximumf>, %13, %cst_18 [0] : vector<256x8xf32> to vector<8xf32>
    %33 = vector.shape_cast %32 : vector<8xf32> to vector<1x8xf32>
    %34 = tpu.concatenate %25, %31, %33 in 0 : vector<1x8xf32>, vector<1x8xf32>, vector<1x8xf32> -> vector<3x8xf32>
    %c0_19 = arith.constant 0 : index
    %c0_20 = arith.constant 0 : index
    %c0_21 = arith.constant 0 : index
    %35 = vector.load %arg6[%c0_19, %c0_20, %c0_21] : memref<1x3x8xf32, #tpu.memory_space<vmem>>, vector<1x3x8xf32>
    %36 = vector.shape_cast %35 : vector<1x3x8xf32> to vector<3x8xf32>
    %37 = vector.shape_cast %34 : vector<3x8xf32> to vector<1x3x8xf32>
    tpu.vector_store %arg6[%c0_19, %c0_20, %c0_21], %37 {strides = array<i32>} : memref<1x3x8xf32, #tpu.memory_space<vmem>>, vector<1x3x8xf32>,
    return
  }
  func.func @transform_0(%arg0: i32) -> (i32, i32, i32) {
    %c0_i32 = arith.constant 0 : i32
    %c0_i32_0 = arith.constant 0 : i32
    %c0_i32_1 = arith.constant 0 : i32
    return %arg0, %c0_i32, %c0_i32_0 : i32, i32, i32
  }
  func.func @transform_1(%arg0: i32) -> (i32, i32) {
    %c0_i32 = arith.constant 0 : i32
    %c0_i32_0 = arith.constant 0 : i32
    %c0_i32_1 = arith.constant 0 : i32
    return %c0_i32, %c0_i32_0 : i32, i32
  }
  func.func @transform_2(%arg0: i32) -> (i32, i32) {
    %c0_i32 = arith.constant 0 : i32
    %c0_i32_0 = arith.constant 0 : i32
    %c0_i32_1 = arith.constant 0 : i32
    return %c0_i32, %c0_i32_0 : i32, i32
  }
  func.func @transform_3(%arg0: i32) -> (i32, i32) {
    %c0_i32 = arith.constant 0 : i32
    %c0_i32_0 = arith.constant 0 : i32
    %c0_i32_1 = arith.constant 0 : i32
    return %c0_i32, %c0_i32_0 : i32, i32
  }
  func.func @transform_4(%arg0: i32) -> (i32, i32) {
    %c0_i32 = arith.constant 0 : i32
    %c0_i32_0 = arith.constant 0 : i32
    %c0_i32_1 = arith.constant 0 : i32
    return %c0_i32, %c0_i32_0 : i32, i32
  }
  func.func @transform_5(%arg0: i32) -> (i32, i32, i32) {
    %c0_i32 = arith.constant 0 : i32
    %c0_i32_0 = arith.constant 0 : i32
    %c0_i32_1 = arith.constant 0 : i32
    return %arg0, %c0_i32, %c0_i32_0 : i32, i32, i32
  }
}

</mosaic_0001>

<llo_original>
// kernel: _lambda_.16
$region0: #{_lambda_.16}
  #allocation0 [shape = 'u32[]', space=smem, size = 0x4, offset = 0x4, fixed_abs, tag = 'smem constant byte address 0x4 - core index']
  #allocation1 [shape = 'u32[144,128]{1,0:T(1,128)}', space=vmem, size = 0x12000, scoped, tag = 'internal scratch']
  %s0 = inlined_call_operand.vmem [shape: bf16[2048,256], index: 0, kind: input, shape index: {}]
  %s1 = inlined_call_operand.vmem [shape: bf16[256,16], index: 1, kind: input, shape index: {}]
  %s2 = inlined_call_operand.vmem [shape: f32[2,16], index: 2, kind: input, shape index: {}]
  %s3 = inlined_call_operand.vmem [shape: bf16[2048,16], index: 3, kind: output, shape index: {}]
  %s4 = sld [smem:[#allocation0]]
  $region45: #{_lambda_.16} parent=0
    _
  %s6 = ssub.s32 1, %s4
  %s7 = scalar_select 0, %s6, %s4
  loop: start=0, step=1, limit=6
  $region2: #{_lambda_.16} parent=0 // loop_pre_header
    _
  $region3: #{_lambda_.16} parent=0 // loop_header
    %s9 = sphi 0, %s13
    %p10 = scmp.ge.s32.totalorder %s9, 6
    %s16 = sphi 0, %s35
    %s17 = sphi 0, %s31
    %s18 = sphi 0, %s27
    %s19 = sphi 0, %s16
    %s20 = sphi 0, %s17
    %s21 = sphi 0, %s18
    %s22 = sphi 0, %s19
    %s23 = sphi 0, %s20
    %s24 = sphi 0, %s21
    %s40 = sphi 0, %s42
    %s43 = sphi 0, %s40
    %s44 = sphi 0, %s43
    %s60 = sphi 0, %s44
    %s68 = sphi 0, %s70
    %s71 = sphi 0, %s68
    %s72 = sphi 0, %s71
    %s88 = sphi 0, %s72
    %s94 = sphi 0, %s96
    %s97 = sphi 0, %s94
    %s98 = sphi 0, %s97
    %s114 = sphi 0, %s98
    %s122 = sphi 0, %s124
    %s125 = sphi 0, %s122
    %s126 = sphi 0, %s125
    %s142 = sphi 0, %s126
  $region4: #{_lambda_.16} parent=0 // loop_header_branch
    %12 = sbr.rel (%p10) target = $region8
  $region5: #{_lambda_.16} parent=0 // loop_body
    %s14 = ssub.s32 %s9, 1
    %s15 = ssub.s32 %s9, 2
    %s25 = sadd.s32 1, %s18
    %p26 = scmp.ge.s32.totalorder %s25, 1
    %s27 = scalar_select %p26, 0, %s25
    %s28 = sadd.s32 1, %s17
    %s29 = scalar_select %p26, %s28, %s17
    %p30 = scmp.ge.s32.totalorder %s29, 1
    %s31 = scalar_select %p30, 0, %s29
    %s32 = sadd.s32 1, %s16
    %s33 = scalar_select %p30, %s32, %s16
    %p34 = scmp.ge.s32.totalorder %s33, 4
    %s35 = scalar_select %p34, 0, %s33
    %s36 = ssub.s32 %s16, %s35
    %s37 = ssub.s32 %s18, %s27
    %s38 = sor.u32 %s36, %s37
    %p39 = scmp.eq.s32.totalorder %s38, 0
    %s41 = sadd.s32 %s40, 1
    %s42 = scalar_select %p39, %s40, %s41
    %p45 = pneg %p39
    %p46 = scmp.eq.s32.totalorder %s9, 3
    %p47 = por %p45, %p46
    %p48 = scmp.ne.s32.totalorder %s40, %s43
    %p49 = scmp.eq.s32.totalorder %s9, 0
    %p50 = por %p48, %p49
    %p51 = scmp.ne.s32.totalorder %s40, %s43
    %p52 = scmp.eq.s32.totalorder %s14, 3
    %p53 = por %p51, %p52
    %p54 = scmp.ne.s32.totalorder %s43, %s44
    %p55 = scmp.eq.s32.totalorder %s14, 0
    %p56 = por %p54, %p55
    %p57 = scmp.ne.s32.totalorder %s43, %s44
    %p58 = scmp.eq.s32.totalorder %s15, 3
    %p59 = por %p57, %p58
    %p61 = scmp.ne.s32.totalorder %s44, %s60
    %p62 = scmp.eq.s32.totalorder %s15, 0
    %p63 = por %p61, %p62
    %s64 = ssub.s32 %s18, %s27
    %s65 = ssub.s32 %s17, %s31
    %s66 = sor.u32 %s64, %s65
    %p67 = scmp.eq.s32.totalorder %s66, 0
    %s69 = sadd.s32 %s68, 1
    %s70 = scalar_select %p67, %s68, %s69
    %p73 = pneg %p67
    %p74 = scmp.eq.s32.totalorder %s9, 3
    %p75 = por %p73, %p74
    %p76 = scmp.ne.s32.totalorder %s68, %s71
    %p77 = scmp.eq.s32.totalorder %s9, 0
    %p78 = por %p76, %p77
    %p79 = scmp.ne.s32.totalorder %s68, %s71
    %p80 = scmp.eq.s32.totalorder %s14, 3
    %p81 = por %p79, %p80
    %p82 = scmp.ne.s32.totalorder %s71, %s72
    %p83 = scmp.eq.s32.totalorder %s14, 0
    %p84 = por %p82, %p83
    %p85 = scmp.ne.s32.totalorder %s71, %s72
    %p86 = scmp.eq.s32.totalorder %s15, 3
    %p87 = por %p85, %p86
    %p89 = scmp.ne.s32.totalorder %s72, %s88
    %p90 = scmp.eq.s32.totalorder %s15, 0
    %p91 = por %p89, %p90
    %s92 = ssub.s32 %s17, %s31
    %p93 = scmp.eq.s32.totalorder %s92, 0
    %s95 = sadd.s32 %s94, 1
    %s96 = scalar_select %p93, %s94, %s95
    %p99 = pneg %p93
    %p100 = scmp.eq.s32.totalorder %s9, 3
    %p101 = por %p99, %p100
    %p102 = scmp.ne.s32.totalorder %s94, %s97
    %p103 = scmp.eq.s32.totalorder %s9, 0
    %p104 = por %p102, %p103
    %p105 = scmp.ne.s32.totalorder %s94, %s97
    %p106 = scmp.eq.s32.totalorder %s14, 3
    %p107 = por %p105, %p106
    %p108 = scmp.ne.s32.totalorder %s97, %s98
    %p109 = scmp.eq.s32.totalorder %s14, 0
    %p110 = por %p108, %p109
    %p111 = scmp.ne.s32.totalorder %s97, %s98
    %p112 = scmp.eq.s32.totalorder %s15, 3
    %p113 = por %p111, %p112
    %p115 = scmp.ne.s32.totalorder %s98, %s114
    %p116 = scmp.eq.s32.totalorder %s15, 0
    %p117 = por %p115, %p116
    %s118 = ssub.s32 %s16, %s35
    %s119 = ssub.s32 %s17, %s31
    %s120 = sor.u32 %s118, %s119
    %p121 = scmp.eq.s32.totalorder %s120, 0
    %s123 = sadd.s32 %s122, 1
    %s124 = scalar_select %p121, %s122, %s123
    %p127 = pneg %p121
    %p128 = scmp.eq.s32.totalorder %s9, 3
    %p129 = por %p127, %p128
    %p130 = scmp.ne.s32.totalorder %s122, %s125
    %p131 = scmp.eq.s32.totalorder %s9, 0
    %p132 = por %p130, %p131
    %p133 = scmp.ne.s32.totalorder %s122, %s125
    %p134 = scmp.eq.s32.totalorder %s14, 3
    %p135 = por %p133, %p134
    %p136 = scmp.ne.s32.totalorder %s125, %s126
    %p137 = scmp.eq.s32.totalorder %s14, 0
    %p138 = por %p136, %p137
    %p139 = scmp.ne.s32.totalorder %s125, %s126
    %p140 = scmp.eq.s32.totalorder %s15, 3
    %p141 = por %p139, %p140
    %p143 = scmp.ne.s32.totalorder %s126, %s142
    %p144 = scmp.eq.s32.totalorder %s15, 0
    %p145 = por %p143, %p144
    %p146 = scmp.le.s32.totalorder 1, %s9
    %p147 = scmp.lt.s32.totalorder %s9, 5
    %p148 = pnand %p146, %p147
    %p149 = pneg %p148
    // Predicated region
    $region9: #{_lambda_.16} parent=5 // pred_check
      _
    $region10: #{_lambda_.16} parent=5 // pred_check_branch
      %151 = sbr.rel (%p148) target = $region12
    $region11: #{_lambda_.16} parent=5 // pred_region
      %s152 = ssub.s32 %s9, 1
      // Predicated region
      $region13: #{_lambda_.16} parent=11 // pred_check
        %p153 = pneg %p84
      $region14: #{_lambda_.16} parent=11 // pred_check_branch
        %155 = sbr.rel (%p153) target = $region16
      $region15: #{_lambda_.16} parent=11 // pred_region
        %s156 = smul.u32 32, %s21
        %p157 = scmp.lt.s32.totalorder %s156, 31
        %s158 = scalar_select %p157, %s156, 31
        %p159 = scmp.lt.s32.totalorder %s20, 0
        %s160 = scalar_select %p159, %s20, 0
        %s161 = sadd.s32 %s160, %s158
        %s162 = smul.addr %s161, 4
        %s163 = scalar_lea.vmem %s1, %s162
        %s164 = smul.u32 32, %s21
      $region16: #{_lambda_.16} parent=11 // pred_fallthru
        _
      // Predicated region
      $region17: #{_lambda_.16} parent=11 // pred_check
        %p165 = pneg %p110
      $region18: #{_lambda_.16} parent=11 // pred_check_branch
        %167 = sbr.rel (%p165) target = $region20
      $region19: #{_lambda_.16} parent=11 // pred_region
        %p168 = scmp.lt.s32.totalorder %s20, 0
        %s169 = scalar_select %p168, %s20, 0
        %s170 = smul.addr %s169, 2
        %s171 = scalar_lea.vmem %s2, %s170
      $region20: #{_lambda_.16} parent=11 // pred_fallthru
        _
    $region12: #{_lambda_.16} parent=5 // pred_fallthru
      _
    %p172 = scmp.lt.s32.totalorder %s9, 4
    // Predicated region
    $region21: #{_lambda_.16} parent=5 // pred_check
      %p173 = pneg %p172
    $region22: #{_lambda_.16} parent=5 // pred_check_branch
      %175 = sbr.rel (%p173) target = $region24
    $region23: #{_lambda_.16} parent=5 // pred_region
      // Predicated region
      $region25: #{_lambda_.16} parent=23 // pred_check
        %p176 = pneg %p50
      $region26: #{_lambda_.16} parent=23 // pred_check_branch
        %178 = sbr.rel (%p176) target = $region28
      $region27: #{_lambda_.16} parent=23 // pred_region
        %s179 = smul.u32 64, %s16
        %s180 = smul.u32 2, %s18
        %p181 = scmp.lt.s32.totalorder %s179, 255
        %s182 = scalar_select %p181, %s179, 255
        %p183 = scmp.lt.s32.totalorder %s180, 1
        %s184 = scalar_select %p183, %s180, 1
        %s185 = smul.addr %s182, 2
        %s186 = sadd.s32 %s184, %s185
        %s187 = smul.addr %s186, 4
        %s188 = scalar_lea.vmem %s0, %s187
        %s189 = smul.u32 64, %s16
        %s190 = smul.u32 2, %s18
      $region28: #{_lambda_.16} parent=23 // pred_fallthru
        _
    $region24: #{_lambda_.16} parent=5 // pred_fallthru
      _
    %p191 = scmp.le.s32.totalorder 1, %s9
    %p192 = scmp.lt.s32.totalorder %s9, 5
    %p193 = pnand %p191, %p192
    %p194 = pneg %p193
    // Predicated region
    $region29: #{_lambda_.16} parent=5 // pred_check
      _
    $region30: #{_lambda_.16} parent=5 // pred_check_branch
      %196 = sbr.rel (%p193) target = $region32
    $region31: #{_lambda_.16} parent=5 // pred_region
      %s197 = ssub.s32 %s9, 1
      %s198 = smul.u32 64, %s19
      %s199 = smul.u32 2, %s21
      %p200 = scmp.lt.s32.totalorder %s198, 255
      %s201 = scalar_select %p200, %s198, 255
      %p202 = scmp.lt.s32.totalorder %s199, 1
      %s203 = scalar_select %p202, %s199, 1
      %s204 = smul.addr %s201, 2
      %s205 = sadd.s32 %s203, %s204
      %s206 = smul.addr %s205, 4
      %s207 = scalar_lea.vmem %s0, %s206
      %p208 = pneg %p56
      %p209 = pneg %p53
      %s210 = smul.u32 32, %s21
      %p211 = scmp.lt.s32.totalorder %s210, 31
      %s212 = scalar_select %p211, %s210, 31
      %p213 = scmp.lt.s32.totalorder %s20, 0
      %s214 = scalar_select %p213, %s20, 0
      %s215 = sadd.s32 %s214, %s212
      %s216 = smul.addr %s215, 4
      %s217 = scalar_lea.vmem %s1, %s216
      %p218 = pneg %p84
      %p219 = pneg %p81
      %p220 = scmp.lt.s32.totalorder %s20, 0
      %s221 = scalar_select %p220, %s20, 0
      %s222 = smul.addr %s221, 2
      %s223 = scalar_lea.vmem %s2, %s222
      %p224 = pneg %p110
      %p225 = pneg %p107
      %p226 = pneg %p138
      %p227 = pneg %p135
      %s228 = smul.u32 64, %s19
      %p229 = scmp.lt.s32.totalorder %s228, 255
      %s230 = scalar_select %p229, %s228, 255
      %p231 = scmp.lt.s32.totalorder %s20, 0
      %s232 = scalar_select %p231, %s20, 0
      %s233 = sadd.s32 %s232, %s230
      %s234 = smul.addr %s233, 4
      %s235 = scalar_lea.vmem %s3, %s234
      %s236 = smul.u32 64, %s19
      %s237 = smul.u32 2, %s21
      %p238 = scmp.lt.s32.totalorder %s236, 255
      %s239 = scalar_select %p238, %s236, 255
      %p240 = scmp.lt.s32.totalorder %s237, 1
      %s241 = scalar_select %p240, %s237, 1
      %s242 = smul.addr %s239, 2
      %s243 = sadd.s32 %s241, %s242
      %s244 = smul.addr %s243, 4
      %s245 = scalar_lea.vmem %s0, %s244
      %s246 = smul.u32 64, %s19
      %s247 = smul.u32 2, %s21
      %s248 = smul.u32 32, %s21
      %p249 = scmp.lt.s32.totalorder %s248, 31
      %s250 = scalar_select %p249, %s248, 31
      %p251 = scmp.lt.s32.totalorder %s20, 0
      %s252 = scalar_select %p251, %s20, 0
      %s253 = sadd.s32 %s252, %s250
      %s254 = smul.addr %s253, 4
      %s255 = scalar_lea.vmem %s1, %s254
      %s256 = smul.u32 32, %s21
      %p257 = scmp.lt.s32.totalorder %s20, 0
      %s258 = scalar_select %p257, %s20, 0
      %s259 = smul.addr %s258, 2
      %s260 = scalar_lea.vmem %s2, %s259
      %s261 = smul.u32 64, %s19
      %p262 = scmp.lt.s32.totalorder %s261, 255
      %s263 = scalar_select %p262, %s261, 255
      %p264 = scmp.lt.s32.totalorder %s20, 0
      %s265 = scalar_select %p264, %s20, 0
      %s266 = sadd.s32 %s265, %s263
      %s267 = smul.addr %s266, 4
      %s268 = scalar_lea.vmem %s3, %s267
      %s269 = smul.u32 64, %s19
      %v271 = vld [vmem:[%s245] sm:$0xff]
      %v272 = vld [vmem:[%s245 + $0x8] sm:$0xff]
      %v273 = vld [vmem:[%s245 + $0x10] sm:$0xff]
      %v274 = vld [vmem:[%s245 + $0x18] sm:$0xff]
      %v275 = vld [vmem:[%s245 + $0x20] sm:$0xff]
      %v276 = vld [vmem:[%s245 + $0x28] sm:$0xff]
      %v277 = vld [vmem:[%s245 + $0x30] sm:$0xff]
      %v278 = vld [vmem:[%s245 + $0x38] sm:$0xff]
      %v279 = vld [vmem:[%s245 + $0x40] sm:$0xff]
      %v280 = vld [vmem:[%s245 + $0x48] sm:$0xff]
      %v281 = vld [vmem:[%s245 + $0x50] sm:$0xff]
      %v282 = vld [vmem:[%s245 + $0x58] sm:$0xff]
      %v283 = vld [vmem:[%s245 + $0x60] sm:$0xff]
      %v284 = vld [vmem:[%s245 + $0x68] sm:$0xff]
      %v285 = vld [vmem:[%s245 + $0x70] sm:$0xff]
      %v286 = vld [vmem:[%s245 + $0x78] sm:$0xff]
      %v287 = vld [vmem:[%s245 + $0x80] sm:$0xff]
      %v288 = vld [vmem:[%s245 + $0x88] sm:$0xff]
      %v289 = vld [vmem:[%s245 + $0x90] sm:$0xff]
      %v290 = vld [vmem:[%s245 + $0x98] sm:$0xff]
      %v291 = vld [vmem:[%s245 + $0xa0] sm:$0xff]
      %v292 = vld [vmem:[%s245 + $0xa8] sm:$0xff]
      %v293 = vld [vmem:[%s245 + $0xb0] sm:$0xff]
      %v294 = vld [vmem:[%s245 + $0xb8] sm:$0xff]
      %v295 = vld [vmem:[%s245 + $0xc0] sm:$0xff]
      %v296 = vld [vmem:[%s245 + $0xc8] sm:$0xff]
      %v297 = vld [vmem:[%s245 + $0xd0] sm:$0xff]
      %v298 = vld [vmem:[%s245 + $0xd8] sm:$0xff]
      %v299 = vld [vmem:[%s245 + $0xe0] sm:$0xff]
      %v300 = vld [vmem:[%s245 + $0xe8] sm:$0xff]
      %v301 = vld [vmem:[%s245 + $0xf0] sm:$0xff]
      %v302 = vld [vmem:[%s245 + $0xf8] sm:$0xff]
      %v303 = vld [vmem:[%s245 + $0x100] sm:$0xff]
      %v304 = vld [vmem:[%s245 + $0x108] sm:$0xff]
      %v305 = vld [vmem:[%s245 + $0x110] sm:$0xff]
      %v306 = vld [vmem:[%s245 + $0x118] sm:$0xff]
      %v307 = vld [vmem:[%s245 + $0x120] sm:$0xff]
      %v308 = vld [vmem:[%s245 + $0x128] sm:$0xff]
      %v309 = vld [vmem:[%s245 + $0x130] sm:$0xff]
      %v310 = vld [vmem:[%s245 + $0x138] sm:$0xff]
      %v311 = vld [vmem:[%s245 + $0x140] sm:$0xff]
      %v312 = vld [vmem:[%s245 + $0x148] sm:$0xff]
      %v313 = vld [vmem:[%s245 + $0x150] sm:$0xff]
      %v314 = vld [vmem:[%s245 + $0x158] sm:$0xff]
      %v315 = vld [vmem:[%s245 + $0x160] sm:$0xff]
      %v316 = vld [vmem:[%s245 + $0x168] sm:$0xff]
      %v317 = vld [vmem:[%s245 + $0x170] sm:$0xff]
      %v318 = vld [vmem:[%s245 + $0x178] sm:$0xff]
      %v319 = vld [vmem:[%s245 + $0x180] sm:$0xff]
      %v320 = vld [vmem:[%s245 + $0x188] sm:$0xff]
      %v321 = vld [vmem:[%s245 + $0x190] sm:$0xff]
      %v322 = vld [vmem:[%s245 + $0x198] sm:$0xff]
      %v323 = vld [vmem:[%s245 + $0x1a0] sm:$0xff]
      %v324 = vld [vmem:[%s245 + $0x1a8] sm:$0xff]
      %v325 = vld [vmem:[%s245 + $0x1b0] sm:$0xff]
      %v326 = vld [vmem:[%s245 + $0x1b8] sm:$0xff]
      %v327 = vld [vmem:[%s245 + $0x1c0] sm:$0xff]
      %v328 = vld [vmem:[%s245 + $0x1c8] sm:$0xff]
      %v329 = vld [vmem:[%s245 + $0x1d0] sm:$0xff]
      %v330 = vld [vmem:[%s245 + $0x1d8] sm:$0xff]
      %v331 = vld [vmem:[%s245 + $0x1e0] sm:$0xff]
      %v332 = vld [vmem:[%s245 + $0x1e8] sm:$0xff]
      %v333 = vld [vmem:[%s245 + $0x1f0] sm:$0xff]
      %v334 = vld [vmem:[%s245 + $0x1f8] sm:$0xff]
      %v335 = vld [vmem:[%s255] sm:$0xf]
      %v336 = vld [vmem:[%s255 + $0x4] sm:$0xf]
      %v337 = vld [vmem:[%s255 + $0x8] sm:$0xf]
      %v338 = vld [vmem:[%s255 + $0xc] sm:$0xf]
      %v339 = vld [vmem:[%s255 + $0x10] sm:$0xf]
      %v340 = vld [vmem:[%s255 + $0x14] sm:$0xf]
      %v341 = vld [vmem:[%s255 + $0x18] sm:$0xf]
      %v342 = vld [vmem:[%s255 + $0x1c] sm:$0xf]
      %v343 = vld [vmem:[%s255 + $0x20] sm:$0xf]
      %v344 = vld [vmem:[%s255 + $0x24] sm:$0xf]
      %v345 = vld [vmem:[%s255 + $0x28] sm:$0xf]
      %v346 = vld [vmem:[%s255 + $0x2c] sm:$0xf]
      %v347 = vld [vmem:[%s255 + $0x30] sm:$0xf]
      %v348 = vld [vmem:[%s255 + $0x34] sm:$0xf]
      %v349 = vld [vmem:[%s255 + $0x38] sm:$0xf]
      %v350 = vld [vmem:[%s255 + $0x3c] sm:$0xf]
      %v351 = vld [vmem:[%s255 + $0x40] sm:$0xf]
      %v352 = vld [vmem:[%s255 + $0x44] sm:$0xf]
      %v353 = vld [vmem:[%s255 + $0x48] sm:$0xf]
      %v354 = vld [vmem:[%s255 + $0x4c] sm:$0xf]
      %v355 = vld [vmem:[%s255 + $0x50] sm:$0xf]
      %v356 = vld [vmem:[%s255 + $0x54] sm:$0xf]
      %v357 = vld [vmem:[%s255 + $0x58] sm:$0xf]
      %v358 = vld [vmem:[%s255 + $0x5c] sm:$0xf]
      %v359 = vld [vmem:[%s255 + $0x60] sm:$0xf]
      %v360 = vld [vmem:[%s255 + $0x64] sm:$0xf]
      %v361 = vld [vmem:[%s255 + $0x68] sm:$0xf]
      %v362 = vld [vmem:[%s255 + $0x6c] sm:$0xf]
      %v363 = vld [vmem:[%s255 + $0x70] sm:$0xf]
      %v364 = vld [vmem:[%s255 + $0x74] sm:$0xf]
      %v365 = vld [vmem:[%s255 + $0x78] sm:$0xf]
      %v366 = vld [vmem:[%s255 + $0x7c] sm:$0xf]
      %v431 = vunpack.c.l.b16 %v271
      %v432 = vunpack.c.h.b16 %v271
      %v433 = vunpack.c.l.b16 %v272
      %v434 = vunpack.c.h.b16 %v272
      %v435 = vunpack.c.l.b16 %v273
      %v436 = vunpack.c.h.b16 %v273
      %v437 = vunpack.c.l.b16 %v274
      %v438 = vunpack.c.h.b16 %v274
      %v439 = vunpack.c.l.b16 %v275
      %v440 = vunpack.c.h.b16 %v275
      %v441 = vunpack.c.l.b16 %v276
      %v442 = vunpack.c.h.b16 %v276
      %v443 = vunpack.c.l.b16 %v277
      %v444 = vunpack.c.h.b16 %v277
      %v445 = vunpack.c.l.b16 %v278
      %v446 = vunpack.c.h.b16 %v278
      %v447 = vunpack.c.l.b16 %v279
      %v448 = vunpack.c.h.b16 %v279
      %v449 = vunpack.c.l.b16 %v280
      %v450 = vunpack.c.h.b16 %v280
      %v451 = vunpack.c.l.b16 %v281
      %v452 = vunpack.c.h.b16 %v281
      %v453 = vunpack.c.l.b16 %v282
      %v454 = vunpack.c.h.b16 %v282
      %v455 = vunpack.c.l.b16 %v283
      %v456 = vunpack.c.h.b16 %v283
      %v457 = vunpack.c.l.b16 %v284
      %v458 = vunpack.c.h.b16 %v284
      %v459 = vunpack.c.l.b16 %v285
      %v460 = vunpack.c.h.b16 %v285
      %v461 = vunpack.c.l.b16 %v286
      %v462 = vunpack.c.h.b16 %v286
      %v463 = vunpack.c.l.b16 %v287
      %v464 = vunpack.c.h.b16 %v287
      %v465 = vunpack.c.l.b16 %v288
      %v466 = vunpack.c.h.b16 %v288
      %v467 = vunpack.c.l.b16 %v289
      %v468 = vunpack.c.h.b16 %v289
      %v469 = vunpack.c.l.b16 %v290
      %v470 = vunpack.c.h.b16 %v290
      %v471 = vunpack.c.l.b16 %v291
      %v472 = vunpack.c.h.b16 %v291
      %v473 = vunpack.c.l.b16 %v292
      %v474 = vunpack.c.h.b16 %v292
      %v475 = vunpack.c.l.b16 %v293
      %v476 = vunpack.c.h.b16 %v293
      %v477 = vunpack.c.l.b16 %v294
      %v478 = vunpack.c.h.b16 %v294
      %v479 = vunpack.c.l.b16 %v295
      %v480 = vunpack.c.h.b16 %v295
      %v481 = vunpack.c.l.b16 %v296
      %v482 = vunpack.c.h.b16 %v296
      %v483 = vunpack.c.l.b16 %v297
      %v484 = vunpack.c.h.b16 %v297
      %v485 = vunpack.c.l.b16 %v298
      %v486 = vunpack.c.h.b16 %v298
      %v487 = vunpack.c.l.b16 %v299
      %v488 = vunpack.c.h.b16 %v299
      %v489 = vunpack.c.l.b16 %v300
      %v490 = vunpack.c.h.b16 %v300
      %v491 = vunpack.c.l.b16 %v301
      %v492 = vunpack.c.h.b16 %v301
      %v493 = vunpack.c.l.b16 %v302
      %v494 = vunpack.c.h.b16 %v302
      %v495 = vunpack.c.l.b16 %v303
      %v496 = vunpack.c.h.b16 %v303
      %v497 = vunpack.c.l.b16 %v304
      %v498 = vunpack.c.h.b16 %v304
      %v499 = vunpack.c.l.b16 %v305
      %v500 = vunpack.c.h.b16 %v305
      %v501 = vunpack.c.l.b16 %v306
      %v502 = vunpack.c.h.b16 %v306
      %v503 = vunpack.c.l.b16 %v307
      %v504 = vunpack.c.h.b16 %v307
      %v505 = vunpack.c.l.b16 %v308
      %v506 = vunpack.c.h.b16 %v308
      %v507 = vunpack.c.l.b16 %v309
      %v508 = vunpack.c.h.b16 %v309
      %v509 = vunpack.c.l.b16 %v310
      %v510 = vunpack.c.h.b16 %v310
      %v511 = vunpack.c.l.b16 %v311
      %v512 = vunpack.c.h.b16 %v311
      %v513 = vunpack.c.l.b16 %v312
      %v514 = vunpack.c.h.b16 %v312
      %v515 = vunpack.c.l.b16 %v313
      %v516 = vunpack.c.h.b16 %v313
      %v517 = vunpack.c.l.b16 %v314
      %v518 = vunpack.c.h.b16 %v314
      %v519 = vunpack.c.l.b16 %v315
      %v520 = vunpack.c.h.b16 %v315
      %v521 = vunpack.c.l.b16 %v316
      %v522 = vunpack.c.h.b16 %v316
      %v523 = vunpack.c.l.b16 %v317
      %v524 = vunpack.c.h.b16 %v317
      %v525 = vunpack.c.l.b16 %v318
      %v526 = vunpack.c.h.b16 %v318
      %v527 = vunpack.c.l.b16 %v319
      %v528 = vunpack.c.h.b16 %v319
      %v529 = vunpack.c.l.b16 %v320
      %v530 = vunpack.c.h.b16 %v320
      %v531 = vunpack.c.l.b16 %v321
      %v532 = vunpack.c.h.b16 %v321
      %v533 = vunpack.c.l.b16 %v322
      %v534 = vunpack.c.h.b16 %v322
      %v535 = vunpack.c.l.b16 %v323
      %v536 = vunpack.c.h.b16 %v323
      %v537 = vunpack.c.l.b16 %v324
      %v538 = vunpack.c.h.b16 %v324
      %v539 = vunpack.c.l.b16 %v325
      %v540 = vunpack.c.h.b16 %v325
      %v541 = vunpack.c.l.b16 %v326
      %v542 = vunpack.c.h.b16 %v326
      %v543 = vunpack.c.l.b16 %v327
      %v544 = vunpack.c.h.b16 %v327
      %v545 = vunpack.c.l.b16 %v328
      %v546 = vunpack.c.h.b16 %v328
      %v547 = vunpack.c.l.b16 %v329
      %v548 = vunpack.c.h.b16 %v329
      %v549 = vunpack.c.l.b16 %v330
      %v550 = vunpack.c.h.b16 %v330
      %v551 = vunpack.c.l.b16 %v331
      %v552 = vunpack.c.h.b16 %v331
      %v553 = vunpack.c.l.b16 %v332
      %v554 = vunpack.c.h.b16 %v332
      %v555 = vunpack.c.l.b16 %v333
      %v556 = vunpack.c.h.b16 %v333
      %v557 = vunpack.c.l.b16 %v334
      %v558 = vunpack.c.h.b16 %v334
      %v559 = vpack.c.b16 %v433, %v431
      %v560 = vpack.c.b16 %v434, %v432
      %v561 = vpack.c.b16 %v437, %v435
      %v562 = vpack.c.b16 %v438, %v436
      %v563 = vpack.c.b16 %v441, %v439
      %v564 = vpack.c.b16 %v442, %v440
      %v565 = vpack.c.b16 %v445, %v443
      %v566 = vpack.c.b16 %v446, %v444
      %v567 = vpack.c.b16 %v449, %v447
      %v568 = vpack.c.b16 %v450, %v448
      %v569 = vpack.c.b16 %v453, %v451
      %v570 = vpack.c.b16 %v454, %v452
      %v571 = vpack.c.b16 %v457, %v455
      %v572 = vpack.c.b16 %v458, %v456
      %v573 = vpack.c.b16 %v461, %v459
      %v574 = vpack.c.b16 %v462, %v460
      %v575 = vpack.c.b16 %v465, %v463
      %v576 = vpack.c.b16 %v466, %v464
      %v577 = vpack.c.b16 %v469, %v467
      %v578 = vpack.c.b16 %v470, %v468
      %v579 = vpack.c.b16 %v473, %v471
      %v580 = vpack.c.b16 %v474, %v472
      %v581 = vpack.c.b16 %v477, %v475
      %v582 = vpack.c.b16 %v478, %v476
      %v583 = vpack.c.b16 %v481, %v479
      %v584 = vpack.c.b16 %v482, %v480
      %v585 = vpack.c.b16 %v485, %v483
      %v586 = vpack.c.b16 %v486, %v484
      %v587 = vpack.c.b16 %v489, %v487
      %v588 = vpack.c.b16 %v490, %v488
      %v589 = vpack.c.b16 %v493, %v491
      %v590 = vpack.c.b16 %v494, %v492
      %v591 = vpack.c.b16 %v497, %v495
      %v592 = vpack.c.b16 %v498, %v496
      %v593 = vpack.c.b16 %v501, %v499
      %v594 = vpack.c.b16 %v502, %v500
      %v595 = vpack.c.b16 %v505, %v503
      %v596 = vpack.c.b16 %v506, %v504
      %v597 = vpack.c.b16 %v509, %v507
      %v598 = vpack.c.b16 %v510, %v508
      %v599 = vpack.c.b16 %v513, %v511
      %v600 = vpack.c.b16 %v514, %v512
      %v601 = vpack.c.b16 %v517, %v515
      %v602 = vpack.c.b16 %v518, %v516
      %v603 = vpack.c.b16 %v521, %v519
      %v604 = vpack.c.b16 %v522, %v520
      %v605 = vpack.c.b16 %v525, %v523
      %v606 = vpack.c.b16 %v526, %v524
      %v607 = vpack.c.b16 %v529, %v527
      %v608 = vpack.c.b16 %v530, %v528
      %v609 = vpack.c.b16 %v533, %v531
      %v610 = vpack.c.b16 %v534, %v532
      %v611 = vpack.c.b16 %v537, %v535
      %v612 = vpack.c.b16 %v538, %v536
      %v613 = vpack.c.b16 %v541, %v539
      %v614 = vpack.c.b16 %v542, %v540
      %v615 = vpack.c.b16 %v545, %v543
      %v616 = vpack.c.b16 %v546, %v544
      %v617 = vpack.c.b16 %v549, %v547
      %v618 = vpack.c.b16 %v550, %v548
      %v619 = vpack.c.b16 %v553, %v551
      %v620 = vpack.c.b16 %v554, %v552
      %v621 = vpack.c.b16 %v557, %v555
      %v622 = vpack.c.b16 %v558, %v556
      %v719 = vunpack.c.l.b16 %v335
      %v720 = vunpack.c.l.b16 %v336
      %v721 = vunpack.c.l.b16 %v337
      %v722 = vunpack.c.l.b16 %v338
      %v723 = vunpack.c.l.b16 %v339
      %v724 = vunpack.c.l.b16 %v340
      %v725 = vunpack.c.l.b16 %v341
      %v726 = vunpack.c.l.b16 %v342
      %v727 = vunpack.c.l.b16 %v343
      %v728 = vunpack.c.l.b16 %v344
      %v729 = vunpack.c.l.b16 %v345
      %v730 = vunpack.c.l.b16 %v346
      %v731 = vunpack.c.l.b16 %v347
      %v732 = vunpack.c.l.b16 %v348
      %v733 = vunpack.c.l.b16 %v349
      %v734 = vunpack.c.l.b16 %v350
      %v735 = vunpack.c.l.b16 %v351
      %v736 = vunpack.c.l.b16 %v352
      %v737 = vunpack.c.l.b16 %v353
      %v738 = vunpack.c.l.b16 %v354
      %v739 = vunpack.c.l.b16 %v355
      %v740 = vunpack.c.l.b16 %v356
      %v741 = vunpack.c.l.b16 %v357
      %v742 = vunpack.c.l.b16 %v358
      %v743 = vunpack.c.l.b16 %v359
      %v744 = vunpack.c.l.b16 %v360
      %v745 = vunpack.c.l.b16 %v361
      %v746 = vunpack.c.l.b16 %v362
      %v747 = vunpack.c.l.b16 %v363
      %v748 = vunpack.c.l.b16 %v364
      %v749 = vunpack.c.l.b16 %v365
      %v750 = vunpack.c.l.b16 %v366
      %v751 = vpack.c.b16 %v720, %v719
      %v752 = vpack.c.b16 %v722, %v721
      %v753 = vpack.c.b16 %v724, %v723
      %v754 = vpack.c.b16 %v726, %v725
      %v755 = vpack.c.b16 %v728, %v727
      %v756 = vpack.c.b16 %v730, %v729
      %v757 = vpack.c.b16 %v732, %v731
      %v758 = vpack.c.b16 %v734, %v733
      %v759 = vpack.c.b16 %v736, %v735
      %v760 = vpack.c.b16 %v738, %v737
      %v761 = vpack.c.b16 %v740, %v739
      %v762 = vpack.c.b16 %v742, %v741
      %v763 = vpack.c.b16 %v744, %v743
      %v764 = vpack.c.b16 %v746, %v745
      %v765 = vpack.c.b16 %v748, %v747
      %v766 = vpack.c.b16 %v750, %v749
      %783 = vmatprep.subr.bf16.mxu0 0
      %784 = vmatpush1.bf16.msra.mxu0 %v758
      %785 = vmatprep.subr.bf16.mxu0 0
      %786 = vmatpush1.bf16.msra.mxu0 %v757
      %787 = vmatprep.subr.bf16.mxu0 0
      %788 = vmatpush1.bf16.msra.mxu0 %v756
      %789 = vmatprep.subr.bf16.mxu0 0
      %790 = vmatpush1.bf16.msra.mxu0 %v755
      %791 = vmatprep.subr.bf16.mxu0 0
      %792 = vmatpush1.bf16.msra.mxu0 %v754
      %793 = vmatprep.subr.bf16.mxu0 0
      %794 = vmatpush1.bf16.msra.mxu0 %v753
      %795 = vmatprep.subr.bf16.mxu0 0
      %796 = vmatpush1.bf16.msra.mxu0 %v752
      %797 = vmatprep.subr.bf16.mxu0 0
      %798 = vmatpush1.bf16.msra.mxu0 %v751
      %799 = vmatprep.subr.bf16.mxu0 0
      %800 = vmatpush2.bf16.msra.mxu0 %v766
      %801 = vmatprep.subr.bf16.mxu0 0
      %802 = vmatpush2.bf16.msra.mxu0 %v765
      %803 = vmatprep.subr.bf16.mxu0 0
      %804 = vmatpush2.bf16.msra.mxu0 %v764
      %805 = vmatprep.subr.bf16.mxu0 0
      %806 = vmatpush2.bf16.msra.mxu0 %v763
      %807 = vmatprep.subr.bf16.mxu0 0
      %808 = vmatpush2.bf16.msra.mxu0 %v762
      %809 = vmatprep.subr.bf16.mxu0 0
      %810 = vmatpush2.bf16.msra.mxu0 %v761
      %811 = vmatprep.subr.bf16.mxu0 0
      %812 = vmatpush2.bf16.msra.mxu0 %v760
      %813 = vmatprep.subr.bf16.mxu0 0
      %814 = vmatpush2.bf16.msra.mxu0 %v759
      %815 = vmatprep.mubr.bf16.mxu0 %v560
      %816 = vmatmul.mubr.bf16.gmra.mxu0 %v559
      %v817 = vpop.f32.mrf.mxu0
      %v818 = vadd.f32 0.0, %v817
      %v819 = vpop.f32.mrf.mxu0
      %v820 = vpop.f32.mrf.mxu0
      %v821 = vadd.f32 0.0, %v820
      %v822 = vpop.f32.mrf.mxu0
      %823 = vmatprep.mubr.bf16.mxu0 %v562
      %824 = vmatmul.mubr.bf16.gmra.mxu0 %v561
      %v825 = vpop.f32.mrf.mxu0
      %v826 = vadd.f32 0.0, %v825
      %v827 = vpop.f32.mrf.mxu0
      %v828 = vpop.f32.mrf.mxu0
      %v829 = vadd.f32 0.0, %v828
      %v830 = vpop.f32.mrf.mxu0
      %831 = vmatprep.mubr.bf16.mxu0 %v564
      %832 = vmatmul.mubr.bf16.gmra.mxu0 %v563
      %v833 = vpop.f32.mrf.mxu0
      %v834 = vadd.f32 0.0, %v833
      %v835 = vpop.f32.mrf.mxu0
      %v836 = vpop.f32.mrf.mxu0
      %v837 = vadd.f32 0.0, %v836
      %v838 = vpop.f32.mrf.mxu0
      %839 = vmatprep.mubr.bf16.mxu0 %v566
      %840 = vmatmul.mubr.bf16.gmra.mxu0 %v565
      %v841 = vpop.f32.mrf.mxu0
      %v842 = vadd.f32 0.0, %v841
      %v843 = vpop.f32.mrf.mxu0
      %v844 = vpop.f32.mrf.mxu0
      %v845 = vadd.f32 0.0, %v844
      %v846 = vpop.f32.mrf.mxu0
      %847 = vmatprep.mubr.bf16.mxu0 %v568
      %848 = vmatmul.mubr.bf16.gmra.mxu0 %v567
      %v849 = vpop.f32.mrf.mxu0
      %v850 = vadd.f32 0.0, %v849
      %v851 = vpop.f32.mrf.mxu0
      %v852 = vpop.f32.mrf.mxu0
      %v853 = vadd.f32 0.0, %v852
      %v854 = vpop.f32.mrf.mxu0
      %855 = vmatprep.mubr.bf16.mxu0 %v570
      %856 = vmatmul.mubr.bf16.gmra.mxu0 %v569
      %v857 = vpop.f32.mrf.mxu0
      %v858 = vadd.f32 0.0, %v857
      %v859 = vpop.f32.mrf.mxu0
      %v860 = vpop.f32.mrf.mxu0
      %v861 = vadd.f32 0.0, %v860
      %v862 = vpop.f32.mrf.mxu0
      %863 = vmatprep.mubr.bf16.mxu0 %v572
      %864 = vmatmul.mubr.bf16.gmra.mxu0 %v571
      %v865 = vpop.f32.mrf.mxu0
      %v866 = vadd.f32 0.0, %v865
      %v867 = vpop.f32.mrf.mxu0
      %v868 = vpop.f32.mrf.mxu0
      %v869 = vadd.f32 0.0, %v868
      %v870 = vpop.f32.mrf.mxu0
      %871 = vmatprep.mubr.bf16.mxu0 %v574
      %872 = vmatmul.mubr.bf16.gmra.mxu0 %v573
      %v873 = vpop.f32.mrf.mxu0
      %v874 = vadd.f32 0.0, %v873
      %v875 = vpop.f32.mrf.mxu0
      %v876 = vpop.f32.mrf.mxu0
      %v877 = vadd.f32 0.0, %v876
      %v878 = vpop.f32.mrf.mxu0
      %879 = vmatprep.mubr.bf16.mxu0 %v576
      %880 = vmatmul.mubr.bf16.gmra.mxu0 %v575
      %v881 = vpop.f32.mrf.mxu0
      %v882 = vadd.f32 0.0, %v881
      %v883 = vpop.f32.mrf.mxu0
      %v884 = vpop.f32.mrf.mxu0
      %v885 = vadd.f32 0.0, %v884
      %v886 = vpop.f32.mrf.mxu0
      %887 = vmatprep.mubr.bf16.mxu0 %v578
      %888 = vmatmul.mubr.bf16.gmra.mxu0 %v577
      %v889 = vpop.f32.mrf.mxu0
      %v890 = vadd.f32 0.0, %v889
      %v891 = vpop.f32.mrf.mxu0
      %v892 = vpop.f32.mrf.mxu0
      %v893 = vadd.f32 0.0, %v892
      %v894 = vpop.f32.mrf.mxu0
      %895 = vmatprep.mubr.bf16.mxu0 %v580
      %896 = vmatmul.mubr.bf16.gmra.mxu0 %v579
      %v897 = vpop.f32.mrf.mxu0
      %v898 = vadd.f32 0.0, %v897
      %v899 = vpop.f32.mrf.mxu0
      %v900 = vpop.f32.mrf.mxu0
      %v901 = vadd.f32 0.0, %v900
      %v902 = vpop.f32.mrf.mxu0
      %903 = vmatprep.mubr.bf16.mxu0 %v582
      %904 = vmatmul.mubr.bf16.gmra.mxu0 %v581
      %v905 = vpop.f32.mrf.mxu0
      %v906 = vadd.f32 0.0, %v905
      %v907 = vpop.f32.mrf.mxu0
      %v908 = vpop.f32.mrf.mxu0
      %v909 = vadd.f32 0.0, %v908
      %v910 = vpop.f32.mrf.mxu0
      %911 = vmatprep.mubr.bf16.mxu0 %v584
      %912 = vmatmul.mubr.bf16.gmra.mxu0 %v583
      %v913 = vpop.f32.mrf.mxu0
      %v914 = vadd.f32 0.0, %v913
      %v915 = vpop.f32.mrf.mxu0
      %v916 = vpop.f32.mrf.mxu0
      %v917 = vadd.f32 0.0, %v916
      %v918 = vpop.f32.mrf.mxu0
      %919 = vmatprep.mubr.bf16.mxu0 %v586
      %920 = vmatmul.mubr.bf16.gmra.mxu0 %v585
      %v921 = vpop.f32.mrf.mxu0
      %v922 = vadd.f32 0.0, %v921
      %v923 = vpop.f32.mrf.mxu0
      %v924 = vpop.f32.mrf.mxu0
      %v925 = vadd.f32 0.0, %v924
      %v926 = vpop.f32.mrf.mxu0
      %927 = vmatprep.mubr.bf16.mxu0 %v588
      %928 = vmatmul.mubr.bf16.gmra.mxu0 %v587
      %v929 = vpop.f32.mrf.mxu0
      %v930 = vadd.f32 0.0, %v929
      %v931 = vpop.f32.mrf.mxu0
      %v932 = vpop.f32.mrf.mxu0
      %v933 = vadd.f32 0.0, %v932
      %v934 = vpop.f32.mrf.mxu0
      %935 = vmatprep.mubr.bf16.mxu0 %v590
      %936 = vmatmul.mubr.bf16.gmra.mxu0 %v589
      %v937 = vpop.f32.mrf.mxu0
      %v938 = vadd.f32 0.0, %v937
      %v939 = vpop.f32.mrf.mxu0
      %v940 = vpop.f32.mrf.mxu0
      %v941 = vadd.f32 0.0, %v940
      %v942 = vpop.f32.mrf.mxu0
      %943 = vmatprep.mubr.bf16.mxu0 %v592
      %944 = vmatmul.mubr.bf16.gmra.mxu0 %v591
      %v945 = vpop.f32.mrf.mxu0
      %v946 = vadd.f32 0.0, %v945
      %v947 = vpop.f32.mrf.mxu0
      %v948 = vpop.f32.mrf.mxu0
      %v949 = vadd.f32 0.0, %v948
      %v950 = vpop.f32.mrf.mxu0
      %951 = vmatprep.mubr.bf16.mxu0 %v594
      %952 = vmatmul.mubr.bf16.gmra.mxu0 %v593
      %v953 = vpop.f32.mrf.mxu0
      %v954 = vadd.f32 0.0, %v953
      %v955 = vpop.f32.mrf.mxu0
      %v956 = vpop.f32.mrf.mxu0
      %v957 = vadd.f32 0.0, %v956
      %v958 = vpop.f32.mrf.mxu0
      %959 = vmatprep.mubr.bf16.mxu0 %v596
      %960 = vmatmul.mubr.bf16.gmra.mxu0 %v595
      %v961 = vpop.f32.mrf.mxu0
      %v962 = vadd.f32 0.0, %v961
      %v963 = vpop.f32.mrf.mxu0
      %v964 = vpop.f32.mrf.mxu0
      %v965 = vadd.f32 0.0, %v964
      %v966 = vpop.f32.mrf.mxu0
      %967 = vmatprep.mubr.bf16.mxu0 %v598
      %968 = vmatmul.mubr.bf16.gmra.mxu0 %v597
      %v969 = vpop.f32.mrf.mxu0
      %v970 = vadd.f32 0.0, %v969
      %v971 = vpop.f32.mrf.mxu0
      %v972 = vpop.f32.mrf.mxu0
      %v973 = vadd.f32 0.0, %v972
      %v974 = vpop.f32.mrf.mxu0
      %975 = vmatprep.mubr.bf16.mxu0 %v600
      %976 = vmatmul.mubr.bf16.gmra.mxu0 %v599
      %v977 = vpop.f32.mrf.mxu0
      %v978 = vadd.f32 0.0, %v977
      %v979 = vpop.f32.mrf.mxu0
      %v980 = vpop.f32.mrf.mxu0
      %v981 = vadd.f32 0.0, %v980
      %v982 = vpop.f32.mrf.mxu0
      %983 = vmatprep.mubr.bf16.mxu0 %v602
      %984 = vmatmul.mubr.bf16.gmra.mxu0 %v601
      %v985 = vpop.f32.mrf.mxu0
      %v986 = vadd.f32 0.0, %v985
      %v987 = vpop.f32.mrf.mxu0
      %v988 = vpop.f32.mrf.mxu0
      %v989 = vadd.f32 0.0, %v988
      %v990 = vpop.f32.mrf.mxu0
      %991 = vmatprep.mubr.bf16.mxu0 %v604
      %992 = vmatmul.mubr.bf16.gmra.mxu0 %v603
      %v993 = vpop.f32.mrf.mxu0
      %v994 = vadd.f32 0.0, %v993
      %v995 = vpop.f32.mrf.mxu0
      %v996 = vpop.f32.mrf.mxu0
      %v997 = vadd.f32 0.0, %v996
      %v998 = vpop.f32.mrf.mxu0
      %999 = vmatprep.mubr.bf16.mxu0 %v606
      %1000 = vmatmul.mubr.bf16.gmra.mxu0 %v605
      %v1001 = vpop.f32.mrf.mxu0
      %v1002 = vadd.f32 0.0, %v1001
      %v1003 = vpop.f32.mrf.mxu0
      %v1004 = vpop.f32.mrf.mxu0
      %v1005 = vadd.f32 0.0, %v1004
      %v1006 = vpop.f32.mrf.mxu0
      %1007 = vmatprep.mubr.bf16.mxu0 %v608
      %1008 = vmatmul.mubr.bf16.gmra.mxu0 %v607
      %v1009 = vpop.f32.mrf.mxu0
      %v1010 = vadd.f32 0.0, %v1009
      %v1011 = vpop.f32.mrf.mxu0
      %v1012 = vpop.f32.mrf.mxu0
      %v1013 = vadd.f32 0.0, %v1012
      %v1014 = vpop.f32.mrf.mxu0
      %1015 = vmatprep.mubr.bf16.mxu0 %v610
      %1016 = vmatmul.mubr.bf16.gmra.mxu0 %v609
      %v1017 = vpop.f32.mrf.mxu0
      %v1018 = vadd.f32 0.0, %v1017
      %v1019 = vpop.f32.mrf.mxu0
      %v1020 = vpop.f32.mrf.mxu0
      %v1021 = vadd.f32 0.0, %v1020
      %v1022 = vpop.f32.mrf.mxu0
      %1023 = vmatprep.mubr.bf16.mxu0 %v612
      %1024 = vmatmul.mubr.bf16.gmra.mxu0 %v611
      %v1025 = vpop.f32.mrf.mxu0
      %v1026 = vadd.f32 0.0, %v1025
      %v1027 = vpop.f32.mrf.mxu0
      %v1028 = vpop.f32.mrf.mxu0
      %v1029 = vadd.f32 0.0, %v1028
      %v1030 = vpop.f32.mrf.mxu0
      %1031 = vmatprep.mubr.bf16.mxu0 %v614
      %1032 = vmatmul.mubr.bf16.gmra.mxu0 %v613
      %v1033 = vpop.f32.mrf.mxu0
      %v1034 = vadd.f32 0.0, %v1033
      %v1035 = vpop.f32.mrf.mxu0
      %v1036 = vpop.f32.mrf.mxu0
      %v1037 = vadd.f32 0.0, %v1036
      %v1038 = vpop.f32.mrf.mxu0
      %1039 = vmatprep.mubr.bf16.mxu0 %v616
      %1040 = vmatmul.mubr.bf16.gmra.mxu0 %v615
      %v1041 = vpop.f32.mrf.mxu0
      %v1042 = vadd.f32 0.0, %v1041
      %v1043 = vpop.f32.mrf.mxu0
      %v1044 = vpop.f32.mrf.mxu0
      %v1045 = vadd.f32 0.0, %v1044
      %v1046 = vpop.f32.mrf.mxu0
      %1047 = vmatprep.mubr.bf16.mxu0 %v618
      %1048 = vmatmul.mubr.bf16.gmra.mxu0 %v617
      %v1049 = vpop.f32.mrf.mxu0
      %v1050 = vadd.f32 0.0, %v1049
      %v1051 = vpop.f32.mrf.mxu0
      %v1052 = vpop.f32.mrf.mxu0
      %v1053 = vadd.f32 0.0, %v1052
      %v1054 = vpop.f32.mrf.mxu0
      %1055 = vmatprep.mubr.bf16.mxu0 %v620
      %1056 = vmatmul.mubr.bf16.gmra.mxu0 %v619
      %v1057 = vpop.f32.mrf.mxu0
      %v1058 = vadd.f32 0.0, %v1057
      %v1059 = vpop.f32.mrf.mxu0
      %v1060 = vpop.f32.mrf.mxu0
      %v1061 = vadd.f32 0.0, %v1060
      %v1062 = vpop.f32.mrf.mxu0
      %1063 = vmatprep.mubr.bf16.mxu0 %v622
      %1064 = vmatmul.mubr.bf16.gmra.mxu0 %v621
      %v1065 = vpop.f32.mrf.mxu0
      %v1066 = vadd.f32 0.0, %v1065
      %v1067 = vpop.f32.mrf.mxu0
      %v1068 = vpop.f32.mrf.mxu0
      %v1069 = vadd.f32 0.0, %v1068
      %v1070 = vpop.f32.mrf.mxu0
      %1071 = vdwg.mxu0
      %v1072 = vld [vmem:[%s260] sm:$0x1]
      %v1073 = vlaneseq
      %v1074 = vshrl.u32 %v1073, 7
      %v1075 = vsub.s32 0, %v1074
      %v1076 = vrot.slane %v1072, %v1075
      %v1077 = vmul.f32 %v818, %v1076
      %v1078 = vmul.f32 %v821, %v1076
      %v1079 = vmul.f32 %v826, %v1076
      %v1080 = vmul.f32 %v829, %v1076
      %v1081 = vmul.f32 %v834, %v1076
      %v1082 = vmul.f32 %v837, %v1076
      %v1083 = vmul.f32 %v842, %v1076
      %v1084 = vmul.f32 %v845, %v1076
      %v1085 = vmul.f32 %v850, %v1076
      %v1086 = vmul.f32 %v853, %v1076
      %v1087 = vmul.f32 %v858, %v1076
      %v1088 = vmul.f32 %v861, %v1076
      %v1089 = vmul.f32 %v866, %v1076
      %v1090 = vmul.f32 %v869, %v1076
      %v1091 = vmul.f32 %v874, %v1076
      %v1092 = vmul.f32 %v877, %v1076
      %v1093 = vmul.f32 %v882, %v1076
      %v1094 = vmul.f32 %v885, %v1076
      %v1095 = vmul.f32 %v890, %v1076
      %v1096 = vmul.f32 %v893, %v1076
      %v1097 = vmul.f32 %v898, %v1076
      %v1098 = vmul.f32 %v901, %v1076
      %v1099 = vmul.f32 %v906, %v1076
      %v1100 = vmul.f32 %v909, %v1076
      %v1101 = vmul.f32 %v914, %v1076
      %v1102 = vmul.f32 %v917, %v1076
      %v1103 = vmul.f32 %v922, %v1076
      %v1104 = vmul.f32 %v925, %v1076
      %v1105 = vmul.f32 %v930, %v1076
      %v1106 = vmul.f32 %v933, %v1076
      %v1107 = vmul.f32 %v938, %v1076
      %v1108 = vmul.f32 %v941, %v1076
      %v1109 = vmul.f32 %v946, %v1076
      %v1110 = vmul.f32 %v949, %v1076
      %v1111 = vmul.f32 %v954, %v1076
      %v1112 = vmul.f32 %v957, %v1076
      %v1113 = vmul.f32 %v962, %v1076
      %v1114 = vmul.f32 %v965, %v1076
      %v1115 = vmul.f32 %v970, %v1076
      %v1116 = vmul.f32 %v973, %v1076
      %v1117 = vmul.f32 %v978, %v1076
      %v1118 = vmul.f32 %v981, %v1076
      %v1119 = vmul.f32 %v986, %v1076
      %v1120 = vmul.f32 %v989, %v1076
      %v1121 = vmul.f32 %v994, %v1076
      %v1122 = vmul.f32 %v997, %v1076
      %v1123 = vmul.f32 %v1002, %v1076
      %v1124 = vmul.f32 %v1005, %v1076
      %v1125 = vmul.f32 %v1010, %v1076
      %v1126 = vmul.f32 %v1013, %v1076
      %v1127 = vmul.f32 %v1018, %v1076
      %v1128 = vmul.f32 %v1021, %v1076
      %v1129 = vmul.f32 %v1026, %v1076
      %v1130 = vmul.f32 %v1029, %v1076
      %v1131 = vmul.f32 %v1034, %v1076
      %v1132 = vmul.f32 %v1037, %v1076
      %v1133 = vmul.f32 %v1042, %v1076
      %v1134 = vmul.f32 %v1045, %v1076
      %v1135 = vmul.f32 %v1050, %v1076
      %v1136 = vmul.f32 %v1053, %v1076
      %v1137 = vmul.f32 %v1058, %v1076
      %v1138 = vmul.f32 %v1061, %v1076
      %v1139 = vmul.f32 %v1066, %v1076
      %v1140 = vmul.f32 %v1069, %v1076
      %v1141 = vld [vmem:[%s260 + $0x1] sm:$0x1]
      %v1142 = vlaneseq
      %v1143 = vshrl.u32 %v1142, 7
      %v1144 = vsub.s32 0, %v1143
      %v1145 = vrot.slane %v1141, %v1144
      %v1146 = vadd.f32 %v1077, %v1145
      %v1147 = vadd.f32 %v1078, %v1145
      %v1148 = vadd.f32 %v1079, %v1145
      %v1149 = vadd.f32 %v1080, %v1145
      %v1150 = vadd.f32 %v1081, %v1145
      %v1151 = vadd.f32 %v1082, %v1145
      %v1152 = vadd.f32 %v1083, %v1145
      %v1153 = vadd.f32 %v1084, %v1145
      %v1154 = vadd.f32 %v1085, %v1145
      %v1155 = vadd.f32 %v1086, %v1145
      %v1156 = vadd.f32 %v1087, %v1145
      %v1157 = vadd.f32 %v1088, %v1145
      %v1158 = vadd.f32 %v1089, %v1145
      %v1159 = vadd.f32 %v1090, %v1145
      %v1160 = vadd.f32 %v1091, %v1145
      %v1161 = vadd.f32 %v1092, %v1145
      %v1162 = vadd.f32 %v1093, %v1145
      %v1163 = vadd.f32 %v1094, %v1145
      %v1164 = vadd.f32 %v1095, %v1145
      %v1165 = vadd.f32 %v1096, %v1145
      %v1166 = vadd.f32 %v1097, %v1145
      %v1167 = vadd.f32 %v1098, %v1145
      %v1168 = vadd.f32 %v1099, %v1145
      %v1169 = vadd.f32 %v1100, %v1145
      %v1170 = vadd.f32 %v1101, %v1145
      %v1171 = vadd.f32 %v1102, %v1145
      %v1172 = vadd.f32 %v1103, %v1145
      %v1173 = vadd.f32 %v1104, %v1145
      %v1174 = vadd.f32 %v1105, %v1145
      %v1175 = vadd.f32 %v1106, %v1145
      %v1176 = vadd.f32 %v1107, %v1145
      %v1177 = vadd.f32 %v1108, %v1145
      %v1178 = vadd.f32 %v1109, %v1145
      %v1179 = vadd.f32 %v1110, %v1145
      %v1180 = vadd.f32 %v1111, %v1145
      %v1181 = vadd.f32 %v1112, %v1145
      %v1182 = vadd.f32 %v1113, %v1145
      %v1183 = vadd.f32 %v1114, %v1145
      %v1184 = vadd.f32 %v1115, %v1145
      %v1185 = vadd.f32 %v1116, %v1145
      %v1186 = vadd.f32 %v1117, %v1145
      %v1187 = vadd.f32 %v1118, %v1145
      %v1188 = vadd.f32 %v1119, %v1145
      %v1189 = vadd.f32 %v1120, %v1145
      %v1190 = vadd.f32 %v1121, %v1145
      %v1191 = vadd.f32 %v1122, %v1145
      %v1192 = vadd.f32 %v1123, %v1145
      %v1193 = vadd.f32 %v1124, %v1145
      %v1194 = vadd.f32 %v1125, %v1145
      %v1195 = vadd.f32 %v1126, %v1145
      %v1196 = vadd.f32 %v1127, %v1145
      %v1197 = vadd.f32 %v1128, %v1145
      %v1198 = vadd.f32 %v1129, %v1145
      %v1199 = vadd.f32 %v1130, %v1145
      %v1200 = vadd.f32 %v1131, %v1145
      %v1201 = vadd.f32 %v1132, %v1145
      %v1202 = vadd.f32 %v1133, %v1145
      %v1203 = vadd.f32 %v1134, %v1145
      %v1204 = vadd.f32 %v1135, %v1145
      %v1205 = vadd.f32 %v1136, %v1145
      %v1206 = vadd.f32 %v1137, %v1145
      %v1207 = vadd.f32 %v1138, %v1145
      %v1208 = vadd.f32 %v1139, %v1145
      %v1209 = vadd.f32 %v1140, %v1145
      %v1210 = vmax.f32 %v1146, 0.0
      %v1211 = vmax.f32 %v1147, 0.0
      %v1212 = vmax.f32 %v1148, 0.0
      %v1213 = vmax.f32 %v1149, 0.0
      %v1214 = vmax.f32 %v1150, 0.0
      %v1215 = vmax.f32 %v1151, 0.0
      %v1216 = vmax.f32 %v1152, 0.0
      %v1217 = vmax.f32 %v1153, 0.0
      %v1218 = vmax.f32 %v1154, 0.0
      %v1219 = vmax.f32 %v1155, 0.0
      %v1220 = vmax.f32 %v1156, 0.0
      %v1221 = vmax.f32 %v1157, 0.0
      %v1222 = vmax.f32 %v1158, 0.0
      %v1223 = vmax.f32 %v1159, 0.0
      %v1224 = vmax.f32 %v1160, 0.0
      %v1225 = vmax.f32 %v1161, 0.0
      %v1226 = vmax.f32 %v1162, 0.0
      %v1227 = vmax.f32 %v1163, 0.0
      %v1228 = vmax.f32 %v1164, 0.0
      %v1229 = vmax.f32 %v1165, 0.0
      %v1230 = vmax.f32 %v1166, 0.0
      %v1231 = vmax.f32 %v1167, 0.0
      %v1232 = vmax.f32 %v1168, 0.0
      %v1233 = vmax.f32 %v1169, 0.0
      %v1234 = vmax.f32 %v1170, 0.0
      %v1235 = vmax.f32 %v1171, 0.0
      %v1236 = vmax.f32 %v1172, 0.0
      %v1237 = vmax.f32 %v1173, 0.0
      %v1238 = vmax.f32 %v1174, 0.0
      %v1239 = vmax.f32 %v1175, 0.0
      %v1240 = vmax.f32 %v1176, 0.0
      %v1241 = vmax.f32 %v1177, 0.0
      %v1242 = vmax.f32 %v1178, 0.0
      %v1243 = vmax.f32 %v1179, 0.0
      %v1244 = vmax.f32 %v1180, 0.0
      %v1245 = vmax.f32 %v1181, 0.0
      %v1246 = vmax.f32 %v1182, 0.0
      %v1247 = vmax.f32 %v1183, 0.0
      %v1248 = vmax.f32 %v1184, 0.0
      %v1249 = vmax.f32 %v1185, 0.0
      %v1250 = vmax.f32 %v1186, 0.0
      %v1251 = vmax.f32 %v1187, 0.0
      %v1252 = vmax.f32 %v1188, 0.0
      %v1253 = vmax.f32 %v1189, 0.0
      %v1254 = vmax.f32 %v1190, 0.0
      %v1255 = vmax.f32 %v1191, 0.0
      %v1256 = vmax.f32 %v1192, 0.0
      %v1257 = vmax.f32 %v1193, 0.0
      %v1258 = vmax.f32 %v1194, 0.0
      %v1259 = vmax.f32 %v1195, 0.0
      %v1260 = vmax.f32 %v1196, 0.0
      %v1261 = vmax.f32 %v1197, 0.0
      %v1262 = vmax.f32 %v1198, 0.0
      %v1263 = vmax.f32 %v1199, 0.0
      %v1264 = vmax.f32 %v1200, 0.0
      %v1265 = vmax.f32 %v1201, 0.0
      %v1266 = vmax.f32 %v1202, 0.0
      %v1267 = vmax.f32 %v1203, 0.0
      %v1268 = vmax.f32 %v1204, 0.0
      %v1269 = vmax.f32 %v1205, 0.0
      %v1270 = vmax.f32 %v1206, 0.0
      %v1271 = vmax.f32 %v1207, 0.0
      %v1272 = vmax.f32 %v1208, 0.0
      %v1273 = vmax.f32 %v1209, 0.0
      %v1274 = vpack.c.bf16 %v1211, %v1210
      %v1275 = vpack.c.bf16 %v1213, %v1212
      %v1276 = vpack.c.bf16 %v1215, %v1214
      %v1277 = vpack.c.bf16 %v1217, %v1216
      %v1278 = vpack.c.bf16 %v1219, %v1218
      %v1279 = vpack.c.bf16 %v1221, %v1220
      %v1280 = vpack.c.bf16 %v1223, %v1222
      %v1281 = vpack.c.bf16 %v1225, %v1224
      %v1282 = vpack.c.bf16 %v1227, %v1226
      %v1283 = vpack.c.bf16 %v1229, %v1228
      %v1284 = vpack.c.bf16 %v1231, %v1230
      %v1285 = vpack.c.bf16 %v1233, %v1232
      %v1286 = vpack.c.bf16 %v1235, %v1234
      %v1287 = vpack.c.bf16 %v1237, %v1236
      %v1288 = vpack.c.bf16 %v1239, %v1238
      %v1289 = vpack.c.bf16 %v1241, %v1240
      %v1290 = vpack.c.bf16 %v1243, %v1242
      %v1291 = vpack.c.bf16 %v1245, %v1244
      %v1292 = vpack.c.bf16 %v1247, %v1246
      %v1293 = vpack.c.bf16 %v1249, %v1248
      %v1294 = vpack.c.bf16 %v1251, %v1250
      %v1295 = vpack.c.bf16 %v1253, %v1252
      %v1296 = vpack.c.bf16 %v1255, %v1254
      %v1297 = vpack.c.bf16 %v1257, %v1256
      %v1298 = vpack.c.bf16 %v1259, %v1258
      %v1299 = vpack.c.bf16 %v1261, %v1260
      %v1300 = vpack.c.bf16 %v1263, %v1262
      %v1301 = vpack.c.bf16 %v1265, %v1264
      %v1302 = vpack.c.bf16 %v1267, %v1266
      %v1303 = vpack.c.bf16 %v1269, %v1268
      %v1304 = vpack.c.bf16 %v1271, %v1270
      %v1305 = vpack.c.bf16 %v1273, %v1272
      %v1338 = vunpack.c.l.b16 %v1274
      %v1339 = vunpack.c.h.b16 %v1274
      %v1340 = vunpack.c.l.b16 %v1275
      %v1341 = vunpack.c.h.b16 %v1275
      %v1342 = vunpack.c.l.b16 %v1276
      %v1343 = vunpack.c.h.b16 %v1276
      %v1344 = vunpack.c.l.b16 %v1277
      %v1345 = vunpack.c.h.b16 %v1277
      %v1346 = vunpack.c.l.b16 %v1278
      %v1347 = vunpack.c.h.b16 %v1278
      %v1348 = vunpack.c.l.b16 %v1279
      %v1349 = vunpack.c.h.b16 %v1279
      %v1350 = vunpack.c.l.b16 %v1280
      %v1351 = vunpack.c.h.b16 %v1280
      %v1352 = vunpack.c.l.b16 %v1281
      %v1353 = vunpack.c.h.b16 %v1281
      %v1354 = vunpack.c.l.b16 %v1282
      %v1355 = vunpack.c.h.b16 %v1282
      %v1356 = vunpack.c.l.b16 %v1283
      %v1357 = vunpack.c.h.b16 %v1283
      %v1358 = vunpack.c.l.b16 %v1284
      %v1359 = vunpack.c.h.b16 %v1284
      %v1360 = vunpack.c.l.b16 %v1285
      %v1361 = vunpack.c.h.b16 %v1285
      %v1362 = vunpack.c.l.b16 %v1286
      %v1363 = vunpack.c.h.b16 %v1286
      %v1364 = vunpack.c.l.b16 %v1287
      %v1365 = vunpack.c.h.b16 %v1287
      %v1366 = vunpack.c.l.b16 %v1288
      %v1367 = vunpack.c.h.b16 %v1288
      %v1368 = vunpack.c.l.b16 %v1289
      %v1369 = vunpack.c.h.b16 %v1289
      %v1370 = vunpack.c.l.b16 %v1290
      %v1371 = vunpack.c.h.b16 %v1290
      %v1372 = vunpack.c.l.b16 %v1291
      %v1373 = vunpack.c.h.b16 %v1291
      %v1374 = vunpack.c.l.b16 %v1292
      %v1375 = vunpack.c.h.b16 %v1292
      %v1376 = vunpack.c.l.b16 %v1293
      %v1377 = vunpack.c.h.b16 %v1293
      %v1378 = vunpack.c.l.b16 %v1294
      %v1379 = vunpack.c.h.b16 %v1294
      %v1380 = vunpack.c.l.b16 %v1295
      %v1381 = vunpack.c.h.b16 %v1295
      %v1382 = vunpack.c.l.b16 %v1296
      %v1383 = vunpack.c.h.b16 %v1296
      %v1384 = vunpack.c.l.b16 %v1297
      %v1385 = vunpack.c.h.b16 %v1297
      %v1386 = vunpack.c.l.b16 %v1298
      %v1387 = vunpack.c.h.b16 %v1298
      %v1388 = vunpack.c.l.b16 %v1299
      %v1389 = vunpack.c.h.b16 %v1299
      %v1390 = vunpack.c.l.b16 %v1300
      %v1391 = vunpack.c.h.b16 %v1300
      %v1392 = vunpack.c.l.b16 %v1301
      %v1393 = vunpack.c.h.b16 %v1301
      %v1394 = vunpack.c.l.b16 %v1302
      %v1395 = vunpack.c.h.b16 %v1302
      %v1396 = vunpack.c.l.b16 %v1303
      %v1397 = vunpack.c.h.b16 %v1303
      %v1398 = vunpack.c.l.b16 %v1304
      %v1399 = vunpack.c.h.b16 %v1304
      %v1400 = vunpack.c.l.b16 %v1305
      %v1401 = vunpack.c.h.b16 %v1305
      %v1402 = vpack.c.b16 %v1338, %v1338
      %v1403 = vpack.c.b16 %v1339, %v1339
      %v1404 = vpack.c.b16 %v1340, %v1340
      %v1405 = vpack.c.b16 %v1341, %v1341
      %v1406 = vpack.c.b16 %v1342, %v1342
      %v1407 = vpack.c.b16 %v1343, %v1343
      %v1408 = vpack.c.b16 %v1344, %v1344
      %v1409 = vpack.c.b16 %v1345, %v1345
      %v1410 = vpack.c.b16 %v1346, %v1346
      %v1411 = vpack.c.b16 %v1347, %v1347
      %v1412 = vpack.c.b16 %v1348, %v1348
      %v1413 = vpack.c.b16 %v1349, %v1349
      %v1414 = vpack.c.b16 %v1350, %v1350
      %v1415 = vpack.c.b16 %v1351, %v1351
      %v1416 = vpack.c.b16 %v1352, %v1352
      %v1417 = vpack.c.b16 %v1353, %v1353
      %v1418 = vpack.c.b16 %v1354, %v1354
      %v1419 = vpack.c.b16 %v1355, %v1355
      %v1420 = vpack.c.b16 %v1356, %v1356
      %v1421 = vpack.c.b16 %v1357, %v1357
      %v1422 = vpack.c.b16 %v1358, %v1358
      %v1423 = vpack.c.b16 %v1359, %v1359
      %v1424 = vpack.c.b16 %v1360, %v1360
      %v1425 = vpack.c.b16 %v1361, %v1361
      %v1426 = vpack.c.b16 %v1362, %v1362
      %v1427 = vpack.c.b16 %v1363, %v1363
      %v1428 = vpack.c.b16 %v1364, %v1364
      %v1429 = vpack.c.b16 %v1365, %v1365
      %v1430 = vpack.c.b16 %v1366, %v1366
      %v1431 = vpack.c.b16 %v1367, %v1367
      %v1432 = vpack.c.b16 %v1368, %v1368
      %v1433 = vpack.c.b16 %v1369, %v1369
      %v1434 = vpack.c.b16 %v1370, %v1370
      %v1435 = vpack.c.b16 %v1371, %v1371
      %v1436 = vpack.c.b16 %v1372, %v1372
      %v1437 = vpack.c.b16 %v1373, %v1373
      %v1438 = vpack.c.b16 %v1374, %v1374
      %v1439 = vpack.c.b16 %v1375, %v1375
      %v1440 = vpack.c.b16 %v1376, %v1376
      %v1441 = vpack.c.b16 %v1377, %v1377
      %v1442 = vpack.c.b16 %v1378, %v1378
      %v1443 = vpack.c.b16 %v1379, %v1379
      %v1444 = vpack.c.b16 %v1380, %v1380
      %v1445 = vpack.c.b16 %v1381, %v1381
      %v1446 = vpack.c.b16 %v1382, %v1382
      %v1447 = vpack.c.b16 %v1383, %v1383
      %v1448 = vpack.c.b16 %v1384, %v1384
      %v1449 = vpack.c.b16 %v1385, %v1385
      %v1450 = vpack.c.b16 %v1386, %v1386
      %v1451 = vpack.c.b16 %v1387, %v1387
      %v1452 = vpack.c.b16 %v1388, %v1388
      %v1453 = vpack.c.b16 %v1389, %v1389
      %v1454 = vpack.c.b16 %v1390, %v1390
      %v1455 = vpack.c.b16 %v1391, %v1391
      %v1456 = vpack.c.b16 %v1392, %v1392
      %v1457 = vpack.c.b16 %v1393, %v1393
      %v1458 = vpack.c.b16 %v1394, %v1394
      %v1459 = vpack.c.b16 %v1395, %v1395
      %v1460 = vpack.c.b16 %v1396, %v1396
      %v1461 = vpack.c.b16 %v1397, %v1397
      %v1462 = vpack.c.b16 %v1398, %v1398
      %v1463 = vpack.c.b16 %v1399, %v1399
      %v1464 = vpack.c.b16 %v1400, %v1400
      %v1465 = vpack.c.b16 %v1401, %v1401
      %vm1530 = vcmask 125952
      %1531 = vst.msk [vmem:[%s268] sm:$0xf] %vm1530, %v1402
      %1532 = vst.msk [vmem:[%s268 + $0x4] sm:$0xf] %vm1530, %v1403
      %1533 = vst.msk [vmem:[%s268 + $0x8] sm:$0xf] %vm1530, %v1404
      %1534 = vst.msk [vmem:[%s268 + $0xc] sm:$0xf] %vm1530, %v1405
      %1535 = vst.msk [vmem:[%s268 + $0x10] sm:$0xf] %vm1530, %v1406
      %1536 = vst.msk [vmem:[%s268 + $0x14] sm:$0xf] %vm1530, %v1407
      %1537 = vst.msk [vmem:[%s268 + $0x18] sm:$0xf] %vm1530, %v1408
      %1538 = vst.msk [vmem:[%s268 + $0x1c] sm:$0xf] %vm1530, %v1409
      %1539 = vst.msk [vmem:[%s268 + $0x20] sm:$0xf] %vm1530, %v1410
      %1540 = vst.msk [vmem:[%s268 + $0x24] sm:$0xf] %vm1530, %v1411
      %1541 = vst.msk [vmem:[%s268 + $0x28] sm:$0xf] %vm1530, %v1412
      %1542 = vst.msk [vmem:[%s268 + $0x2c] sm:$0xf] %vm1530, %v1413
      %1543 = vst.msk [vmem:[%s268 + $0x30] sm:$0xf] %vm1530, %v1414
      %1544 = vst.msk [vmem:[%s268 + $0x34] sm:$0xf] %vm1530, %v1415
      %1545 = vst.msk [vmem:[%s268 + $0x38] sm:$0xf] %vm1530, %v1416
      %1546 = vst.msk [vmem:[%s268 + $0x3c] sm:$0xf] %vm1530, %v1417
      %1547 = vst.msk [vmem:[%s268 + $0x40] sm:$0xf] %vm1530, %v1418
      %1548 = vst.msk [vmem:[%s268 + $0x44] sm:$0xf] %vm1530, %v1419
      %1549 = vst.msk [vmem:[%s268 + $0x48] sm:$0xf] %vm1530, %v1420
      %1550 = vst.msk [vmem:[%s268 + $0x4c] sm:$0xf] %vm1530, %v1421
      %1551 = vst.msk [vmem:[%s268 + $0x50] sm:$0xf] %vm1530, %v1422
      %1552 = vst.msk [vmem:[%s268 + $0x54] sm:$0xf] %vm1530, %v1423
      %1553 = vst.msk [vmem:[%s268 + $0x58] sm:$0xf] %vm1530, %v1424
      %1554 = vst.msk [vmem:[%s268 + $0x5c] sm:$0xf] %vm1530, %v1425
      %1555 = vst.msk [vmem:[%s268 + $0x60] sm:$0xf] %vm1530, %v1426
      %1556 = vst.msk [vmem:[%s268 + $0x64] sm:$0xf] %vm1530, %v1427
      %1557 = vst.msk [vmem:[%s268 + $0x68] sm:$0xf] %vm1530, %v1428
      %1558 = vst.msk [vmem:[%s268 + $0x6c] sm:$0xf] %vm1530, %v1429
      %1559 = vst.msk [vmem:[%s268 + $0x70] sm:$0xf] %vm1530, %v1430
      %1560 = vst.msk [vmem:[%s268 + $0x74] sm:$0xf] %vm1530, %v1431
      %1561 = vst.msk [vmem:[%s268 + $0x78] sm:$0xf] %vm1530, %v1432
      %1562 = vst.msk [vmem:[%s268 + $0x7c] sm:$0xf] %vm1530, %v1433
      %1563 = vst.msk [vmem:[%s268 + $0x80] sm:$0xf] %vm1530, %v1434
      %1564 = vst.msk [vmem:[%s268 + $0x84] sm:$0xf] %vm1530, %v1435
      %1565 = vst.msk [vmem:[%s268 + $0x88] sm:$0xf] %vm1530, %v1436
      %1566 = vst.msk [vmem:[%s268 + $0x8c] sm:$0xf] %vm1530, %v1437
      %1567 = vst.msk [vmem:[%s268 + $0x90] sm:$0xf] %vm1530, %v1438
      %1568 = vst.msk [vmem:[%s268 + $0x94] sm:$0xf] %vm1530, %v1439
      %1569 = vst.msk [vmem:[%s268 + $0x98] sm:$0xf] %vm1530, %v1440
      %1570 = vst.msk [vmem:[%s268 + $0x9c] sm:$0xf] %vm1530, %v1441
      %1571 = vst.msk [vmem:[%s268 + $0xa0] sm:$0xf] %vm1530, %v1442
      %1572 = vst.msk [vmem:[%s268 + $0xa4] sm:$0xf] %vm1530, %v1443
      %1573 = vst.msk [vmem:[%s268 + $0xa8] sm:$0xf] %vm1530, %v1444
      %1574 = vst.msk [vmem:[%s268 + $0xac] sm:$0xf] %vm1530, %v1445
      %1575 = vst.msk [vmem:[%s268 + $0xb0] sm:$0xf] %vm1530, %v1446
      %1576 = vst.msk [vmem:[%s268 + $0xb4] sm:$0xf] %vm1530, %v1447
      %1577 = vst.msk [vmem:[%s268 + $0xb8] sm:$0xf] %vm1530, %v1448
      %1578 = vst.msk [vmem:[%s268 + $0xbc] sm:$0xf] %vm1530, %v1449
      %1579 = vst.msk [vmem:[%s268 + $0xc0] sm:$0xf] %vm1530, %v1450
      %1580 = vst.msk [vmem:[%s268 + $0xc4] sm:$0xf] %vm1530, %v1451
      %1581 = vst.msk [vmem:[%s268 + $0xc8] sm:$0xf] %vm1530, %v1452
      %1582 = vst.msk [vmem:[%s268 + $0xcc] sm:$0xf] %vm1530, %v1453
      %1583 = vst.msk [vmem:[%s268 + $0xd0] sm:$0xf] %vm1530, %v1454
      %1584 = vst.msk [vmem:[%s268 + $0xd4] sm:$0xf] %vm1530, %v1455
      %1585 = vst.msk [vmem:[%s268 + $0xd8] sm:$0xf] %vm1530, %v1456
      %1586 = vst.msk [vmem:[%s268 + $0xdc] sm:$0xf] %vm1530, %v1457
      %1587 = vst.msk [vmem:[%s268 + $0xe0] sm:$0xf] %vm1530, %v1458
      %1588 = vst.msk [vmem:[%s268 + $0xe4] sm:$0xf] %vm1530, %v1459
      %1589 = vst.msk [vmem:[%s268 + $0xe8] sm:$0xf] %vm1530, %v1460
      %1590 = vst.msk [vmem:[%s268 + $0xec] sm:$0xf] %vm1530, %v1461
      %1591 = vst.msk [vmem:[%s268 + $0xf0] sm:$0xf] %vm1530, %v1462
      %1592 = vst.msk [vmem:[%s268 + $0xf4] sm:$0xf] %vm1530, %v1463
      %1593 = vst.msk [vmem:[%s268 + $0xf8] sm:$0xf] %vm1530, %v1464
      %1594 = vst.msk [vmem:[%s268 + $0xfc] sm:$0xf] %vm1530, %v1465
      %s1595 = smul.u32 64, %s19
      %p1596 = scmp.lt.s32.totalorder %s1595, 255
      %s1597 = scalar_select %p1596, %s1595, 255
      %p1598 = scmp.lt.s32.totalorder %s20, 0
      %s1599 = scalar_select %p1598, %s20, 0
      %s1600 = sadd.s32 %s1599, %s1597
      %s1601 = smul.addr %s1600, 4
      %s1602 = scalar_lea.vmem %s3, %s1601
      // Predicated region
      $region33: #{_lambda_.16} parent=31 // pred_check
        %p1603 = pneg %p135
      $region34: #{_lambda_.16} parent=31 // pred_check_branch
        %1605 = sbr.rel (%p1603) target = $region36
      $region35: #{_lambda_.16} parent=31 // pred_region
        %s1606 = smul.u32 64, %s19
      $region36: #{_lambda_.16} parent=31 // pred_fallthru
        _
    $region32: #{_lambda_.16} parent=5 // pred_fallthru
      _
    %p1607 = scmp.le.s32.totalorder 2, %s9
    // Predicated region
    $region37: #{_lambda_.16} parent=5 // pred_check
      %p1608 = pneg %p1607
    $region38: #{_lambda_.16} parent=5 // pred_check_branch
      %1610 = sbr.rel (%p1608) target = $region40
    $region39: #{_lambda_.16} parent=5 // pred_region
      %s1611 = ssub.s32 %s9, 2
      // Predicated region
      $region41: #{_lambda_.16} parent=39 // pred_check
        %p1612 = pneg %p141
      $region42: #{_lambda_.16} parent=39 // pred_check_branch
        %1614 = sbr.rel (%p1612) target = $region44
      $region43: #{_lambda_.16} parent=39 // pred_region
        %s1615 = smul.u32 64, %s22
        %p1616 = scmp.lt.s32.totalorder %s1615, 255
        %s1617 = scalar_select %p1616, %s1615, 255
        %p1618 = scmp.lt.s32.totalorder %s23, 0
        %s1619 = scalar_select %p1618, %s23, 0
        %s1620 = sadd.s32 %s1619, %s1617
        %s1621 = smul.addr %s1620, 4
        %s1622 = scalar_lea.vmem %s3, %s1621
      $region44: #{_lambda_.16} parent=39 // pred_fallthru
        _
    $region40: #{_lambda_.16} parent=5 // pred_fallthru
      _
  $region6: #{_lambda_.16} parent=0 // loop_footer
    %s13 = sadd.s32 1, %s9
  $region7: #{_lambda_.16} parent=0 // loop_footer_branch
    %8 = sbr.rel target = $region3
  $region8: #{_lambda_.16} parent=0 // loop_exit
    _

// kernel: _lambda_.17
$region0: #{_lambda_.17}
  #allocation0 [shape = 'u32[]', space=smem, size = 0x4, offset = 0x4, fixed_abs, tag = 'smem constant byte address 0x4 - core index']
  #allocation1 [shape = 'u32[144,128]{1,0:T(1,128)}', space=vmem, size = 0x12000, scoped, tag = 'internal scratch']
  %s0 = inlined_call_operand.vmem [shape: bf16[512,256], index: 0, kind: input, shape index: {}]
  %s1 = inlined_call_operand.vmem [shape: bf16[256,16], index: 1, kind: input, shape index: {}]
  %s2 = inlined_call_operand.vmem [shape: f32[2,16], index: 2, kind: input, shape index: {}]
  %s3 = inlined_call_operand.vmem [shape: bf16[512,16], index: 3, kind: output, shape index: {}]
  %s4 = sld [smem:[#allocation0]]
  $region22: #{_lambda_.17} parent=0
    _
  %s6 = ssub.s32 1, %s4
  %s7 = scalar_select 0, %s6, %s4
  // Predicated region
  $region2: #{_lambda_.17} parent=0 // pred_check
    _
  $region3: #{_lambda_.17} parent=0 // pred_check_branch
    %9 = sbr.rel (0) target = $region5
  $region4: #{_lambda_.17} parent=0 // pred_region
    _
  $region5: #{_lambda_.17} parent=0 // pred_fallthru
    _
  // Predicated region
  $region6: #{_lambda_.17} parent=0 // pred_check
    _
  $region7: #{_lambda_.17} parent=0 // pred_check_branch
    %11 = sbr.rel (0) target = $region9
  $region8: #{_lambda_.17} parent=0 // pred_region
    _
  $region9: #{_lambda_.17} parent=0 // pred_fallthru
    _
  // Predicated region
  $region10: #{_lambda_.17} parent=0 // pred_check
    _
  $region11: #{_lambda_.17} parent=0 // pred_check_branch
    %13 = sbr.rel (0) target = $region13
  $region12: #{_lambda_.17} parent=0 // pred_region
    _
  $region13: #{_lambda_.17} parent=0 // pred_fallthru
    _
  %v15 = vld [vmem:[%s0] sm:$0xff]
  %v16 = vld [vmem:[%s0 + $0x8] sm:$0xff]
  %v17 = vld [vmem:[%s0 + $0x10] sm:$0xff]
  %v18 = vld [vmem:[%s0 + $0x18] sm:$0xff]
  %v19 = vld [vmem:[%s0 + $0x20] sm:$0xff]
  %v20 = vld [vmem:[%s0 + $0x28] sm:$0xff]
  %v21 = vld [vmem:[%s0 + $0x30] sm:$0xff]
  %v22 = vld [vmem:[%s0 + $0x38] sm:$0xff]
  %v23 = vld [vmem:[%s0 + $0x40] sm:$0xff]
  %v24 = vld [vmem:[%s0 + $0x48] sm:$0xff]
  %v25 = vld [vmem:[%s0 + $0x50] sm:$0xff]
  %v26 = vld [vmem:[%s0 + $0x58] sm:$0xff]
  %v27 = vld [vmem:[%s0 + $0x60] sm:$0xff]
  %v28 = vld [vmem:[%s0 + $0x68] sm:$0xff]
  %v29 = vld [vmem:[%s0 + $0x70] sm:$0xff]
  %v30 = vld [vmem:[%s0 + $0x78] sm:$0xff]
  %v31 = vld [vmem:[%s0 + $0x80] sm:$0xff]
  %v32 = vld [vmem:[%s0 + $0x88] sm:$0xff]
  %v33 = vld [vmem:[%s0 + $0x90] sm:$0xff]
  %v34 = vld [vmem:[%s0 + $0x98] sm:$0xff]
  %v35 = vld [vmem:[%s0 + $0xa0] sm:$0xff]
  %v36 = vld [vmem:[%s0 + $0xa8] sm:$0xff]
  %v37 = vld [vmem:[%s0 + $0xb0] sm:$0xff]
  %v38 = vld [vmem:[%s0 + $0xb8] sm:$0xff]
  %v39 = vld [vmem:[%s0 + $0xc0] sm:$0xff]
  %v40 = vld [vmem:[%s0 + $0xc8] sm:$0xff]
  %v41 = vld [vmem:[%s0 + $0xd0] sm:$0xff]
  %v42 = vld [vmem:[%s0 + $0xd8] sm:$0xff]
  %v43 = vld [vmem:[%s0 + $0xe0] sm:$0xff]
  %v44 = vld [vmem:[%s0 + $0xe8] sm:$0xff]
  %v45 = vld [vmem:[%s0 + $0xf0] sm:$0xff]
  %v46 = vld [vmem:[%s0 + $0xf8] sm:$0xff]
  %v47 = vld [vmem:[%s0 + $0x100] sm:$0xff]
  %v48 = vld [vmem:[%s0 + $0x108] sm:$0xff]
  %v49 = vld [vmem:[%s0 + $0x110] sm:$0xff]
  %v50 = vld [vmem:[%s0 + $0x118] sm:$0xff]
  %v51 = vld [vmem:[%s0 + $0x120] sm:$0xff]
  %v52 = vld [vmem:[%s0 + $0x128] sm:$0xff]
  %v53 = vld [vmem:[%s0 + $0x130] sm:$0xff]
  %v54 = vld [vmem:[%s0 + $0x138] sm:$0xff]
  %v55 = vld [vmem:[%s0 + $0x140] sm:$0xff]
  %v56 = vld [vmem:[%s0 + $0x148] sm:$0xff]
  %v57 = vld [vmem:[%s0 + $0x150] sm:$0xff]
  %v58 = vld [vmem:[%s0 + $0x158] sm:$0xff]
  %v59 = vld [vmem:[%s0 + $0x160] sm:$0xff]
  %v60 = vld [vmem:[%s0 + $0x168] sm:$0xff]
  %v61 = vld [vmem:[%s0 + $0x170] sm:$0xff]
  %v62 = vld [vmem:[%s0 + $0x178] sm:$0xff]
  %v63 = vld [vmem:[%s0 + $0x180] sm:$0xff]
  %v64 = vld [vmem:[%s0 + $0x188] sm:$0xff]
  %v65 = vld [vmem:[%s0 + $0x190] sm:$0xff]
  %v66 = vld [vmem:[%s0 + $0x198] sm:$0xff]
  %v67 = vld [vmem:[%s0 + $0x1a0] sm:$0xff]
  %v68 = vld [vmem:[%s0 + $0x1a8] sm:$0xff]
  %v69 = vld [vmem:[%s0 + $0x1b0] sm:$0xff]
  %v70 = vld [vmem:[%s0 + $0x1b8] sm:$0xff]
  %v71 = vld [vmem:[%s0 + $0x1c0] sm:$0xff]
  %v72 = vld [vmem:[%s0 + $0x1c8] sm:$0xff]
  %v73 = vld [vmem:[%s0 + $0x1d0] sm:$0xff]
  %v74 = vld [vmem:[%s0 + $0x1d8] sm:$0xff]
  %v75 = vld [vmem:[%s0 + $0x1e0] sm:$0xff]
  %v76 = vld [vmem:[%s0 + $0x1e8] sm:$0xff]
  %v77 = vld [vmem:[%s0 + $0x1f0] sm:$0xff]
  %v78 = vld [vmem:[%s0 + $0x1f8] sm:$0xff]
  %v79 = vld [vmem:[%s1] sm:$0xf]
  %v80 = vld [vmem:[%s1 + $0x4] sm:$0xf]
  %v81 = vld [vmem:[%s1 + $0x8] sm:$0xf]
  %v82 = vld [vmem:[%s1 + $0xc] sm:$0xf]
  %v83 = vld [vmem:[%s1 + $0x10] sm:$0xf]
  %v84 = vld [vmem:[%s1 + $0x14] sm:$0xf]
  %v85 = vld [vmem:[%s1 + $0x18] sm:$0xf]
  %v86 = vld [vmem:[%s1 + $0x1c] sm:$0xf]
  %v87 = vld [vmem:[%s1 + $0x20] sm:$0xf]
  %v88 = vld [vmem:[%s1 + $0x24] sm:$0xf]
  %v89 = vld [vmem:[%s1 + $0x28] sm:$0xf]
  %v90 = vld [vmem:[%s1 + $0x2c] sm:$0xf]
  %v91 = vld [vmem:[%s1 + $0x30] sm:$0xf]
  %v92 = vld [vmem:[%s1 + $0x34] sm:$0xf]
  %v93 = vld [vmem:[%s1 + $0x38] sm:$0xf]
  %v94 = vld [vmem:[%s1 + $0x3c] sm:$0xf]
  %v95 = vld [vmem:[%s1 + $0x40] sm:$0xf]
  %v96 = vld [vmem:[%s1 + $0x44] sm:$0xf]
  %v97 = vld [vmem:[%s1 + $0x48] sm:$0xf]
  %v98 = vld [vmem:[%s1 + $0x4c] sm:$0xf]
  %v99 = vld [vmem:[%s1 + $0x50] sm:$0xf]
  %v100 = vld [vmem:[%s1 + $0x54] sm:$0xf]
  %v101 = vld [vmem:[%s1 + $0x58] sm:$0xf]
  %v102 = vld [vmem:[%s1 + $0x5c] sm:$0xf]
  %v103 = vld [vmem:[%s1 + $0x60] sm:$0xf]
  %v104 = vld [vmem:[%s1 + $0x64] sm:$0xf]
  %v105 = vld [vmem:[%s1 + $0x68] sm:$0xf]
  %v106 = vld [vmem:[%s1 + $0x6c] sm:$0xf]
  %v107 = vld [vmem:[%s1 + $0x70] sm:$0xf]
  %v108 = vld [vmem:[%s1 + $0x74] sm:$0xf]
  %v109 = vld [vmem:[%s1 + $0x78] sm:$0xf]
  %v110 = vld [vmem:[%s1 + $0x7c] sm:$0xf]
  %v175 = vunpack.c.l.b16 %v15
  %v176 = vunpack.c.h.b16 %v15
  %v177 = vunpack.c.l.b16 %v16
  %v178 = vunpack.c.h.b16 %v16
  %v179 = vunpack.c.l.b16 %v17
  %v180 = vunpack.c.h.b16 %v17
  %v181 = vunpack.c.l.b16 %v18
  %v182 = vunpack.c.h.b16 %v18
  %v183 = vunpack.c.l.b16 %v19
  %v184 = vunpack.c.h.b16 %v19
  %v185 = vunpack.c.l.b16 %v20
  %v186 = vunpack.c.h.b16 %v20
  %v187 = vunpack.c.l.b16 %v21
  %v188 = vunpack.c.h.b16 %v21
  %v189 = vunpack.c.l.b16 %v22
  %v190 = vunpack.c.h.b16 %v22
  %v191 = vunpack.c.l.b16 %v23
  %v192 = vunpack.c.h.b16 %v23
  %v193 = vunpack.c.l.b16 %v24
  %v194 = vunpack.c.h.b16 %v24
  %v195 = vunpack.c.l.b16 %v25
  %v196 = vunpack.c.h.b16 %v25
  %v197 = vunpack.c.l.b16 %v26
  %v198 = vunpack.c.h.b16 %v26
  %v199 = vunpack.c.l.b16 %v27
  %v200 = vunpack.c.h.b16 %v27
  %v201 = vunpack.c.l.b16 %v28
  %v202 = vunpack.c.h.b16 %v28
  %v203 = vunpack.c.l.b16 %v29
  %v204 = vunpack.c.h.b16 %v29
  %v205 = vunpack.c.l.b16 %v30
  %v206 = vunpack.c.h.b16 %v30
  %v207 = vunpack.c.l.b16 %v31
  %v208 = vunpack.c.h.b16 %v31
  %v209 = vunpack.c.l.b16 %v32
  %v210 = vunpack.c.h.b16 %v32
  %v211 = vunpack.c.l.b16 %v33
  %v212 = vunpack.c.h.b16 %v33
  %v213 = vunpack.c.l.b16 %v34
  %v214 = vunpack.c.h.b16 %v34
  %v215 = vunpack.c.l.b16 %v35
  %v216 = vunpack.c.h.b16 %v35
  %v217 = vunpack.c.l.b16 %v36
  %v218 = vunpack.c.h.b16 %v36
  %v219 = vunpack.c.l.b16 %v37
  %v220 = vunpack.c.h.b16 %v37
  %v221 = vunpack.c.l.b16 %v38
  %v222 = vunpack.c.h.b16 %v38
  %v223 = vunpack.c.l.b16 %v39
  %v224 = vunpack.c.h.b16 %v39
  %v225 = vunpack.c.l.b16 %v40
  %v226 = vunpack.c.h.b16 %v40
  %v227 = vunpack.c.l.b16 %v41
  %v228 = vunpack.c.h.b16 %v41
  %v229 = vunpack.c.l.b16 %v42
  %v230 = vunpack.c.h.b16 %v42
  %v231 = vunpack.c.l.b16 %v43
  %v232 = vunpack.c.h.b16 %v43
  %v233 = vunpack.c.l.b16 %v44
  %v234 = vunpack.c.h.b16 %v44
  %v235 = vunpack.c.l.b16 %v45
  %v236 = vunpack.c.h.b16 %v45
  %v237 = vunpack.c.l.b16 %v46
  %v238 = vunpack.c.h.b16 %v46
  %v239 = vunpack.c.l.b16 %v47
  %v240 = vunpack.c.h.b16 %v47
  %v241 = vunpack.c.l.b16 %v48
  %v242 = vunpack.c.h.b16 %v48
  %v243 = vunpack.c.l.b16 %v49
  %v244 = vunpack.c.h.b16 %v49
  %v245 = vunpack.c.l.b16 %v50
  %v246 = vunpack.c.h.b16 %v50
  %v247 = vunpack.c.l.b16 %v51
  %v248 = vunpack.c.h.b16 %v51
  %v249 = vunpack.c.l.b16 %v52
  %v250 = vunpack.c.h.b16 %v52
  %v251 = vunpack.c.l.b16 %v53
  %v252 = vunpack.c.h.b16 %v53
  %v253 = vunpack.c.l.b16 %v54
  %v254 = vunpack.c.h.b16 %v54
  %v255 = vunpack.c.l.b16 %v55
  %v256 = vunpack.c.h.b16 %v55
  %v257 = vunpack.c.l.b16 %v56
  %v258 = vunpack.c.h.b16 %v56
  %v259 = vunpack.c.l.b16 %v57
  %v260 = vunpack.c.h.b16 %v57
  %v261 = vunpack.c.l.b16 %v58
  %v262 = vunpack.c.h.b16 %v58
  %v263 = vunpack.c.l.b16 %v59
  %v264 = vunpack.c.h.b16 %v59
  %v265 = vunpack.c.l.b16 %v60
  %v266 = vunpack.c.h.b16 %v60
  %v267 = vunpack.c.l.b16 %v61
  %v268 = vunpack.c.h.b16 %v61
  %v269 = vunpack.c.l.b16 %v62
  %v270 = vunpack.c.h.b16 %v62
  %v271 = vunpack.c.l.b16 %v63
  %v272 = vunpack.c.h.b16 %v63
  %v273 = vunpack.c.l.b16 %v64
  %v274 = vunpack.c.h.b16 %v64
  %v275 = vunpack.c.l.b16 %v65
  %v276 = vunpack.c.h.b16 %v65
  %v277 = vunpack.c.l.b16 %v66
  %v278 = vunpack.c.h.b16 %v66
  %v279 = vunpack.c.l.b16 %v67
  %v280 = vunpack.c.h.b16 %v67
  %v281 = vunpack.c.l.b16 %v68
  %v282 = vunpack.c.h.b16 %v68
  %v283 = vunpack.c.l.b16 %v69
  %v284 = vunpack.c.h.b16 %v69
  %v285 = vunpack.c.l.b16 %v70
  %v286 = vunpack.c.h.b16 %v70
  %v287 = vunpack.c.l.b16 %v71
  %v288 = vunpack.c.h.b16 %v71
  %v289 = vunpack.c.l.b16 %v72
  %v290 = vunpack.c.h.b16 %v72
  %v291 = vunpack.c.l.b16 %v73
  %v292 = vunpack.c.h.b16 %v73
  %v293 = vunpack.c.l.b16 %v74
  %v294 = vunpack.c.h.b16 %v74
  %v295 = vunpack.c.l.b16 %v75
  %v296 = vunpack.c.h.b16 %v75
  %v297 = vunpack.c.l.b16 %v76
  %v298 = vunpack.c.h.b16 %v76
  %v299 = vunpack.c.l.b16 %v77
  %v300 = vunpack.c.h.b16 %v77
  %v301 = vunpack.c.l.b16 %v78
  %v302 = vunpack.c.h.b16 %v78
  %v303 = vpack.c.b16 %v177, %v175
  %v304 = vpack.c.b16 %v178, %v176
  %v305 = vpack.c.b16 %v181, %v179
  %v306 = vpack.c.b16 %v182, %v180
  %v307 = vpack.c.b16 %v185, %v183
  %v308 = vpack.c.b16 %v186, %v184
  %v309 = vpack.c.b16 %v189, %v187
  %v310 = vpack.c.b16 %v190, %v188
  %v311 = vpack.c.b16 %v193, %v191
  %v312 = vpack.c.b16 %v194, %v192
  %v313 = vpack.c.b16 %v197, %v195
  %v314 = vpack.c.b16 %v198, %v196
  %v315 = vpack.c.b16 %v201, %v199
  %v316 = vpack.c.b16 %v202, %v200
  %v317 = vpack.c.b16 %v205, %v203
  %v318 = vpack.c.b16 %v206, %v204
  %v319 = vpack.c.b16 %v209, %v207
  %v320 = vpack.c.b16 %v210, %v208
  %v321 = vpack.c.b16 %v213, %v211
  %v322 = vpack.c.b16 %v214, %v212
  %v323 = vpack.c.b16 %v217, %v215
  %v324 = vpack.c.b16 %v218, %v216
  %v325 = vpack.c.b16 %v221, %v219
  %v326 = vpack.c.b16 %v222, %v220
  %v327 = vpack.c.b16 %v225, %v223
  %v328 = vpack.c.b16 %v226, %v224
  %v329 = vpack.c.b16 %v229, %v227
  %v330 = vpack.c.b16 %v230, %v228
  %v331 = vpack.c.b16 %v233, %v231
  %v332 = vpack.c.b16 %v234, %v232
  %v333 = vpack.c.b16 %v237, %v235
  %v334 = vpack.c.b16 %v238, %v236
  %v335 = vpack.c.b16 %v241, %v239
  %v336 = vpack.c.b16 %v242, %v240
  %v337 = vpack.c.b16 %v245, %v243
  %v338 = vpack.c.b16 %v246, %v244
  %v339 = vpack.c.b16 %v249, %v247
  %v340 = vpack.c.b16 %v250, %v248
  %v341 = vpack.c.b16 %v253, %v251
  %v342 = vpack.c.b16 %v254, %v252
  %v343 = vpack.c.b16 %v257, %v255
  %v344 = vpack.c.b16 %v258, %v256
  %v345 = vpack.c.b16 %v261, %v259
  %v346 = vpack.c.b16 %v262, %v260
  %v347 = vpack.c.b16 %v265, %v263
  %v348 = vpack.c.b16 %v266, %v264
  %v349 = vpack.c.b16 %v269, %v267
  %v350 = vpack.c.b16 %v270, %v268
  %v351 = vpack.c.b16 %v273, %v271
  %v352 = vpack.c.b16 %v274, %v272
  %v353 = vpack.c.b16 %v277, %v275
  %v354 = vpack.c.b16 %v278, %v276
  %v355 = vpack.c.b16 %v281, %v279
  %v356 = vpack.c.b16 %v282, %v280
  %v357 = vpack.c.b16 %v285, %v283
  %v358 = vpack.c.b16 %v286, %v284
  %v359 = vpack.c.b16 %v289, %v287
  %v360 = vpack.c.b16 %v290, %v288
  %v361 = vpack.c.b16 %v293, %v291
  %v362 = vpack.c.b16 %v294, %v292
  %v363 = vpack.c.b16 %v297, %v295
  %v364 = vpack.c.b16 %v298, %v296
  %v365 = vpack.c.b16 %v301, %v299
  %v366 = vpack.c.b16 %v302, %v300
  %v463 = vunpack.c.l.b16 %v79
  %v464 = vunpack.c.l.b16 %v80
  %v465 = vunpack.c.l.b16 %v81
  %v466 = vunpack.c.l.b16 %v82
  %v467 = vunpack.c.l.b16 %v83
  %v468 = vunpack.c.l.b16 %v84
  %v469 = vunpack.c.l.b16 %v85
  %v470 = vunpack.c.l.b16 %v86
  %v471 = vunpack.c.l.b16 %v87
  %v472 = vunpack.c.l.b16 %v88
  %v473 = vunpack.c.l.b16 %v89
  %v474 = vunpack.c.l.b16 %v90
  %v475 = vunpack.c.l.b16 %v91
  %v476 = vunpack.c.l.b16 %v92
  %v477 = vunpack.c.l.b16 %v93
  %v478 = vunpack.c.l.b16 %v94
  %v479 = vunpack.c.l.b16 %v95
  %v480 = vunpack.c.l.b16 %v96
  %v481 = vunpack.c.l.b16 %v97
  %v482 = vunpack.c.l.b16 %v98
  %v483 = vunpack.c.l.b16 %v99
  %v484 = vunpack.c.l.b16 %v100
  %v485 = vunpack.c.l.b16 %v101
  %v486 = vunpack.c.l.b16 %v102
  %v487 = vunpack.c.l.b16 %v103
  %v488 = vunpack.c.l.b16 %v104
  %v489 = vunpack.c.l.b16 %v105
  %v490 = vunpack.c.l.b16 %v106
  %v491 = vunpack.c.l.b16 %v107
  %v492 = vunpack.c.l.b16 %v108
  %v493 = vunpack.c.l.b16 %v109
  %v494 = vunpack.c.l.b16 %v110
  %v495 = vpack.c.b16 %v464, %v463
  %v496 = vpack.c.b16 %v466, %v465
  %v497 = vpack.c.b16 %v468, %v467
  %v498 = vpack.c.b16 %v470, %v469
  %v499 = vpack.c.b16 %v472, %v471
  %v500 = vpack.c.b16 %v474, %v473
  %v501 = vpack.c.b16 %v476, %v475
  %v502 = vpack.c.b16 %v478, %v477
  %v503 = vpack.c.b16 %v480, %v479
  %v504 = vpack.c.b16 %v482, %v481
  %v505 = vpack.c.b16 %v484, %v483
  %v506 = vpack.c.b16 %v486, %v485
  %v507 = vpack.c.b16 %v488, %v487
  %v508 = vpack.c.b16 %v490, %v489
  %v509 = vpack.c.b16 %v492, %v491
  %v510 = vpack.c.b16 %v494, %v493
  %527 = vmatprep.subr.bf16.mxu0 0
  %528 = vmatpush1.bf16.msra.mxu0 %v502
  %529 = vmatprep.subr.bf16.mxu0 0
  %530 = vmatpush1.bf16.msra.mxu0 %v501
  %531 = vmatprep.subr.bf16.mxu0 0
  %532 = vmatpush1.bf16.msra.mxu0 %v500
  %533 = vmatprep.subr.bf16.mxu0 0
  %534 = vmatpush1.bf16.msra.mxu0 %v499
  %535 = vmatprep.subr.bf16.mxu0 0
  %536 = vmatpush1.bf16.msra.mxu0 %v498
  %537 = vmatprep.subr.bf16.mxu0 0
  %538 = vmatpush1.bf16.msra.mxu0 %v497
  %539 = vmatprep.subr.bf16.mxu0 0
  %540 = vmatpush1.bf16.msra.mxu0 %v496
  %541 = vmatprep.subr.bf16.mxu0 0
  %542 = vmatpush1.bf16.msra.mxu0 %v495
  %543 = vmatprep.subr.bf16.mxu0 0
  %544 = vmatpush2.bf16.msra.mxu0 %v510
  %545 = vmatprep.subr.bf16.mxu0 0
  %546 = vmatpush2.bf16.msra.mxu0 %v509
  %547 = vmatprep.subr.bf16.mxu0 0
  %548 = vmatpush2.bf16.msra.mxu0 %v508
  %549 = vmatprep.subr.bf16.mxu0 0
  %550 = vmatpush2.bf16.msra.mxu0 %v507
  %551 = vmatprep.subr.bf16.mxu0 0
  %552 = vmatpush2.bf16.msra.mxu0 %v506
  %553 = vmatprep.subr.bf16.mxu0 0
  %554 = vmatpush2.bf16.msra.mxu0 %v505
  %555 = vmatprep.subr.bf16.mxu0 0
  %556 = vmatpush2.bf16.msra.mxu0 %v504
  %557 = vmatprep.subr.bf16.mxu0 0
  %558 = vmatpush2.bf16.msra.mxu0 %v503
  %559 = vmatprep.mubr.bf16.mxu0 %v304
  %560 = vmatmul.mubr.bf16.gmra.mxu0 %v303
  %v561 = vpop.f32.mrf.mxu0
  %v562 = vadd.f32 0.0, %v561
  %v563 = vpop.f32.mrf.mxu0
  %v564 = vpop.f32.mrf.mxu0
  %v565 = vadd.f32 0.0, %v564
  %v566 = vpop.f32.mrf.mxu0
  %567 = vmatprep.mubr.bf16.mxu0 %v306
  %568 = vmatmul.mubr.bf16.gmra.mxu0 %v305
  %v569 = vpop.f32.mrf.mxu0
  %v570 = vadd.f32 0.0, %v569
  %v571 = vpop.f32.mrf.mxu0
  %v572 = vpop.f32.mrf.mxu0
  %v573 = vadd.f32 0.0, %v572
  %v574 = vpop.f32.mrf.mxu0
  %575 = vmatprep.mubr.bf16.mxu0 %v308
  %576 = vmatmul.mubr.bf16.gmra.mxu0 %v307
  %v577 = vpop.f32.mrf.mxu0
  %v578 = vadd.f32 0.0, %v577
  %v579 = vpop.f32.mrf.mxu0
  %v580 = vpop.f32.mrf.mxu0
  %v581 = vadd.f32 0.0, %v580
  %v582 = vpop.f32.mrf.mxu0
  %583 = vmatprep.mubr.bf16.mxu0 %v310
  %584 = vmatmul.mubr.bf16.gmra.mxu0 %v309
  %v585 = vpop.f32.mrf.mxu0
  %v586 = vadd.f32 0.0, %v585
  %v587 = vpop.f32.mrf.mxu0
  %v588 = vpop.f32.mrf.mxu0
  %v589 = vadd.f32 0.0, %v588
  %v590 = vpop.f32.mrf.mxu0
  %591 = vmatprep.mubr.bf16.mxu0 %v312
  %592 = vmatmul.mubr.bf16.gmra.mxu0 %v311
  %v593 = vpop.f32.mrf.mxu0
  %v594 = vadd.f32 0.0, %v593
  %v595 = vpop.f32.mrf.mxu0
  %v596 = vpop.f32.mrf.mxu0
  %v597 = vadd.f32 0.0, %v596
  %v598 = vpop.f32.mrf.mxu0
  %599 = vmatprep.mubr.bf16.mxu0 %v314
  %600 = vmatmul.mubr.bf16.gmra.mxu0 %v313
  %v601 = vpop.f32.mrf.mxu0
  %v602 = vadd.f32 0.0, %v601
  %v603 = vpop.f32.mrf.mxu0
  %v604 = vpop.f32.mrf.mxu0
  %v605 = vadd.f32 0.0, %v604
  %v606 = vpop.f32.mrf.mxu0
  %607 = vmatprep.mubr.bf16.mxu0 %v316
  %608 = vmatmul.mubr.bf16.gmra.mxu0 %v315
  %v609 = vpop.f32.mrf.mxu0
  %v610 = vadd.f32 0.0, %v609
  %v611 = vpop.f32.mrf.mxu0
  %v612 = vpop.f32.mrf.mxu0
  %v613 = vadd.f32 0.0, %v612
  %v614 = vpop.f32.mrf.mxu0
  %615 = vmatprep.mubr.bf16.mxu0 %v318
  %616 = vmatmul.mubr.bf16.gmra.mxu0 %v317
  %v617 = vpop.f32.mrf.mxu0
  %v618 = vadd.f32 0.0, %v617
  %v619 = vpop.f32.mrf.mxu0
  %v620 = vpop.f32.mrf.mxu0
  %v621 = vadd.f32 0.0, %v620
  %v622 = vpop.f32.mrf.mxu0
  %623 = vmatprep.mubr.bf16.mxu0 %v320
  %624 = vmatmul.mubr.bf16.gmra.mxu0 %v319
  %v625 = vpop.f32.mrf.mxu0
  %v626 = vadd.f32 0.0, %v625
  %v627 = vpop.f32.mrf.mxu0
  %v628 = vpop.f32.mrf.mxu0
  %v629 = vadd.f32 0.0, %v628
  %v630 = vpop.f32.mrf.mxu0
  %631 = vmatprep.mubr.bf16.mxu0 %v322
  %632 = vmatmul.mubr.bf16.gmra.mxu0 %v321
  %v633 = vpop.f32.mrf.mxu0
  %v634 = vadd.f32 0.0, %v633
  %v635 = vpop.f32.mrf.mxu0
  %v636 = vpop.f32.mrf.mxu0
  %v637 = vadd.f32 0.0, %v636
  %v638 = vpop.f32.mrf.mxu0
  %639 = vmatprep.mubr.bf16.mxu0 %v324
  %640 = vmatmul.mubr.bf16.gmra.mxu0 %v323
  %v641 = vpop.f32.mrf.mxu0
  %v642 = vadd.f32 0.0, %v641
  %v643 = vpop.f32.mrf.mxu0
  %v644 = vpop.f32.mrf.mxu0
  %v645 = vadd.f32 0.0, %v644
  %v646 = vpop.f32.mrf.mxu0
  %647 = vmatprep.mubr.bf16.mxu0 %v326
  %648 = vmatmul.mubr.bf16.gmra.mxu0 %v325
  %v649 = vpop.f32.mrf.mxu0
  %v650 = vadd.f32 0.0, %v649
  %v651 = vpop.f32.mrf.mxu0
  %v652 = vpop.f32.mrf.mxu0
  %v653 = vadd.f32 0.0, %v652
  %v654 = vpop.f32.mrf.mxu0
  %655 = vmatprep.mubr.bf16.mxu0 %v328
  %656 = vmatmul.mubr.bf16.gmra.mxu0 %v327
  %v657 = vpop.f32.mrf.mxu0
  %v658 = vadd.f32 0.0, %v657
  %v659 = vpop.f32.mrf.mxu0
  %v660 = vpop.f32.mrf.mxu0
  %v661 = vadd.f32 0.0, %v660
  %v662 = vpop.f32.mrf.mxu0
  %663 = vmatprep.mubr.bf16.mxu0 %v330
  %664 = vmatmul.mubr.bf16.gmra.mxu0 %v329
  %v665 = vpop.f32.mrf.mxu0
  %v666 = vadd.f32 0.0, %v665
  %v667 = vpop.f32.mrf.mxu0
  %v668 = vpop.f32.mrf.mxu0
  %v669 = vadd.f32 0.0, %v668
  %v670 = vpop.f32.mrf.mxu0
  %671 = vmatprep.mubr.bf16.mxu0 %v332
  %672 = vmatmul.mubr.bf16.gmra.mxu0 %v331
  %v673 = vpop.f32.mrf.mxu0
  %v674 = vadd.f32 0.0, %v673
  %v675 = vpop.f32.mrf.mxu0
  %v676 = vpop.f32.mrf.mxu0
  %v677 = vadd.f32 0.0, %v676
  %v678 = vpop.f32.mrf.mxu0
  %679 = vmatprep.mubr.bf16.mxu0 %v334
  %680 = vmatmul.mubr.bf16.gmra.mxu0 %v333
  %v681 = vpop.f32.mrf.mxu0
  %v682 = vadd.f32 0.0, %v681
  %v683 = vpop.f32.mrf.mxu0
  %v684 = vpop.f32.mrf.mxu0
  %v685 = vadd.f32 0.0, %v684
  %v686 = vpop.f32.mrf.mxu0
  %687 = vmatprep.mubr.bf16.mxu0 %v336
  %688 = vmatmul.mubr.bf16.gmra.mxu0 %v335
  %v689 = vpop.f32.mrf.mxu0
  %v690 = vadd.f32 0.0, %v689
  %v691 = vpop.f32.mrf.mxu0
  %v692 = vpop.f32.mrf.mxu0
  %v693 = vadd.f32 0.0, %v692
  %v694 = vpop.f32.mrf.mxu0
  %695 = vmatprep.mubr.bf16.mxu0 %v338
  %696 = vmatmul.mubr.bf16.gmra.mxu0 %v337
  %v697 = vpop.f32.mrf.mxu0
  %v698 = vadd.f32 0.0, %v697
  %v699 = vpop.f32.mrf.mxu0
  %v700 = vpop.f32.mrf.mxu0
  %v701 = vadd.f32 0.0, %v700
  %v702 = vpop.f32.mrf.mxu0
  %703 = vmatprep.mubr.bf16.mxu0 %v340
  %704 = vmatmul.mubr.bf16.gmra.mxu0 %v339
  %v705 = vpop.f32.mrf.mxu0
  %v706 = vadd.f32 0.0, %v705
  %v707 = vpop.f32.mrf.mxu0
  %v708 = vpop.f32.mrf.mxu0
  %v709 = vadd.f32 0.0, %v708
  %v710 = vpop.f32.mrf.mxu0
  %711 = vmatprep.mubr.bf16.mxu0 %v342
  %712 = vmatmul.mubr.bf16.gmra.mxu0 %v341
  %v713 = vpop.f32.mrf.mxu0
  %v714 = vadd.f32 0.0, %v713
  %v715 = vpop.f32.mrf.mxu0
  %v716 = vpop.f32.mrf.mxu0
  %v717 = vadd.f32 0.0, %v716
  %v718 = vpop.f32.mrf.mxu0
  %719 = vmatprep.mubr.bf16.mxu0 %v344
  %720 = vmatmul.mubr.bf16.gmra.mxu0 %v343
  %v721 = vpop.f32.mrf.mxu0
  %v722 = vadd.f32 0.0, %v721
  %v723 = vpop.f32.mrf.mxu0
  %v724 = vpop.f32.mrf.mxu0
  %v725 = vadd.f32 0.0, %v724
  %v726 = vpop.f32.mrf.mxu0
  %727 = vmatprep.mubr.bf16.mxu0 %v346
  %728 = vmatmul.mubr.bf16.gmra.mxu0 %v345
  %v729 = vpop.f32.mrf.mxu0
  %v730 = vadd.f32 0.0, %v729
  %v731 = vpop.f32.mrf.mxu0
  %v732 = vpop.f32.mrf.mxu0
  %v733 = vadd.f32 0.0, %v732
  %v734 = vpop.f32.mrf.mxu0
  %735 = vmatprep.mubr.bf16.mxu0 %v348
  %736 = vmatmul.mubr.bf16.gmra.mxu0 %v347
  %v737 = vpop.f32.mrf.mxu0
  %v738 = vadd.f32 0.0, %v737
  %v739 = vpop.f32.mrf.mxu0
  %v740 = vpop.f32.mrf.mxu0
  %v741 = vadd.f32 0.0, %v740
  %v742 = vpop.f32.mrf.mxu0
  %743 = vmatprep.mubr.bf16.mxu0 %v350
  %744 = vmatmul.mubr.bf16.gmra.mxu0 %v349
  %v745 = vpop.f32.mrf.mxu0
  %v746 = vadd.f32 0.0, %v745
  %v747 = vpop.f32.mrf.mxu0
  %v748 = vpop.f32.mrf.mxu0
  %v749 = vadd.f32 0.0, %v748
  %v750 = vpop.f32.mrf.mxu0
  %751 = vmatprep.mubr.bf16.mxu0 %v352
  %752 = vmatmul.mubr.bf16.gmra.mxu0 %v351
  %v753 = vpop.f32.mrf.mxu0
  %v754 = vadd.f32 0.0, %v753
  %v755 = vpop.f32.mrf.mxu0
  %v756 = vpop.f32.mrf.mxu0
  %v757 = vadd.f32 0.0, %v756
  %v758 = vpop.f32.mrf.mxu0
  %759 = vmatprep.mubr.bf16.mxu0 %v354
  %760 = vmatmul.mubr.bf16.gmra.mxu0 %v353
  %v761 = vpop.f32.mrf.mxu0
  %v762 = vadd.f32 0.0, %v761
  %v763 = vpop.f32.mrf.mxu0
  %v764 = vpop.f32.mrf.mxu0
  %v765 = vadd.f32 0.0, %v764
  %v766 = vpop.f32.mrf.mxu0
  %767 = vmatprep.mubr.bf16.mxu0 %v356
  %768 = vmatmul.mubr.bf16.gmra.mxu0 %v355
  %v769 = vpop.f32.mrf.mxu0
  %v770 = vadd.f32 0.0, %v769
  %v771 = vpop.f32.mrf.mxu0
  %v772 = vpop.f32.mrf.mxu0
  %v773 = vadd.f32 0.0, %v772
  %v774 = vpop.f32.mrf.mxu0
  %775 = vmatprep.mubr.bf16.mxu0 %v358
  %776 = vmatmul.mubr.bf16.gmra.mxu0 %v357
  %v777 = vpop.f32.mrf.mxu0
  %v778 = vadd.f32 0.0, %v777
  %v779 = vpop.f32.mrf.mxu0
  %v780 = vpop.f32.mrf.mxu0
  %v781 = vadd.f32 0.0, %v780
  %v782 = vpop.f32.mrf.mxu0
  %783 = vmatprep.mubr.bf16.mxu0 %v360
  %784 = vmatmul.mubr.bf16.gmra.mxu0 %v359
  %v785 = vpop.f32.mrf.mxu0
  %v786 = vadd.f32 0.0, %v785
  %v787 = vpop.f32.mrf.mxu0
  %v788 = vpop.f32.mrf.mxu0
  %v789 = vadd.f32 0.0, %v788
  %v790 = vpop.f32.mrf.mxu0
  %791 = vmatprep.mubr.bf16.mxu0 %v362
  %792 = vmatmul.mubr.bf16.gmra.mxu0 %v361
  %v793 = vpop.f32.mrf.mxu0
  %v794 = vadd.f32 0.0, %v793
  %v795 = vpop.f32.mrf.mxu0
  %v796 = vpop.f32.mrf.mxu0
  %v797 = vadd.f32 0.0, %v796
  %v798 = vpop.f32.mrf.mxu0
  %799 = vmatprep.mubr.bf16.mxu0 %v364
  %800 = vmatmul.mubr.bf16.gmra.mxu0 %v363
  %v801 = vpop.f32.mrf.mxu0
  %v802 = vadd.f32 0.0, %v801
  %v803 = vpop.f32.mrf.mxu0
  %v804 = vpop.f32.mrf.mxu0
  %v805 = vadd.f32 0.0, %v804
  %v806 = vpop.f32.mrf.mxu0
  %807 = vmatprep.mubr.bf16.mxu0 %v366
  %808 = vmatmul.mubr.bf16.gmra.mxu0 %v365
  %v809 = vpop.f32.mrf.mxu0
  %v810 = vadd.f32 0.0, %v809
  %v811 = vpop.f32.mrf.mxu0
  %v812 = vpop.f32.mrf.mxu0
  %v813 = vadd.f32 0.0, %v812
  %v814 = vpop.f32.mrf.mxu0
  %815 = vdwg.mxu0
  %v816 = vld [vmem:[%s2] sm:$0x1]
  %v817 = vlaneseq
  %v818 = vshrl.u32 %v817, 7
  %v819 = vsub.s32 0, %v818
  %v820 = vrot.slane %v816, %v819
  %v821 = vmul.f32 %v562, %v820
  %v822 = vmul.f32 %v565, %v820
  %v823 = vmul.f32 %v570, %v820
  %v824 = vmul.f32 %v573, %v820
  %v825 = vmul.f32 %v578, %v820
  %v826 = vmul.f32 %v581, %v820
  %v827 = vmul.f32 %v586, %v820
  %v828 = vmul.f32 %v589, %v820
  %v829 = vmul.f32 %v594, %v820
  %v830 = vmul.f32 %v597, %v820
  %v831 = vmul.f32 %v602, %v820
  %v832 = vmul.f32 %v605, %v820
  %v833 = vmul.f32 %v610, %v820
  %v834 = vmul.f32 %v613, %v820
  %v835 = vmul.f32 %v618, %v820
  %v836 = vmul.f32 %v621, %v820
  %v837 = vmul.f32 %v626, %v820
  %v838 = vmul.f32 %v629, %v820
  %v839 = vmul.f32 %v634, %v820
  %v840 = vmul.f32 %v637, %v820
  %v841 = vmul.f32 %v642, %v820
  %v842 = vmul.f32 %v645, %v820
  %v843 = vmul.f32 %v650, %v820
  %v844 = vmul.f32 %v653, %v820
  %v845 = vmul.f32 %v658, %v820
  %v846 = vmul.f32 %v661, %v820
  %v847 = vmul.f32 %v666, %v820
  %v848 = vmul.f32 %v669, %v820
  %v849 = vmul.f32 %v674, %v820
  %v850 = vmul.f32 %v677, %v820
  %v851 = vmul.f32 %v682, %v820
  %v852 = vmul.f32 %v685, %v820
  %v853 = vmul.f32 %v690, %v820
  %v854 = vmul.f32 %v693, %v820
  %v855 = vmul.f32 %v698, %v820
  %v856 = vmul.f32 %v701, %v820
  %v857 = vmul.f32 %v706, %v820
  %v858 = vmul.f32 %v709, %v820
  %v859 = vmul.f32 %v714, %v820
  %v860 = vmul.f32 %v717, %v820
  %v861 = vmul.f32 %v722, %v820
  %v862 = vmul.f32 %v725, %v820
  %v863 = vmul.f32 %v730, %v820
  %v864 = vmul.f32 %v733, %v820
  %v865 = vmul.f32 %v738, %v820
  %v866 = vmul.f32 %v741, %v820
  %v867 = vmul.f32 %v746, %v820
  %v868 = vmul.f32 %v749, %v820
  %v869 = vmul.f32 %v754, %v820
  %v870 = vmul.f32 %v757, %v820
  %v871 = vmul.f32 %v762, %v820
  %v872 = vmul.f32 %v765, %v820
  %v873 = vmul.f32 %v770, %v820
  %v874 = vmul.f32 %v773, %v820
  %v875 = vmul.f32 %v778, %v820
  %v876 = vmul.f32 %v781, %v820
  %v877 = vmul.f32 %v786, %v820
  %v878 = vmul.f32 %v789, %v820
  %v879 = vmul.f32 %v794, %v820
  %v880 = vmul.f32 %v797, %v820
  %v881 = vmul.f32 %v802, %v820
  %v882 = vmul.f32 %v805, %v820
  %v883 = vmul.f32 %v810, %v820
  %v884 = vmul.f32 %v813, %v820
  %v885 = vld [vmem:[%s2 + $0x1] sm:$0x1]
  %v886 = vlaneseq
  %v887 = vshrl.u32 %v886, 7
  %v888 = vsub.s32 0, %v887
  %v889 = vrot.slane %v885, %v888
  %v890 = vadd.f32 %v821, %v889
  %v891 = vadd.f32 %v822, %v889
  %v892 = vadd.f32 %v823, %v889
  %v893 = vadd.f32 %v824, %v889
  %v894 = vadd.f32 %v825, %v889
  %v895 = vadd.f32 %v826, %v889
  %v896 = vadd.f32 %v827, %v889
  %v897 = vadd.f32 %v828, %v889
  %v898 = vadd.f32 %v829, %v889
  %v899 = vadd.f32 %v830, %v889
  %v900 = vadd.f32 %v831, %v889
  %v901 = vadd.f32 %v832, %v889
  %v902 = vadd.f32 %v833, %v889
  %v903 = vadd.f32 %v834, %v889
  %v904 = vadd.f32 %v835, %v889
  %v905 = vadd.f32 %v836, %v889
  %v906 = vadd.f32 %v837, %v889
  %v907 = vadd.f32 %v838, %v889
  %v908 = vadd.f32 %v839, %v889
  %v909 = vadd.f32 %v840, %v889
  %v910 = vadd.f32 %v841, %v889
  %v911 = vadd.f32 %v842, %v889
  %v912 = vadd.f32 %v843, %v889
  %v913 = vadd.f32 %v844, %v889
  %v914 = vadd.f32 %v845, %v889
  %v915 = vadd.f32 %v846, %v889
  %v916 = vadd.f32 %v847, %v889
  %v917 = vadd.f32 %v848, %v889
  %v918 = vadd.f32 %v849, %v889
  %v919 = vadd.f32 %v850, %v889
  %v920 = vadd.f32 %v851, %v889
  %v921 = vadd.f32 %v852, %v889
  %v922 = vadd.f32 %v853, %v889
  %v923 = vadd.f32 %v854, %v889
  %v924 = vadd.f32 %v855, %v889
  %v925 = vadd.f32 %v856, %v889
  %v926 = vadd.f32 %v857, %v889
  %v927 = vadd.f32 %v858, %v889
  %v928 = vadd.f32 %v859, %v889
  %v929 = vadd.f32 %v860, %v889
  %v930 = vadd.f32 %v861, %v889
  %v931 = vadd.f32 %v862, %v889
  %v932 = vadd.f32 %v863, %v889
  %v933 = vadd.f32 %v864, %v889
  %v934 = vadd.f32 %v865, %v889
  %v935 = vadd.f32 %v866, %v889
  %v936 = vadd.f32 %v867, %v889
  %v937 = vadd.f32 %v868, %v889
  %v938 = vadd.f32 %v869, %v889
  %v939 = vadd.f32 %v870, %v889
  %v940 = vadd.f32 %v871, %v889
  %v941 = vadd.f32 %v872, %v889
  %v942 = vadd.f32 %v873, %v889
  %v943 = vadd.f32 %v874, %v889
  %v944 = vadd.f32 %v875, %v889
  %v945 = vadd.f32 %v876, %v889
  %v946 = vadd.f32 %v877, %v889
  %v947 = vadd.f32 %v878, %v889
  %v948 = vadd.f32 %v879, %v889
  %v949 = vadd.f32 %v880, %v889
  %v950 = vadd.f32 %v881, %v889
  %v951 = vadd.f32 %v882, %v889
  %v952 = vadd.f32 %v883, %v889
  %v953 = vadd.f32 %v884, %v889
  %v954 = vmax.f32 %v890, 0.0
  %v955 = vmax.f32 %v891, 0.0
  %v956 = vmax.f32 %v892, 0.0
  %v957 = vmax.f32 %v893, 0.0
  %v958 = vmax.f32 %v894, 0.0
  %v959 = vmax.f32 %v895, 0.0
  %v960 = vmax.f32 %v896, 0.0
  %v961 = vmax.f32 %v897, 0.0
  %v962 = vmax.f32 %v898, 0.0
  %v963 = vmax.f32 %v899, 0.0
  %v964 = vmax.f32 %v900, 0.0
  %v965 = vmax.f32 %v901, 0.0
  %v966 = vmax.f32 %v902, 0.0
  %v967 = vmax.f32 %v903, 0.0
  %v968 = vmax.f32 %v904, 0.0
  %v969 = vmax.f32 %v905, 0.0
  %v970 = vmax.f32 %v906, 0.0
  %v971 = vmax.f32 %v907, 0.0
  %v972 = vmax.f32 %v908, 0.0
  %v973 = vmax.f32 %v909, 0.0
  %v974 = vmax.f32 %v910, 0.0
  %v975 = vmax.f32 %v911, 0.0
  %v976 = vmax.f32 %v912, 0.0
  %v977 = vmax.f32 %v913, 0.0
  %v978 = vmax.f32 %v914, 0.0
  %v979 = vmax.f32 %v915, 0.0
  %v980 = vmax.f32 %v916, 0.0
  %v981 = vmax.f32 %v917, 0.0
  %v982 = vmax.f32 %v918, 0.0
  %v983 = vmax.f32 %v919, 0.0
  %v984 = vmax.f32 %v920, 0.0
  %v985 = vmax.f32 %v921, 0.0
  %v986 = vmax.f32 %v922, 0.0
  %v987 = vmax.f32 %v923, 0.0
  %v988 = vmax.f32 %v924, 0.0
  %v989 = vmax.f32 %v925, 0.0
  %v990 = vmax.f32 %v926, 0.0
  %v991 = vmax.f32 %v927, 0.0
  %v992 = vmax.f32 %v928, 0.0
  %v993 = vmax.f32 %v929, 0.0
  %v994 = vmax.f32 %v930, 0.0
  %v995 = vmax.f32 %v931, 0.0
  %v996 = vmax.f32 %v932, 0.0
  %v997 = vmax.f32 %v933, 0.0
  %v998 = vmax.f32 %v934, 0.0
  %v999 = vmax.f32 %v935, 0.0
  %v1000 = vmax.f32 %v936, 0.0
  %v1001 = vmax.f32 %v937, 0.0
  %v1002 = vmax.f32 %v938, 0.0
  %v1003 = vmax.f32 %v939, 0.0
  %v1004 = vmax.f32 %v940, 0.0
  %v1005 = vmax.f32 %v941, 0.0
  %v1006 = vmax.f32 %v942, 0.0
  %v1007 = vmax.f32 %v943, 0.0
  %v1008 = vmax.f32 %v944, 0.0
  %v1009 = vmax.f32 %v945, 0.0
  %v1010 = vmax.f32 %v946, 0.0
  %v1011 = vmax.f32 %v947, 0.0
  %v1012 = vmax.f32 %v948, 0.0
  %v1013 = vmax.f32 %v949, 0.0
  %v1014 = vmax.f32 %v950, 0.0
  %v1015 = vmax.f32 %v951, 0.0
  %v1016 = vmax.f32 %v952, 0.0
  %v1017 = vmax.f32 %v953, 0.0
  %v1018 = vpack.c.bf16 %v955, %v954
  %v1019 = vpack.c.bf16 %v957, %v956
  %v1020 = vpack.c.bf16 %v959, %v958
  %v1021 = vpack.c.bf16 %v961, %v960
  %v1022 = vpack.c.bf16 %v963, %v962
  %v1023 = vpack.c.bf16 %v965, %v964
  %v1024 = vpack.c.bf16 %v967, %v966
  %v1025 = vpack.c.bf16 %v969, %v968
  %v1026 = vpack.c.bf16 %v971, %v970
  %v1027 = vpack.c.bf16 %v973, %v972
  %v1028 = vpack.c.bf16 %v975, %v974
  %v1029 = vpack.c.bf16 %v977, %v976
  %v1030 = vpack.c.bf16 %v979, %v978
  %v1031 = vpack.c.bf16 %v981, %v980
  %v1032 = vpack.c.bf16 %v983, %v982
  %v1033 = vpack.c.bf16 %v985, %v984
  %v1034 = vpack.c.bf16 %v987, %v986
  %v1035 = vpack.c.bf16 %v989, %v988
  %v1036 = vpack.c.bf16 %v991, %v990
  %v1037 = vpack.c.bf16 %v993, %v992
  %v1038 = vpack.c.bf16 %v995, %v994
  %v1039 = vpack.c.bf16 %v997, %v996
  %v1040 = vpack.c.bf16 %v999, %v998
  %v1041 = vpack.c.bf16 %v1001, %v1000
  %v1042 = vpack.c.bf16 %v1003, %v1002
  %v1043 = vpack.c.bf16 %v1005, %v1004
  %v1044 = vpack.c.bf16 %v1007, %v1006
  %v1045 = vpack.c.bf16 %v1009, %v1008
  %v1046 = vpack.c.bf16 %v1011, %v1010
  %v1047 = vpack.c.bf16 %v1013, %v1012
  %v1048 = vpack.c.bf16 %v1015, %v1014
  %v1049 = vpack.c.bf16 %v1017, %v1016
  %v1082 = vunpack.c.l.b16 %v1018
  %v1083 = vunpack.c.h.b16 %v1018
  %v1084 = vunpack.c.l.b16 %v1019
  %v1085 = vunpack.c.h.b16 %v1019
  %v1086 = vunpack.c.l.b16 %v1020
  %v1087 = vunpack.c.h.b16 %v1020
  %v1088 = vunpack.c.l.b16 %v1021
  %v1089 = vunpack.c.h.b16 %v1021
  %v1090 = vunpack.c.l.b16 %v1022
  %v1091 = vunpack.c.h.b16 %v1022
  %v1092 = vunpack.c.l.b16 %v1023
  %v1093 = vunpack.c.h.b16 %v1023
  %v1094 = vunpack.c.l.b16 %v1024
  %v1095 = vunpack.c.h.b16 %v1024
  %v1096 = vunpack.c.l.b16 %v1025
  %v1097 = vunpack.c.h.b16 %v1025
  %v1098 = vunpack.c.l.b16 %v1026
  %v1099 = vunpack.c.h.b16 %v1026
  %v1100 = vunpack.c.l.b16 %v1027
  %v1101 = vunpack.c.h.b16 %v1027
  %v1102 = vunpack.c.l.b16 %v1028
  %v1103 = vunpack.c.h.b16 %v1028
  %v1104 = vunpack.c.l.b16 %v1029
  %v1105 = vunpack.c.h.b16 %v1029
  %v1106 = vunpack.c.l.b16 %v1030
  %v1107 = vunpack.c.h.b16 %v1030
  %v1108 = vunpack.c.l.b16 %v1031
  %v1109 = vunpack.c.h.b16 %v1031
  %v1110 = vunpack.c.l.b16 %v1032
  %v1111 = vunpack.c.h.b16 %v1032
  %v1112 = vunpack.c.l.b16 %v1033
  %v1113 = vunpack.c.h.b16 %v1033
  %v1114 = vunpack.c.l.b16 %v1034
  %v1115 = vunpack.c.h.b16 %v1034
  %v1116 = vunpack.c.l.b16 %v1035
  %v1117 = vunpack.c.h.b16 %v1035
  %v1118 = vunpack.c.l.b16 %v1036
  %v1119 = vunpack.c.h.b16 %v1036
  %v1120 = vunpack.c.l.b16 %v1037
  %v1121 = vunpack.c.h.b16 %v1037
  %v1122 = vunpack.c.l.b16 %v1038
  %v1123 = vunpack.c.h.b16 %v1038
  %v1124 = vunpack.c.l.b16 %v1039
  %v1125 = vunpack.c.h.b16 %v1039
  %v1126 = vunpack.c.l.b16 %v1040
  %v1127 = vunpack.c.h.b16 %v1040
  %v1128 = vunpack.c.l.b16 %v1041
  %v1129 = vunpack.c.h.b16 %v1041
  %v1130 = vunpack.c.l.b16 %v1042
  %v1131 = vunpack.c.h.b16 %v1042
  %v1132 = vunpack.c.l.b16 %v1043
  %v1133 = vunpack.c.h.b16 %v1043
  %v1134 = vunpack.c.l.b16 %v1044
  %v1135 = vunpack.c.h.b16 %v1044
  %v1136 = vunpack.c.l.b16 %v1045
  %v1137 = vunpack.c.h.b16 %v1045
  %v1138 = vunpack.c.l.b16 %v1046
  %v1139 = vunpack.c.h.b16 %v1046
  %v1140 = vunpack.c.l.b16 %v1047
  %v1141 = vunpack.c.h.b16 %v1047
  %v1142 = vunpack.c.l.b16 %v1048
  %v1143 = vunpack.c.h.b16 %v1048
  %v1144 = vunpack.c.l.b16 %v1049
  %v1145 = vunpack.c.h.b16 %v1049
  %v1146 = vpack.c.b16 %v1082, %v1082
  %v1147 = vpack.c.b16 %v1083, %v1083
  %v1148 = vpack.c.b16 %v1084, %v1084
  %v1149 = vpack.c.b16 %v1085, %v1085
  %v1150 = vpack.c.b16 %v1086, %v1086
  %v1151 = vpack.c.b16 %v1087, %v1087
  %v1152 = vpack.c.b16 %v1088, %v1088
  %v1153 = vpack.c.b16 %v1089, %v1089
  %v1154 = vpack.c.b16 %v1090, %v1090
  %v1155 = vpack.c.b16 %v1091, %v1091
  %v1156 = vpack.c.b16 %v1092, %v1092
  %v1157 = vpack.c.b16 %v1093, %v1093
  %v1158 = vpack.c.b16 %v1094, %v1094
  %v1159 = vpack.c.b16 %v1095, %v1095
  %v1160 = vpack.c.b16 %v1096, %v1096
  %v1161 = vpack.c.b16 %v1097, %v1097
  %v1162 = vpack.c.b16 %v1098, %v1098
  %v1163 = vpack.c.b16 %v1099, %v1099
  %v1164 = vpack.c.b16 %v1100, %v1100
  %v1165 = vpack.c.b16 %v1101, %v1101
  %v1166 = vpack.c.b16 %v1102, %v1102
  %v1167 = vpack.c.b16 %v1103, %v1103
  %v1168 = vpack.c.b16 %v1104, %v1104
  %v1169 = vpack.c.b16 %v1105, %v1105
  %v1170 = vpack.c.b16 %v1106, %v1106
  %v1171 = vpack.c.b16 %v1107, %v1107
  %v1172 = vpack.c.b16 %v1108, %v1108
  %v1173 = vpack.c.b16 %v1109, %v1109
  %v1174 = vpack.c.b16 %v1110, %v1110
  %v1175 = vpack.c.b16 %v1111, %v1111
  %v1176 = vpack.c.b16 %v1112, %v1112
  %v1177 = vpack.c.b16 %v1113, %v1113
  %v1178 = vpack.c.b16 %v1114, %v1114
  %v1179 = vpack.c.b16 %v1115, %v1115
  %v1180 = vpack.c.b16 %v1116, %v1116
  %v1181 = vpack.c.b16 %v1117, %v1117
  %v1182 = vpack.c.b16 %v1118, %v1118
  %v1183 = vpack.c.b16 %v1119, %v1119
  %v1184 = vpack.c.b16 %v1120, %v1120
  %v1185 = vpack.c.b16 %v1121, %v1121
  %v1186 = vpack.c.b16 %v1122, %v1122
  %v1187 = vpack.c.b16 %v1123, %v1123
  %v1188 = vpack.c.b16 %v1124, %v1124
  %v1189 = vpack.c.b16 %v1125, %v1125
  %v1190 = vpack.c.b16 %v1126, %v1126
  %v1191 = vpack.c.b16 %v1127, %v1127
  %v1192 = vpack.c.b16 %v1128, %v1128
  %v1193 = vpack.c.b16 %v1129, %v1129
  %v1194 = vpack.c.b16 %v1130, %v1130
  %v1195 = vpack.c.b16 %v1131, %v1131
  %v1196 = vpack.c.b16 %v1132, %v1132
  %v1197 = vpack.c.b16 %v1133, %v1133
  %v1198 = vpack.c.b16 %v1134, %v1134
  %v1199 = vpack.c.b16 %v1135, %v1135
  %v1200 = vpack.c.b16 %v1136, %v1136
  %v1201 = vpack.c.b16 %v1137, %v1137
  %v1202 = vpack.c.b16 %v1138, %v1138
  %v1203 = vpack.c.b16 %v1139, %v1139
  %v1204 = vpack.c.b16 %v1140, %v1140
  %v1205 = vpack.c.b16 %v1141, %v1141
  %v1206 = vpack.c.b16 %v1142, %v1142
  %v1207 = vpack.c.b16 %v1143, %v1143
  %v1208 = vpack.c.b16 %v1144, %v1144
  %v1209 = vpack.c.b16 %v1145, %v1145
  %vm1274 = vcmask 125952
  %1275 = vst.msk [vmem:[%s3] sm:$0xf] %vm1274, %v1146
  %1276 = vst.msk [vmem:[%s3 + $0x4] sm:$0xf] %vm1274, %v1147
  %1277 = vst.msk [vmem:[%s3 + $0x8] sm:$0xf] %vm1274, %v1148
  %1278 = vst.msk [vmem:[%s3 + $0xc] sm:$0xf] %vm1274, %v1149
  %1279 = vst.msk [vmem:[%s3 + $0x10] sm:$0xf] %vm1274, %v1150
  %1280 = vst.msk [vmem:[%s3 + $0x14] sm:$0xf] %vm1274, %v1151
  %1281 = vst.msk [vmem:[%s3 + $0x18] sm:$0xf] %vm1274, %v1152
  %1282 = vst.msk [vmem:[%s3 + $0x1c] sm:$0xf] %vm1274, %v1153
  %1283 = vst.msk [vmem:[%s3 + $0x20] sm:$0xf] %vm1274, %v1154
  %1284 = vst.msk [vmem:[%s3 + $0x24] sm:$0xf] %vm1274, %v1155
  %1285 = vst.msk [vmem:[%s3 + $0x28] sm:$0xf] %vm1274, %v1156
  %1286 = vst.msk [vmem:[%s3 + $0x2c] sm:$0xf] %vm1274, %v1157
  %1287 = vst.msk [vmem:[%s3 + $0x30] sm:$0xf] %vm1274, %v1158
  %1288 = vst.msk [vmem:[%s3 + $0x34] sm:$0xf] %vm1274, %v1159
  %1289 = vst.msk [vmem:[%s3 + $0x38] sm:$0xf] %vm1274, %v1160
  %1290 = vst.msk [vmem:[%s3 + $0x3c] sm:$0xf] %vm1274, %v1161
  %1291 = vst.msk [vmem:[%s3 + $0x40] sm:$0xf] %vm1274, %v1162
  %1292 = vst.msk [vmem:[%s3 + $0x44] sm:$0xf] %vm1274, %v1163
  %1293 = vst.msk [vmem:[%s3 + $0x48] sm:$0xf] %vm1274, %v1164
  %1294 = vst.msk [vmem:[%s3 + $0x4c] sm:$0xf] %vm1274, %v1165
  %1295 = vst.msk [vmem:[%s3 + $0x50] sm:$0xf] %vm1274, %v1166
  %1296 = vst.msk [vmem:[%s3 + $0x54] sm:$0xf] %vm1274, %v1167
  %1297 = vst.msk [vmem:[%s3 + $0x58] sm:$0xf] %vm1274, %v1168
  %1298 = vst.msk [vmem:[%s3 + $0x5c] sm:$0xf] %vm1274, %v1169
  %1299 = vst.msk [vmem:[%s3 + $0x60] sm:$0xf] %vm1274, %v1170
  %1300 = vst.msk [vmem:[%s3 + $0x64] sm:$0xf] %vm1274, %v1171
  %1301 = vst.msk [vmem:[%s3 + $0x68] sm:$0xf] %vm1274, %v1172
  %1302 = vst.msk [vmem:[%s3 + $0x6c] sm:$0xf] %vm1274, %v1173
  %1303 = vst.msk [vmem:[%s3 + $0x70] sm:$0xf] %vm1274, %v1174
  %1304 = vst.msk [vmem:[%s3 + $0x74] sm:$0xf] %vm1274, %v1175
  %1305 = vst.msk [vmem:[%s3 + $0x78] sm:$0xf] %vm1274, %v1176
  %1306 = vst.msk [vmem:[%s3 + $0x7c] sm:$0xf] %vm1274, %v1177
  %1307 = vst.msk [vmem:[%s3 + $0x80] sm:$0xf] %vm1274, %v1178
  %1308 = vst.msk [vmem:[%s3 + $0x84] sm:$0xf] %vm1274, %v1179
  %1309 = vst.msk [vmem:[%s3 + $0x88] sm:$0xf] %vm1274, %v1180
  %1310 = vst.msk [vmem:[%s3 + $0x8c] sm:$0xf] %vm1274, %v1181
  %1311 = vst.msk [vmem:[%s3 + $0x90] sm:$0xf] %vm1274, %v1182
  %1312 = vst.msk [vmem:[%s3 + $0x94] sm:$0xf] %vm1274, %v1183
  %1313 = vst.msk [vmem:[%s3 + $0x98] sm:$0xf] %vm1274, %v1184
  %1314 = vst.msk [vmem:[%s3 + $0x9c] sm:$0xf] %vm1274, %v1185
  %1315 = vst.msk [vmem:[%s3 + $0xa0] sm:$0xf] %vm1274, %v1186
  %1316 = vst.msk [vmem:[%s3 + $0xa4] sm:$0xf] %vm1274, %v1187
  %1317 = vst.msk [vmem:[%s3 + $0xa8] sm:$0xf] %vm1274, %v1188
  %1318 = vst.msk [vmem:[%s3 + $0xac] sm:$0xf] %vm1274, %v1189
  %1319 = vst.msk [vmem:[%s3 + $0xb0] sm:$0xf] %vm1274, %v1190
  %1320 = vst.msk [vmem:[%s3 + $0xb4] sm:$0xf] %vm1274, %v1191
  %1321 = vst.msk [vmem:[%s3 + $0xb8] sm:$0xf] %vm1274, %v1192
  %1322 = vst.msk [vmem:[%s3 + $0xbc] sm:$0xf] %vm1274, %v1193
  %1323 = vst.msk [vmem:[%s3 + $0xc0] sm:$0xf] %vm1274, %v1194
  %1324 = vst.msk [vmem:[%s3 + $0xc4] sm:$0xf] %vm1274, %v1195
  %1325 = vst.msk [vmem:[%s3 + $0xc8] sm:$0xf] %vm1274, %v1196
  %1326 = vst.msk [vmem:[%s3 + $0xcc] sm:$0xf] %vm1274, %v1197
  %1327 = vst.msk [vmem:[%s3 + $0xd0] sm:$0xf] %vm1274, %v1198
  %1328 = vst.msk [vmem:[%s3 + $0xd4] sm:$0xf] %vm1274, %v1199
  %1329 = vst.msk [vmem:[%s3 + $0xd8] sm:$0xf] %vm1274, %v1200
  %1330 = vst.msk [vmem:[%s3 + $0xdc] sm:$0xf] %vm1274, %v1201
  %1331 = vst.msk [vmem:[%s3 + $0xe0] sm:$0xf] %vm1274, %v1202
  %1332 = vst.msk [vmem:[%s3 + $0xe4] sm:$0xf] %vm1274, %v1203
  %1333 = vst.msk [vmem:[%s3 + $0xe8] sm:$0xf] %vm1274, %v1204
  %1334 = vst.msk [vmem:[%s3 + $0xec] sm:$0xf] %vm1274, %v1205
  %1335 = vst.msk [vmem:[%s3 + $0xf0] sm:$0xf] %vm1274, %v1206
  %1336 = vst.msk [vmem:[%s3 + $0xf4] sm:$0xf] %vm1274, %v1207
  %1337 = vst.msk [vmem:[%s3 + $0xf8] sm:$0xf] %vm1274, %v1208
  %1338 = vst.msk [vmem:[%s3 + $0xfc] sm:$0xf] %vm1274, %v1209
  // Predicated region
  $region14: #{_lambda_.17} parent=0 // pred_check
    _
  $region15: #{_lambda_.17} parent=0 // pred_check_branch
    %1340 = sbr.rel (0) target = $region17
  $region16: #{_lambda_.17} parent=0 // pred_region
    _
  $region17: #{_lambda_.17} parent=0 // pred_fallthru
    _
  // Predicated region
  $region18: #{_lambda_.17} parent=0 // pred_check
    _
  $region19: #{_lambda_.17} parent=0 // pred_check_branch
    %1342 = sbr.rel (0) target = $region21
  $region20: #{_lambda_.17} parent=0 // pred_region
    _
  $region21: #{_lambda_.17} parent=0 // pred_fallthru
    _

// kernel: _lambda_.18
$region0: #{_lambda_.18}
  #allocation0 [shape = 'u32[]', space=smem, size = 0x4, offset = 0x4, fixed_abs, tag = 'smem constant byte address 0x4 - core index']
  #allocation1 [shape = 'u32[144,128]{1,0:T(1,128)}', space=vmem, size = 0x12000, scoped, tag = 'internal scratch']
  %s0 = inlined_call_operand.vmem [shape: bf16[512,256], index: 0, kind: input, shape index: {}]
  %s1 = inlined_call_operand.vmem [shape: bf16[256,16], index: 1, kind: input, shape index: {}]
  %s2 = inlined_call_operand.vmem [shape: f32[2,16], index: 2, kind: input, shape index: {}]
  %s3 = inlined_call_operand.vmem [shape: bf16[512,16], index: 3, kind: input, shape index: {}]
  %s4 = inlined_call_operand.vmem [shape: bf16[512,16], index: 4, kind: output, shape index: {}]
  %s5 = sld [smem:[#allocation0]]
  $region26: #{_lambda_.18} parent=0
    _
  %s7 = ssub.s32 1, %s5
  %s8 = scalar_select 0, %s7, %s5
  // Predicated region
  $region2: #{_lambda_.18} parent=0 // pred_check
    _
  $region3: #{_lambda_.18} parent=0 // pred_check_branch
    %10 = sbr.rel (0) target = $region5
  $region4: #{_lambda_.18} parent=0 // pred_region
    _
  $region5: #{_lambda_.18} parent=0 // pred_fallthru
    _
  // Predicated region
  $region6: #{_lambda_.18} parent=0 // pred_check
    _
  $region7: #{_lambda_.18} parent=0 // pred_check_branch
    %12 = sbr.rel (0) target = $region9
  $region8: #{_lambda_.18} parent=0 // pred_region
    _
  $region9: #{_lambda_.18} parent=0 // pred_fallthru
    _
  // Predicated region
  $region10: #{_lambda_.18} parent=0 // pred_check
    _
  $region11: #{_lambda_.18} parent=0 // pred_check_branch
    %14 = sbr.rel (0) target = $region13
  $region12: #{_lambda_.18} parent=0 // pred_region
    _
  $region13: #{_lambda_.18} parent=0 // pred_fallthru
    _
  // Predicated region
  $region14: #{_lambda_.18} parent=0 // pred_check
    _
  $region15: #{_lambda_.18} parent=0 // pred_check_branch
    %16 = sbr.rel (0) target = $region17
  $region16: #{_lambda_.18} parent=0 // pred_region
    _
  $region17: #{_lambda_.18} parent=0 // pred_fallthru
    _
  %v18 = vld [vmem:[%s0] sm:$0xff]
  %v19 = vld [vmem:[%s0 + $0x8] sm:$0xff]
  %v20 = vld [vmem:[%s0 + $0x10] sm:$0xff]
  %v21 = vld [vmem:[%s0 + $0x18] sm:$0xff]
  %v22 = vld [vmem:[%s0 + $0x20] sm:$0xff]
  %v23 = vld [vmem:[%s0 + $0x28] sm:$0xff]
  %v24 = vld [vmem:[%s0 + $0x30] sm:$0xff]
  %v25 = vld [vmem:[%s0 + $0x38] sm:$0xff]
  %v26 = vld [vmem:[%s0 + $0x40] sm:$0xff]
  %v27 = vld [vmem:[%s0 + $0x48] sm:$0xff]
  %v28 = vld [vmem:[%s0 + $0x50] sm:$0xff]
  %v29 = vld [vmem:[%s0 + $0x58] sm:$0xff]
  %v30 = vld [vmem:[%s0 + $0x60] sm:$0xff]
  %v31 = vld [vmem:[%s0 + $0x68] sm:$0xff]
  %v32 = vld [vmem:[%s0 + $0x70] sm:$0xff]
  %v33 = vld [vmem:[%s0 + $0x78] sm:$0xff]
  %v34 = vld [vmem:[%s0 + $0x80] sm:$0xff]
  %v35 = vld [vmem:[%s0 + $0x88] sm:$0xff]
  %v36 = vld [vmem:[%s0 + $0x90] sm:$0xff]
  %v37 = vld [vmem:[%s0 + $0x98] sm:$0xff]
  %v38 = vld [vmem:[%s0 + $0xa0] sm:$0xff]
  %v39 = vld [vmem:[%s0 + $0xa8] sm:$0xff]
  %v40 = vld [vmem:[%s0 + $0xb0] sm:$0xff]
  %v41 = vld [vmem:[%s0 + $0xb8] sm:$0xff]
  %v42 = vld [vmem:[%s0 + $0xc0] sm:$0xff]
  %v43 = vld [vmem:[%s0 + $0xc8] sm:$0xff]
  %v44 = vld [vmem:[%s0 + $0xd0] sm:$0xff]
  %v45 = vld [vmem:[%s0 + $0xd8] sm:$0xff]
  %v46 = vld [vmem:[%s0 + $0xe0] sm:$0xff]
  %v47 = vld [vmem:[%s0 + $0xe8] sm:$0xff]
  %v48 = vld [vmem:[%s0 + $0xf0] sm:$0xff]
  %v49 = vld [vmem:[%s0 + $0xf8] sm:$0xff]
  %v50 = vld [vmem:[%s0 + $0x100] sm:$0xff]
  %v51 = vld [vmem:[%s0 + $0x108] sm:$0xff]
  %v52 = vld [vmem:[%s0 + $0x110] sm:$0xff]
  %v53 = vld [vmem:[%s0 + $0x118] sm:$0xff]
  %v54 = vld [vmem:[%s0 + $0x120] sm:$0xff]
  %v55 = vld [vmem:[%s0 + $0x128] sm:$0xff]
  %v56 = vld [vmem:[%s0 + $0x130] sm:$0xff]
  %v57 = vld [vmem:[%s0 + $0x138] sm:$0xff]
  %v58 = vld [vmem:[%s0 + $0x140] sm:$0xff]
  %v59 = vld [vmem:[%s0 + $0x148] sm:$0xff]
  %v60 = vld [vmem:[%s0 + $0x150] sm:$0xff]
  %v61 = vld [vmem:[%s0 + $0x158] sm:$0xff]
  %v62 = vld [vmem:[%s0 + $0x160] sm:$0xff]
  %v63 = vld [vmem:[%s0 + $0x168] sm:$0xff]
  %v64 = vld [vmem:[%s0 + $0x170] sm:$0xff]
  %v65 = vld [vmem:[%s0 + $0x178] sm:$0xff]
  %v66 = vld [vmem:[%s0 + $0x180] sm:$0xff]
  %v67 = vld [vmem:[%s0 + $0x188] sm:$0xff]
  %v68 = vld [vmem:[%s0 + $0x190] sm:$0xff]
  %v69 = vld [vmem:[%s0 + $0x198] sm:$0xff]
  %v70 = vld [vmem:[%s0 + $0x1a0] sm:$0xff]
  %v71 = vld [vmem:[%s0 + $0x1a8] sm:$0xff]
  %v72 = vld [vmem:[%s0 + $0x1b0] sm:$0xff]
  %v73 = vld [vmem:[%s0 + $0x1b8] sm:$0xff]
  %v74 = vld [vmem:[%s0 + $0x1c0] sm:$0xff]
  %v75 = vld [vmem:[%s0 + $0x1c8] sm:$0xff]
  %v76 = vld [vmem:[%s0 + $0x1d0] sm:$0xff]
  %v77 = vld [vmem:[%s0 + $0x1d8] sm:$0xff]
  %v78 = vld [vmem:[%s0 + $0x1e0] sm:$0xff]
  %v79 = vld [vmem:[%s0 + $0x1e8] sm:$0xff]
  %v80 = vld [vmem:[%s0 + $0x1f0] sm:$0xff]
  %v81 = vld [vmem:[%s0 + $0x1f8] sm:$0xff]
  %v82 = vld [vmem:[%s1] sm:$0xf]
  %v83 = vld [vmem:[%s1 + $0x4] sm:$0xf]
  %v84 = vld [vmem:[%s1 + $0x8] sm:$0xf]
  %v85 = vld [vmem:[%s1 + $0xc] sm:$0xf]
  %v86 = vld [vmem:[%s1 + $0x10] sm:$0xf]
  %v87 = vld [vmem:[%s1 + $0x14] sm:$0xf]
  %v88 = vld [vmem:[%s1 + $0x18] sm:$0xf]
  %v89 = vld [vmem:[%s1 + $0x1c] sm:$0xf]
  %v90 = vld [vmem:[%s1 + $0x20] sm:$0xf]
  %v91 = vld [vmem:[%s1 + $0x24] sm:$0xf]
  %v92 = vld [vmem:[%s1 + $0x28] sm:$0xf]
  %v93 = vld [vmem:[%s1 + $0x2c] sm:$0xf]
  %v94 = vld [vmem:[%s1 + $0x30] sm:$0xf]
  %v95 = vld [vmem:[%s1 + $0x34] sm:$0xf]
  %v96 = vld [vmem:[%s1 + $0x38] sm:$0xf]
  %v97 = vld [vmem:[%s1 + $0x3c] sm:$0xf]
  %v98 = vld [vmem:[%s1 + $0x40] sm:$0xf]
  %v99 = vld [vmem:[%s1 + $0x44] sm:$0xf]
  %v100 = vld [vmem:[%s1 + $0x48] sm:$0xf]
  %v101 = vld [vmem:[%s1 + $0x4c] sm:$0xf]
  %v102 = vld [vmem:[%s1 + $0x50] sm:$0xf]
  %v103 = vld [vmem:[%s1 + $0x54] sm:$0xf]
  %v104 = vld [vmem:[%s1 + $0x58] sm:$0xf]
  %v105 = vld [vmem:[%s1 + $0x5c] sm:$0xf]
  %v106 = vld [vmem:[%s1 + $0x60] sm:$0xf]
  %v107 = vld [vmem:[%s1 + $0x64] sm:$0xf]
  %v108 = vld [vmem:[%s1 + $0x68] sm:$0xf]
  %v109 = vld [vmem:[%s1 + $0x6c] sm:$0xf]
  %v110 = vld [vmem:[%s1 + $0x70] sm:$0xf]
  %v111 = vld [vmem:[%s1 + $0x74] sm:$0xf]
  %v112 = vld [vmem:[%s1 + $0x78] sm:$0xf]
  %v113 = vld [vmem:[%s1 + $0x7c] sm:$0xf]
  %v178 = vunpack.c.l.b16 %v18
  %v179 = vunpack.c.h.b16 %v18
  %v180 = vunpack.c.l.b16 %v19
  %v181 = vunpack.c.h.b16 %v19
  %v182 = vunpack.c.l.b16 %v20
  %v183 = vunpack.c.h.b16 %v20
  %v184 = vunpack.c.l.b16 %v21
  %v185 = vunpack.c.h.b16 %v21
  %v186 = vunpack.c.l.b16 %v22
  %v187 = vunpack.c.h.b16 %v22
  %v188 = vunpack.c.l.b16 %v23
  %v189 = vunpack.c.h.b16 %v23
  %v190 = vunpack.c.l.b16 %v24
  %v191 = vunpack.c.h.b16 %v24
  %v192 = vunpack.c.l.b16 %v25
  %v193 = vunpack.c.h.b16 %v25
  %v194 = vunpack.c.l.b16 %v26
  %v195 = vunpack.c.h.b16 %v26
  %v196 = vunpack.c.l.b16 %v27
  %v197 = vunpack.c.h.b16 %v27
  %v198 = vunpack.c.l.b16 %v28
  %v199 = vunpack.c.h.b16 %v28
  %v200 = vunpack.c.l.b16 %v29
  %v201 = vunpack.c.h.b16 %v29
  %v202 = vunpack.c.l.b16 %v30
  %v203 = vunpack.c.h.b16 %v30
  %v204 = vunpack.c.l.b16 %v31
  %v205 = vunpack.c.h.b16 %v31
  %v206 = vunpack.c.l.b16 %v32
  %v207 = vunpack.c.h.b16 %v32
  %v208 = vunpack.c.l.b16 %v33
  %v209 = vunpack.c.h.b16 %v33
  %v210 = vunpack.c.l.b16 %v34
  %v211 = vunpack.c.h.b16 %v34
  %v212 = vunpack.c.l.b16 %v35
  %v213 = vunpack.c.h.b16 %v35
  %v214 = vunpack.c.l.b16 %v36
  %v215 = vunpack.c.h.b16 %v36
  %v216 = vunpack.c.l.b16 %v37
  %v217 = vunpack.c.h.b16 %v37
  %v218 = vunpack.c.l.b16 %v38
  %v219 = vunpack.c.h.b16 %v38
  %v220 = vunpack.c.l.b16 %v39
  %v221 = vunpack.c.h.b16 %v39
  %v222 = vunpack.c.l.b16 %v40
  %v223 = vunpack.c.h.b16 %v40
  %v224 = vunpack.c.l.b16 %v41
  %v225 = vunpack.c.h.b16 %v41
  %v226 = vunpack.c.l.b16 %v42
  %v227 = vunpack.c.h.b16 %v42
  %v228 = vunpack.c.l.b16 %v43
  %v229 = vunpack.c.h.b16 %v43
  %v230 = vunpack.c.l.b16 %v44
  %v231 = vunpack.c.h.b16 %v44
  %v232 = vunpack.c.l.b16 %v45
  %v233 = vunpack.c.h.b16 %v45
  %v234 = vunpack.c.l.b16 %v46
  %v235 = vunpack.c.h.b16 %v46
  %v236 = vunpack.c.l.b16 %v47
  %v237 = vunpack.c.h.b16 %v47
  %v238 = vunpack.c.l.b16 %v48
  %v239 = vunpack.c.h.b16 %v48
  %v240 = vunpack.c.l.b16 %v49
  %v241 = vunpack.c.h.b16 %v49
  %v242 = vunpack.c.l.b16 %v50
  %v243 = vunpack.c.h.b16 %v50
  %v244 = vunpack.c.l.b16 %v51
  %v245 = vunpack.c.h.b16 %v51
  %v246 = vunpack.c.l.b16 %v52
  %v247 = vunpack.c.h.b16 %v52
  %v248 = vunpack.c.l.b16 %v53
  %v249 = vunpack.c.h.b16 %v53
  %v250 = vunpack.c.l.b16 %v54
  %v251 = vunpack.c.h.b16 %v54
  %v252 = vunpack.c.l.b16 %v55
  %v253 = vunpack.c.h.b16 %v55
  %v254 = vunpack.c.l.b16 %v56
  %v255 = vunpack.c.h.b16 %v56
  %v256 = vunpack.c.l.b16 %v57
  %v257 = vunpack.c.h.b16 %v57
  %v258 = vunpack.c.l.b16 %v58
  %v259 = vunpack.c.h.b16 %v58
  %v260 = vunpack.c.l.b16 %v59
  %v261 = vunpack.c.h.b16 %v59
  %v262 = vunpack.c.l.b16 %v60
  %v263 = vunpack.c.h.b16 %v60
  %v264 = vunpack.c.l.b16 %v61
  %v265 = vunpack.c.h.b16 %v61
  %v266 = vunpack.c.l.b16 %v62
  %v267 = vunpack.c.h.b16 %v62
  %v268 = vunpack.c.l.b16 %v63
  %v269 = vunpack.c.h.b16 %v63
  %v270 = vunpack.c.l.b16 %v64
  %v271 = vunpack.c.h.b16 %v64
  %v272 = vunpack.c.l.b16 %v65
  %v273 = vunpack.c.h.b16 %v65
  %v274 = vunpack.c.l.b16 %v66
  %v275 = vunpack.c.h.b16 %v66
  %v276 = vunpack.c.l.b16 %v67
  %v277 = vunpack.c.h.b16 %v67
  %v278 = vunpack.c.l.b16 %v68
  %v279 = vunpack.c.h.b16 %v68
  %v280 = vunpack.c.l.b16 %v69
  %v281 = vunpack.c.h.b16 %v69
  %v282 = vunpack.c.l.b16 %v70
  %v283 = vunpack.c.h.b16 %v70
  %v284 = vunpack.c.l.b16 %v71
  %v285 = vunpack.c.h.b16 %v71
  %v286 = vunpack.c.l.b16 %v72
  %v287 = vunpack.c.h.b16 %v72
  %v288 = vunpack.c.l.b16 %v73
  %v289 = vunpack.c.h.b16 %v73
  %v290 = vunpack.c.l.b16 %v74
  %v291 = vunpack.c.h.b16 %v74
  %v292 = vunpack.c.l.b16 %v75
  %v293 = vunpack.c.h.b16 %v75
  %v294 = vunpack.c.l.b16 %v76
  %v295 = vunpack.c.h.b16 %v76
  %v296 = vunpack.c.l.b16 %v77
  %v297 = vunpack.c.h.b16 %v77
  %v298 = vunpack.c.l.b16 %v78
  %v299 = vunpack.c.h.b16 %v78
  %v300 = vunpack.c.l.b16 %v79
  %v301 = vunpack.c.h.b16 %v79
  %v302 = vunpack.c.l.b16 %v80
  %v303 = vunpack.c.h.b16 %v80
  %v304 = vunpack.c.l.b16 %v81
  %v305 = vunpack.c.h.b16 %v81
  %v306 = vpack.c.b16 %v180, %v178
  %v307 = vpack.c.b16 %v181, %v179
  %v308 = vpack.c.b16 %v184, %v182
  %v309 = vpack.c.b16 %v185, %v183
  %v310 = vpack.c.b16 %v188, %v186
  %v311 = vpack.c.b16 %v189, %v187
  %v312 = vpack.c.b16 %v192, %v190
  %v313 = vpack.c.b16 %v193, %v191
  %v314 = vpack.c.b16 %v196, %v194
  %v315 = vpack.c.b16 %v197, %v195
  %v316 = vpack.c.b16 %v200, %v198
  %v317 = vpack.c.b16 %v201, %v199
  %v318 = vpack.c.b16 %v204, %v202
  %v319 = vpack.c.b16 %v205, %v203
  %v320 = vpack.c.b16 %v208, %v206
  %v321 = vpack.c.b16 %v209, %v207
  %v322 = vpack.c.b16 %v212, %v210
  %v323 = vpack.c.b16 %v213, %v211
  %v324 = vpack.c.b16 %v216, %v214
  %v325 = vpack.c.b16 %v217, %v215
  %v326 = vpack.c.b16 %v220, %v218
  %v327 = vpack.c.b16 %v221, %v219
  %v328 = vpack.c.b16 %v224, %v222
  %v329 = vpack.c.b16 %v225, %v223
  %v330 = vpack.c.b16 %v228, %v226
  %v331 = vpack.c.b16 %v229, %v227
  %v332 = vpack.c.b16 %v232, %v230
  %v333 = vpack.c.b16 %v233, %v231
  %v334 = vpack.c.b16 %v236, %v234
  %v335 = vpack.c.b16 %v237, %v235
  %v336 = vpack.c.b16 %v240, %v238
  %v337 = vpack.c.b16 %v241, %v239
  %v338 = vpack.c.b16 %v244, %v242
  %v339 = vpack.c.b16 %v245, %v243
  %v340 = vpack.c.b16 %v248, %v246
  %v341 = vpack.c.b16 %v249, %v247
  %v342 = vpack.c.b16 %v252, %v250
  %v343 = vpack.c.b16 %v253, %v251
  %v344 = vpack.c.b16 %v256, %v254
  %v345 = vpack.c.b16 %v257, %v255
  %v346 = vpack.c.b16 %v260, %v258
  %v347 = vpack.c.b16 %v261, %v259
  %v348 = vpack.c.b16 %v264, %v262
  %v349 = vpack.c.b16 %v265, %v263
  %v350 = vpack.c.b16 %v268, %v266
  %v351 = vpack.c.b16 %v269, %v267
  %v352 = vpack.c.b16 %v272, %v270
  %v353 = vpack.c.b16 %v273, %v271
  %v354 = vpack.c.b16 %v276, %v274
  %v355 = vpack.c.b16 %v277, %v275
  %v356 = vpack.c.b16 %v280, %v278
  %v357 = vpack.c.b16 %v281, %v279
  %v358 = vpack.c.b16 %v284, %v282
  %v359 = vpack.c.b16 %v285, %v283
  %v360 = vpack.c.b16 %v288, %v286
  %v361 = vpack.c.b16 %v289, %v287
  %v362 = vpack.c.b16 %v292, %v290
  %v363 = vpack.c.b16 %v293, %v291
  %v364 = vpack.c.b16 %v296, %v294
  %v365 = vpack.c.b16 %v297, %v295
  %v366 = vpack.c.b16 %v300, %v298
  %v367 = vpack.c.b16 %v301, %v299
  %v368 = vpack.c.b16 %v304, %v302
  %v369 = vpack.c.b16 %v305, %v303
  %v466 = vunpack.c.l.b16 %v82
  %v467 = vunpack.c.l.b16 %v83
  %v468 = vunpack.c.l.b16 %v84
  %v469 = vunpack.c.l.b16 %v85
  %v470 = vunpack.c.l.b16 %v86
  %v471 = vunpack.c.l.b16 %v87
  %v472 = vunpack.c.l.b16 %v88
  %v473 = vunpack.c.l.b16 %v89
  %v474 = vunpack.c.l.b16 %v90
  %v475 = vunpack.c.l.b16 %v91
  %v476 = vunpack.c.l.b16 %v92
  %v477 = vunpack.c.l.b16 %v93
  %v478 = vunpack.c.l.b16 %v94
  %v479 = vunpack.c.l.b16 %v95
  %v480 = vunpack.c.l.b16 %v96
  %v481 = vunpack.c.l.b16 %v97
  %v482 = vunpack.c.l.b16 %v98
  %v483 = vunpack.c.l.b16 %v99
  %v484 = vunpack.c.l.b16 %v100
  %v485 = vunpack.c.l.b16 %v101
  %v486 = vunpack.c.l.b16 %v102
  %v487 = vunpack.c.l.b16 %v103
  %v488 = vunpack.c.l.b16 %v104
  %v489 = vunpack.c.l.b16 %v105
  %v490 = vunpack.c.l.b16 %v106
  %v491 = vunpack.c.l.b16 %v107
  %v492 = vunpack.c.l.b16 %v108
  %v493 = vunpack.c.l.b16 %v109
  %v494 = vunpack.c.l.b16 %v110
  %v495 = vunpack.c.l.b16 %v111
  %v496 = vunpack.c.l.b16 %v112
  %v497 = vunpack.c.l.b16 %v113
  %v498 = vpack.c.b16 %v467, %v466
  %v499 = vpack.c.b16 %v469, %v468
  %v500 = vpack.c.b16 %v471, %v470
  %v501 = vpack.c.b16 %v473, %v472
  %v502 = vpack.c.b16 %v475, %v474
  %v503 = vpack.c.b16 %v477, %v476
  %v504 = vpack.c.b16 %v479, %v478
  %v505 = vpack.c.b16 %v481, %v480
  %v506 = vpack.c.b16 %v483, %v482
  %v507 = vpack.c.b16 %v485, %v484
  %v508 = vpack.c.b16 %v487, %v486
  %v509 = vpack.c.b16 %v489, %v488
  %v510 = vpack.c.b16 %v491, %v490
  %v511 = vpack.c.b16 %v493, %v492
  %v512 = vpack.c.b16 %v495, %v494
  %v513 = vpack.c.b16 %v497, %v496
  %530 = vmatprep.subr.bf16.mxu0 0
  %531 = vmatpush1.bf16.msra.mxu0 %v505
  %532 = vmatprep.subr.bf16.mxu0 0
  %533 = vmatpush1.bf16.msra.mxu0 %v504
  %534 = vmatprep.subr.bf16.mxu0 0
  %535 = vmatpush1.bf16.msra.mxu0 %v503
  %536 = vmatprep.subr.bf16.mxu0 0
  %537 = vmatpush1.bf16.msra.mxu0 %v502
  %538 = vmatprep.subr.bf16.mxu0 0
  %539 = vmatpush1.bf16.msra.mxu0 %v501
  %540 = vmatprep.subr.bf16.mxu0 0
  %541 = vmatpush1.bf16.msra.mxu0 %v500
  %542 = vmatprep.subr.bf16.mxu0 0
  %543 = vmatpush1.bf16.msra.mxu0 %v499
  %544 = vmatprep.subr.bf16.mxu0 0
  %545 = vmatpush1.bf16.msra.mxu0 %v498
  %546 = vmatprep.subr.bf16.mxu0 0
  %547 = vmatpush2.bf16.msra.mxu0 %v513
  %548 = vmatprep.subr.bf16.mxu0 0
  %549 = vmatpush2.bf16.msra.mxu0 %v512
  %550 = vmatprep.subr.bf16.mxu0 0
  %551 = vmatpush2.bf16.msra.mxu0 %v511
  %552 = vmatprep.subr.bf16.mxu0 0
  %553 = vmatpush2.bf16.msra.mxu0 %v510
  %554 = vmatprep.subr.bf16.mxu0 0
  %555 = vmatpush2.bf16.msra.mxu0 %v509
  %556 = vmatprep.subr.bf16.mxu0 0
  %557 = vmatpush2.bf16.msra.mxu0 %v508
  %558 = vmatprep.subr.bf16.mxu0 0
  %559 = vmatpush2.bf16.msra.mxu0 %v507
  %560 = vmatprep.subr.bf16.mxu0 0
  %561 = vmatpush2.bf16.msra.mxu0 %v506
  %562 = vmatprep.mubr.bf16.mxu0 %v307
  %563 = vmatmul.mubr.bf16.gmra.mxu0 %v306
  %v564 = vpop.f32.mrf.mxu0
  %v565 = vadd.f32 0.0, %v564
  %v566 = vpop.f32.mrf.mxu0
  %v567 = vpop.f32.mrf.mxu0
  %v568 = vadd.f32 0.0, %v567
  %v569 = vpop.f32.mrf.mxu0
  %570 = vmatprep.mubr.bf16.mxu0 %v309
  %571 = vmatmul.mubr.bf16.gmra.mxu0 %v308
  %v572 = vpop.f32.mrf.mxu0
  %v573 = vadd.f32 0.0, %v572
  %v574 = vpop.f32.mrf.mxu0
  %v575 = vpop.f32.mrf.mxu0
  %v576 = vadd.f32 0.0, %v575
  %v577 = vpop.f32.mrf.mxu0
  %578 = vmatprep.mubr.bf16.mxu0 %v311
  %579 = vmatmul.mubr.bf16.gmra.mxu0 %v310
  %v580 = vpop.f32.mrf.mxu0
  %v581 = vadd.f32 0.0, %v580
  %v582 = vpop.f32.mrf.mxu0
  %v583 = vpop.f32.mrf.mxu0
  %v584 = vadd.f32 0.0, %v583
  %v585 = vpop.f32.mrf.mxu0
  %586 = vmatprep.mubr.bf16.mxu0 %v313
  %587 = vmatmul.mubr.bf16.gmra.mxu0 %v312
  %v588 = vpop.f32.mrf.mxu0
  %v589 = vadd.f32 0.0, %v588
  %v590 = vpop.f32.mrf.mxu0
  %v591 = vpop.f32.mrf.mxu0
  %v592 = vadd.f32 0.0, %v591
  %v593 = vpop.f32.mrf.mxu0
  %594 = vmatprep.mubr.bf16.mxu0 %v315
  %595 = vmatmul.mubr.bf16.gmra.mxu0 %v314
  %v596 = vpop.f32.mrf.mxu0
  %v597 = vadd.f32 0.0, %v596
  %v598 = vpop.f32.mrf.mxu0
  %v599 = vpop.f32.mrf.mxu0
  %v600 = vadd.f32 0.0, %v599
  %v601 = vpop.f32.mrf.mxu0
  %602 = vmatprep.mubr.bf16.mxu0 %v317
  %603 = vmatmul.mubr.bf16.gmra.mxu0 %v316
  %v604 = vpop.f32.mrf.mxu0
  %v605 = vadd.f32 0.0, %v604
  %v606 = vpop.f32.mrf.mxu0
  %v607 = vpop.f32.mrf.mxu0
  %v608 = vadd.f32 0.0, %v607
  %v609 = vpop.f32.mrf.mxu0
  %610 = vmatprep.mubr.bf16.mxu0 %v319
  %611 = vmatmul.mubr.bf16.gmra.mxu0 %v318
  %v612 = vpop.f32.mrf.mxu0
  %v613 = vadd.f32 0.0, %v612
  %v614 = vpop.f32.mrf.mxu0
  %v615 = vpop.f32.mrf.mxu0
  %v616 = vadd.f32 0.0, %v615
  %v617 = vpop.f32.mrf.mxu0
  %618 = vmatprep.mubr.bf16.mxu0 %v321
  %619 = vmatmul.mubr.bf16.gmra.mxu0 %v320
  %v620 = vpop.f32.mrf.mxu0
  %v621 = vadd.f32 0.0, %v620
  %v622 = vpop.f32.mrf.mxu0
  %v623 = vpop.f32.mrf.mxu0
  %v624 = vadd.f32 0.0, %v623
  %v625 = vpop.f32.mrf.mxu0
  %626 = vmatprep.mubr.bf16.mxu0 %v323
  %627 = vmatmul.mubr.bf16.gmra.mxu0 %v322
  %v628 = vpop.f32.mrf.mxu0
  %v629 = vadd.f32 0.0, %v628
  %v630 = vpop.f32.mrf.mxu0
  %v631 = vpop.f32.mrf.mxu0
  %v632 = vadd.f32 0.0, %v631
  %v633 = vpop.f32.mrf.mxu0
  %634 = vmatprep.mubr.bf16.mxu0 %v325
  %635 = vmatmul.mubr.bf16.gmra.mxu0 %v324
  %v636 = vpop.f32.mrf.mxu0
  %v637 = vadd.f32 0.0, %v636
  %v638 = vpop.f32.mrf.mxu0
  %v639 = vpop.f32.mrf.mxu0
  %v640 = vadd.f32 0.0, %v639
  %v641 = vpop.f32.mrf.mxu0
  %642 = vmatprep.mubr.bf16.mxu0 %v327
  %643 = vmatmul.mubr.bf16.gmra.mxu0 %v326
  %v644 = vpop.f32.mrf.mxu0
  %v645 = vadd.f32 0.0, %v644
  %v646 = vpop.f32.mrf.mxu0
  %v647 = vpop.f32.mrf.mxu0
  %v648 = vadd.f32 0.0, %v647
  %v649 = vpop.f32.mrf.mxu0
  %650 = vmatprep.mubr.bf16.mxu0 %v329
  %651 = vmatmul.mubr.bf16.gmra.mxu0 %v328
  %v652 = vpop.f32.mrf.mxu0
  %v653 = vadd.f32 0.0, %v652
  %v654 = vpop.f32.mrf.mxu0
  %v655 = vpop.f32.mrf.mxu0
  %v656 = vadd.f32 0.0, %v655
  %v657 = vpop.f32.mrf.mxu0
  %658 = vmatprep.mubr.bf16.mxu0 %v331
  %659 = vmatmul.mubr.bf16.gmra.mxu0 %v330
  %v660 = vpop.f32.mrf.mxu0
  %v661 = vadd.f32 0.0, %v660
  %v662 = vpop.f32.mrf.mxu0
  %v663 = vpop.f32.mrf.mxu0
  %v664 = vadd.f32 0.0, %v663
  %v665 = vpop.f32.mrf.mxu0
  %666 = vmatprep.mubr.bf16.mxu0 %v333
  %667 = vmatmul.mubr.bf16.gmra.mxu0 %v332
  %v668 = vpop.f32.mrf.mxu0
  %v669 = vadd.f32 0.0, %v668
  %v670 = vpop.f32.mrf.mxu0
  %v671 = vpop.f32.mrf.mxu0
  %v672 = vadd.f32 0.0, %v671
  %v673 = vpop.f32.mrf.mxu0
  %674 = vmatprep.mubr.bf16.mxu0 %v335
  %675 = vmatmul.mubr.bf16.gmra.mxu0 %v334
  %v676 = vpop.f32.mrf.mxu0
  %v677 = vadd.f32 0.0, %v676
  %v678 = vpop.f32.mrf.mxu0
  %v679 = vpop.f32.mrf.mxu0
  %v680 = vadd.f32 0.0, %v679
  %v681 = vpop.f32.mrf.mxu0
  %682 = vmatprep.mubr.bf16.mxu0 %v337
  %683 = vmatmul.mubr.bf16.gmra.mxu0 %v336
  %v684 = vpop.f32.mrf.mxu0
  %v685 = vadd.f32 0.0, %v684
  %v686 = vpop.f32.mrf.mxu0
  %v687 = vpop.f32.mrf.mxu0
  %v688 = vadd.f32 0.0, %v687
  %v689 = vpop.f32.mrf.mxu0
  %690 = vmatprep.mubr.bf16.mxu0 %v339
  %691 = vmatmul.mubr.bf16.gmra.mxu0 %v338
  %v692 = vpop.f32.mrf.mxu0
  %v693 = vadd.f32 0.0, %v692
  %v694 = vpop.f32.mrf.mxu0
  %v695 = vpop.f32.mrf.mxu0
  %v696 = vadd.f32 0.0, %v695
  %v697 = vpop.f32.mrf.mxu0
  %698 = vmatprep.mubr.bf16.mxu0 %v341
  %699 = vmatmul.mubr.bf16.gmra.mxu0 %v340
  %v700 = vpop.f32.mrf.mxu0
  %v701 = vadd.f32 0.0, %v700
  %v702 = vpop.f32.mrf.mxu0
  %v703 = vpop.f32.mrf.mxu0
  %v704 = vadd.f32 0.0, %v703
  %v705 = vpop.f32.mrf.mxu0
  %706 = vmatprep.mubr.bf16.mxu0 %v343
  %707 = vmatmul.mubr.bf16.gmra.mxu0 %v342
  %v708 = vpop.f32.mrf.mxu0
  %v709 = vadd.f32 0.0, %v708
  %v710 = vpop.f32.mrf.mxu0
  %v711 = vpop.f32.mrf.mxu0
  %v712 = vadd.f32 0.0, %v711
  %v713 = vpop.f32.mrf.mxu0
  %714 = vmatprep.mubr.bf16.mxu0 %v345
  %715 = vmatmul.mubr.bf16.gmra.mxu0 %v344
  %v716 = vpop.f32.mrf.mxu0
  %v717 = vadd.f32 0.0, %v716
  %v718 = vpop.f32.mrf.mxu0
  %v719 = vpop.f32.mrf.mxu0
  %v720 = vadd.f32 0.0, %v719
  %v721 = vpop.f32.mrf.mxu0
  %722 = vmatprep.mubr.bf16.mxu0 %v347
  %723 = vmatmul.mubr.bf16.gmra.mxu0 %v346
  %v724 = vpop.f32.mrf.mxu0
  %v725 = vadd.f32 0.0, %v724
  %v726 = vpop.f32.mrf.mxu0
  %v727 = vpop.f32.mrf.mxu0
  %v728 = vadd.f32 0.0, %v727
  %v729 = vpop.f32.mrf.mxu0
  %730 = vmatprep.mubr.bf16.mxu0 %v349
  %731 = vmatmul.mubr.bf16.gmra.mxu0 %v348
  %v732 = vpop.f32.mrf.mxu0
  %v733 = vadd.f32 0.0, %v732
  %v734 = vpop.f32.mrf.mxu0
  %v735 = vpop.f32.mrf.mxu0
  %v736 = vadd.f32 0.0, %v735
  %v737 = vpop.f32.mrf.mxu0
  %738 = vmatprep.mubr.bf16.mxu0 %v351
  %739 = vmatmul.mubr.bf16.gmra.mxu0 %v350
  %v740 = vpop.f32.mrf.mxu0
  %v741 = vadd.f32 0.0, %v740
  %v742 = vpop.f32.mrf.mxu0
  %v743 = vpop.f32.mrf.mxu0
  %v744 = vadd.f32 0.0, %v743
  %v745 = vpop.f32.mrf.mxu0
  %746 = vmatprep.mubr.bf16.mxu0 %v353
  %747 = vmatmul.mubr.bf16.gmra.mxu0 %v352
  %v748 = vpop.f32.mrf.mxu0
  %v749 = vadd.f32 0.0, %v748
  %v750 = vpop.f32.mrf.mxu0
  %v751 = vpop.f32.mrf.mxu0
  %v752 = vadd.f32 0.0, %v751
  %v753 = vpop.f32.mrf.mxu0
  %754 = vmatprep.mubr.bf16.mxu0 %v355
  %755 = vmatmul.mubr.bf16.gmra.mxu0 %v354
  %v756 = vpop.f32.mrf.mxu0
  %v757 = vadd.f32 0.0, %v756
  %v758 = vpop.f32.mrf.mxu0
  %v759 = vpop.f32.mrf.mxu0
  %v760 = vadd.f32 0.0, %v759
  %v761 = vpop.f32.mrf.mxu0
  %762 = vmatprep.mubr.bf16.mxu0 %v357
  %763 = vmatmul.mubr.bf16.gmra.mxu0 %v356
  %v764 = vpop.f32.mrf.mxu0
  %v765 = vadd.f32 0.0, %v764
  %v766 = vpop.f32.mrf.mxu0
  %v767 = vpop.f32.mrf.mxu0
  %v768 = vadd.f32 0.0, %v767
  %v769 = vpop.f32.mrf.mxu0
  %770 = vmatprep.mubr.bf16.mxu0 %v359
  %771 = vmatmul.mubr.bf16.gmra.mxu0 %v358
  %v772 = vpop.f32.mrf.mxu0
  %v773 = vadd.f32 0.0, %v772
  %v774 = vpop.f32.mrf.mxu0
  %v775 = vpop.f32.mrf.mxu0
  %v776 = vadd.f32 0.0, %v775
  %v777 = vpop.f32.mrf.mxu0
  %778 = vmatprep.mubr.bf16.mxu0 %v361
  %779 = vmatmul.mubr.bf16.gmra.mxu0 %v360
  %v780 = vpop.f32.mrf.mxu0
  %v781 = vadd.f32 0.0, %v780
  %v782 = vpop.f32.mrf.mxu0
  %v783 = vpop.f32.mrf.mxu0
  %v784 = vadd.f32 0.0, %v783
  %v785 = vpop.f32.mrf.mxu0
  %786 = vmatprep.mubr.bf16.mxu0 %v363
  %787 = vmatmul.mubr.bf16.gmra.mxu0 %v362
  %v788 = vpop.f32.mrf.mxu0
  %v789 = vadd.f32 0.0, %v788
  %v790 = vpop.f32.mrf.mxu0
  %v791 = vpop.f32.mrf.mxu0
  %v792 = vadd.f32 0.0, %v791
  %v793 = vpop.f32.mrf.mxu0
  %794 = vmatprep.mubr.bf16.mxu0 %v365
  %795 = vmatmul.mubr.bf16.gmra.mxu0 %v364
  %v796 = vpop.f32.mrf.mxu0
  %v797 = vadd.f32 0.0, %v796
  %v798 = vpop.f32.mrf.mxu0
  %v799 = vpop.f32.mrf.mxu0
  %v800 = vadd.f32 0.0, %v799
  %v801 = vpop.f32.mrf.mxu0
  %802 = vmatprep.mubr.bf16.mxu0 %v367
  %803 = vmatmul.mubr.bf16.gmra.mxu0 %v366
  %v804 = vpop.f32.mrf.mxu0
  %v805 = vadd.f32 0.0, %v804
  %v806 = vpop.f32.mrf.mxu0
  %v807 = vpop.f32.mrf.mxu0
  %v808 = vadd.f32 0.0, %v807
  %v809 = vpop.f32.mrf.mxu0
  %810 = vmatprep.mubr.bf16.mxu0 %v369
  %811 = vmatmul.mubr.bf16.gmra.mxu0 %v368
  %v812 = vpop.f32.mrf.mxu0
  %v813 = vadd.f32 0.0, %v812
  %v814 = vpop.f32.mrf.mxu0
  %v815 = vpop.f32.mrf.mxu0
  %v816 = vadd.f32 0.0, %v815
  %v817 = vpop.f32.mrf.mxu0
  %818 = vdwg.mxu0
  %v819 = vld [vmem:[%s2] sm:$0x1]
  %v820 = vlaneseq
  %v821 = vshrl.u32 %v820, 7
  %v822 = vsub.s32 0, %v821
  %v823 = vrot.slane %v819, %v822
  %v824 = vmul.f32 %v565, %v823
  %v825 = vmul.f32 %v568, %v823
  %v826 = vmul.f32 %v573, %v823
  %v827 = vmul.f32 %v576, %v823
  %v828 = vmul.f32 %v581, %v823
  %v829 = vmul.f32 %v584, %v823
  %v830 = vmul.f32 %v589, %v823
  %v831 = vmul.f32 %v592, %v823
  %v832 = vmul.f32 %v597, %v823
  %v833 = vmul.f32 %v600, %v823
  %v834 = vmul.f32 %v605, %v823
  %v835 = vmul.f32 %v608, %v823
  %v836 = vmul.f32 %v613, %v823
  %v837 = vmul.f32 %v616, %v823
  %v838 = vmul.f32 %v621, %v823
  %v839 = vmul.f32 %v624, %v823
  %v840 = vmul.f32 %v629, %v823
  %v841 = vmul.f32 %v632, %v823
  %v842 = vmul.f32 %v637, %v823
  %v843 = vmul.f32 %v640, %v823
  %v844 = vmul.f32 %v645, %v823
  %v845 = vmul.f32 %v648, %v823
  %v846 = vmul.f32 %v653, %v823
  %v847 = vmul.f32 %v656, %v823
  %v848 = vmul.f32 %v661, %v823
  %v849 = vmul.f32 %v664, %v823
  %v850 = vmul.f32 %v669, %v823
  %v851 = vmul.f32 %v672, %v823
  %v852 = vmul.f32 %v677, %v823
  %v853 = vmul.f32 %v680, %v823
  %v854 = vmul.f32 %v685, %v823
  %v855 = vmul.f32 %v688, %v823
  %v856 = vmul.f32 %v693, %v823
  %v857 = vmul.f32 %v696, %v823
  %v858 = vmul.f32 %v701, %v823
  %v859 = vmul.f32 %v704, %v823
  %v860 = vmul.f32 %v709, %v823
  %v861 = vmul.f32 %v712, %v823
  %v862 = vmul.f32 %v717, %v823
  %v863 = vmul.f32 %v720, %v823
  %v864 = vmul.f32 %v725, %v823
  %v865 = vmul.f32 %v728, %v823
  %v866 = vmul.f32 %v733, %v823
  %v867 = vmul.f32 %v736, %v823
  %v868 = vmul.f32 %v741, %v823
  %v869 = vmul.f32 %v744, %v823
  %v870 = vmul.f32 %v749, %v823
  %v871 = vmul.f32 %v752, %v823
  %v872 = vmul.f32 %v757, %v823
  %v873 = vmul.f32 %v760, %v823
  %v874 = vmul.f32 %v765, %v823
  %v875 = vmul.f32 %v768, %v823
  %v876 = vmul.f32 %v773, %v823
  %v877 = vmul.f32 %v776, %v823
  %v878 = vmul.f32 %v781, %v823
  %v879 = vmul.f32 %v784, %v823
  %v880 = vmul.f32 %v789, %v823
  %v881 = vmul.f32 %v792, %v823
  %v882 = vmul.f32 %v797, %v823
  %v883 = vmul.f32 %v800, %v823
  %v884 = vmul.f32 %v805, %v823
  %v885 = vmul.f32 %v808, %v823
  %v886 = vmul.f32 %v813, %v823
  %v887 = vmul.f32 %v816, %v823
  %v888 = vld [vmem:[%s2 + $0x1] sm:$0x1]
  %v889 = vlaneseq
  %v890 = vshrl.u32 %v889, 7
  %v891 = vsub.s32 0, %v890
  %v892 = vrot.slane %v888, %v891
  %v893 = vadd.f32 %v824, %v892
  %v894 = vadd.f32 %v825, %v892
  %v895 = vadd.f32 %v826, %v892
  %v896 = vadd.f32 %v827, %v892
  %v897 = vadd.f32 %v828, %v892
  %v898 = vadd.f32 %v829, %v892
  %v899 = vadd.f32 %v830, %v892
  %v900 = vadd.f32 %v831, %v892
  %v901 = vadd.f32 %v832, %v892
  %v902 = vadd.f32 %v833, %v892
  %v903 = vadd.f32 %v834, %v892
  %v904 = vadd.f32 %v835, %v892
  %v905 = vadd.f32 %v836, %v892
  %v906 = vadd.f32 %v837, %v892
  %v907 = vadd.f32 %v838, %v892
  %v908 = vadd.f32 %v839, %v892
  %v909 = vadd.f32 %v840, %v892
  %v910 = vadd.f32 %v841, %v892
  %v911 = vadd.f32 %v842, %v892
  %v912 = vadd.f32 %v843, %v892
  %v913 = vadd.f32 %v844, %v892
  %v914 = vadd.f32 %v845, %v892
  %v915 = vadd.f32 %v846, %v892
  %v916 = vadd.f32 %v847, %v892
  %v917 = vadd.f32 %v848, %v892
  %v918 = vadd.f32 %v849, %v892
  %v919 = vadd.f32 %v850, %v892
  %v920 = vadd.f32 %v851, %v892
  %v921 = vadd.f32 %v852, %v892
  %v922 = vadd.f32 %v853, %v892
  %v923 = vadd.f32 %v854, %v892
  %v924 = vadd.f32 %v855, %v892
  %v925 = vadd.f32 %v856, %v892
  %v926 = vadd.f32 %v857, %v892
  %v927 = vadd.f32 %v858, %v892
  %v928 = vadd.f32 %v859, %v892
  %v929 = vadd.f32 %v860, %v892
  %v930 = vadd.f32 %v861, %v892
  %v931 = vadd.f32 %v862, %v892
  %v932 = vadd.f32 %v863, %v892
  %v933 = vadd.f32 %v864, %v892
  %v934 = vadd.f32 %v865, %v892
  %v935 = vadd.f32 %v866, %v892
  %v936 = vadd.f32 %v867, %v892
  %v937 = vadd.f32 %v868, %v892
  %v938 = vadd.f32 %v869, %v892
  %v939 = vadd.f32 %v870, %v892
  %v940 = vadd.f32 %v871, %v892
  %v941 = vadd.f32 %v872, %v892
  %v942 = vadd.f32 %v873, %v892
  %v943 = vadd.f32 %v874, %v892
  %v944 = vadd.f32 %v875, %v892
  %v945 = vadd.f32 %v876, %v892
  %v946 = vadd.f32 %v877, %v892
  %v947 = vadd.f32 %v878, %v892
  %v948 = vadd.f32 %v879, %v892
  %v949 = vadd.f32 %v880, %v892
  %v950 = vadd.f32 %v881, %v892
  %v951 = vadd.f32 %v882, %v892
  %v952 = vadd.f32 %v883, %v892
  %v953 = vadd.f32 %v884, %v892
  %v954 = vadd.f32 %v885, %v892
  %v955 = vadd.f32 %v886, %v892
  %v956 = vadd.f32 %v887, %v892
  %v957 = vld [vmem:[%s3] sm:$0xf]
  %v958 = vld [vmem:[%s3 + $0x4] sm:$0xf]
  %v959 = vld [vmem:[%s3 + $0x8] sm:$0xf]
  %v960 = vld [vmem:[%s3 + $0xc] sm:$0xf]
  %v961 = vld [vmem:[%s3 + $0x10] sm:$0xf]
  %v962 = vld [vmem:[%s3 + $0x14] sm:$0xf]
  %v963 = vld [vmem:[%s3 + $0x18] sm:$0xf]
  %v964 = vld [vmem:[%s3 + $0x1c] sm:$0xf]
  %v965 = vld [vmem:[%s3 + $0x20] sm:$0xf]
  %v966 = vld [vmem:[%s3 + $0x24] sm:$0xf]
  %v967 = vld [vmem:[%s3 + $0x28] sm:$0xf]
  %v968 = vld [vmem:[%s3 + $0x2c] sm:$0xf]
  %v969 = vld [vmem:[%s3 + $0x30] sm:$0xf]
  %v970 = vld [vmem:[%s3 + $0x34] sm:$0xf]
  %v971 = vld [vmem:[%s3 + $0x38] sm:$0xf]
  %v972 = vld [vmem:[%s3 + $0x3c] sm:$0xf]
  %v973 = vld [vmem:[%s3 + $0x40] sm:$0xf]
  %v974 = vld [vmem:[%s3 + $0x44] sm:$0xf]
  %v975 = vld [vmem:[%s3 + $0x48] sm:$0xf]
  %v976 = vld [vmem:[%s3 + $0x4c] sm:$0xf]
  %v977 = vld [vmem:[%s3 + $0x50] sm:$0xf]
  %v978 = vld [vmem:[%s3 + $0x54] sm:$0xf]
  %v979 = vld [vmem:[%s3 + $0x58] sm:$0xf]
  %v980 = vld [vmem:[%s3 + $0x5c] sm:$0xf]
  %v981 = vld [vmem:[%s3 + $0x60] sm:$0xf]
  %v982 = vld [vmem:[%s3 + $0x64] sm:$0xf]
  %v983 = vld [vmem:[%s3 + $0x68] sm:$0xf]
  %v984 = vld [vmem:[%s3 + $0x6c] sm:$0xf]
  %v985 = vld [vmem:[%s3 + $0x70] sm:$0xf]
  %v986 = vld [vmem:[%s3 + $0x74] sm:$0xf]
  %v987 = vld [vmem:[%s3 + $0x78] sm:$0xf]
  %v988 = vld [vmem:[%s3 + $0x7c] sm:$0xf]
  %v989 = vld [vmem:[%s3 + $0x80] sm:$0xf]
  %v990 = vld [vmem:[%s3 + $0x84] sm:$0xf]
  %v991 = vld [vmem:[%s3 + $0x88] sm:$0xf]
  %v992 = vld [vmem:[%s3 + $0x8c] sm:$0xf]
  %v993 = vld [vmem:[%s3 + $0x90] sm:$0xf]
  %v994 = vld [vmem:[%s3 + $0x94] sm:$0xf]
  %v995 = vld [vmem:[%s3 + $0x98] sm:$0xf]
  %v996 = vld [vmem:[%s3 + $0x9c] sm:$0xf]
  %v997 = vld [vmem:[%s3 + $0xa0] sm:$0xf]
  %v998 = vld [vmem:[%s3 + $0xa4] sm:$0xf]
  %v999 = vld [vmem:[%s3 + $0xa8] sm:$0xf]
  %v1000 = vld [vmem:[%s3 + $0xac] sm:$0xf]
  %v1001 = vld [vmem:[%s3 + $0xb0] sm:$0xf]
  %v1002 = vld [vmem:[%s3 + $0xb4] sm:$0xf]
  %v1003 = vld [vmem:[%s3 + $0xb8] sm:$0xf]
  %v1004 = vld [vmem:[%s3 + $0xbc] sm:$0xf]
  %v1005 = vld [vmem:[%s3 + $0xc0] sm:$0xf]
  %v1006 = vld [vmem:[%s3 + $0xc4] sm:$0xf]
  %v1007 = vld [vmem:[%s3 + $0xc8] sm:$0xf]
  %v1008 = vld [vmem:[%s3 + $0xcc] sm:$0xf]
  %v1009 = vld [vmem:[%s3 + $0xd0] sm:$0xf]
  %v1010 = vld [vmem:[%s3 + $0xd4] sm:$0xf]
  %v1011 = vld [vmem:[%s3 + $0xd8] sm:$0xf]
  %v1012 = vld [vmem:[%s3 + $0xdc] sm:$0xf]
  %v1013 = vld [vmem:[%s3 + $0xe0] sm:$0xf]
  %v1014 = vld [vmem:[%s3 + $0xe4] sm:$0xf]
  %v1015 = vld [vmem:[%s3 + $0xe8] sm:$0xf]
  %v1016 = vld [vmem:[%s3 + $0xec] sm:$0xf]
  %v1017 = vld [vmem:[%s3 + $0xf0] sm:$0xf]
  %v1018 = vld [vmem:[%s3 + $0xf4] sm:$0xf]
  %v1019 = vld [vmem:[%s3 + $0xf8] sm:$0xf]
  %v1020 = vld [vmem:[%s3 + $0xfc] sm:$0xf]
  %v1021 = vunpack.c.l.bf16 %v957
  %v1022 = vunpack.c.l.bf16 %v958
  %v1023 = vunpack.c.l.bf16 %v959
  %v1024 = vunpack.c.l.bf16 %v960
  %v1025 = vunpack.c.l.bf16 %v961
  %v1026 = vunpack.c.l.bf16 %v962
  %v1027 = vunpack.c.l.bf16 %v963
  %v1028 = vunpack.c.l.bf16 %v964
  %v1029 = vunpack.c.l.bf16 %v965
  %v1030 = vunpack.c.l.bf16 %v966
  %v1031 = vunpack.c.l.bf16 %v967
  %v1032 = vunpack.c.l.bf16 %v968
  %v1033 = vunpack.c.l.bf16 %v969
  %v1034 = vunpack.c.l.bf16 %v970
  %v1035 = vunpack.c.l.bf16 %v971
  %v1036 = vunpack.c.l.bf16 %v972
  %v1037 = vunpack.c.l.bf16 %v973
  %v1038 = vunpack.c.l.bf16 %v974
  %v1039 = vunpack.c.l.bf16 %v975
  %v1040 = vunpack.c.l.bf16 %v976
  %v1041 = vunpack.c.l.bf16 %v977
  %v1042 = vunpack.c.l.bf16 %v978
  %v1043 = vunpack.c.l.bf16 %v979
  %v1044 = vunpack.c.l.bf16 %v980
  %v1045 = vunpack.c.l.bf16 %v981
  %v1046 = vunpack.c.l.bf16 %v982
  %v1047 = vunpack.c.l.bf16 %v983
  %v1048 = vunpack.c.l.bf16 %v984
  %v1049 = vunpack.c.l.bf16 %v985
  %v1050 = vunpack.c.l.bf16 %v986
  %v1051 = vunpack.c.l.bf16 %v987
  %v1052 = vunpack.c.l.bf16 %v988
  %v1053 = vunpack.c.l.bf16 %v989
  %v1054 = vunpack.c.l.bf16 %v990
  %v1055 = vunpack.c.l.bf16 %v991
  %v1056 = vunpack.c.l.bf16 %v992
  %v1057 = vunpack.c.l.bf16 %v993
  %v1058 = vunpack.c.l.bf16 %v994
  %v1059 = vunpack.c.l.bf16 %v995
  %v1060 = vunpack.c.l.bf16 %v996
  %v1061 = vunpack.c.l.bf16 %v997
  %v1062 = vunpack.c.l.bf16 %v998
  %v1063 = vunpack.c.l.bf16 %v999
  %v1064 = vunpack.c.l.bf16 %v1000
  %v1065 = vunpack.c.l.bf16 %v1001
  %v1066 = vunpack.c.l.bf16 %v1002
  %v1067 = vunpack.c.l.bf16 %v1003
  %v1068 = vunpack.c.l.bf16 %v1004
  %v1069 = vunpack.c.l.bf16 %v1005
  %v1070 = vunpack.c.l.bf16 %v1006
  %v1071 = vunpack.c.l.bf16 %v1007
  %v1072 = vunpack.c.l.bf16 %v1008
  %v1073 = vunpack.c.l.bf16 %v1009
  %v1074 = vunpack.c.l.bf16 %v1010
  %v1075 = vunpack.c.l.bf16 %v1011
  %v1076 = vunpack.c.l.bf16 %v1012
  %v1077 = vunpack.c.l.bf16 %v1013
  %v1078 = vunpack.c.l.bf16 %v1014
  %v1079 = vunpack.c.l.bf16 %v1015
  %v1080 = vunpack.c.l.bf16 %v1016
  %v1081 = vunpack.c.l.bf16 %v1017
  %v1082 = vunpack.c.l.bf16 %v1018
  %v1083 = vunpack.c.l.bf16 %v1019
  %v1084 = vunpack.c.l.bf16 %v1020
  %v1085 = vadd.f32 %v893, %v1021
  %v1086 = vadd.f32 %v894, %v1022
  %v1087 = vadd.f32 %v895, %v1023
  %v1088 = vadd.f32 %v896, %v1024
  %v1089 = vadd.f32 %v897, %v1025
  %v1090 = vadd.f32 %v898, %v1026
  %v1091 = vadd.f32 %v899, %v1027
  %v1092 = vadd.f32 %v900, %v1028
  %v1093 = vadd.f32 %v901, %v1029
  %v1094 = vadd.f32 %v902, %v1030
  %v1095 = vadd.f32 %v903, %v1031
  %v1096 = vadd.f32 %v904, %v1032
  %v1097 = vadd.f32 %v905, %v1033
  %v1098 = vadd.f32 %v906, %v1034
  %v1099 = vadd.f32 %v907, %v1035
  %v1100 = vadd.f32 %v908, %v1036
  %v1101 = vadd.f32 %v909, %v1037
  %v1102 = vadd.f32 %v910, %v1038
  %v1103 = vadd.f32 %v911, %v1039
  %v1104 = vadd.f32 %v912, %v1040
  %v1105 = vadd.f32 %v913, %v1041
  %v1106 = vadd.f32 %v914, %v1042
  %v1107 = vadd.f32 %v915, %v1043
  %v1108 = vadd.f32 %v916, %v1044
  %v1109 = vadd.f32 %v917, %v1045
  %v1110 = vadd.f32 %v918, %v1046
  %v1111 = vadd.f32 %v919, %v1047
  %v1112 = vadd.f32 %v920, %v1048
  %v1113 = vadd.f32 %v921, %v1049
  %v1114 = vadd.f32 %v922, %v1050
  %v1115 = vadd.f32 %v923, %v1051
  %v1116 = vadd.f32 %v924, %v1052
  %v1117 = vadd.f32 %v925, %v1053
  %v1118 = vadd.f32 %v926, %v1054
  %v1119 = vadd.f32 %v927, %v1055
  %v1120 = vadd.f32 %v928, %v1056
  %v1121 = vadd.f32 %v929, %v1057
  %v1122 = vadd.f32 %v930, %v1058
  %v1123 = vadd.f32 %v931, %v1059
  %v1124 = vadd.f32 %v932, %v1060
  %v1125 = vadd.f32 %v933, %v1061
  %v1126 = vadd.f32 %v934, %v1062
  %v1127 = vadd.f32 %v935, %v1063
  %v1128 = vadd.f32 %v936, %v1064
  %v1129 = vadd.f32 %v937, %v1065
  %v1130 = vadd.f32 %v938, %v1066
  %v1131 = vadd.f32 %v939, %v1067
  %v1132 = vadd.f32 %v940, %v1068
  %v1133 = vadd.f32 %v941, %v1069
  %v1134 = vadd.f32 %v942, %v1070
  %v1135 = vadd.f32 %v943, %v1071
  %v1136 = vadd.f32 %v944, %v1072
  %v1137 = vadd.f32 %v945, %v1073
  %v1138 = vadd.f32 %v946, %v1074
  %v1139 = vadd.f32 %v947, %v1075
  %v1140 = vadd.f32 %v948, %v1076
  %v1141 = vadd.f32 %v949, %v1077
  %v1142 = vadd.f32 %v950, %v1078
  %v1143 = vadd.f32 %v951, %v1079
  %v1144 = vadd.f32 %v952, %v1080
  %v1145 = vadd.f32 %v953, %v1081
  %v1146 = vadd.f32 %v954, %v1082
  %v1147 = vadd.f32 %v955, %v1083
  %v1148 = vadd.f32 %v956, %v1084
  %v1149 = vmax.f32 %v1085, 0.0
  %v1150 = vmax.f32 %v1086, 0.0
  %v1151 = vmax.f32 %v1087, 0.0
  %v1152 = vmax.f32 %v1088, 0.0
  %v1153 = vmax.f32 %v1089, 0.0
  %v1154 = vmax.f32 %v1090, 0.0
  %v1155 = vmax.f32 %v1091, 0.0
  %v1156 = vmax.f32 %v1092, 0.0
  %v1157 = vmax.f32 %v1093, 0.0
  %v1158 = vmax.f32 %v1094, 0.0
  %v1159 = vmax.f32 %v1095, 0.0
  %v1160 = vmax.f32 %v1096, 0.0
  %v1161 = vmax.f32 %v1097, 0.0
  %v1162 = vmax.f32 %v1098, 0.0
  %v1163 = vmax.f32 %v1099, 0.0
  %v1164 = vmax.f32 %v1100, 0.0
  %v1165 = vmax.f32 %v1101, 0.0
  %v1166 = vmax.f32 %v1102, 0.0
  %v1167 = vmax.f32 %v1103, 0.0
  %v1168 = vmax.f32 %v1104, 0.0
  %v1169 = vmax.f32 %v1105, 0.0
  %v1170 = vmax.f32 %v1106, 0.0
  %v1171 = vmax.f32 %v1107, 0.0
  %v1172 = vmax.f32 %v1108, 0.0
  %v1173 = vmax.f32 %v1109, 0.0
  %v1174 = vmax.f32 %v1110, 0.0
  %v1175 = vmax.f32 %v1111, 0.0
  %v1176 = vmax.f32 %v1112, 0.0
  %v1177 = vmax.f32 %v1113, 0.0
  %v1178 = vmax.f32 %v1114, 0.0
  %v1179 = vmax.f32 %v1115, 0.0
  %v1180 = vmax.f32 %v1116, 0.0
  %v1181 = vmax.f32 %v1117, 0.0
  %v1182 = vmax.f32 %v1118, 0.0
  %v1183 = vmax.f32 %v1119, 0.0
  %v1184 = vmax.f32 %v1120, 0.0
  %v1185 = vmax.f32 %v1121, 0.0
  %v1186 = vmax.f32 %v1122, 0.0
  %v1187 = vmax.f32 %v1123, 0.0
  %v1188 = vmax.f32 %v1124, 0.0
  %v1189 = vmax.f32 %v1125, 0.0
  %v1190 = vmax.f32 %v1126, 0.0
  %v1191 = vmax.f32 %v1127, 0.0
  %v1192 = vmax.f32 %v1128, 0.0
  %v1193 = vmax.f32 %v1129, 0.0
  %v1194 = vmax.f32 %v1130, 0.0
  %v1195 = vmax.f32 %v1131, 0.0
  %v1196 = vmax.f32 %v1132, 0.0
  %v1197 = vmax.f32 %v1133, 0.0
  %v1198 = vmax.f32 %v1134, 0.0
  %v1199 = vmax.f32 %v1135, 0.0
  %v1200 = vmax.f32 %v1136, 0.0
  %v1201 = vmax.f32 %v1137, 0.0
  %v1202 = vmax.f32 %v1138, 0.0
  %v1203 = vmax.f32 %v1139, 0.0
  %v1204 = vmax.f32 %v1140, 0.0
  %v1205 = vmax.f32 %v1141, 0.0
  %v1206 = vmax.f32 %v1142, 0.0
  %v1207 = vmax.f32 %v1143, 0.0
  %v1208 = vmax.f32 %v1144, 0.0
  %v1209 = vmax.f32 %v1145, 0.0
  %v1210 = vmax.f32 %v1146, 0.0
  %v1211 = vmax.f32 %v1147, 0.0
  %v1212 = vmax.f32 %v1148, 0.0
  %v1213 = vpack.c.bf16 %v1150, %v1149
  %v1214 = vpack.c.bf16 %v1152, %v1151
  %v1215 = vpack.c.bf16 %v1154, %v1153
  %v1216 = vpack.c.bf16 %v1156, %v1155
  %v1217 = vpack.c.bf16 %v1158, %v1157
  %v1218 = vpack.c.bf16 %v1160, %v1159
  %v1219 = vpack.c.bf16 %v1162, %v1161
  %v1220 = vpack.c.bf16 %v1164, %v1163
  %v1221 = vpack.c.bf16 %v1166, %v1165
  %v1222 = vpack.c.bf16 %v1168, %v1167
  %v1223 = vpack.c.bf16 %v1170, %v1169
  %v1224 = vpack.c.bf16 %v1172, %v1171
  %v1225 = vpack.c.bf16 %v1174, %v1173
  %v1226 = vpack.c.bf16 %v1176, %v1175
  %v1227 = vpack.c.bf16 %v1178, %v1177
  %v1228 = vpack.c.bf16 %v1180, %v1179
  %v1229 = vpack.c.bf16 %v1182, %v1181
  %v1230 = vpack.c.bf16 %v1184, %v1183
  %v1231 = vpack.c.bf16 %v1186, %v1185
  %v1232 = vpack.c.bf16 %v1188, %v1187
  %v1233 = vpack.c.bf16 %v1190, %v1189
  %v1234 = vpack.c.bf16 %v1192, %v1191
  %v1235 = vpack.c.bf16 %v1194, %v1193
  %v1236 = vpack.c.bf16 %v1196, %v1195
  %v1237 = vpack.c.bf16 %v1198, %v1197
  %v1238 = vpack.c.bf16 %v1200, %v1199
  %v1239 = vpack.c.bf16 %v1202, %v1201
  %v1240 = vpack.c.bf16 %v1204, %v1203
  %v1241 = vpack.c.bf16 %v1206, %v1205
  %v1242 = vpack.c.bf16 %v1208, %v1207
  %v1243 = vpack.c.bf16 %v1210, %v1209
  %v1244 = vpack.c.bf16 %v1212, %v1211
  %v1277 = vunpack.c.l.b16 %v1213
  %v1278 = vunpack.c.h.b16 %v1213
  %v1279 = vunpack.c.l.b16 %v1214
  %v1280 = vunpack.c.h.b16 %v1214
  %v1281 = vunpack.c.l.b16 %v1215
  %v1282 = vunpack.c.h.b16 %v1215
  %v1283 = vunpack.c.l.b16 %v1216
  %v1284 = vunpack.c.h.b16 %v1216
  %v1285 = vunpack.c.l.b16 %v1217
  %v1286 = vunpack.c.h.b16 %v1217
  %v1287 = vunpack.c.l.b16 %v1218
  %v1288 = vunpack.c.h.b16 %v1218
  %v1289 = vunpack.c.l.b16 %v1219
  %v1290 = vunpack.c.h.b16 %v1219
  %v1291 = vunpack.c.l.b16 %v1220
  %v1292 = vunpack.c.h.b16 %v1220
  %v1293 = vunpack.c.l.b16 %v1221
  %v1294 = vunpack.c.h.b16 %v1221
  %v1295 = vunpack.c.l.b16 %v1222
  %v1296 = vunpack.c.h.b16 %v1222
  %v1297 = vunpack.c.l.b16 %v1223
  %v1298 = vunpack.c.h.b16 %v1223
  %v1299 = vunpack.c.l.b16 %v1224
  %v1300 = vunpack.c.h.b16 %v1224
  %v1301 = vunpack.c.l.b16 %v1225
  %v1302 = vunpack.c.h.b16 %v1225
  %v1303 = vunpack.c.l.b16 %v1226
  %v1304 = vunpack.c.h.b16 %v1226
  %v1305 = vunpack.c.l.b16 %v1227
  %v1306 = vunpack.c.h.b16 %v1227
  %v1307 = vunpack.c.l.b16 %v1228
  %v1308 = vunpack.c.h.b16 %v1228
  %v1309 = vunpack.c.l.b16 %v1229
  %v1310 = vunpack.c.h.b16 %v1229
  %v1311 = vunpack.c.l.b16 %v1230
  %v1312 = vunpack.c.h.b16 %v1230
  %v1313 = vunpack.c.l.b16 %v1231
  %v1314 = vunpack.c.h.b16 %v1231
  %v1315 = vunpack.c.l.b16 %v1232
  %v1316 = vunpack.c.h.b16 %v1232
  %v1317 = vunpack.c.l.b16 %v1233
  %v1318 = vunpack.c.h.b16 %v1233
  %v1319 = vunpack.c.l.b16 %v1234
  %v1320 = vunpack.c.h.b16 %v1234
  %v1321 = vunpack.c.l.b16 %v1235
  %v1322 = vunpack.c.h.b16 %v1235
  %v1323 = vunpack.c.l.b16 %v1236
  %v1324 = vunpack.c.h.b16 %v1236
  %v1325 = vunpack.c.l.b16 %v1237
  %v1326 = vunpack.c.h.b16 %v1237
  %v1327 = vunpack.c.l.b16 %v1238
  %v1328 = vunpack.c.h.b16 %v1238
  %v1329 = vunpack.c.l.b16 %v1239
  %v1330 = vunpack.c.h.b16 %v1239
  %v1331 = vunpack.c.l.b16 %v1240
  %v1332 = vunpack.c.h.b16 %v1240
  %v1333 = vunpack.c.l.b16 %v1241
  %v1334 = vunpack.c.h.b16 %v1241
  %v1335 = vunpack.c.l.b16 %v1242
  %v1336 = vunpack.c.h.b16 %v1242
  %v1337 = vunpack.c.l.b16 %v1243
  %v1338 = vunpack.c.h.b16 %v1243
  %v1339 = vunpack.c.l.b16 %v1244
  %v1340 = vunpack.c.h.b16 %v1244
  %v1341 = vpack.c.b16 %v1277, %v1277
  %v1342 = vpack.c.b16 %v1278, %v1278
  %v1343 = vpack.c.b16 %v1279, %v1279
  %v1344 = vpack.c.b16 %v1280, %v1280
  %v1345 = vpack.c.b16 %v1281, %v1281
  %v1346 = vpack.c.b16 %v1282, %v1282
  %v1347 = vpack.c.b16 %v1283, %v1283
  %v1348 = vpack.c.b16 %v1284, %v1284
  %v1349 = vpack.c.b16 %v1285, %v1285
  %v1350 = vpack.c.b16 %v1286, %v1286
  %v1351 = vpack.c.b16 %v1287, %v1287
  %v1352 = vpack.c.b16 %v1288, %v1288
  %v1353 = vpack.c.b16 %v1289, %v1289
  %v1354 = vpack.c.b16 %v1290, %v1290
  %v1355 = vpack.c.b16 %v1291, %v1291
  %v1356 = vpack.c.b16 %v1292, %v1292
  %v1357 = vpack.c.b16 %v1293, %v1293
  %v1358 = vpack.c.b16 %v1294, %v1294
  %v1359 = vpack.c.b16 %v1295, %v1295
  %v1360 = vpack.c.b16 %v1296, %v1296
  %v1361 = vpack.c.b16 %v1297, %v1297
  %v1362 = vpack.c.b16 %v1298, %v1298
  %v1363 = vpack.c.b16 %v1299, %v1299
  %v1364 = vpack.c.b16 %v1300, %v1300
  %v1365 = vpack.c.b16 %v1301, %v1301
  %v1366 = vpack.c.b16 %v1302, %v1302
  %v1367 = vpack.c.b16 %v1303, %v1303
  %v1368 = vpack.c.b16 %v1304, %v1304
  %v1369 = vpack.c.b16 %v1305, %v1305
  %v1370 = vpack.c.b16 %v1306, %v1306
  %v1371 = vpack.c.b16 %v1307, %v1307
  %v1372 = vpack.c.b16 %v1308, %v1308
  %v1373 = vpack.c.b16 %v1309, %v1309
  %v1374 = vpack.c.b16 %v1310, %v1310
  %v1375 = vpack.c.b16 %v1311, %v1311
  %v1376 = vpack.c.b16 %v1312, %v1312
  %v1377 = vpack.c.b16 %v1313, %v1313
  %v1378 = vpack.c.b16 %v1314, %v1314
  %v1379 = vpack.c.b16 %v1315, %v1315
  %v1380 = vpack.c.b16 %v1316, %v1316
  %v1381 = vpack.c.b16 %v1317, %v1317
  %v1382 = vpack.c.b16 %v1318, %v1318
  %v1383 = vpack.c.b16 %v1319, %v1319
  %v1384 = vpack.c.b16 %v1320, %v1320
  %v1385 = vpack.c.b16 %v1321, %v1321
  %v1386 = vpack.c.b16 %v1322, %v1322
  %v1387 = vpack.c.b16 %v1323, %v1323
  %v1388 = vpack.c.b16 %v1324, %v1324
  %v1389 = vpack.c.b16 %v1325, %v1325
  %v1390 = vpack.c.b16 %v1326, %v1326
  %v1391 = vpack.c.b16 %v1327, %v1327
  %v1392 = vpack.c.b16 %v1328, %v1328
  %v1393 = vpack.c.b16 %v1329, %v1329
  %v1394 = vpack.c.b16 %v1330, %v1330
  %v1395 = vpack.c.b16 %v1331, %v1331
  %v1396 = vpack.c.b16 %v1332, %v1332
  %v1397 = vpack.c.b16 %v1333, %v1333
  %v1398 = vpack.c.b16 %v1334, %v1334
  %v1399 = vpack.c.b16 %v1335, %v1335
  %v1400 = vpack.c.b16 %v1336, %v1336
  %v1401 = vpack.c.b16 %v1337, %v1337
  %v1402 = vpack.c.b16 %v1338, %v1338
  %v1403 = vpack.c.b16 %v1339, %v1339
  %v1404 = vpack.c.b16 %v1340, %v1340
  %vm1469 = vcmask 125952
  %1470 = vst.msk [vmem:[%s4] sm:$0xf] %vm1469, %v1341
  %1471 = vst.msk [vmem:[%s4 + $0x4] sm:$0xf] %vm1469, %v1342
  %1472 = vst.msk [vmem:[%s4 + $0x8] sm:$0xf] %vm1469, %v1343
  %1473 = vst.msk [vmem:[%s4 + $0xc] sm:$0xf] %vm1469, %v1344
  %1474 = vst.msk [vmem:[%s4 + $0x10] sm:$0xf] %vm1469, %v1345
  %1475 = vst.msk [vmem:[%s4 + $0x14] sm:$0xf] %vm1469, %v1346
  %1476 = vst.msk [vmem:[%s4 + $0x18] sm:$0xf] %vm1469, %v1347
  %1477 = vst.msk [vmem:[%s4 + $0x1c] sm:$0xf] %vm1469, %v1348
  %1478 = vst.msk [vmem:[%s4 + $0x20] sm:$0xf] %vm1469, %v1349
  %1479 = vst.msk [vmem:[%s4 + $0x24] sm:$0xf] %vm1469, %v1350
  %1480 = vst.msk [vmem:[%s4 + $0x28] sm:$0xf] %vm1469, %v1351
  %1481 = vst.msk [vmem:[%s4 + $0x2c] sm:$0xf] %vm1469, %v1352
  %1482 = vst.msk [vmem:[%s4 + $0x30] sm:$0xf] %vm1469, %v1353
  %1483 = vst.msk [vmem:[%s4 + $0x34] sm:$0xf] %vm1469, %v1354
  %1484 = vst.msk [vmem:[%s4 + $0x38] sm:$0xf] %vm1469, %v1355
  %1485 = vst.msk [vmem:[%s4 + $0x3c] sm:$0xf] %vm1469, %v1356
  %1486 = vst.msk [vmem:[%s4 + $0x40] sm:$0xf] %vm1469, %v1357
  %1487 = vst.msk [vmem:[%s4 + $0x44] sm:$0xf] %vm1469, %v1358
  %1488 = vst.msk [vmem:[%s4 + $0x48] sm:$0xf] %vm1469, %v1359
  %1489 = vst.msk [vmem:[%s4 + $0x4c] sm:$0xf] %vm1469, %v1360
  %1490 = vst.msk [vmem:[%s4 + $0x50] sm:$0xf] %vm1469, %v1361
  %1491 = vst.msk [vmem:[%s4 + $0x54] sm:$0xf] %vm1469, %v1362
  %1492 = vst.msk [vmem:[%s4 + $0x58] sm:$0xf] %vm1469, %v1363
  %1493 = vst.msk [vmem:[%s4 + $0x5c] sm:$0xf] %vm1469, %v1364
  %1494 = vst.msk [vmem:[%s4 + $0x60] sm:$0xf] %vm1469, %v1365
  %1495 = vst.msk [vmem:[%s4 + $0x64] sm:$0xf] %vm1469, %v1366
  %1496 = vst.msk [vmem:[%s4 + $0x68] sm:$0xf] %vm1469, %v1367
  %1497 = vst.msk [vmem:[%s4 + $0x6c] sm:$0xf] %vm1469, %v1368
  %1498 = vst.msk [vmem:[%s4 + $0x70] sm:$0xf] %vm1469, %v1369
  %1499 = vst.msk [vmem:[%s4 + $0x74] sm:$0xf] %vm1469, %v1370
  %1500 = vst.msk [vmem:[%s4 + $0x78] sm:$0xf] %vm1469, %v1371
  %1501 = vst.msk [vmem:[%s4 + $0x7c] sm:$0xf] %vm1469, %v1372
  %1502 = vst.msk [vmem:[%s4 + $0x80] sm:$0xf] %vm1469, %v1373
  %1503 = vst.msk [vmem:[%s4 + $0x84] sm:$0xf] %vm1469, %v1374
  %1504 = vst.msk [vmem:[%s4 + $0x88] sm:$0xf] %vm1469, %v1375
  %1505 = vst.msk [vmem:[%s4 + $0x8c] sm:$0xf] %vm1469, %v1376
  %1506 = vst.msk [vmem:[%s4 + $0x90] sm:$0xf] %vm1469, %v1377
  %1507 = vst.msk [vmem:[%s4 + $0x94] sm:$0xf] %vm1469, %v1378
  %1508 = vst.msk [vmem:[%s4 + $0x98] sm:$0xf] %vm1469, %v1379
  %1509 = vst.msk [vmem:[%s4 + $0x9c] sm:$0xf] %vm1469, %v1380
  %1510 = vst.msk [vmem:[%s4 + $0xa0] sm:$0xf] %vm1469, %v1381
  %1511 = vst.msk [vmem:[%s4 + $0xa4] sm:$0xf] %vm1469, %v1382
  %1512 = vst.msk [vmem:[%s4 + $0xa8] sm:$0xf] %vm1469, %v1383
  %1513 = vst.msk [vmem:[%s4 + $0xac] sm:$0xf] %vm1469, %v1384
  %1514 = vst.msk [vmem:[%s4 + $0xb0] sm:$0xf] %vm1469, %v1385
  %1515 = vst.msk [vmem:[%s4 + $0xb4] sm:$0xf] %vm1469, %v1386
  %1516 = vst.msk [vmem:[%s4 + $0xb8] sm:$0xf] %vm1469, %v1387
  %1517 = vst.msk [vmem:[%s4 + $0xbc] sm:$0xf] %vm1469, %v1388
  %1518 = vst.msk [vmem:[%s4 + $0xc0] sm:$0xf] %vm1469, %v1389
  %1519 = vst.msk [vmem:[%s4 + $0xc4] sm:$0xf] %vm1469, %v1390
  %1520 = vst.msk [vmem:[%s4 + $0xc8] sm:$0xf] %vm1469, %v1391
  %1521 = vst.msk [vmem:[%s4 + $0xcc] sm:$0xf] %vm1469, %v1392
  %1522 = vst.msk [vmem:[%s4 + $0xd0] sm:$0xf] %vm1469, %v1393
  %1523 = vst.msk [vmem:[%s4 + $0xd4] sm:$0xf] %vm1469, %v1394
  %1524 = vst.msk [vmem:[%s4 + $0xd8] sm:$0xf] %vm1469, %v1395
  %1525 = vst.msk [vmem:[%s4 + $0xdc] sm:$0xf] %vm1469, %v1396
  %1526 = vst.msk [vmem:[%s4 + $0xe0] sm:$0xf] %vm1469, %v1397
  %1527 = vst.msk [vmem:[%s4 + $0xe4] sm:$0xf] %vm1469, %v1398
  %1528 = vst.msk [vmem:[%s4 + $0xe8] sm:$0xf] %vm1469, %v1399
  %1529 = vst.msk [vmem:[%s4 + $0xec] sm:$0xf] %vm1469, %v1400
  %1530 = vst.msk [vmem:[%s4 + $0xf0] sm:$0xf] %vm1469, %v1401
  %1531 = vst.msk [vmem:[%s4 + $0xf4] sm:$0xf] %vm1469, %v1402
  %1532 = vst.msk [vmem:[%s4 + $0xf8] sm:$0xf] %vm1469, %v1403
  %1533 = vst.msk [vmem:[%s4 + $0xfc] sm:$0xf] %vm1469, %v1404
  // Predicated region
  $region18: #{_lambda_.18} parent=0 // pred_check
    _
  $region19: #{_lambda_.18} parent=0 // pred_check_branch
    %1535 = sbr.rel (0) target = $region21
  $region20: #{_lambda_.18} parent=0 // pred_region
    _
  $region21: #{_lambda_.18} parent=0 // pred_fallthru
    _
  // Predicated region
  $region22: #{_lambda_.18} parent=0 // pred_check
    _
  $region23: #{_lambda_.18} parent=0 // pred_check_branch
    %1537 = sbr.rel (0) target = $region25
  $region24: #{_lambda_.18} parent=0 // pred_region
    _
  $region25: #{_lambda_.18} parent=0 // pred_fallthru
    _

// kernel: _lambda_.19
$region0: #{_lambda_.19}
  #allocation0 [shape = 'u32[]', space=smem, size = 0x4, offset = 0x4, fixed_abs, tag = 'smem constant byte address 0x4 - core index']
  #allocation1 [shape = 'u32[144,128]{1,0:T(1,128)}', space=vmem, size = 0x12000, scoped, tag = 'internal scratch']
  %s0 = inlined_call_operand.vmem [shape: bf16[128,256], index: 0, kind: input, shape index: {}]
  %s1 = inlined_call_operand.vmem [shape: bf16[256,32], index: 1, kind: input, shape index: {}]
  %s2 = inlined_call_operand.vmem [shape: f32[2,32], index: 2, kind: input, shape index: {}]
  %s3 = inlined_call_operand.vmem [shape: bf16[128,32], index: 3, kind: output, shape index: {}]
  %s4 = sld [smem:[#allocation0]]
  $region22: #{_lambda_.19} parent=0
    _
  %s6 = ssub.s32 1, %s4
  %s7 = scalar_select 0, %s6, %s4
  // Predicated region
  $region2: #{_lambda_.19} parent=0 // pred_check
    _
  $region3: #{_lambda_.19} parent=0 // pred_check_branch
    %9 = sbr.rel (0) target = $region5
  $region4: #{_lambda_.19} parent=0 // pred_region
    _
  $region5: #{_lambda_.19} parent=0 // pred_fallthru
    _
  // Predicated region
  $region6: #{_lambda_.19} parent=0 // pred_check
    _
  $region7: #{_lambda_.19} parent=0 // pred_check_branch
    %11 = sbr.rel (0) target = $region9
  $region8: #{_lambda_.19} parent=0 // pred_region
    _
  $region9: #{_lambda_.19} parent=0 // pred_fallthru
    _
  // Predicated region
  $region10: #{_lambda_.19} parent=0 // pred_check
    _
  $region11: #{_lambda_.19} parent=0 // pred_check_branch
    %13 = sbr.rel (0) target = $region13
  $region12: #{_lambda_.19} parent=0 // pred_region
    _
  $region13: #{_lambda_.19} parent=0 // pred_fallthru
    _
  %v15 = vld [vmem:[%s0] sm:$0xff]
  %v16 = vld [vmem:[%s0 + $0x8] sm:$0xff]
  %v17 = vld [vmem:[%s0 + $0x10] sm:$0xff]
  %v18 = vld [vmem:[%s0 + $0x18] sm:$0xff]
  %v19 = vld [vmem:[%s0 + $0x20] sm:$0xff]
  %v20 = vld [vmem:[%s0 + $0x28] sm:$0xff]
  %v21 = vld [vmem:[%s0 + $0x30] sm:$0xff]
  %v22 = vld [vmem:[%s0 + $0x38] sm:$0xff]
  %v23 = vld [vmem:[%s0 + $0x40] sm:$0xff]
  %v24 = vld [vmem:[%s0 + $0x48] sm:$0xff]
  %v25 = vld [vmem:[%s0 + $0x50] sm:$0xff]
  %v26 = vld [vmem:[%s0 + $0x58] sm:$0xff]
  %v27 = vld [vmem:[%s0 + $0x60] sm:$0xff]
  %v28 = vld [vmem:[%s0 + $0x68] sm:$0xff]
  %v29 = vld [vmem:[%s0 + $0x70] sm:$0xff]
  %v30 = vld [vmem:[%s0 + $0x78] sm:$0xff]
  %v31 = vld [vmem:[%s1] sm:$0xf]
  %v32 = vld [vmem:[%s1 + $0x4] sm:$0xf]
  %v33 = vld [vmem:[%s1 + $0x8] sm:$0xf]
  %v34 = vld [vmem:[%s1 + $0xc] sm:$0xf]
  %v35 = vld [vmem:[%s1 + $0x10] sm:$0xf]
  %v36 = vld [vmem:[%s1 + $0x14] sm:$0xf]
  %v37 = vld [vmem:[%s1 + $0x18] sm:$0xf]
  %v38 = vld [vmem:[%s1 + $0x1c] sm:$0xf]
  %v39 = vld [vmem:[%s1 + $0x20] sm:$0xf]
  %v40 = vld [vmem:[%s1 + $0x24] sm:$0xf]
  %v41 = vld [vmem:[%s1 + $0x28] sm:$0xf]
  %v42 = vld [vmem:[%s1 + $0x2c] sm:$0xf]
  %v43 = vld [vmem:[%s1 + $0x30] sm:$0xf]
  %v44 = vld [vmem:[%s1 + $0x34] sm:$0xf]
  %v45 = vld [vmem:[%s1 + $0x38] sm:$0xf]
  %v46 = vld [vmem:[%s1 + $0x3c] sm:$0xf]
  %v47 = vld [vmem:[%s1 + $0x40] sm:$0xf]
  %v48 = vld [vmem:[%s1 + $0x44] sm:$0xf]
  %v49 = vld [vmem:[%s1 + $0x48] sm:$0xf]
  %v50 = vld [vmem:[%s1 + $0x4c] sm:$0xf]
  %v51 = vld [vmem:[%s1 + $0x50] sm:$0xf]
  %v52 = vld [vmem:[%s1 + $0x54] sm:$0xf]
  %v53 = vld [vmem:[%s1 + $0x58] sm:$0xf]
  %v54 = vld [vmem:[%s1 + $0x5c] sm:$0xf]
  %v55 = vld [vmem:[%s1 + $0x60] sm:$0xf]
  %v56 = vld [vmem:[%s1 + $0x64] sm:$0xf]
  %v57 = vld [vmem:[%s1 + $0x68] sm:$0xf]
  %v58 = vld [vmem:[%s1 + $0x6c] sm:$0xf]
  %v59 = vld [vmem:[%s1 + $0x70] sm:$0xf]
  %v60 = vld [vmem:[%s1 + $0x74] sm:$0xf]
  %v61 = vld [vmem:[%s1 + $0x78] sm:$0xf]
  %v62 = vld [vmem:[%s1 + $0x7c] sm:$0xf]
  %v79 = vunpack.c.l.b16 %v15
  %v80 = vunpack.c.h.b16 %v15
  %v81 = vunpack.c.l.b16 %v16
  %v82 = vunpack.c.h.b16 %v16
  %v83 = vunpack.c.l.b16 %v17
  %v84 = vunpack.c.h.b16 %v17
  %v85 = vunpack.c.l.b16 %v18
  %v86 = vunpack.c.h.b16 %v18
  %v87 = vunpack.c.l.b16 %v19
  %v88 = vunpack.c.h.b16 %v19
  %v89 = vunpack.c.l.b16 %v20
  %v90 = vunpack.c.h.b16 %v20
  %v91 = vunpack.c.l.b16 %v21
  %v92 = vunpack.c.h.b16 %v21
  %v93 = vunpack.c.l.b16 %v22
  %v94 = vunpack.c.h.b16 %v22
  %v95 = vunpack.c.l.b16 %v23
  %v96 = vunpack.c.h.b16 %v23
  %v97 = vunpack.c.l.b16 %v24
  %v98 = vunpack.c.h.b16 %v24
  %v99 = vunpack.c.l.b16 %v25
  %v100 = vunpack.c.h.b16 %v25
  %v101 = vunpack.c.l.b16 %v26
  %v102 = vunpack.c.h.b16 %v26
  %v103 = vunpack.c.l.b16 %v27
  %v104 = vunpack.c.h.b16 %v27
  %v105 = vunpack.c.l.b16 %v28
  %v106 = vunpack.c.h.b16 %v28
  %v107 = vunpack.c.l.b16 %v29
  %v108 = vunpack.c.h.b16 %v29
  %v109 = vunpack.c.l.b16 %v30
  %v110 = vunpack.c.h.b16 %v30
  %v111 = vpack.c.b16 %v81, %v79
  %v112 = vpack.c.b16 %v82, %v80
  %v113 = vpack.c.b16 %v85, %v83
  %v114 = vpack.c.b16 %v86, %v84
  %v115 = vpack.c.b16 %v89, %v87
  %v116 = vpack.c.b16 %v90, %v88
  %v117 = vpack.c.b16 %v93, %v91
  %v118 = vpack.c.b16 %v94, %v92
  %v119 = vpack.c.b16 %v97, %v95
  %v120 = vpack.c.b16 %v98, %v96
  %v121 = vpack.c.b16 %v101, %v99
  %v122 = vpack.c.b16 %v102, %v100
  %v123 = vpack.c.b16 %v105, %v103
  %v124 = vpack.c.b16 %v106, %v104
  %v125 = vpack.c.b16 %v109, %v107
  %v126 = vpack.c.b16 %v110, %v108
  %v175 = vunpack.c.l.b16 %v31
  %v176 = vunpack.c.l.b16 %v32
  %v177 = vunpack.c.l.b16 %v33
  %v178 = vunpack.c.l.b16 %v34
  %v179 = vunpack.c.l.b16 %v35
  %v180 = vunpack.c.l.b16 %v36
  %v181 = vunpack.c.l.b16 %v37
  %v182 = vunpack.c.l.b16 %v38
  %v183 = vunpack.c.l.b16 %v39
  %v184 = vunpack.c.l.b16 %v40
  %v185 = vunpack.c.l.b16 %v41
  %v186 = vunpack.c.l.b16 %v42
  %v187 = vunpack.c.l.b16 %v43
  %v188 = vunpack.c.l.b16 %v44
  %v189 = vunpack.c.l.b16 %v45
  %v190 = vunpack.c.l.b16 %v46
  %v191 = vunpack.c.l.b16 %v47
  %v192 = vunpack.c.l.b16 %v48
  %v193 = vunpack.c.l.b16 %v49
  %v194 = vunpack.c.l.b16 %v50
  %v195 = vunpack.c.l.b16 %v51
  %v196 = vunpack.c.l.b16 %v52
  %v197 = vunpack.c.l.b16 %v53
  %v198 = vunpack.c.l.b16 %v54
  %v199 = vunpack.c.l.b16 %v55
  %v200 = vunpack.c.l.b16 %v56
  %v201 = vunpack.c.l.b16 %v57
  %v202 = vunpack.c.l.b16 %v58
  %v203 = vunpack.c.l.b16 %v59
  %v204 = vunpack.c.l.b16 %v60
  %v205 = vunpack.c.l.b16 %v61
  %v206 = vunpack.c.l.b16 %v62
  %v207 = vpack.c.b16 %v176, %v175
  %v208 = vpack.c.b16 %v178, %v177
  %v209 = vpack.c.b16 %v180, %v179
  %v210 = vpack.c.b16 %v182, %v181
  %v211 = vpack.c.b16 %v184, %v183
  %v212 = vpack.c.b16 %v186, %v185
  %v213 = vpack.c.b16 %v188, %v187
  %v214 = vpack.c.b16 %v190, %v189
  %v215 = vpack.c.b16 %v192, %v191
  %v216 = vpack.c.b16 %v194, %v193
  %v217 = vpack.c.b16 %v196, %v195
  %v218 = vpack.c.b16 %v198, %v197
  %v219 = vpack.c.b16 %v200, %v199
  %v220 = vpack.c.b16 %v202, %v201
  %v221 = vpack.c.b16 %v204, %v203
  %v222 = vpack.c.b16 %v206, %v205
  %239 = vmatprep.subr.bf16.mxu0 0
  %240 = vmatpush1.bf16.msra.mxu0 %v214
  %241 = vmatprep.subr.bf16.mxu0 0
  %242 = vmatpush1.bf16.msra.mxu0 %v213
  %243 = vmatprep.subr.bf16.mxu0 0
  %244 = vmatpush1.bf16.msra.mxu0 %v212
  %245 = vmatprep.subr.bf16.mxu0 0
  %246 = vmatpush1.bf16.msra.mxu0 %v211
  %247 = vmatprep.subr.bf16.mxu0 0
  %248 = vmatpush1.bf16.msra.mxu0 %v210
  %249 = vmatprep.subr.bf16.mxu0 0
  %250 = vmatpush1.bf16.msra.mxu0 %v209
  %251 = vmatprep.subr.bf16.mxu0 0
  %252 = vmatpush1.bf16.msra.mxu0 %v208
  %253 = vmatprep.subr.bf16.mxu0 0
  %254 = vmatpush1.bf16.msra.mxu0 %v207
  %255 = vmatprep.subr.bf16.mxu0 0
  %256 = vmatpush2.bf16.msra.mxu0 %v222
  %257 = vmatprep.subr.bf16.mxu0 0
  %258 = vmatpush2.bf16.msra.mxu0 %v221
  %259 = vmatprep.subr.bf16.mxu0 0
  %260 = vmatpush2.bf16.msra.mxu0 %v220
  %261 = vmatprep.subr.bf16.mxu0 0
  %262 = vmatpush2.bf16.msra.mxu0 %v219
  %263 = vmatprep.subr.bf16.mxu0 0
  %264 = vmatpush2.bf16.msra.mxu0 %v218
  %265 = vmatprep.subr.bf16.mxu0 0
  %266 = vmatpush2.bf16.msra.mxu0 %v217
  %267 = vmatprep.subr.bf16.mxu0 0
  %268 = vmatpush2.bf16.msra.mxu0 %v216
  %269 = vmatprep.subr.bf16.mxu0 0
  %270 = vmatpush2.bf16.msra.mxu0 %v215
  %271 = vmatprep.mubr.bf16.mxu0 %v112
  %272 = vmatmul.mubr.bf16.gmra.mxu0 %v111
  %v273 = vpop.f32.mrf.mxu0
  %v274 = vadd.f32 0.0, %v273
  %v275 = vpop.f32.mrf.mxu0
  %v276 = vpop.f32.mrf.mxu0
  %v277 = vadd.f32 0.0, %v276
  %v278 = vpop.f32.mrf.mxu0
  %279 = vmatprep.mubr.bf16.mxu0 %v114
  %280 = vmatmul.mubr.bf16.gmra.mxu0 %v113
  %v281 = vpop.f32.mrf.mxu0
  %v282 = vadd.f32 0.0, %v281
  %v283 = vpop.f32.mrf.mxu0
  %v284 = vpop.f32.mrf.mxu0
  %v285 = vadd.f32 0.0, %v284
  %v286 = vpop.f32.mrf.mxu0
  %287 = vmatprep.mubr.bf16.mxu0 %v116
  %288 = vmatmul.mubr.bf16.gmra.mxu0 %v115
  %v289 = vpop.f32.mrf.mxu0
  %v290 = vadd.f32 0.0, %v289
  %v291 = vpop.f32.mrf.mxu0
  %v292 = vpop.f32.mrf.mxu0
  %v293 = vadd.f32 0.0, %v292
  %v294 = vpop.f32.mrf.mxu0
  %295 = vmatprep.mubr.bf16.mxu0 %v118
  %296 = vmatmul.mubr.bf16.gmra.mxu0 %v117
  %v297 = vpop.f32.mrf.mxu0
  %v298 = vadd.f32 0.0, %v297
  %v299 = vpop.f32.mrf.mxu0
  %v300 = vpop.f32.mrf.mxu0
  %v301 = vadd.f32 0.0, %v300
  %v302 = vpop.f32.mrf.mxu0
  %303 = vmatprep.mubr.bf16.mxu0 %v120
  %304 = vmatmul.mubr.bf16.gmra.mxu0 %v119
  %v305 = vpop.f32.mrf.mxu0
  %v306 = vadd.f32 0.0, %v305
  %v307 = vpop.f32.mrf.mxu0
  %v308 = vpop.f32.mrf.mxu0
  %v309 = vadd.f32 0.0, %v308
  %v310 = vpop.f32.mrf.mxu0
  %311 = vmatprep.mubr.bf16.mxu0 %v122
  %312 = vmatmul.mubr.bf16.gmra.mxu0 %v121
  %v313 = vpop.f32.mrf.mxu0
  %v314 = vadd.f32 0.0, %v313
  %v315 = vpop.f32.mrf.mxu0
  %v316 = vpop.f32.mrf.mxu0
  %v317 = vadd.f32 0.0, %v316
  %v318 = vpop.f32.mrf.mxu0
  %319 = vmatprep.mubr.bf16.mxu0 %v124
  %320 = vmatmul.mubr.bf16.gmra.mxu0 %v123
  %v321 = vpop.f32.mrf.mxu0
  %v322 = vadd.f32 0.0, %v321
  %v323 = vpop.f32.mrf.mxu0
  %v324 = vpop.f32.mrf.mxu0
  %v325 = vadd.f32 0.0, %v324
  %v326 = vpop.f32.mrf.mxu0
  %327 = vmatprep.mubr.bf16.mxu0 %v126
  %328 = vmatmul.mubr.bf16.gmra.mxu0 %v125
  %v329 = vpop.f32.mrf.mxu0
  %v330 = vadd.f32 0.0, %v329
  %v331 = vpop.f32.mrf.mxu0
  %v332 = vpop.f32.mrf.mxu0
  %v333 = vadd.f32 0.0, %v332
  %v334 = vpop.f32.mrf.mxu0
  %335 = vdwg.mxu0
  %v336 = vld [vmem:[%s2] sm:$0x1]
  %v337 = vlaneseq
  %v338 = vshrl.u32 %v337, 7
  %v339 = vsub.s32 0, %v338
  %v340 = vrot.slane %v336, %v339
  %v341 = vmul.f32 %v274, %v340
  %v342 = vmul.f32 %v277, %v340
  %v343 = vmul.f32 %v282, %v340
  %v344 = vmul.f32 %v285, %v340
  %v345 = vmul.f32 %v290, %v340
  %v346 = vmul.f32 %v293, %v340
  %v347 = vmul.f32 %v298, %v340
  %v348 = vmul.f32 %v301, %v340
  %v349 = vmul.f32 %v306, %v340
  %v350 = vmul.f32 %v309, %v340
  %v351 = vmul.f32 %v314, %v340
  %v352 = vmul.f32 %v317, %v340
  %v353 = vmul.f32 %v322, %v340
  %v354 = vmul.f32 %v325, %v340
  %v355 = vmul.f32 %v330, %v340
  %v356 = vmul.f32 %v333, %v340
  %v357 = vld [vmem:[%s2 + $0x1] sm:$0x1]
  %v358 = vlaneseq
  %v359 = vshrl.u32 %v358, 7
  %v360 = vsub.s32 0, %v359
  %v361 = vrot.slane %v357, %v360
  %v362 = vadd.f32 %v341, %v361
  %v363 = vadd.f32 %v342, %v361
  %v364 = vadd.f32 %v343, %v361
  %v365 = vadd.f32 %v344, %v361
  %v366 = vadd.f32 %v345, %v361
  %v367 = vadd.f32 %v346, %v361
  %v368 = vadd.f32 %v347, %v361
  %v369 = vadd.f32 %v348, %v361
  %v370 = vadd.f32 %v349, %v361
  %v371 = vadd.f32 %v350, %v361
  %v372 = vadd.f32 %v351, %v361
  %v373 = vadd.f32 %v352, %v361
  %v374 = vadd.f32 %v353, %v361
  %v375 = vadd.f32 %v354, %v361
  %v376 = vadd.f32 %v355, %v361
  %v377 = vadd.f32 %v356, %v361
  %v378 = vmax.f32 %v362, 0.0
  %v379 = vmax.f32 %v363, 0.0
  %v380 = vmax.f32 %v364, 0.0
  %v381 = vmax.f32 %v365, 0.0
  %v382 = vmax.f32 %v366, 0.0
  %v383 = vmax.f32 %v367, 0.0
  %v384 = vmax.f32 %v368, 0.0
  %v385 = vmax.f32 %v369, 0.0
  %v386 = vmax.f32 %v370, 0.0
  %v387 = vmax.f32 %v371, 0.0
  %v388 = vmax.f32 %v372, 0.0
  %v389 = vmax.f32 %v373, 0.0
  %v390 = vmax.f32 %v374, 0.0
  %v391 = vmax.f32 %v375, 0.0
  %v392 = vmax.f32 %v376, 0.0
  %v393 = vmax.f32 %v377, 0.0
  %v394 = vpack.c.bf16 %v379, %v378
  %v395 = vpack.c.bf16 %v381, %v380
  %v396 = vpack.c.bf16 %v383, %v382
  %v397 = vpack.c.bf16 %v385, %v384
  %v398 = vpack.c.bf16 %v387, %v386
  %v399 = vpack.c.bf16 %v389, %v388
  %v400 = vpack.c.bf16 %v391, %v390
  %v401 = vpack.c.bf16 %v393, %v392
  %v410 = vunpack.c.l.b16 %v394
  %v411 = vunpack.c.h.b16 %v394
  %v412 = vunpack.c.l.b16 %v395
  %v413 = vunpack.c.h.b16 %v395
  %v414 = vunpack.c.l.b16 %v396
  %v415 = vunpack.c.h.b16 %v396
  %v416 = vunpack.c.l.b16 %v397
  %v417 = vunpack.c.h.b16 %v397
  %v418 = vunpack.c.l.b16 %v398
  %v419 = vunpack.c.h.b16 %v398
  %v420 = vunpack.c.l.b16 %v399
  %v421 = vunpack.c.h.b16 %v399
  %v422 = vunpack.c.l.b16 %v400
  %v423 = vunpack.c.h.b16 %v400
  %v424 = vunpack.c.l.b16 %v401
  %v425 = vunpack.c.h.b16 %v401
  %v426 = vpack.c.b16 %v410, %v410
  %v427 = vpack.c.b16 %v411, %v411
  %v428 = vpack.c.b16 %v412, %v412
  %v429 = vpack.c.b16 %v413, %v413
  %v430 = vpack.c.b16 %v414, %v414
  %v431 = vpack.c.b16 %v415, %v415
  %v432 = vpack.c.b16 %v416, %v416
  %v433 = vpack.c.b16 %v417, %v417
  %v434 = vpack.c.b16 %v418, %v418
  %v435 = vpack.c.b16 %v419, %v419
  %v436 = vpack.c.b16 %v420, %v420
  %v437 = vpack.c.b16 %v421, %v421
  %v438 = vpack.c.b16 %v422, %v422
  %v439 = vpack.c.b16 %v423, %v423
  %v440 = vpack.c.b16 %v424, %v424
  %v441 = vpack.c.b16 %v425, %v425
  %vm458 = vcmask 257024
  %459 = vst.msk [vmem:[%s3] sm:$0xf] %vm458, %v426
  %460 = vst.msk [vmem:[%s3 + $0x4] sm:$0xf] %vm458, %v427
  %461 = vst.msk [vmem:[%s3 + $0x8] sm:$0xf] %vm458, %v428
  %462 = vst.msk [vmem:[%s3 + $0xc] sm:$0xf] %vm458, %v429
  %463 = vst.msk [vmem:[%s3 + $0x10] sm:$0xf] %vm458, %v430
  %464 = vst.msk [vmem:[%s3 + $0x14] sm:$0xf] %vm458, %v431
  %465 = vst.msk [vmem:[%s3 + $0x18] sm:$0xf] %vm458, %v432
  %466 = vst.msk [vmem:[%s3 + $0x1c] sm:$0xf] %vm458, %v433
  %467 = vst.msk [vmem:[%s3 + $0x20] sm:$0xf] %vm458, %v434
  %468 = vst.msk [vmem:[%s3 + $0x24] sm:$0xf] %vm458, %v435
  %469 = vst.msk [vmem:[%s3 + $0x28] sm:$0xf] %vm458, %v436
  %470 = vst.msk [vmem:[%s3 + $0x2c] sm:$0xf] %vm458, %v437
  %471 = vst.msk [vmem:[%s3 + $0x30] sm:$0xf] %vm458, %v438
  %472 = vst.msk [vmem:[%s3 + $0x34] sm:$0xf] %vm458, %v439
  %473 = vst.msk [vmem:[%s3 + $0x38] sm:$0xf] %vm458, %v440
  %474 = vst.msk [vmem:[%s3 + $0x3c] sm:$0xf] %vm458, %v441
  // Predicated region
  $region14: #{_lambda_.19} parent=0 // pred_check
    _
  $region15: #{_lambda_.19} parent=0 // pred_check_branch
    %476 = sbr.rel (0) target = $region17
  $region16: #{_lambda_.19} parent=0 // pred_region
    _
  $region17: #{_lambda_.19} parent=0 // pred_fallthru
    _
  // Predicated region
  $region18: #{_lambda_.19} parent=0 // pred_check
    _
  $region19: #{_lambda_.19} parent=0 // pred_check_branch
    %478 = sbr.rel (0) target = $region21
  $region20: #{_lambda_.19} parent=0 // pred_region
    _
  $region21: #{_lambda_.19} parent=0 // pred_fallthru
    _

// kernel: _lambda_.20
$region0: #{_lambda_.20}
  #allocation0 [shape = 'u32[]', space=smem, size = 0x4, offset = 0x4, fixed_abs, tag = 'smem constant byte address 0x4 - core index']
  #allocation1 [shape = 'u32[144,128]{1,0:T(1,128)}', space=vmem, size = 0x12000, scoped, tag = 'internal scratch']
  %s0 = inlined_call_operand.vmem [shape: bf16[128,128], index: 0, kind: input, shape index: {}]
  %s1 = inlined_call_operand.vmem [shape: bf16[128,32], index: 1, kind: input, shape index: {}]
  %s2 = inlined_call_operand.vmem [shape: f32[2,32], index: 2, kind: input, shape index: {}]
  %s3 = inlined_call_operand.vmem [shape: bf16[128,32], index: 3, kind: output, shape index: {}]
  %s4 = sld [smem:[#allocation0]]
  $region22: #{_lambda_.20} parent=0
    _
  %s6 = ssub.s32 1, %s4
  %s7 = scalar_select 0, %s6, %s4
  // Predicated region
  $region2: #{_lambda_.20} parent=0 // pred_check
    _
  $region3: #{_lambda_.20} parent=0 // pred_check_branch
    %9 = sbr.rel (0) target = $region5
  $region4: #{_lambda_.20} parent=0 // pred_region
    _
  $region5: #{_lambda_.20} parent=0 // pred_fallthru
    _
  // Predicated region
  $region6: #{_lambda_.20} parent=0 // pred_check
    _
  $region7: #{_lambda_.20} parent=0 // pred_check_branch
    %11 = sbr.rel (0) target = $region9
  $region8: #{_lambda_.20} parent=0 // pred_region
    _
  $region9: #{_lambda_.20} parent=0 // pred_fallthru
    _
  // Predicated region
  $region10: #{_lambda_.20} parent=0 // pred_check
    _
  $region11: #{_lambda_.20} parent=0 // pred_check_branch
    %13 = sbr.rel (0) target = $region13
  $region12: #{_lambda_.20} parent=0 // pred_region
    _
  $region13: #{_lambda_.20} parent=0 // pred_fallthru
    _
  %v15 = vld [vmem:[%s0] sm:$0xf]
  %v16 = vld [vmem:[%s0 + $0x4] sm:$0xf]
  %v17 = vld [vmem:[%s0 + $0x8] sm:$0xf]
  %v18 = vld [vmem:[%s0 + $0xc] sm:$0xf]
  %v19 = vld [vmem:[%s0 + $0x10] sm:$0xf]
  %v20 = vld [vmem:[%s0 + $0x14] sm:$0xf]
  %v21 = vld [vmem:[%s0 + $0x18] sm:$0xf]
  %v22 = vld [vmem:[%s0 + $0x1c] sm:$0xf]
  %v23 = vld [vmem:[%s0 + $0x20] sm:$0xf]
  %v24 = vld [vmem:[%s0 + $0x24] sm:$0xf]
  %v25 = vld [vmem:[%s0 + $0x28] sm:$0xf]
  %v26 = vld [vmem:[%s0 + $0x2c] sm:$0xf]
  %v27 = vld [vmem:[%s0 + $0x30] sm:$0xf]
  %v28 = vld [vmem:[%s0 + $0x34] sm:$0xf]
  %v29 = vld [vmem:[%s0 + $0x38] sm:$0xf]
  %v30 = vld [vmem:[%s0 + $0x3c] sm:$0xf]
  %v31 = vld [vmem:[%s1] sm:$0xf]
  %v32 = vld [vmem:[%s1 + $0x4] sm:$0xf]
  %v33 = vld [vmem:[%s1 + $0x8] sm:$0xf]
  %v34 = vld [vmem:[%s1 + $0xc] sm:$0xf]
  %v35 = vld [vmem:[%s1 + $0x10] sm:$0xf]
  %v36 = vld [vmem:[%s1 + $0x14] sm:$0xf]
  %v37 = vld [vmem:[%s1 + $0x18] sm:$0xf]
  %v38 = vld [vmem:[%s1 + $0x1c] sm:$0xf]
  %v39 = vld [vmem:[%s1 + $0x20] sm:$0xf]
  %v40 = vld [vmem:[%s1 + $0x24] sm:$0xf]
  %v41 = vld [vmem:[%s1 + $0x28] sm:$0xf]
  %v42 = vld [vmem:[%s1 + $0x2c] sm:$0xf]
  %v43 = vld [vmem:[%s1 + $0x30] sm:$0xf]
  %v44 = vld [vmem:[%s1 + $0x34] sm:$0xf]
  %v45 = vld [vmem:[%s1 + $0x38] sm:$0xf]
  %v46 = vld [vmem:[%s1 + $0x3c] sm:$0xf]
  %v63 = vunpack.c.l.b16 %v15
  %v64 = vunpack.c.l.b16 %v16
  %v65 = vunpack.c.l.b16 %v17
  %v66 = vunpack.c.l.b16 %v18
  %v67 = vunpack.c.l.b16 %v19
  %v68 = vunpack.c.l.b16 %v20
  %v69 = vunpack.c.l.b16 %v21
  %v70 = vunpack.c.l.b16 %v22
  %v71 = vunpack.c.l.b16 %v23
  %v72 = vunpack.c.l.b16 %v24
  %v73 = vunpack.c.l.b16 %v25
  %v74 = vunpack.c.l.b16 %v26
  %v75 = vunpack.c.l.b16 %v27
  %v76 = vunpack.c.l.b16 %v28
  %v77 = vunpack.c.l.b16 %v29
  %v78 = vunpack.c.l.b16 %v30
  %v79 = vpack.c.b16 %v64, %v63
  %v80 = vpack.c.b16 %v66, %v65
  %v81 = vpack.c.b16 %v68, %v67
  %v82 = vpack.c.b16 %v70, %v69
  %v83 = vpack.c.b16 %v72, %v71
  %v84 = vpack.c.b16 %v74, %v73
  %v85 = vpack.c.b16 %v76, %v75
  %v86 = vpack.c.b16 %v78, %v77
  %v111 = vunpack.c.l.b16 %v31
  %v112 = vunpack.c.l.b16 %v32
  %v113 = vunpack.c.l.b16 %v33
  %v114 = vunpack.c.l.b16 %v34
  %v115 = vunpack.c.l.b16 %v35
  %v116 = vunpack.c.l.b16 %v36
  %v117 = vunpack.c.l.b16 %v37
  %v118 = vunpack.c.l.b16 %v38
  %v119 = vunpack.c.l.b16 %v39
  %v120 = vunpack.c.l.b16 %v40
  %v121 = vunpack.c.l.b16 %v41
  %v122 = vunpack.c.l.b16 %v42
  %v123 = vunpack.c.l.b16 %v43
  %v124 = vunpack.c.l.b16 %v44
  %v125 = vunpack.c.l.b16 %v45
  %v126 = vunpack.c.l.b16 %v46
  %v127 = vpack.c.b16 %v112, %v111
  %v128 = vpack.c.b16 %v114, %v113
  %v129 = vpack.c.b16 %v116, %v115
  %v130 = vpack.c.b16 %v118, %v117
  %v131 = vpack.c.b16 %v120, %v119
  %v132 = vpack.c.b16 %v122, %v121
  %v133 = vpack.c.b16 %v124, %v123
  %v134 = vpack.c.b16 %v126, %v125
  %143 = vmatprep.subr.bf16.mxu0 0
  %144 = vmatpush1.bf16.msra.mxu0 %v134
  %145 = vmatprep.subr.bf16.mxu0 0
  %146 = vmatpush1.bf16.msra.mxu0 %v133
  %147 = vmatprep.subr.bf16.mxu0 0
  %148 = vmatpush1.bf16.msra.mxu0 %v132
  %149 = vmatprep.subr.bf16.mxu0 0
  %150 = vmatpush1.bf16.msra.mxu0 %v131
  %151 = vmatprep.subr.bf16.mxu0 0
  %152 = vmatpush1.bf16.msra.mxu0 %v130
  %153 = vmatprep.subr.bf16.mxu0 0
  %154 = vmatpush1.bf16.msra.mxu0 %v129
  %155 = vmatprep.subr.bf16.mxu0 0
  %156 = vmatpush1.bf16.msra.mxu0 %v128
  %157 = vmatprep.subr.bf16.mxu0 0
  %158 = vmatpush1.bf16.msra.mxu0 %v127
  %159 = vmatprep.subr.bf16.mxu0 0
  %160 = vmatpush2.bf16.msra.mxu0 0
  %161 = vmatprep.subr.bf16.mxu0 0
  %162 = vmatpush2.bf16.msra.mxu0 0
  %163 = vmatprep.subr.bf16.mxu0 0
  %164 = vmatpush2.bf16.msra.mxu0 0
  %165 = vmatprep.subr.bf16.mxu0 0
  %166 = vmatpush2.bf16.msra.mxu0 0
  %167 = vmatprep.subr.bf16.mxu0 0
  %168 = vmatpush2.bf16.msra.mxu0 0
  %169 = vmatprep.subr.bf16.mxu0 0
  %170 = vmatpush2.bf16.msra.mxu0 0
  %171 = vmatprep.subr.bf16.mxu0 0
  %172 = vmatpush2.bf16.msra.mxu0 0
  %173 = vmatprep.subr.bf16.mxu0 0
  %174 = vmatpush2.bf16.msra.mxu0 0
  %175 = vmatprep.mubr.bf16.mxu0 0
  %176 = vmatmul.mubr.bf16.gmra.mxu0 %v79
  %v177 = vpop.f32.mrf.mxu0
  %v178 = vadd.f32 0.0, %v177
  %v179 = vpop.f32.mrf.mxu0
  %v180 = vpop.f32.mrf.mxu0
  %v181 = vadd.f32 0.0, %v180
  %v182 = vpop.f32.mrf.mxu0
  %183 = vmatprep.mubr.bf16.mxu0 0
  %184 = vmatmul.mubr.bf16.gmra.mxu0 %v80
  %v185 = vpop.f32.mrf.mxu0
  %v186 = vadd.f32 0.0, %v185
  %v187 = vpop.f32.mrf.mxu0
  %v188 = vpop.f32.mrf.mxu0
  %v189 = vadd.f32 0.0, %v188
  %v190 = vpop.f32.mrf.mxu0
  %191 = vmatprep.mubr.bf16.mxu0 0
  %192 = vmatmul.mubr.bf16.gmra.mxu0 %v81
  %v193 = vpop.f32.mrf.mxu0
  %v194 = vadd.f32 0.0, %v193
  %v195 = vpop.f32.mrf.mxu0
  %v196 = vpop.f32.mrf.mxu0
  %v197 = vadd.f32 0.0, %v196
  %v198 = vpop.f32.mrf.mxu0
  %199 = vmatprep.mubr.bf16.mxu0 0
  %200 = vmatmul.mubr.bf16.gmra.mxu0 %v82
  %v201 = vpop.f32.mrf.mxu0
  %v202 = vadd.f32 0.0, %v201
  %v203 = vpop.f32.mrf.mxu0
  %v204 = vpop.f32.mrf.mxu0
  %v205 = vadd.f32 0.0, %v204
  %v206 = vpop.f32.mrf.mxu0
  %207 = vmatprep.mubr.bf16.mxu0 0
  %208 = vmatmul.mubr.bf16.gmra.mxu0 %v83
  %v209 = vpop.f32.mrf.mxu0
  %v210 = vadd.f32 0.0, %v209
  %v211 = vpop.f32.mrf.mxu0
  %v212 = vpop.f32.mrf.mxu0
  %v213 = vadd.f32 0.0, %v212
  %v214 = vpop.f32.mrf.mxu0
  %215 = vmatprep.mubr.bf16.mxu0 0
  %216 = vmatmul.mubr.bf16.gmra.mxu0 %v84
  %v217 = vpop.f32.mrf.mxu0
  %v218 = vadd.f32 0.0, %v217
  %v219 = vpop.f32.mrf.mxu0
  %v220 = vpop.f32.mrf.mxu0
  %v221 = vadd.f32 0.0, %v220
  %v222 = vpop.f32.mrf.mxu0
  %223 = vmatprep.mubr.bf16.mxu0 0
  %224 = vmatmul.mubr.bf16.gmra.mxu0 %v85
  %v225 = vpop.f32.mrf.mxu0
  %v226 = vadd.f32 0.0, %v225
  %v227 = vpop.f32.mrf.mxu0
  %v228 = vpop.f32.mrf.mxu0
  %v229 = vadd.f32 0.0, %v228
  %v230 = vpop.f32.mrf.mxu0
  %231 = vmatprep.mubr.bf16.mxu0 0
  %232 = vmatmul.mubr.bf16.gmra.mxu0 %v86
  %v233 = vpop.f32.mrf.mxu0
  %v234 = vadd.f32 0.0, %v233
  %v235 = vpop.f32.mrf.mxu0
  %v236 = vpop.f32.mrf.mxu0
  %v237 = vadd.f32 0.0, %v236
  %v238 = vpop.f32.mrf.mxu0
  %239 = vdwg.mxu0
  %v240 = vld [vmem:[%s2] sm:$0x1]
  %v241 = vlaneseq
  %v242 = vshrl.u32 %v241, 7
  %v243 = vsub.s32 0, %v242
  %v244 = vrot.slane %v240, %v243
  %v245 = vmul.f32 %v178, %v244
  %v246 = vmul.f32 %v181, %v244
  %v247 = vmul.f32 %v186, %v244
  %v248 = vmul.f32 %v189, %v244
  %v249 = vmul.f32 %v194, %v244
  %v250 = vmul.f32 %v197, %v244
  %v251 = vmul.f32 %v202, %v244
  %v252 = vmul.f32 %v205, %v244
  %v253 = vmul.f32 %v210, %v244
  %v254 = vmul.f32 %v213, %v244
  %v255 = vmul.f32 %v218, %v244
  %v256 = vmul.f32 %v221, %v244
  %v257 = vmul.f32 %v226, %v244
  %v258 = vmul.f32 %v229, %v244
  %v259 = vmul.f32 %v234, %v244
  %v260 = vmul.f32 %v237, %v244
  %v261 = vld [vmem:[%s2 + $0x1] sm:$0x1]
  %v262 = vlaneseq
  %v263 = vshrl.u32 %v262, 7
  %v264 = vsub.s32 0, %v263
  %v265 = vrot.slane %v261, %v264
  %v266 = vadd.f32 %v245, %v265
  %v267 = vadd.f32 %v246, %v265
  %v268 = vadd.f32 %v247, %v265
  %v269 = vadd.f32 %v248, %v265
  %v270 = vadd.f32 %v249, %v265
  %v271 = vadd.f32 %v250, %v265
  %v272 = vadd.f32 %v251, %v265
  %v273 = vadd.f32 %v252, %v265
  %v274 = vadd.f32 %v253, %v265
  %v275 = vadd.f32 %v254, %v265
  %v276 = vadd.f32 %v255, %v265
  %v277 = vadd.f32 %v256, %v265
  %v278 = vadd.f32 %v257, %v265
  %v279 = vadd.f32 %v258, %v265
  %v280 = vadd.f32 %v259, %v265
  %v281 = vadd.f32 %v260, %v265
  %v282 = vpack.c.bf16 %v267, %v266
  %v283 = vpack.c.bf16 %v269, %v268
  %v284 = vpack.c.bf16 %v271, %v270
  %v285 = vpack.c.bf16 %v273, %v272
  %v286 = vpack.c.bf16 %v275, %v274
  %v287 = vpack.c.bf16 %v277, %v276
  %v288 = vpack.c.bf16 %v279, %v278
  %v289 = vpack.c.bf16 %v281, %v280
  %v298 = vunpack.c.l.b16 %v282
  %v299 = vunpack.c.h.b16 %v282
  %v300 = vunpack.c.l.b16 %v283
  %v301 = vunpack.c.h.b16 %v283
  %v302 = vunpack.c.l.b16 %v284
  %v303 = vunpack.c.h.b16 %v284
  %v304 = vunpack.c.l.b16 %v285
  %v305 = vunpack.c.h.b16 %v285
  %v306 = vunpack.c.l.b16 %v286
  %v307 = vunpack.c.h.b16 %v286
  %v308 = vunpack.c.l.b16 %v287
  %v309 = vunpack.c.h.b16 %v287
  %v310 = vunpack.c.l.b16 %v288
  %v311 = vunpack.c.h.b16 %v288
  %v312 = vunpack.c.l.b16 %v289
  %v313 = vunpack.c.h.b16 %v289
  %v314 = vpack.c.b16 %v298, %v298
  %v315 = vpack.c.b16 %v299, %v299
  %v316 = vpack.c.b16 %v300, %v300
  %v317 = vpack.c.b16 %v301, %v301
  %v318 = vpack.c.b16 %v302, %v302
  %v319 = vpack.c.b16 %v303, %v303
  %v320 = vpack.c.b16 %v304, %v304
  %v321 = vpack.c.b16 %v305, %v305
  %v322 = vpack.c.b16 %v306, %v306
  %v323 = vpack.c.b16 %v307, %v307
  %v324 = vpack.c.b16 %v308, %v308
  %v325 = vpack.c.b16 %v309, %v309
  %v326 = vpack.c.b16 %v310, %v310
  %v327 = vpack.c.b16 %v311, %v311
  %v328 = vpack.c.b16 %v312, %v312
  %v329 = vpack.c.b16 %v313, %v313
  %vm346 = vcmask 257024
  %347 = vst.msk [vmem:[%s3] sm:$0xf] %vm346, %v314
  %348 = vst.msk [vmem:[%s3 + $0x4] sm:$0xf] %vm346, %v315
  %349 = vst.msk [vmem:[%s3 + $0x8] sm:$0xf] %vm346, %v316
  %350 = vst.msk [vmem:[%s3 + $0xc] sm:$0xf] %vm346, %v317
  %351 = vst.msk [vmem:[%s3 + $0x10] sm:$0xf] %vm346, %v318
  %352 = vst.msk [vmem:[%s3 + $0x14] sm:$0xf] %vm346, %v319
  %353 = vst.msk [vmem:[%s3 + $0x18] sm:$0xf] %vm346, %v320
  %354 = vst.msk [vmem:[%s3 + $0x1c] sm:$0xf] %vm346, %v321
  %355 = vst.msk [vmem:[%s3 + $0x20] sm:$0xf] %vm346, %v322
  %356 = vst.msk [vmem:[%s3 + $0x24] sm:$0xf] %vm346, %v323
  %357 = vst.msk [vmem:[%s3 + $0x28] sm:$0xf] %vm346, %v324
  %358 = vst.msk [vmem:[%s3 + $0x2c] sm:$0xf] %vm346, %v325
  %359 = vst.msk [vmem:[%s3 + $0x30] sm:$0xf] %vm346, %v326
  %360 = vst.msk [vmem:[%s3 + $0x34] sm:$0xf] %vm346, %v327
  %361 = vst.msk [vmem:[%s3 + $0x38] sm:$0xf] %vm346, %v328
  %362 = vst.msk [vmem:[%s3 + $0x3c] sm:$0xf] %vm346, %v329
  // Predicated region
  $region14: #{_lambda_.20} parent=0 // pred_check
    _
  $region15: #{_lambda_.20} parent=0 // pred_check_branch
    %364 = sbr.rel (0) target = $region17
  $region16: #{_lambda_.20} parent=0 // pred_region
    _
  $region17: #{_lambda_.20} parent=0 // pred_fallthru
    _
  // Predicated region
  $region18: #{_lambda_.20} parent=0 // pred_check
    _
  $region19: #{_lambda_.20} parent=0 // pred_check_branch
    %366 = sbr.rel (0) target = $region21
  $region20: #{_lambda_.20} parent=0 // pred_region
    _
  $region21: #{_lambda_.20} parent=0 // pred_fallthru
    _

// kernel: _lambda_.21
$region0: #{_lambda_.21}
  #allocation0 [shape = 'u32[]', space=smem, size = 0x4, offset = 0x4, fixed_abs, tag = 'smem constant byte address 0x4 - core index']
  #allocation1 [shape = 'u32[144,128]{1,0:T(1,128)}', space=vmem, size = 0x12000, scoped, tag = 'internal scratch']
  %s0 = inlined_call_operand.vmem [shape: bf16[128,384], index: 0, kind: input, shape index: {}]
  %s1 = inlined_call_operand.vmem [shape: bf16[384,32], index: 1, kind: input, shape index: {}]
  %s2 = inlined_call_operand.vmem [shape: f32[2,32], index: 2, kind: input, shape index: {}]
  %s3 = inlined_call_operand.vmem [shape: bf16[128,32], index: 3, kind: input, shape index: {}]
  %s4 = inlined_call_operand.vmem [shape: bf16[128,32], index: 4, kind: output, shape index: {}]
  %s5 = sld [smem:[#allocation0]]
  $region26: #{_lambda_.21} parent=0
    _
  %s7 = ssub.s32 1, %s5
  %s8 = scalar_select 0, %s7, %s5
  // Predicated region
  $region2: #{_lambda_.21} parent=0 // pred_check
    _
  $region3: #{_lambda_.21} parent=0 // pred_check_branch
    %10 = sbr.rel (0) target = $region5
  $region4: #{_lambda_.21} parent=0 // pred_region
    _
  $region5: #{_lambda_.21} parent=0 // pred_fallthru
    _
  // Predicated region
  $region6: #{_lambda_.21} parent=0 // pred_check
    _
  $region7: #{_lambda_.21} parent=0 // pred_check_branch
    %12 = sbr.rel (0) target = $region9
  $region8: #{_lambda_.21} parent=0 // pred_region
    _
  $region9: #{_lambda_.21} parent=0 // pred_fallthru
    _
  // Predicated region
  $region10: #{_lambda_.21} parent=0 // pred_check
    _
  $region11: #{_lambda_.21} parent=0 // pred_check_branch
    %14 = sbr.rel (0) target = $region13
  $region12: #{_lambda_.21} parent=0 // pred_region
    _
  $region13: #{_lambda_.21} parent=0 // pred_fallthru
    _
  // Predicated region
  $region14: #{_lambda_.21} parent=0 // pred_check
    _
  $region15: #{_lambda_.21} parent=0 // pred_check_branch
    %16 = sbr.rel (0) target = $region17
  $region16: #{_lambda_.21} parent=0 // pred_region
    _
  $region17: #{_lambda_.21} parent=0 // pred_fallthru
    _
  %v18 = vld [vmem:[%s0] sm:$0xff]
  %v19 = vld [vmem:[%s0 + $0x8] sm:$0xf]
  %v20 = vld [vmem:[%s0 + $0xc] sm:$0xff]
  %v21 = vld [vmem:[%s0 + $0x14] sm:$0xf]
  %v22 = vld [vmem:[%s0 + $0x18] sm:$0xff]
  %v23 = vld [vmem:[%s0 + $0x20] sm:$0xf]
  %v24 = vld [vmem:[%s0 + $0x24] sm:$0xff]
  %v25 = vld [vmem:[%s0 + $0x2c] sm:$0xf]
  %v26 = vld [vmem:[%s0 + $0x30] sm:$0xff]
  %v27 = vld [vmem:[%s0 + $0x38] sm:$0xf]
  %v28 = vld [vmem:[%s0 + $0x3c] sm:$0xff]
  %v29 = vld [vmem:[%s0 + $0x44] sm:$0xf]
  %v30 = vld [vmem:[%s0 + $0x48] sm:$0xff]
  %v31 = vld [vmem:[%s0 + $0x50] sm:$0xf]
  %v32 = vld [vmem:[%s0 + $0x54] sm:$0xff]
  %v33 = vld [vmem:[%s0 + $0x5c] sm:$0xf]
  %v34 = vld [vmem:[%s0 + $0x60] sm:$0xff]
  %v35 = vld [vmem:[%s0 + $0x68] sm:$0xf]
  %v36 = vld [vmem:[%s0 + $0x6c] sm:$0xff]
  %v37 = vld [vmem:[%s0 + $0x74] sm:$0xf]
  %v38 = vld [vmem:[%s0 + $0x78] sm:$0xff]
  %v39 = vld [vmem:[%s0 + $0x80] sm:$0xf]
  %v40 = vld [vmem:[%s0 + $0x84] sm:$0xff]
  %v41 = vld [vmem:[%s0 + $0x8c] sm:$0xf]
  %v42 = vld [vmem:[%s0 + $0x90] sm:$0xff]
  %v43 = vld [vmem:[%s0 + $0x98] sm:$0xf]
  %v44 = vld [vmem:[%s0 + $0x9c] sm:$0xff]
  %v45 = vld [vmem:[%s0 + $0xa4] sm:$0xf]
  %v46 = vld [vmem:[%s0 + $0xa8] sm:$0xff]
  %v47 = vld [vmem:[%s0 + $0xb0] sm:$0xf]
  %v48 = vld [vmem:[%s0 + $0xb4] sm:$0xff]
  %v49 = vld [vmem:[%s0 + $0xbc] sm:$0xf]
  %v50 = vld [vmem:[%s1] sm:$0xf]
  %v51 = vld [vmem:[%s1 + $0x4] sm:$0xf]
  %v52 = vld [vmem:[%s1 + $0x8] sm:$0xf]
  %v53 = vld [vmem:[%s1 + $0xc] sm:$0xf]
  %v54 = vld [vmem:[%s1 + $0x10] sm:$0xf]
  %v55 = vld [vmem:[%s1 + $0x14] sm:$0xf]
  %v56 = vld [vmem:[%s1 + $0x18] sm:$0xf]
  %v57 = vld [vmem:[%s1 + $0x1c] sm:$0xf]
  %v58 = vld [vmem:[%s1 + $0x20] sm:$0xf]
  %v59 = vld [vmem:[%s1 + $0x24] sm:$0xf]
  %v60 = vld [vmem:[%s1 + $0x28] sm:$0xf]
  %v61 = vld [vmem:[%s1 + $0x2c] sm:$0xf]
  %v62 = vld [vmem:[%s1 + $0x30] sm:$0xf]
  %v63 = vld [vmem:[%s1 + $0x34] sm:$0xf]
  %v64 = vld [vmem:[%s1 + $0x38] sm:$0xf]
  %v65 = vld [vmem:[%s1 + $0x3c] sm:$0xf]
  %v66 = vld [vmem:[%s1 + $0x40] sm:$0xf]
  %v67 = vld [vmem:[%s1 + $0x44] sm:$0xf]
  %v68 = vld [vmem:[%s1 + $0x48] sm:$0xf]
  %v69 = vld [vmem:[%s1 + $0x4c] sm:$0xf]
  %v70 = vld [vmem:[%s1 + $0x50] sm:$0xf]
  %v71 = vld [vmem:[%s1 + $0x54] sm:$0xf]
  %v72 = vld [vmem:[%s1 + $0x58] sm:$0xf]
  %v73 = vld [vmem:[%s1 + $0x5c] sm:$0xf]
  %v74 = vld [vmem:[%s1 + $0x60] sm:$0xf]
  %v75 = vld [vmem:[%s1 + $0x64] sm:$0xf]
  %v76 = vld [vmem:[%s1 + $0x68] sm:$0xf]
  %v77 = vld [vmem:[%s1 + $0x6c] sm:$0xf]
  %v78 = vld [vmem:[%s1 + $0x70] sm:$0xf]
  %v79 = vld [vmem:[%s1 + $0x74] sm:$0xf]
  %v80 = vld [vmem:[%s1 + $0x78] sm:$0xf]
  %v81 = vld [vmem:[%s1 + $0x7c] sm:$0xf]
  %v82 = vld [vmem:[%s1 + $0x80] sm:$0xf]
  %v83 = vld [vmem:[%s1 + $0x84] sm:$0xf]
  %v84 = vld [vmem:[%s1 + $0x88] sm:$0xf]
  %v85 = vld [vmem:[%s1 + $0x8c] sm:$0xf]
  %v86 = vld [vmem:[%s1 + $0x90] sm:$0xf]
  %v87 = vld [vmem:[%s1 + $0x94] sm:$0xf]
  %v88 = vld [vmem:[%s1 + $0x98] sm:$0xf]
  %v89 = vld [vmem:[%s1 + $0x9c] sm:$0xf]
  %v90 = vld [vmem:[%s1 + $0xa0] sm:$0xf]
  %v91 = vld [vmem:[%s1 + $0xa4] sm:$0xf]
  %v92 = vld [vmem:[%s1 + $0xa8] sm:$0xf]
  %v93 = vld [vmem:[%s1 + $0xac] sm:$0xf]
  %v94 = vld [vmem:[%s1 + $0xb0] sm:$0xf]
  %v95 = vld [vmem:[%s1 + $0xb4] sm:$0xf]
  %v96 = vld [vmem:[%s1 + $0xb8] sm:$0xf]
  %v97 = vld [vmem:[%s1 + $0xbc] sm:$0xf]
  %v130 = vunpack.c.l.b16 %v18
  %v131 = vunpack.c.h.b16 %v18
  %v132 = vunpack.c.l.b16 %v19
  %v133 = vunpack.c.l.b16 %v20
  %v134 = vunpack.c.h.b16 %v20
  %v135 = vunpack.c.l.b16 %v21
  %v136 = vunpack.c.l.b16 %v22
  %v137 = vunpack.c.h.b16 %v22
  %v138 = vunpack.c.l.b16 %v23
  %v139 = vunpack.c.l.b16 %v24
  %v140 = vunpack.c.h.b16 %v24
  %v141 = vunpack.c.l.b16 %v25
  %v142 = vunpack.c.l.b16 %v26
  %v143 = vunpack.c.h.b16 %v26
  %v144 = vunpack.c.l.b16 %v27
  %v145 = vunpack.c.l.b16 %v28
  %v146 = vunpack.c.h.b16 %v28
  %v147 = vunpack.c.l.b16 %v29
  %v148 = vunpack.c.l.b16 %v30
  %v149 = vunpack.c.h.b16 %v30
  %v150 = vunpack.c.l.b16 %v31
  %v151 = vunpack.c.l.b16 %v32
  %v152 = vunpack.c.h.b16 %v32
  %v153 = vunpack.c.l.b16 %v33
  %v154 = vunpack.c.l.b16 %v34
  %v155 = vunpack.c.h.b16 %v34
  %v156 = vunpack.c.l.b16 %v35
  %v157 = vunpack.c.l.b16 %v36
  %v158 = vunpack.c.h.b16 %v36
  %v159 = vunpack.c.l.b16 %v37
  %v160 = vunpack.c.l.b16 %v38
  %v161 = vunpack.c.h.b16 %v38
  %v162 = vunpack.c.l.b16 %v39
  %v163 = vunpack.c.l.b16 %v40
  %v164 = vunpack.c.h.b16 %v40
  %v165 = vunpack.c.l.b16 %v41
  %v166 = vunpack.c.l.b16 %v42
  %v167 = vunpack.c.h.b16 %v42
  %v168 = vunpack.c.l.b16 %v43
  %v169 = vunpack.c.l.b16 %v44
  %v170 = vunpack.c.h.b16 %v44
  %v171 = vunpack.c.l.b16 %v45
  %v172 = vunpack.c.l.b16 %v46
  %v173 = vunpack.c.h.b16 %v46
  %v174 = vunpack.c.l.b16 %v47
  %v175 = vunpack.c.l.b16 %v48
  %v176 = vunpack.c.h.b16 %v48
  %v177 = vunpack.c.l.b16 %v49
  %v178 = vpack.c.b16 %v133, %v130
  %v179 = vpack.c.b16 %v134, %v131
  %v180 = vpack.c.b16 %v135, %v132
  %v181 = vpack.c.b16 %v139, %v136
  %v182 = vpack.c.b16 %v140, %v137
  %v183 = vpack.c.b16 %v141, %v138
  %v184 = vpack.c.b16 %v145, %v142
  %v185 = vpack.c.b16 %v146, %v143
  %v186 = vpack.c.b16 %v147, %v144
  %v187 = vpack.c.b16 %v151, %v148
  %v188 = vpack.c.b16 %v152, %v149
  %v189 = vpack.c.b16 %v153, %v150
  %v190 = vpack.c.b16 %v157, %v154
  %v191 = vpack.c.b16 %v158, %v155
  %v192 = vpack.c.b16 %v159, %v156
  %v193 = vpack.c.b16 %v163, %v160
  %v194 = vpack.c.b16 %v164, %v161
  %v195 = vpack.c.b16 %v165, %v162
  %v196 = vpack.c.b16 %v169, %v166
  %v197 = vpack.c.b16 %v170, %v167
  %v198 = vpack.c.b16 %v171, %v168
  %v199 = vpack.c.b16 %v175, %v172
  %v200 = vpack.c.b16 %v176, %v173
  %v201 = vpack.c.b16 %v177, %v174
  %v274 = vunpack.c.l.b16 %v50
  %v275 = vunpack.c.l.b16 %v51
  %v276 = vunpack.c.l.b16 %v52
  %v277 = vunpack.c.l.b16 %v53
  %v278 = vunpack.c.l.b16 %v54
  %v279 = vunpack.c.l.b16 %v55
  %v280 = vunpack.c.l.b16 %v56
  %v281 = vunpack.c.l.b16 %v57
  %v282 = vunpack.c.l.b16 %v58
  %v283 = vunpack.c.l.b16 %v59
  %v284 = vunpack.c.l.b16 %v60
  %v285 = vunpack.c.l.b16 %v61
  %v286 = vunpack.c.l.b16 %v62
  %v287 = vunpack.c.l.b16 %v63
  %v288 = vunpack.c.l.b16 %v64
  %v289 = vunpack.c.l.b16 %v65
  %v290 = vunpack.c.l.b16 %v66
  %v291 = vunpack.c.l.b16 %v67
  %v292 = vunpack.c.l.b16 %v68
  %v293 = vunpack.c.l.b16 %v69
  %v294 = vunpack.c.l.b16 %v70
  %v295 = vunpack.c.l.b16 %v71
  %v296 = vunpack.c.l.b16 %v72
  %v297 = vunpack.c.l.b16 %v73
  %v298 = vunpack.c.l.b16 %v74
  %v299 = vunpack.c.l.b16 %v75
  %v300 = vunpack.c.l.b16 %v76
  %v301 = vunpack.c.l.b16 %v77
  %v302 = vunpack.c.l.b16 %v78
  %v303 = vunpack.c.l.b16 %v79
  %v304 = vunpack.c.l.b16 %v80
  %v305 = vunpack.c.l.b16 %v81
  %v306 = vunpack.c.l.b16 %v82
  %v307 = vunpack.c.l.b16 %v83
  %v308 = vunpack.c.l.b16 %v84
  %v309 = vunpack.c.l.b16 %v85
  %v310 = vunpack.c.l.b16 %v86
  %v311 = vunpack.c.l.b16 %v87
  %v312 = vunpack.c.l.b16 %v88
  %v313 = vunpack.c.l.b16 %v89
  %v314 = vunpack.c.l.b16 %v90
  %v315 = vunpack.c.l.b16 %v91
  %v316 = vunpack.c.l.b16 %v92
  %v317 = vunpack.c.l.b16 %v93
  %v318 = vunpack.c.l.b16 %v94
  %v319 = vunpack.c.l.b16 %v95
  %v320 = vunpack.c.l.b16 %v96
  %v321 = vunpack.c.l.b16 %v97
  %v322 = vpack.c.b16 %v275, %v274
  %v323 = vpack.c.b16 %v277, %v276
  %v324 = vpack.c.b16 %v279, %v278
  %v325 = vpack.c.b16 %v281, %v280
  %v326 = vpack.c.b16 %v283, %v282
  %v327 = vpack.c.b16 %v285, %v284
  %v328 = vpack.c.b16 %v287, %v286
  %v329 = vpack.c.b16 %v289, %v288
  %v330 = vpack.c.b16 %v291, %v290
  %v331 = vpack.c.b16 %v293, %v292
  %v332 = vpack.c.b16 %v295, %v294
  %v333 = vpack.c.b16 %v297, %v296
  %v334 = vpack.c.b16 %v299, %v298
  %v335 = vpack.c.b16 %v301, %v300
  %v336 = vpack.c.b16 %v303, %v302
  %v337 = vpack.c.b16 %v305, %v304
  %v338 = vpack.c.b16 %v307, %v306
  %v339 = vpack.c.b16 %v309, %v308
  %v340 = vpack.c.b16 %v311, %v310
  %v341 = vpack.c.b16 %v313, %v312
  %v342 = vpack.c.b16 %v315, %v314
  %v343 = vpack.c.b16 %v317, %v316
  %v344 = vpack.c.b16 %v319, %v318
  %v345 = vpack.c.b16 %v321, %v320
  %370 = vmatprep.subr.bf16.mxu0 0
  %371 = vmatpush1.bf16.msra.mxu0 %v329
  %372 = vmatprep.subr.bf16.mxu0 0
  %373 = vmatpush1.bf16.msra.mxu0 %v328
  %374 = vmatprep.subr.bf16.mxu0 0
  %375 = vmatpush1.bf16.msra.mxu0 %v327
  %376 = vmatprep.subr.bf16.mxu0 0
  %377 = vmatpush1.bf16.msra.mxu0 %v326
  %378 = vmatprep.subr.bf16.mxu0 0
  %379 = vmatpush1.bf16.msra.mxu0 %v325
  %380 = vmatprep.subr.bf16.mxu0 0
  %381 = vmatpush1.bf16.msra.mxu0 %v324
  %382 = vmatprep.subr.bf16.mxu0 0
  %383 = vmatpush1.bf16.msra.mxu0 %v323
  %384 = vmatprep.subr.bf16.mxu0 0
  %385 = vmatpush1.bf16.msra.mxu0 %v322
  %386 = vmatprep.subr.bf16.mxu0 0
  %387 = vmatpush2.bf16.msra.mxu0 %v337
  %388 = vmatprep.subr.bf16.mxu0 0
  %389 = vmatpush2.bf16.msra.mxu0 %v336
  %390 = vmatprep.subr.bf16.mxu0 0
  %391 = vmatpush2.bf16.msra.mxu0 %v335
  %392 = vmatprep.subr.bf16.mxu0 0
  %393 = vmatpush2.bf16.msra.mxu0 %v334
  %394 = vmatprep.subr.bf16.mxu0 0
  %395 = vmatpush2.bf16.msra.mxu0 %v333
  %396 = vmatprep.subr.bf16.mxu0 0
  %397 = vmatpush2.bf16.msra.mxu0 %v332
  %398 = vmatprep.subr.bf16.mxu0 0
  %399 = vmatpush2.bf16.msra.mxu0 %v331
  %400 = vmatprep.subr.bf16.mxu0 0
  %401 = vmatpush2.bf16.msra.mxu0 %v330
  %402 = vmatprep.mubr.bf16.mxu0 %v179
  %403 = vmatmul.mubr.bf16.gmra.mxu0 %v178
  %v404 = vpop.f32.mrf.mxu0
  %v405 = vadd.f32 0.0, %v404
  %v406 = vpop.f32.mrf.mxu0
  %v407 = vpop.f32.mrf.mxu0
  %v408 = vadd.f32 0.0, %v407
  %v409 = vpop.f32.mrf.mxu0
  %410 = vmatprep.mubr.bf16.mxu0 %v182
  %411 = vmatmul.mubr.bf16.gmra.mxu0 %v181
  %v412 = vpop.f32.mrf.mxu0
  %v413 = vadd.f32 0.0, %v412
  %v414 = vpop.f32.mrf.mxu0
  %v415 = vpop.f32.mrf.mxu0
  %v416 = vadd.f32 0.0, %v415
  %v417 = vpop.f32.mrf.mxu0
  %418 = vmatprep.mubr.bf16.mxu0 %v185
  %419 = vmatmul.mubr.bf16.gmra.mxu0 %v184
  %v420 = vpop.f32.mrf.mxu0
  %v421 = vadd.f32 0.0, %v420
  %v422 = vpop.f32.mrf.mxu0
  %v423 = vpop.f32.mrf.mxu0
  %v424 = vadd.f32 0.0, %v423
  %v425 = vpop.f32.mrf.mxu0
  %426 = vmatprep.mubr.bf16.mxu0 %v188
  %427 = vmatmul.mubr.bf16.gmra.mxu0 %v187
  %v428 = vpop.f32.mrf.mxu0
  %v429 = vadd.f32 0.0, %v428
  %v430 = vpop.f32.mrf.mxu0
  %v431 = vpop.f32.mrf.mxu0
  %v432 = vadd.f32 0.0, %v431
  %v433 = vpop.f32.mrf.mxu0
  %434 = vmatprep.mubr.bf16.mxu0 %v191
  %435 = vmatmul.mubr.bf16.gmra.mxu0 %v190
  %v436 = vpop.f32.mrf.mxu0
  %v437 = vadd.f32 0.0, %v436
  %v438 = vpop.f32.mrf.mxu0
  %v439 = vpop.f32.mrf.mxu0
  %v440 = vadd.f32 0.0, %v439
  %v441 = vpop.f32.mrf.mxu0
  %442 = vmatprep.mubr.bf16.mxu0 %v194
  %443 = vmatmul.mubr.bf16.gmra.mxu0 %v193
  %v444 = vpop.f32.mrf.mxu0
  %v445 = vadd.f32 0.0, %v444
  %v446 = vpop.f32.mrf.mxu0
  %v447 = vpop.f32.mrf.mxu0
  %v448 = vadd.f32 0.0, %v447
  %v449 = vpop.f32.mrf.mxu0
  %450 = vmatprep.mubr.bf16.mxu0 %v197
  %451 = vmatmul.mubr.bf16.gmra.mxu0 %v196
  %v452 = vpop.f32.mrf.mxu0
  %v453 = vadd.f32 0.0, %v452
  %v454 = vpop.f32.mrf.mxu0
  %v455 = vpop.f32.mrf.mxu0
  %v456 = vadd.f32 0.0, %v455
  %v457 = vpop.f32.mrf.mxu0
  %458 = vmatprep.mubr.bf16.mxu0 %v200
  %459 = vmatmul.mubr.bf16.gmra.mxu0 %v199
  %v460 = vpop.f32.mrf.mxu0
  %v461 = vadd.f32 0.0, %v460
  %v462 = vpop.f32.mrf.mxu0
  %v463 = vpop.f32.mrf.mxu0
  %v464 = vadd.f32 0.0, %v463
  %v465 = vpop.f32.mrf.mxu0
  %466 = vdwg.mxu0
  %467 = vmatprep.subr.bf16.mxu0 0
  %468 = vmatpush1.bf16.msra.mxu0 %v345
  %469 = vmatprep.subr.bf16.mxu0 0
  %470 = vmatpush1.bf16.msra.mxu0 %v344
  %471 = vmatprep.subr.bf16.mxu0 0
  %472 = vmatpush1.bf16.msra.mxu0 %v343
  %473 = vmatprep.subr.bf16.mxu0 0
  %474 = vmatpush1.bf16.msra.mxu0 %v342
  %475 = vmatprep.subr.bf16.mxu0 0
  %476 = vmatpush1.bf16.msra.mxu0 %v341
  %477 = vmatprep.subr.bf16.mxu0 0
  %478 = vmatpush1.bf16.msra.mxu0 %v340
  %479 = vmatprep.subr.bf16.mxu0 0
  %480 = vmatpush1.bf16.msra.mxu0 %v339
  %481 = vmatprep.subr.bf16.mxu0 0
  %482 = vmatpush1.bf16.msra.mxu0 %v338
  %483 = vmatprep.subr.bf16.mxu0 0
  %484 = vmatpush2.bf16.msra.mxu0 0
  %485 = vmatprep.subr.bf16.mxu0 0
  %486 = vmatpush2.bf16.msra.mxu0 0
  %487 = vmatprep.subr.bf16.mxu0 0
  %488 = vmatpush2.bf16.msra.mxu0 0
  %489 = vmatprep.subr.bf16.mxu0 0
  %490 = vmatpush2.bf16.msra.mxu0 0
  %491 = vmatprep.subr.bf16.mxu0 0
  %492 = vmatpush2.bf16.msra.mxu0 0
  %493 = vmatprep.subr.bf16.mxu0 0
  %494 = vmatpush2.bf16.msra.mxu0 0
  %495 = vmatprep.subr.bf16.mxu0 0
  %496 = vmatpush2.bf16.msra.mxu0 0
  %497 = vmatprep.subr.bf16.mxu0 0
  %498 = vmatpush2.bf16.msra.mxu0 0
  %499 = vmatprep.mubr.bf16.mxu0 0
  %500 = vmatmul.mubr.bf16.gmra.mxu0 %v180
  %v501 = vpop.f32.mrf.mxu0
  %v502 = vadd.f32 %v405, %v501
  %v503 = vpop.f32.mrf.mxu0
  %v504 = vpop.f32.mrf.mxu0
  %v505 = vadd.f32 %v408, %v504
  %v506 = vpop.f32.mrf.mxu0
  %507 = vmatprep.mubr.bf16.mxu0 0
  %508 = vmatmul.mubr.bf16.gmra.mxu0 %v183
  %v509 = vpop.f32.mrf.mxu0
  %v510 = vadd.f32 %v413, %v509
  %v511 = vpop.f32.mrf.mxu0
  %v512 = vpop.f32.mrf.mxu0
  %v513 = vadd.f32 %v416, %v512
  %v514 = vpop.f32.mrf.mxu0
  %515 = vmatprep.mubr.bf16.mxu0 0
  %516 = vmatmul.mubr.bf16.gmra.mxu0 %v186
  %v517 = vpop.f32.mrf.mxu0
  %v518 = vadd.f32 %v421, %v517
  %v519 = vpop.f32.mrf.mxu0
  %v520 = vpop.f32.mrf.mxu0
  %v521 = vadd.f32 %v424, %v520
  %v522 = vpop.f32.mrf.mxu0
  %523 = vmatprep.mubr.bf16.mxu0 0
  %524 = vmatmul.mubr.bf16.gmra.mxu0 %v189
  %v525 = vpop.f32.mrf.mxu0
  %v526 = vadd.f32 %v429, %v525
  %v527 = vpop.f32.mrf.mxu0
  %v528 = vpop.f32.mrf.mxu0
  %v529 = vadd.f32 %v432, %v528
  %v530 = vpop.f32.mrf.mxu0
  %531 = vmatprep.mubr.bf16.mxu0 0
  %532 = vmatmul.mubr.bf16.gmra.mxu0 %v192
  %v533 = vpop.f32.mrf.mxu0
  %v534 = vadd.f32 %v437, %v533
  %v535 = vpop.f32.mrf.mxu0
  %v536 = vpop.f32.mrf.mxu0
  %v537 = vadd.f32 %v440, %v536
  %v538 = vpop.f32.mrf.mxu0
  %539 = vmatprep.mubr.bf16.mxu0 0
  %540 = vmatmul.mubr.bf16.gmra.mxu0 %v195
  %v541 = vpop.f32.mrf.mxu0
  %v542 = vadd.f32 %v445, %v541
  %v543 = vpop.f32.mrf.mxu0
  %v544 = vpop.f32.mrf.mxu0
  %v545 = vadd.f32 %v448, %v544
  %v546 = vpop.f32.mrf.mxu0
  %547 = vmatprep.mubr.bf16.mxu0 0
  %548 = vmatmul.mubr.bf16.gmra.mxu0 %v198
  %v549 = vpop.f32.mrf.mxu0
  %v550 = vadd.f32 %v453, %v549
  %v551 = vpop.f32.mrf.mxu0
  %v552 = vpop.f32.mrf.mxu0
  %v553 = vadd.f32 %v456, %v552
  %v554 = vpop.f32.mrf.mxu0
  %555 = vmatprep.mubr.bf16.mxu0 0
  %556 = vmatmul.mubr.bf16.gmra.mxu0 %v201
  %v557 = vpop.f32.mrf.mxu0
  %v558 = vadd.f32 %v461, %v557
  %v559 = vpop.f32.mrf.mxu0
  %v560 = vpop.f32.mrf.mxu0
  %v561 = vadd.f32 %v464, %v560
  %v562 = vpop.f32.mrf.mxu0
  %563 = vdwg.mxu0
  %v564 = vld [vmem:[%s2] sm:$0x1]
  %v565 = vlaneseq
  %v566 = vshrl.u32 %v565, 7
  %v567 = vsub.s32 0, %v566
  %v568 = vrot.slane %v564, %v567
  %v569 = vmul.f32 %v502, %v568
  %v570 = vmul.f32 %v505, %v568
  %v571 = vmul.f32 %v510, %v568
  %v572 = vmul.f32 %v513, %v568
  %v573 = vmul.f32 %v518, %v568
  %v574 = vmul.f32 %v521, %v568
  %v575 = vmul.f32 %v526, %v568
  %v576 = vmul.f32 %v529, %v568
  %v577 = vmul.f32 %v534, %v568
  %v578 = vmul.f32 %v537, %v568
  %v579 = vmul.f32 %v542, %v568
  %v580 = vmul.f32 %v545, %v568
  %v581 = vmul.f32 %v550, %v568
  %v582 = vmul.f32 %v553, %v568
  %v583 = vmul.f32 %v558, %v568
  %v584 = vmul.f32 %v561, %v568
  %v585 = vld [vmem:[%s2 + $0x1] sm:$0x1]
  %v586 = vlaneseq
  %v587 = vshrl.u32 %v586, 7
  %v588 = vsub.s32 0, %v587
  %v589 = vrot.slane %v585, %v588
  %v590 = vadd.f32 %v569, %v589
  %v591 = vadd.f32 %v570, %v589
  %v592 = vadd.f32 %v571, %v589
  %v593 = vadd.f32 %v572, %v589
  %v594 = vadd.f32 %v573, %v589
  %v595 = vadd.f32 %v574, %v589
  %v596 = vadd.f32 %v575, %v589
  %v597 = vadd.f32 %v576, %v589
  %v598 = vadd.f32 %v577, %v589
  %v599 = vadd.f32 %v578, %v589
  %v600 = vadd.f32 %v579, %v589
  %v601 = vadd.f32 %v580, %v589
  %v602 = vadd.f32 %v581, %v589
  %v603 = vadd.f32 %v582, %v589
  %v604 = vadd.f32 %v583, %v589
  %v605 = vadd.f32 %v584, %v589
  %v606 = vld [vmem:[%s3] sm:$0xf]
  %v607 = vld [vmem:[%s3 + $0x4] sm:$0xf]
  %v608 = vld [vmem:[%s3 + $0x8] sm:$0xf]
  %v609 = vld [vmem:[%s3 + $0xc] sm:$0xf]
  %v610 = vld [vmem:[%s3 + $0x10] sm:$0xf]
  %v611 = vld [vmem:[%s3 + $0x14] sm:$0xf]
  %v612 = vld [vmem:[%s3 + $0x18] sm:$0xf]
  %v613 = vld [vmem:[%s3 + $0x1c] sm:$0xf]
  %v614 = vld [vmem:[%s3 + $0x20] sm:$0xf]
  %v615 = vld [vmem:[%s3 + $0x24] sm:$0xf]
  %v616 = vld [vmem:[%s3 + $0x28] sm:$0xf]
  %v617 = vld [vmem:[%s3 + $0x2c] sm:$0xf]
  %v618 = vld [vmem:[%s3 + $0x30] sm:$0xf]
  %v619 = vld [vmem:[%s3 + $0x34] sm:$0xf]
  %v620 = vld [vmem:[%s3 + $0x38] sm:$0xf]
  %v621 = vld [vmem:[%s3 + $0x3c] sm:$0xf]
  %v622 = vunpack.c.l.bf16 %v606
  %v623 = vunpack.c.l.bf16 %v607
  %v624 = vunpack.c.l.bf16 %v608
  %v625 = vunpack.c.l.bf16 %v609
  %v626 = vunpack.c.l.bf16 %v610
  %v627 = vunpack.c.l.bf16 %v611
  %v628 = vunpack.c.l.bf16 %v612
  %v629 = vunpack.c.l.bf16 %v613
  %v630 = vunpack.c.l.bf16 %v614
  %v631 = vunpack.c.l.bf16 %v615
  %v632 = vunpack.c.l.bf16 %v616
  %v633 = vunpack.c.l.bf16 %v617
  %v634 = vunpack.c.l.bf16 %v618
  %v635 = vunpack.c.l.bf16 %v619
  %v636 = vunpack.c.l.bf16 %v620
  %v637 = vunpack.c.l.bf16 %v621
  %v638 = vadd.f32 %v590, %v622
  %v639 = vadd.f32 %v591, %v623
  %v640 = vadd.f32 %v592, %v624
  %v641 = vadd.f32 %v593, %v625
  %v642 = vadd.f32 %v594, %v626
  %v643 = vadd.f32 %v595, %v627
  %v644 = vadd.f32 %v596, %v628
  %v645 = vadd.f32 %v597, %v629
  %v646 = vadd.f32 %v598, %v630
  %v647 = vadd.f32 %v599, %v631
  %v648 = vadd.f32 %v600, %v632
  %v649 = vadd.f32 %v601, %v633
  %v650 = vadd.f32 %v602, %v634
  %v651 = vadd.f32 %v603, %v635
  %v652 = vadd.f32 %v604, %v636
  %v653 = vadd.f32 %v605, %v637
  %v654 = vmax.f32 %v638, 0.0
  %v655 = vmax.f32 %v639, 0.0
  %v656 = vmax.f32 %v640, 0.0
  %v657 = vmax.f32 %v641, 0.0
  %v658 = vmax.f32 %v642, 0.0
  %v659 = vmax.f32 %v643, 0.0
  %v660 = vmax.f32 %v644, 0.0
  %v661 = vmax.f32 %v645, 0.0
  %v662 = vmax.f32 %v646, 0.0
  %v663 = vmax.f32 %v647, 0.0
  %v664 = vmax.f32 %v648, 0.0
  %v665 = vmax.f32 %v649, 0.0
  %v666 = vmax.f32 %v650, 0.0
  %v667 = vmax.f32 %v651, 0.0
  %v668 = vmax.f32 %v652, 0.0
  %v669 = vmax.f32 %v653, 0.0
  %v670 = vpack.c.bf16 %v655, %v654
  %v671 = vpack.c.bf16 %v657, %v656
  %v672 = vpack.c.bf16 %v659, %v658
  %v673 = vpack.c.bf16 %v661, %v660
  %v674 = vpack.c.bf16 %v663, %v662
  %v675 = vpack.c.bf16 %v665, %v664
  %v676 = vpack.c.bf16 %v667, %v666
  %v677 = vpack.c.bf16 %v669, %v668
  %v686 = vunpack.c.l.b16 %v670
  %v687 = vunpack.c.h.b16 %v670
  %v688 = vunpack.c.l.b16 %v671
  %v689 = vunpack.c.h.b16 %v671
  %v690 = vunpack.c.l.b16 %v672
  %v691 = vunpack.c.h.b16 %v672
  %v692 = vunpack.c.l.b16 %v673
  %v693 = vunpack.c.h.b16 %v673
  %v694 = vunpack.c.l.b16 %v674
  %v695 = vunpack.c.h.b16 %v674
  %v696 = vunpack.c.l.b16 %v675
  %v697 = vunpack.c.h.b16 %v675
  %v698 = vunpack.c.l.b16 %v676
  %v699 = vunpack.c.h.b16 %v676
  %v700 = vunpack.c.l.b16 %v677
  %v701 = vunpack.c.h.b16 %v677
  %v702 = vpack.c.b16 %v686, %v686
  %v703 = vpack.c.b16 %v687, %v687
  %v704 = vpack.c.b16 %v688, %v688
  %v705 = vpack.c.b16 %v689, %v689
  %v706 = vpack.c.b16 %v690, %v690
  %v707 = vpack.c.b16 %v691, %v691
  %v708 = vpack.c.b16 %v692, %v692
  %v709 = vpack.c.b16 %v693, %v693
  %v710 = vpack.c.b16 %v694, %v694
  %v711 = vpack.c.b16 %v695, %v695
  %v712 = vpack.c.b16 %v696, %v696
  %v713 = vpack.c.b16 %v697, %v697
  %v714 = vpack.c.b16 %v698, %v698
  %v715 = vpack.c.b16 %v699, %v699
  %v716 = vpack.c.b16 %v700, %v700
  %v717 = vpack.c.b16 %v701, %v701
  %vm734 = vcmask 257024
  %735 = vst.msk [vmem:[%s4] sm:$0xf] %vm734, %v702
  %736 = vst.msk [vmem:[%s4 + $0x4] sm:$0xf] %vm734, %v703
  %737 = vst.msk [vmem:[%s4 + $0x8] sm:$0xf] %vm734, %v704
  %738 = vst.msk [vmem:[%s4 + $0xc] sm:$0xf] %vm734, %v705
  %739 = vst.msk [vmem:[%s4 + $0x10] sm:$0xf] %vm734, %v706
  %740 = vst.msk [vmem:[%s4 + $0x14] sm:$0xf] %vm734, %v707
  %741 = vst.msk [vmem:[%s4 + $0x18] sm:$0xf] %vm734, %v708
  %742 = vst.msk [vmem:[%s4 + $0x1c] sm:$0xf] %vm734, %v709
  %743 = vst.msk [vmem:[%s4 + $0x20] sm:$0xf] %vm734, %v710
  %744 = vst.msk [vmem:[%s4 + $0x24] sm:$0xf] %vm734, %v711
  %745 = vst.msk [vmem:[%s4 + $0x28] sm:$0xf] %vm734, %v712
  %746 = vst.msk [vmem:[%s4 + $0x2c] sm:$0xf] %vm734, %v713
  %747 = vst.msk [vmem:[%s4 + $0x30] sm:$0xf] %vm734, %v714
  %748 = vst.msk [vmem:[%s4 + $0x34] sm:$0xf] %vm734, %v715
  %749 = vst.msk [vmem:[%s4 + $0x38] sm:$0xf] %vm734, %v716
  %750 = vst.msk [vmem:[%s4 + $0x3c] sm:$0xf] %vm734, %v717
  // Predicated region
  $region18: #{_lambda_.21} parent=0 // pred_check
    _
  $region19: #{_lambda_.21} parent=0 // pred_check_branch
    %752 = sbr.rel (0) target = $region21
  $region20: #{_lambda_.21} parent=0 // pred_region
    _
  $region21: #{_lambda_.21} parent=0 // pred_fallthru
    _
  // Predicated region
  $region22: #{_lambda_.21} parent=0 // pred_check
    _
  $region23: #{_lambda_.21} parent=0 // pred_check_branch
    %754 = sbr.rel (0) target = $region25
  $region24: #{_lambda_.21} parent=0 // pred_region
    _
  $region25: #{_lambda_.21} parent=0 // pred_fallthru
    _

// kernel: _lambda_.22
$region0: #{_lambda_.22}
  #allocation0 [shape = 'u32[]', space=smem, size = 0x4, offset = 0x4, fixed_abs, tag = 'smem constant byte address 0x4 - core index']
  #allocation1 [shape = 'u32[144,128]{1,0:T(1,128)}', space=vmem, size = 0x12000, scoped, tag = 'internal scratch']
  %s0 = inlined_call_operand.vmem [shape: bf16[32,384], index: 0, kind: input, shape index: {}]
  %s1 = inlined_call_operand.vmem [shape: bf16[384,64], index: 1, kind: input, shape index: {}]
  %s2 = inlined_call_operand.vmem [shape: f32[2,64], index: 2, kind: input, shape index: {}]
  %s3 = inlined_call_operand.vmem [shape: bf16[32,64], index: 3, kind: output, shape index: {}]
  %s4 = sld [smem:[#allocation0]]
  $region22: #{_lambda_.22} parent=0
    _
  %s6 = ssub.s32 1, %s4
  %s7 = scalar_select 0, %s6, %s4
  // Predicated region
  $region2: #{_lambda_.22} parent=0 // pred_check
    _
  $region3: #{_lambda_.22} parent=0 // pred_check_branch
    %9 = sbr.rel (0) target = $region5
  $region4: #{_lambda_.22} parent=0 // pred_region
    _
  $region5: #{_lambda_.22} parent=0 // pred_fallthru
    _
  // Predicated region
  $region6: #{_lambda_.22} parent=0 // pred_check
    _
  $region7: #{_lambda_.22} parent=0 // pred_check_branch
    %11 = sbr.rel (0) target = $region9
  $region8: #{_lambda_.22} parent=0 // pred_region
    _
  $region9: #{_lambda_.22} parent=0 // pred_fallthru
    _
  // Predicated region
  $region10: #{_lambda_.22} parent=0 // pred_check
    _
  $region11: #{_lambda_.22} parent=0 // pred_check_branch
    %13 = sbr.rel (0) target = $region13
  $region12: #{_lambda_.22} parent=0 // pred_region
    _
  $region13: #{_lambda_.22} parent=0 // pred_fallthru
    _
  %v15 = vld [vmem:[%s0] sm:$0xff]
  %v16 = vld [vmem:[%s0 + $0x8] sm:$0xf]
  %v17 = vld [vmem:[%s0 + $0xc] sm:$0xff]
  %v18 = vld [vmem:[%s0 + $0x14] sm:$0xf]
  %v19 = vld [vmem:[%s0 + $0x18] sm:$0xff]
  %v20 = vld [vmem:[%s0 + $0x20] sm:$0xf]
  %v21 = vld [vmem:[%s0 + $0x24] sm:$0xff]
  %v22 = vld [vmem:[%s0 + $0x2c] sm:$0xf]
  %v23 = vld [vmem:[%s1] sm:$0xf]
  %v24 = vld [vmem:[%s1 + $0x4] sm:$0xf]
  %v25 = vld [vmem:[%s1 + $0x8] sm:$0xf]
  %v26 = vld [vmem:[%s1 + $0xc] sm:$0xf]
  %v27 = vld [vmem:[%s1 + $0x10] sm:$0xf]
  %v28 = vld [vmem:[%s1 + $0x14] sm:$0xf]
  %v29 = vld [vmem:[%s1 + $0x18] sm:$0xf]
  %v30 = vld [vmem:[%s1 + $0x1c] sm:$0xf]
  %v31 = vld [vmem:[%s1 + $0x20] sm:$0xf]
  %v32 = vld [vmem:[%s1 + $0x24] sm:$0xf]
  %v33 = vld [vmem:[%s1 + $0x28] sm:$0xf]
  %v34 = vld [vmem:[%s1 + $0x2c] sm:$0xf]
  %v35 = vld [vmem:[%s1 + $0x30] sm:$0xf]
  %v36 = vld [vmem:[%s1 + $0x34] sm:$0xf]
  %v37 = vld [vmem:[%s1 + $0x38] sm:$0xf]
  %v38 = vld [vmem:[%s1 + $0x3c] sm:$0xf]
  %v39 = vld [vmem:[%s1 + $0x40] sm:$0xf]
  %v40 = vld [vmem:[%s1 + $0x44] sm:$0xf]
  %v41 = vld [vmem:[%s1 + $0x48] sm:$0xf]
  %v42 = vld [vmem:[%s1 + $0x4c] sm:$0xf]
  %v43 = vld [vmem:[%s1 + $0x50] sm:$0xf]
  %v44 = vld [vmem:[%s1 + $0x54] sm:$0xf]
  %v45 = vld [vmem:[%s1 + $0x58] sm:$0xf]
  %v46 = vld [vmem:[%s1 + $0x5c] sm:$0xf]
  %v47 = vld [vmem:[%s1 + $0x60] sm:$0xf]
  %v48 = vld [vmem:[%s1 + $0x64] sm:$0xf]
  %v49 = vld [vmem:[%s1 + $0x68] sm:$0xf]
  %v50 = vld [vmem:[%s1 + $0x6c] sm:$0xf]
  %v51 = vld [vmem:[%s1 + $0x70] sm:$0xf]
  %v52 = vld [vmem:[%s1 + $0x74] sm:$0xf]
  %v53 = vld [vmem:[%s1 + $0x78] sm:$0xf]
  %v54 = vld [vmem:[%s1 + $0x7c] sm:$0xf]
  %v55 = vld [vmem:[%s1 + $0x80] sm:$0xf]
  %v56 = vld [vmem:[%s1 + $0x84] sm:$0xf]
  %v57 = vld [vmem:[%s1 + $0x88] sm:$0xf]
  %v58 = vld [vmem:[%s1 + $0x8c] sm:$0xf]
  %v59 = vld [vmem:[%s1 + $0x90] sm:$0xf]
  %v60 = vld [vmem:[%s1 + $0x94] sm:$0xf]
  %v61 = vld [vmem:[%s1 + $0x98] sm:$0xf]
  %v62 = vld [vmem:[%s1 + $0x9c] sm:$0xf]
  %v63 = vld [vmem:[%s1 + $0xa0] sm:$0xf]
  %v64 = vld [vmem:[%s1 + $0xa4] sm:$0xf]
  %v65 = vld [vmem:[%s1 + $0xa8] sm:$0xf]
  %v66 = vld [vmem:[%s1 + $0xac] sm:$0xf]
  %v67 = vld [vmem:[%s1 + $0xb0] sm:$0xf]
  %v68 = vld [vmem:[%s1 + $0xb4] sm:$0xf]
  %v69 = vld [vmem:[%s1 + $0xb8] sm:$0xf]
  %v70 = vld [vmem:[%s1 + $0xbc] sm:$0xf]
  %v79 = vunpack.c.l.b16 %v15
  %v80 = vunpack.c.h.b16 %v15
  %v81 = vunpack.c.l.b16 %v16
  %v82 = vunpack.c.l.b16 %v17
  %v83 = vunpack.c.h.b16 %v17
  %v84 = vunpack.c.l.b16 %v18
  %v85 = vunpack.c.l.b16 %v19
  %v86 = vunpack.c.h.b16 %v19
  %v87 = vunpack.c.l.b16 %v20
  %v88 = vunpack.c.l.b16 %v21
  %v89 = vunpack.c.h.b16 %v21
  %v90 = vunpack.c.l.b16 %v22
  %v91 = vpack.c.b16 %v82, %v79
  %v92 = vpack.c.b16 %v83, %v80
  %v93 = vpack.c.b16 %v84, %v81
  %v94 = vpack.c.b16 %v88, %v85
  %v95 = vpack.c.b16 %v89, %v86
  %v96 = vpack.c.b16 %v90, %v87
  %v151 = vunpack.c.l.b16 %v23
  %v152 = vunpack.c.l.b16 %v24
  %v153 = vunpack.c.l.b16 %v25
  %v154 = vunpack.c.l.b16 %v26
  %v155 = vunpack.c.l.b16 %v27
  %v156 = vunpack.c.l.b16 %v28
  %v157 = vunpack.c.l.b16 %v29
  %v158 = vunpack.c.l.b16 %v30
  %v159 = vunpack.c.l.b16 %v31
  %v160 = vunpack.c.l.b16 %v32
  %v161 = vunpack.c.l.b16 %v33
  %v162 = vunpack.c.l.b16 %v34
  %v163 = vunpack.c.l.b16 %v35
  %v164 = vunpack.c.l.b16 %v36
  %v165 = vunpack.c.l.b16 %v37
  %v166 = vunpack.c.l.b16 %v38
  %v167 = vunpack.c.l.b16 %v39
  %v168 = vunpack.c.l.b16 %v40
  %v169 = vunpack.c.l.b16 %v41
  %v170 = vunpack.c.l.b16 %v42
  %v171 = vunpack.c.l.b16 %v43
  %v172 = vunpack.c.l.b16 %v44
  %v173 = vunpack.c.l.b16 %v45
  %v174 = vunpack.c.l.b16 %v46
  %v175 = vunpack.c.l.b16 %v47
  %v176 = vunpack.c.l.b16 %v48
  %v177 = vunpack.c.l.b16 %v49
  %v178 = vunpack.c.l.b16 %v50
  %v179 = vunpack.c.l.b16 %v51
  %v180 = vunpack.c.l.b16 %v52
  %v181 = vunpack.c.l.b16 %v53
  %v182 = vunpack.c.l.b16 %v54
  %v183 = vunpack.c.l.b16 %v55
  %v184 = vunpack.c.l.b16 %v56
  %v185 = vunpack.c.l.b16 %v57
  %v186 = vunpack.c.l.b16 %v58
  %v187 = vunpack.c.l.b16 %v59
  %v188 = vunpack.c.l.b16 %v60
  %v189 = vunpack.c.l.b16 %v61
  %v190 = vunpack.c.l.b16 %v62
  %v191 = vunpack.c.l.b16 %v63
  %v192 = vunpack.c.l.b16 %v64
  %v193 = vunpack.c.l.b16 %v65
  %v194 = vunpack.c.l.b16 %v66
  %v195 = vunpack.c.l.b16 %v67
  %v196 = vunpack.c.l.b16 %v68
  %v197 = vunpack.c.l.b16 %v69
  %v198 = vunpack.c.l.b16 %v70
  %v199 = vpack.c.b16 %v152, %v151
  %v200 = vpack.c.b16 %v154, %v153
  %v201 = vpack.c.b16 %v156, %v155
  %v202 = vpack.c.b16 %v158, %v157
  %v203 = vpack.c.b16 %v160, %v159
  %v204 = vpack.c.b16 %v162, %v161
  %v205 = vpack.c.b16 %v164, %v163
  %v206 = vpack.c.b16 %v166, %v165
  %v207 = vpack.c.b16 %v168, %v167
  %v208 = vpack.c.b16 %v170, %v169
  %v209 = vpack.c.b16 %v172, %v171
  %v210 = vpack.c.b16 %v174, %v173
  %v211 = vpack.c.b16 %v176, %v175
  %v212 = vpack.c.b16 %v178, %v177
  %v213 = vpack.c.b16 %v180, %v179
  %v214 = vpack.c.b16 %v182, %v181
  %v215 = vpack.c.b16 %v184, %v183
  %v216 = vpack.c.b16 %v186, %v185
  %v217 = vpack.c.b16 %v188, %v187
  %v218 = vpack.c.b16 %v190, %v189
  %v219 = vpack.c.b16 %v192, %v191
  %v220 = vpack.c.b16 %v194, %v193
  %v221 = vpack.c.b16 %v196, %v195
  %v222 = vpack.c.b16 %v198, %v197
  %247 = vmatprep.subr.bf16.mxu0 0
  %248 = vmatpush1.bf16.msra.mxu0 %v206
  %249 = vmatprep.subr.bf16.mxu0 0
  %250 = vmatpush1.bf16.msra.mxu0 %v205
  %251 = vmatprep.subr.bf16.mxu0 0
  %252 = vmatpush1.bf16.msra.mxu0 %v204
  %253 = vmatprep.subr.bf16.mxu0 0
  %254 = vmatpush1.bf16.msra.mxu0 %v203
  %255 = vmatprep.subr.bf16.mxu0 0
  %256 = vmatpush1.bf16.msra.mxu0 %v202
  %257 = vmatprep.subr.bf16.mxu0 0
  %258 = vmatpush1.bf16.msra.mxu0 %v201
  %259 = vmatprep.subr.bf16.mxu0 0
  %260 = vmatpush1.bf16.msra.mxu0 %v200
  %261 = vmatprep.subr.bf16.mxu0 0
  %262 = vmatpush1.bf16.msra.mxu0 %v199
  %263 = vmatprep.subr.bf16.mxu0 0
  %264 = vmatpush2.bf16.msra.mxu0 %v214
  %265 = vmatprep.subr.bf16.mxu0 0
  %266 = vmatpush2.bf16.msra.mxu0 %v213
  %267 = vmatprep.subr.bf16.mxu0 0
  %268 = vmatpush2.bf16.msra.mxu0 %v212
  %269 = vmatprep.subr.bf16.mxu0 0
  %270 = vmatpush2.bf16.msra.mxu0 %v211
  %271 = vmatprep.subr.bf16.mxu0 0
  %272 = vmatpush2.bf16.msra.mxu0 %v210
  %273 = vmatprep.subr.bf16.mxu0 0
  %274 = vmatpush2.bf16.msra.mxu0 %v209
  %275 = vmatprep.subr.bf16.mxu0 0
  %276 = vmatpush2.bf16.msra.mxu0 %v208
  %277 = vmatprep.subr.bf16.mxu0 0
  %278 = vmatpush2.bf16.msra.mxu0 %v207
  %279 = vmatprep.mubr.bf16.mxu0 %v92
  %280 = vmatmul.mubr.bf16.gmra.mxu0 %v91
  %v281 = vpop.f32.mrf.mxu0
  %v282 = vadd.f32 0.0, %v281
  %v283 = vpop.f32.mrf.mxu0
  %v284 = vpop.f32.mrf.mxu0
  %v285 = vadd.f32 0.0, %v284
  %v286 = vpop.f32.mrf.mxu0
  %287 = vmatprep.mubr.bf16.mxu0 %v95
  %288 = vmatmul.mubr.bf16.gmra.mxu0 %v94
  %v289 = vpop.f32.mrf.mxu0
  %v290 = vadd.f32 0.0, %v289
  %v291 = vpop.f32.mrf.mxu0
  %v292 = vpop.f32.mrf.mxu0
  %v293 = vadd.f32 0.0, %v292
  %v294 = vpop.f32.mrf.mxu0
  %295 = vdwg.mxu0
  %296 = vmatprep.subr.bf16.mxu0 0
  %297 = vmatpush1.bf16.msra.mxu0 %v222
  %298 = vmatprep.subr.bf16.mxu0 0
  %299 = vmatpush1.bf16.msra.mxu0 %v221
  %300 = vmatprep.subr.bf16.mxu0 0
  %301 = vmatpush1.bf16.msra.mxu0 %v220
  %302 = vmatprep.subr.bf16.mxu0 0
  %303 = vmatpush1.bf16.msra.mxu0 %v219
  %304 = vmatprep.subr.bf16.mxu0 0
  %305 = vmatpush1.bf16.msra.mxu0 %v218
  %306 = vmatprep.subr.bf16.mxu0 0
  %307 = vmatpush1.bf16.msra.mxu0 %v217
  %308 = vmatprep.subr.bf16.mxu0 0
  %309 = vmatpush1.bf16.msra.mxu0 %v216
  %310 = vmatprep.subr.bf16.mxu0 0
  %311 = vmatpush1.bf16.msra.mxu0 %v215
  %312 = vmatprep.subr.bf16.mxu0 0
  %313 = vmatpush2.bf16.msra.mxu0 0
  %314 = vmatprep.subr.bf16.mxu0 0
  %315 = vmatpush2.bf16.msra.mxu0 0
  %316 = vmatprep.subr.bf16.mxu0 0
  %317 = vmatpush2.bf16.msra.mxu0 0
  %318 = vmatprep.subr.bf16.mxu0 0
  %319 = vmatpush2.bf16.msra.mxu0 0
  %320 = vmatprep.subr.bf16.mxu0 0
  %321 = vmatpush2.bf16.msra.mxu0 0
  %322 = vmatprep.subr.bf16.mxu0 0
  %323 = vmatpush2.bf16.msra.mxu0 0
  %324 = vmatprep.subr.bf16.mxu0 0
  %325 = vmatpush2.bf16.msra.mxu0 0
  %326 = vmatprep.subr.bf16.mxu0 0
  %327 = vmatpush2.bf16.msra.mxu0 0
  %328 = vmatprep.mubr.bf16.mxu0 0
  %329 = vmatmul.mubr.bf16.gmra.mxu0 %v93
  %v330 = vpop.f32.mrf.mxu0
  %v331 = vadd.f32 %v282, %v330
  %v332 = vpop.f32.mrf.mxu0
  %v333 = vpop.f32.mrf.mxu0
  %v334 = vadd.f32 %v285, %v333
  %v335 = vpop.f32.mrf.mxu0
  %336 = vmatprep.mubr.bf16.mxu0 0
  %337 = vmatmul.mubr.bf16.gmra.mxu0 %v96
  %v338 = vpop.f32.mrf.mxu0
  %v339 = vadd.f32 %v290, %v338
  %v340 = vpop.f32.mrf.mxu0
  %v341 = vpop.f32.mrf.mxu0
  %v342 = vadd.f32 %v293, %v341
  %v343 = vpop.f32.mrf.mxu0
  %344 = vdwg.mxu0
  %v345 = vld [vmem:[%s2] sm:$0x1]
  %v346 = vlaneseq
  %v347 = vshrl.u32 %v346, 7
  %v348 = vsub.s32 0, %v347
  %v349 = vrot.slane %v345, %v348
  %v350 = vmul.f32 %v331, %v349
  %v351 = vmul.f32 %v334, %v349
  %v352 = vmul.f32 %v339, %v349
  %v353 = vmul.f32 %v342, %v349
  %v354 = vld [vmem:[%s2 + $0x1] sm:$0x1]
  %v355 = vlaneseq
  %v356 = vshrl.u32 %v355, 7
  %v357 = vsub.s32 0, %v356
  %v358 = vrot.slane %v354, %v357
  %v359 = vadd.f32 %v350, %v358
  %v360 = vadd.f32 %v351, %v358
  %v361 = vadd.f32 %v352, %v358
  %v362 = vadd.f32 %v353, %v358
  %v363 = vmax.f32 %v359, 0.0
  %v364 = vmax.f32 %v360, 0.0
  %v365 = vmax.f32 %v361, 0.0
  %v366 = vmax.f32 %v362, 0.0
  %v367 = vpack.c.bf16 %v364, %v363
  %v368 = vpack.c.bf16 %v366, %v365
  %v371 = vunpack.c.l.b16 %v367
  %v372 = vunpack.c.h.b16 %v367
  %v373 = vunpack.c.l.b16 %v368
  %v374 = vunpack.c.h.b16 %v368
  %v375 = vpack.c.b16 %v371, %v371
  %v376 = vpack.c.b16 %v372, %v372
  %v377 = vpack.c.b16 %v373, %v373
  %v378 = vpack.c.b16 %v374, %v374
  %vm383 = vcmask 519168
  %384 = vst.msk [vmem:[%s3] sm:$0xf] %vm383, %v375
  %385 = vst.msk [vmem:[%s3 + $0x4] sm:$0xf] %vm383, %v376
  %386 = vst.msk [vmem:[%s3 + $0x8] sm:$0xf] %vm383, %v377
  %387 = vst.msk [vmem:[%s3 + $0xc] sm:$0xf] %vm383, %v378
  // Predicated region
  $region14: #{_lambda_.22} parent=0 // pred_check
    _
  $region15: #{_lambda_.22} parent=0 // pred_check_branch
    %389 = sbr.rel (0) target = $region17
  $region16: #{_lambda_.22} parent=0 // pred_region
    _
  $region17: #{_lambda_.22} parent=0 // pred_fallthru
    _
  // Predicated region
  $region18: #{_lambda_.22} parent=0 // pred_check
    _
  $region19: #{_lambda_.22} parent=0 // pred_check_branch
    %391 = sbr.rel (0) target = $region21
  $region20: #{_lambda_.22} parent=0 // pred_region
    _
  $region21: #{_lambda_.22} parent=0 // pred_fallthru
    _

// kernel: _lambda_.23
$region0: #{_lambda_.23}
  #allocation0 [shape = 'u32[]', space=smem, size = 0x4, offset = 0x4, fixed_abs, tag = 'smem constant byte address 0x4 - core index']
  #allocation1 [shape = 'u32[144,128]{1,0:T(1,128)}', space=vmem, size = 0x12000, scoped, tag = 'internal scratch']
  %s0 = inlined_call_operand.vmem [shape: bf16[32,128], index: 0, kind: input, shape index: {}]
  %s1 = inlined_call_operand.vmem [shape: bf16[128,64], index: 1, kind: input, shape index: {}]
  %s2 = inlined_call_operand.vmem [shape: f32[2,64], index: 2, kind: input, shape index: {}]
  %s3 = inlined_call_operand.vmem [shape: bf16[32,64], index: 3, kind: output, shape index: {}]
  %s4 = sld [smem:[#allocation0]]
  $region22: #{_lambda_.23} parent=0
    _
  %s6 = ssub.s32 1, %s4
  %s7 = scalar_select 0, %s6, %s4
  // Predicated region
  $region2: #{_lambda_.23} parent=0 // pred_check
    _
  $region3: #{_lambda_.23} parent=0 // pred_check_branch
    %9 = sbr.rel (0) target = $region5
  $region4: #{_lambda_.23} parent=0 // pred_region
    _
  $region5: #{_lambda_.23} parent=0 // pred_fallthru
    _
  // Predicated region
  $region6: #{_lambda_.23} parent=0 // pred_check
    _
  $region7: #{_lambda_.23} parent=0 // pred_check_branch
    %11 = sbr.rel (0) target = $region9
  $region8: #{_lambda_.23} parent=0 // pred_region
    _
  $region9: #{_lambda_.23} parent=0 // pred_fallthru
    _
  // Predicated region
  $region10: #{_lambda_.23} parent=0 // pred_check
    _
  $region11: #{_lambda_.23} parent=0 // pred_check_branch
    %13 = sbr.rel (0) target = $region13
  $region12: #{_lambda_.23} parent=0 // pred_region
    _
  $region13: #{_lambda_.23} parent=0 // pred_fallthru
    _
  %v15 = vld [vmem:[%s0] sm:$0xf]
  %v16 = vld [vmem:[%s0 + $0x4] sm:$0xf]
  %v17 = vld [vmem:[%s0 + $0x8] sm:$0xf]
  %v18 = vld [vmem:[%s0 + $0xc] sm:$0xf]
  %v19 = vld [vmem:[%s1] sm:$0xf]
  %v20 = vld [vmem:[%s1 + $0x4] sm:$0xf]
  %v21 = vld [vmem:[%s1 + $0x8] sm:$0xf]
  %v22 = vld [vmem:[%s1 + $0xc] sm:$0xf]
  %v23 = vld [vmem:[%s1 + $0x10] sm:$0xf]
  %v24 = vld [vmem:[%s1 + $0x14] sm:$0xf]
  %v25 = vld [vmem:[%s1 + $0x18] sm:$0xf]
  %v26 = vld [vmem:[%s1 + $0x1c] sm:$0xf]
  %v27 = vld [vmem:[%s1 + $0x20] sm:$0xf]
  %v28 = vld [vmem:[%s1 + $0x24] sm:$0xf]
  %v29 = vld [vmem:[%s1 + $0x28] sm:$0xf]
  %v30 = vld [vmem:[%s1 + $0x2c] sm:$0xf]
  %v31 = vld [vmem:[%s1 + $0x30] sm:$0xf]
  %v32 = vld [vmem:[%s1 + $0x34] sm:$0xf]
  %v33 = vld [vmem:[%s1 + $0x38] sm:$0xf]
  %v34 = vld [vmem:[%s1 + $0x3c] sm:$0xf]
  %v39 = vunpack.c.l.b16 %v15
  %v40 = vunpack.c.l.b16 %v16
  %v41 = vunpack.c.l.b16 %v17
  %v42 = vunpack.c.l.b16 %v18
  %v43 = vpack.c.b16 %v40, %v39
  %v44 = vpack.c.b16 %v42, %v41
  %v63 = vunpack.c.l.b16 %v19
  %v64 = vunpack.c.l.b16 %v20
  %v65 = vunpack.c.l.b16 %v21
  %v66 = vunpack.c.l.b16 %v22
  %v67 = vunpack.c.l.b16 %v23
  %v68 = vunpack.c.l.b16 %v24
  %v69 = vunpack.c.l.b16 %v25
  %v70 = vunpack.c.l.b16 %v26
  %v71 = vunpack.c.l.b16 %v27
  %v72 = vunpack.c.l.b16 %v28
  %v73 = vunpack.c.l.b16 %v29
  %v74 = vunpack.c.l.b16 %v30
  %v75 = vunpack.c.l.b16 %v31
  %v76 = vunpack.c.l.b16 %v32
  %v77 = vunpack.c.l.b16 %v33
  %v78 = vunpack.c.l.b16 %v34
  %v79 = vpack.c.b16 %v64, %v63
  %v80 = vpack.c.b16 %v66, %v65
  %v81 = vpack.c.b16 %v68, %v67
  %v82 = vpack.c.b16 %v70, %v69
  %v83 = vpack.c.b16 %v72, %v71
  %v84 = vpack.c.b16 %v74, %v73
  %v85 = vpack.c.b16 %v76, %v75
  %v86 = vpack.c.b16 %v78, %v77
  %95 = vmatprep.subr.bf16.mxu0 0
  %96 = vmatpush1.bf16.msra.mxu0 %v86
  %97 = vmatprep.subr.bf16.mxu0 0
  %98 = vmatpush1.bf16.msra.mxu0 %v85
  %99 = vmatprep.subr.bf16.mxu0 0
  %100 = vmatpush1.bf16.msra.mxu0 %v84
  %101 = vmatprep.subr.bf16.mxu0 0
  %102 = vmatpush1.bf16.msra.mxu0 %v83
  %103 = vmatprep.subr.bf16.mxu0 0
  %104 = vmatpush1.bf16.msra.mxu0 %v82
  %105 = vmatprep.subr.bf16.mxu0 0
  %106 = vmatpush1.bf16.msra.mxu0 %v81
  %107 = vmatprep.subr.bf16.mxu0 0
  %108 = vmatpush1.bf16.msra.mxu0 %v80
  %109 = vmatprep.subr.bf16.mxu0 0
  %110 = vmatpush1.bf16.msra.mxu0 %v79
  %111 = vmatprep.subr.bf16.mxu0 0
  %112 = vmatpush2.bf16.msra.mxu0 0
  %113 = vmatprep.subr.bf16.mxu0 0
  %114 = vmatpush2.bf16.msra.mxu0 0
  %115 = vmatprep.subr.bf16.mxu0 0
  %116 = vmatpush2.bf16.msra.mxu0 0
  %117 = vmatprep.subr.bf16.mxu0 0
  %118 = vmatpush2.bf16.msra.mxu0 0
  %119 = vmatprep.subr.bf16.mxu0 0
  %120 = vmatpush2.bf16.msra.mxu0 0
  %121 = vmatprep.subr.bf16.mxu0 0
  %122 = vmatpush2.bf16.msra.mxu0 0
  %123 = vmatprep.subr.bf16.mxu0 0
  %124 = vmatpush2.bf16.msra.mxu0 0
  %125 = vmatprep.subr.bf16.mxu0 0
  %126 = vmatpush2.bf16.msra.mxu0 0
  %127 = vmatprep.mubr.bf16.mxu0 0
  %128 = vmatmul.mubr.bf16.gmra.mxu0 %v43
  %v129 = vpop.f32.mrf.mxu0
  %v130 = vadd.f32 0.0, %v129
  %v131 = vpop.f32.mrf.mxu0
  %v132 = vpop.f32.mrf.mxu0
  %v133 = vadd.f32 0.0, %v132
  %v134 = vpop.f32.mrf.mxu0
  %135 = vmatprep.mubr.bf16.mxu0 0
  %136 = vmatmul.mubr.bf16.gmra.mxu0 %v44
  %v137 = vpop.f32.mrf.mxu0
  %v138 = vadd.f32 0.0, %v137
  %v139 = vpop.f32.mrf.mxu0
  %v140 = vpop.f32.mrf.mxu0
  %v141 = vadd.f32 0.0, %v140
  %v142 = vpop.f32.mrf.mxu0
  %143 = vdwg.mxu0
  %v144 = vld [vmem:[%s2] sm:$0x1]
  %v145 = vlaneseq
  %v146 = vshrl.u32 %v145, 7
  %v147 = vsub.s32 0, %v146
  %v148 = vrot.slane %v144, %v147
  %v149 = vmul.f32 %v130, %v148
  %v150 = vmul.f32 %v133, %v148
  %v151 = vmul.f32 %v138, %v148
  %v152 = vmul.f32 %v141, %v148
  %v153 = vld [vmem:[%s2 + $0x1] sm:$0x1]
  %v154 = vlaneseq
  %v155 = vshrl.u32 %v154, 7
  %v156 = vsub.s32 0, %v155
  %v157 = vrot.slane %v153, %v156
  %v158 = vadd.f32 %v149, %v157
  %v159 = vadd.f32 %v150, %v157
  %v160 = vadd.f32 %v151, %v157
  %v161 = vadd.f32 %v152, %v157
  %v162 = vpack.c.bf16 %v159, %v158
  %v163 = vpack.c.bf16 %v161, %v160
  %v166 = vunpack.c.l.b16 %v162
  %v167 = vunpack.c.h.b16 %v162
  %v168 = vunpack.c.l.b16 %v163
  %v169 = vunpack.c.h.b16 %v163
  %v170 = vpack.c.b16 %v166, %v166
  %v171 = vpack.c.b16 %v167, %v167
  %v172 = vpack.c.b16 %v168, %v168
  %v173 = vpack.c.b16 %v169, %v169
  %vm178 = vcmask 519168
  %179 = vst.msk [vmem:[%s3] sm:$0xf] %vm178, %v170
  %180 = vst.msk [vmem:[%s3 + $0x4] sm:$0xf] %vm178, %v171
  %181 = vst.msk [vmem:[%s3 + $0x8] sm:$0xf] %vm178, %v172
  %182 = vst.msk [vmem:[%s3 + $0xc] sm:$0xf] %vm178, %v173
  // Predicated region
  $region14: #{_lambda_.23} parent=0 // pred_check
    _
  $region15: #{_lambda_.23} parent=0 // pred_check_branch
    %184 = sbr.rel (0) target = $region17
  $region16: #{_lambda_.23} parent=0 // pred_region
    _
  $region17: #{_lambda_.23} parent=0 // pred_fallthru
    _
  // Predicated region
  $region18: #{_lambda_.23} parent=0 // pred_check
    _
  $region19: #{_lambda_.23} parent=0 // pred_check_branch
    %186 = sbr.rel (0) target = $region21
  $region20: #{_lambda_.23} parent=0 // pred_region
    _
  $region21: #{_lambda_.23} parent=0 // pred_fallthru
    _

// kernel: _lambda_.24
$region0: #{_lambda_.24}
  #allocation0 [shape = 'u32[]', space=smem, size = 0x4, offset = 0x4, fixed_abs, tag = 'smem constant byte address 0x4 - core index']
  #allocation1 [shape = 'u32[144,128]{1,0:T(1,128)}', space=vmem, size = 0x12000, scoped, tag = 'internal scratch']
  %s0 = inlined_call_operand.vmem [shape: bf16[32,640], index: 0, kind: input, shape index: {}]
  %s1 = inlined_call_operand.vmem [shape: bf16[640,64], index: 1, kind: input, shape index: {}]
  %s2 = inlined_call_operand.vmem [shape: f32[2,64], index: 2, kind: input, shape index: {}]
  %s3 = inlined_call_operand.vmem [shape: bf16[32,64], index: 3, kind: input, shape index: {}]
  %s4 = inlined_call_operand.vmem [shape: bf16[32,64], index: 4, kind: output, shape index: {}]
  %s5 = sld [smem:[#allocation0]]
  $region26: #{_lambda_.24} parent=0
    _
  %s7 = ssub.s32 1, %s5
  %s8 = scalar_select 0, %s7, %s5
  // Predicated region
  $region2: #{_lambda_.24} parent=0 // pred_check
    _
  $region3: #{_lambda_.24} parent=0 // pred_check_branch
    %10 = sbr.rel (0) target = $region5
  $region4: #{_lambda_.24} parent=0 // pred_region
    _
  $region5: #{_lambda_.24} parent=0 // pred_fallthru
    _
  // Predicated region
  $region6: #{_lambda_.24} parent=0 // pred_check
    _
  $region7: #{_lambda_.24} parent=0 // pred_check_branch
    %12 = sbr.rel (0) target = $region9
  $region8: #{_lambda_.24} parent=0 // pred_region
    _
  $region9: #{_lambda_.24} parent=0 // pred_fallthru
    _
  // Predicated region
  $region10: #{_lambda_.24} parent=0 // pred_check
    _
  $region11: #{_lambda_.24} parent=0 // pred_check_branch
    %14 = sbr.rel (0) target = $region13
  $region12: #{_lambda_.24} parent=0 // pred_region
    _
  $region13: #{_lambda_.24} parent=0 // pred_fallthru
    _
  // Predicated region
  $region14: #{_lambda_.24} parent=0 // pred_check
    _
  $region15: #{_lambda_.24} parent=0 // pred_check_branch
    %16 = sbr.rel (0) target = $region17
  $region16: #{_lambda_.24} parent=0 // pred_region
    _
  $region17: #{_lambda_.24} parent=0 // pred_fallthru
    _
  %v18 = vld [vmem:[%s0] sm:$0xff]
  %v19 = vld [vmem:[%s0 + $0x8] sm:$0xff]
  %v20 = vld [vmem:[%s0 + $0x10] sm:$0xf]
  %v21 = vld [vmem:[%s0 + $0x14] sm:$0xff]
  %v22 = vld [vmem:[%s0 + $0x1c] sm:$0xff]
  %v23 = vld [vmem:[%s0 + $0x24] sm:$0xf]
  %v24 = vld [vmem:[%s0 + $0x28] sm:$0xff]
  %v25 = vld [vmem:[%s0 + $0x30] sm:$0xff]
  %v26 = vld [vmem:[%s0 + $0x38] sm:$0xf]
  %v27 = vld [vmem:[%s0 + $0x3c] sm:$0xff]
  %v28 = vld [vmem:[%s0 + $0x44] sm:$0xff]
  %v29 = vld [vmem:[%s0 + $0x4c] sm:$0xf]
  %v30 = vld [vmem:[%s1] sm:$0xf]
  %v31 = vld [vmem:[%s1 + $0x4] sm:$0xf]
  %v32 = vld [vmem:[%s1 + $0x8] sm:$0xf]
  %v33 = vld [vmem:[%s1 + $0xc] sm:$0xf]
  %v34 = vld [vmem:[%s1 + $0x10] sm:$0xf]
  %v35 = vld [vmem:[%s1 + $0x14] sm:$0xf]
  %v36 = vld [vmem:[%s1 + $0x18] sm:$0xf]
  %v37 = vld [vmem:[%s1 + $0x1c] sm:$0xf]
  %v38 = vld [vmem:[%s1 + $0x20] sm:$0xf]
  %v39 = vld [vmem:[%s1 + $0x24] sm:$0xf]
  %v40 = vld [vmem:[%s1 + $0x28] sm:$0xf]
  %v41 = vld [vmem:[%s1 + $0x2c] sm:$0xf]
  %v42 = vld [vmem:[%s1 + $0x30] sm:$0xf]
  %v43 = vld [vmem:[%s1 + $0x34] sm:$0xf]
  %v44 = vld [vmem:[%s1 + $0x38] sm:$0xf]
  %v45 = vld [vmem:[%s1 + $0x3c] sm:$0xf]
  %v46 = vld [vmem:[%s1 + $0x40] sm:$0xf]
  %v47 = vld [vmem:[%s1 + $0x44] sm:$0xf]
  %v48 = vld [vmem:[%s1 + $0x48] sm:$0xf]
  %v49 = vld [vmem:[%s1 + $0x4c] sm:$0xf]
  %v50 = vld [vmem:[%s1 + $0x50] sm:$0xf]
  %v51 = vld [vmem:[%s1 + $0x54] sm:$0xf]
  %v52 = vld [vmem:[%s1 + $0x58] sm:$0xf]
  %v53 = vld [vmem:[%s1 + $0x5c] sm:$0xf]
  %v54 = vld [vmem:[%s1 + $0x60] sm:$0xf]
  %v55 = vld [vmem:[%s1 + $0x64] sm:$0xf]
  %v56 = vld [vmem:[%s1 + $0x68] sm:$0xf]
  %v57 = vld [vmem:[%s1 + $0x6c] sm:$0xf]
  %v58 = vld [vmem:[%s1 + $0x70] sm:$0xf]
  %v59 = vld [vmem:[%s1 + $0x74] sm:$0xf]
  %v60 = vld [vmem:[%s1 + $0x78] sm:$0xf]
  %v61 = vld [vmem:[%s1 + $0x7c] sm:$0xf]
  %v62 = vld [vmem:[%s1 + $0x80] sm:$0xf]
  %v63 = vld [vmem:[%s1 + $0x84] sm:$0xf]
  %v64 = vld [vmem:[%s1 + $0x88] sm:$0xf]
  %v65 = vld [vmem:[%s1 + $0x8c] sm:$0xf]
  %v66 = vld [vmem:[%s1 + $0x90] sm:$0xf]
  %v67 = vld [vmem:[%s1 + $0x94] sm:$0xf]
  %v68 = vld [vmem:[%s1 + $0x98] sm:$0xf]
  %v69 = vld [vmem:[%s1 + $0x9c] sm:$0xf]
  %v70 = vld [vmem:[%s1 + $0xa0] sm:$0xf]
  %v71 = vld [vmem:[%s1 + $0xa4] sm:$0xf]
  %v72 = vld [vmem:[%s1 + $0xa8] sm:$0xf]
  %v73 = vld [vmem:[%s1 + $0xac] sm:$0xf]
  %v74 = vld [vmem:[%s1 + $0xb0] sm:$0xf]
  %v75 = vld [vmem:[%s1 + $0xb4] sm:$0xf]
  %v76 = vld [vmem:[%s1 + $0xb8] sm:$0xf]
  %v77 = vld [vmem:[%s1 + $0xbc] sm:$0xf]
  %v78 = vld [vmem:[%s1 + $0xc0] sm:$0xf]
  %v79 = vld [vmem:[%s1 + $0xc4] sm:$0xf]
  %v80 = vld [vmem:[%s1 + $0xc8] sm:$0xf]
  %v81 = vld [vmem:[%s1 + $0xcc] sm:$0xf]
  %v82 = vld [vmem:[%s1 + $0xd0] sm:$0xf]
  %v83 = vld [vmem:[%s1 + $0xd4] sm:$0xf]
  %v84 = vld [vmem:[%s1 + $0xd8] sm:$0xf]
  %v85 = vld [vmem:[%s1 + $0xdc] sm:$0xf]
  %v86 = vld [vmem:[%s1 + $0xe0] sm:$0xf]
  %v87 = vld [vmem:[%s1 + $0xe4] sm:$0xf]
  %v88 = vld [vmem:[%s1 + $0xe8] sm:$0xf]
  %v89 = vld [vmem:[%s1 + $0xec] sm:$0xf]
  %v90 = vld [vmem:[%s1 + $0xf0] sm:$0xf]
  %v91 = vld [vmem:[%s1 + $0xf4] sm:$0xf]
  %v92 = vld [vmem:[%s1 + $0xf8] sm:$0xf]
  %v93 = vld [vmem:[%s1 + $0xfc] sm:$0xf]
  %v94 = vld [vmem:[%s1 + $0x100] sm:$0xf]
  %v95 = vld [vmem:[%s1 + $0x104] sm:$0xf]
  %v96 = vld [vmem:[%s1 + $0x108] sm:$0xf]
  %v97 = vld [vmem:[%s1 + $0x10c] sm:$0xf]
  %v98 = vld [vmem:[%s1 + $0x110] sm:$0xf]
  %v99 = vld [vmem:[%s1 + $0x114] sm:$0xf]
  %v100 = vld [vmem:[%s1 + $0x118] sm:$0xf]
  %v101 = vld [vmem:[%s1 + $0x11c] sm:$0xf]
  %v102 = vld [vmem:[%s1 + $0x120] sm:$0xf]
  %v103 = vld [vmem:[%s1 + $0x124] sm:$0xf]
  %v104 = vld [vmem:[%s1 + $0x128] sm:$0xf]
  %v105 = vld [vmem:[%s1 + $0x12c] sm:$0xf]
  %v106 = vld [vmem:[%s1 + $0x130] sm:$0xf]
  %v107 = vld [vmem:[%s1 + $0x134] sm:$0xf]
  %v108 = vld [vmem:[%s1 + $0x138] sm:$0xf]
  %v109 = vld [vmem:[%s1 + $0x13c] sm:$0xf]
  %v122 = vunpack.c.l.b16 %v18
  %v123 = vunpack.c.h.b16 %v18
  %v124 = vunpack.c.l.b16 %v19
  %v125 = vunpack.c.h.b16 %v19
  %v126 = vunpack.c.l.b16 %v20
  %v127 = vunpack.c.l.b16 %v21
  %v128 = vunpack.c.h.b16 %v21
  %v129 = vunpack.c.l.b16 %v22
  %v130 = vunpack.c.h.b16 %v22
  %v131 = vunpack.c.l.b16 %v23
  %v132 = vunpack.c.l.b16 %v24
  %v133 = vunpack.c.h.b16 %v24
  %v134 = vunpack.c.l.b16 %v25
  %v135 = vunpack.c.h.b16 %v25
  %v136 = vunpack.c.l.b16 %v26
  %v137 = vunpack.c.l.b16 %v27
  %v138 = vunpack.c.h.b16 %v27
  %v139 = vunpack.c.l.b16 %v28
  %v140 = vunpack.c.h.b16 %v28
  %v141 = vunpack.c.l.b16 %v29
  %v142 = vpack.c.b16 %v127, %v122
  %v143 = vpack.c.b16 %v128, %v123
  %v144 = vpack.c.b16 %v129, %v124
  %v145 = vpack.c.b16 %v130, %v125
  %v146 = vpack.c.b16 %v131, %v126
  %v147 = vpack.c.b16 %v137, %v132
  %v148 = vpack.c.b16 %v138, %v133
  %v149 = vpack.c.b16 %v139, %v134
  %v150 = vpack.c.b16 %v140, %v135
  %v151 = vpack.c.b16 %v141, %v136
  %v242 = vunpack.c.l.b16 %v30
  %v243 = vunpack.c.l.b16 %v31
  %v244 = vunpack.c.l.b16 %v32
  %v245 = vunpack.c.l.b16 %v33
  %v246 = vunpack.c.l.b16 %v34
  %v247 = vunpack.c.l.b16 %v35
  %v248 = vunpack.c.l.b16 %v36
  %v249 = vunpack.c.l.b16 %v37
  %v250 = vunpack.c.l.b16 %v38
  %v251 = vunpack.c.l.b16 %v39
  %v252 = vunpack.c.l.b16 %v40
  %v253 = vunpack.c.l.b16 %v41
  %v254 = vunpack.c.l.b16 %v42
  %v255 = vunpack.c.l.b16 %v43
  %v256 = vunpack.c.l.b16 %v44
  %v257 = vunpack.c.l.b16 %v45
  %v258 = vunpack.c.l.b16 %v46
  %v259 = vunpack.c.l.b16 %v47
  %v260 = vunpack.c.l.b16 %v48
  %v261 = vunpack.c.l.b16 %v49
  %v262 = vunpack.c.l.b16 %v50
  %v263 = vunpack.c.l.b16 %v51
  %v264 = vunpack.c.l.b16 %v52
  %v265 = vunpack.c.l.b16 %v53
  %v266 = vunpack.c.l.b16 %v54
  %v267 = vunpack.c.l.b16 %v55
  %v268 = vunpack.c.l.b16 %v56
  %v269 = vunpack.c.l.b16 %v57
  %v270 = vunpack.c.l.b16 %v58
  %v271 = vunpack.c.l.b16 %v59
  %v272 = vunpack.c.l.b16 %v60
  %v273 = vunpack.c.l.b16 %v61
  %v274 = vunpack.c.l.b16 %v62
  %v275 = vunpack.c.l.b16 %v63
  %v276 = vunpack.c.l.b16 %v64
  %v277 = vunpack.c.l.b16 %v65
  %v278 = vunpack.c.l.b16 %v66
  %v279 = vunpack.c.l.b16 %v67
  %v280 = vunpack.c.l.b16 %v68
  %v281 = vunpack.c.l.b16 %v69
  %v282 = vunpack.c.l.b16 %v70
  %v283 = vunpack.c.l.b16 %v71
  %v284 = vunpack.c.l.b16 %v72
  %v285 = vunpack.c.l.b16 %v73
  %v286 = vunpack.c.l.b16 %v74
  %v287 = vunpack.c.l.b16 %v75
  %v288 = vunpack.c.l.b16 %v76
  %v289 = vunpack.c.l.b16 %v77
  %v290 = vunpack.c.l.b16 %v78
  %v291 = vunpack.c.l.b16 %v79
  %v292 = vunpack.c.l.b16 %v80
  %v293 = vunpack.c.l.b16 %v81
  %v294 = vunpack.c.l.b16 %v82
  %v295 = vunpack.c.l.b16 %v83
  %v296 = vunpack.c.l.b16 %v84
  %v297 = vunpack.c.l.b16 %v85
  %v298 = vunpack.c.l.b16 %v86
  %v299 = vunpack.c.l.b16 %v87
  %v300 = vunpack.c.l.b16 %v88
  %v301 = vunpack.c.l.b16 %v89
  %v302 = vunpack.c.l.b16 %v90
  %v303 = vunpack.c.l.b16 %v91
  %v304 = vunpack.c.l.b16 %v92
  %v305 = vunpack.c.l.b16 %v93
  %v306 = vunpack.c.l.b16 %v94
  %v307 = vunpack.c.l.b16 %v95
  %v308 = vunpack.c.l.b16 %v96
  %v309 = vunpack.c.l.b16 %v97
  %v310 = vunpack.c.l.b16 %v98
  %v311 = vunpack.c.l.b16 %v99
  %v312 = vunpack.c.l.b16 %v100
  %v313 = vunpack.c.l.b16 %v101
  %v314 = vunpack.c.l.b16 %v102
  %v315 = vunpack.c.l.b16 %v103
  %v316 = vunpack.c.l.b16 %v104
  %v317 = vunpack.c.l.b16 %v105
  %v318 = vunpack.c.l.b16 %v106
  %v319 = vunpack.c.l.b16 %v107
  %v320 = vunpack.c.l.b16 %v108
  %v321 = vunpack.c.l.b16 %v109
  %v322 = vpack.c.b16 %v243, %v242
  %v323 = vpack.c.b16 %v245, %v244
  %v324 = vpack.c.b16 %v247, %v246
  %v325 = vpack.c.b16 %v249, %v248
  %v326 = vpack.c.b16 %v251, %v250
  %v327 = vpack.c.b16 %v253, %v252
  %v328 = vpack.c.b16 %v255, %v254
  %v329 = vpack.c.b16 %v257, %v256
  %v330 = vpack.c.b16 %v259, %v258
  %v331 = vpack.c.b16 %v261, %v260
  %v332 = vpack.c.b16 %v263, %v262
  %v333 = vpack.c.b16 %v265, %v264
  %v334 = vpack.c.b16 %v267, %v266
  %v335 = vpack.c.b16 %v269, %v268
  %v336 = vpack.c.b16 %v271, %v270
  %v337 = vpack.c.b16 %v273, %v272
  %v338 = vpack.c.b16 %v275, %v274
  %v339 = vpack.c.b16 %v277, %v276
  %v340 = vpack.c.b16 %v279, %v278
  %v341 = vpack.c.b16 %v281, %v280
  %v342 = vpack.c.b16 %v283, %v282
  %v343 = vpack.c.b16 %v285, %v284
  %v344 = vpack.c.b16 %v287, %v286
  %v345 = vpack.c.b16 %v289, %v288
  %v346 = vpack.c.b16 %v291, %v290
  %v347 = vpack.c.b16 %v293, %v292
  %v348 = vpack.c.b16 %v295, %v294
  %v349 = vpack.c.b16 %v297, %v296
  %v350 = vpack.c.b16 %v299, %v298
  %v351 = vpack.c.b16 %v301, %v300
  %v352 = vpack.c.b16 %v303, %v302
  %v353 = vpack.c.b16 %v305, %v304
  %v354 = vpack.c.b16 %v307, %v306
  %v355 = vpack.c.b16 %v309, %v308
  %v356 = vpack.c.b16 %v311, %v310
  %v357 = vpack.c.b16 %v313, %v312
  %v358 = vpack.c.b16 %v315, %v314
  %v359 = vpack.c.b16 %v317, %v316
  %v360 = vpack.c.b16 %v319, %v318
  %v361 = vpack.c.b16 %v321, %v320
  %402 = vmatprep.subr.bf16.mxu0 0
  %403 = vmatpush1.bf16.msra.mxu0 %v329
  %404 = vmatprep.subr.bf16.mxu0 0
  %405 = vmatpush1.bf16.msra.mxu0 %v328
  %406 = vmatprep.subr.bf16.mxu0 0
  %407 = vmatpush1.bf16.msra.mxu0 %v327
  %408 = vmatprep.subr.bf16.mxu0 0
  %409 = vmatpush1.bf16.msra.mxu0 %v326
  %410 = vmatprep.subr.bf16.mxu0 0
  %411 = vmatpush1.bf16.msra.mxu0 %v325
  %412 = vmatprep.subr.bf16.mxu0 0
  %413 = vmatpush1.bf16.msra.mxu0 %v324
  %414 = vmatprep.subr.bf16.mxu0 0
  %415 = vmatpush1.bf16.msra.mxu0 %v323
  %416 = vmatprep.subr.bf16.mxu0 0
  %417 = vmatpush1.bf16.msra.mxu0 %v322
  %418 = vmatprep.subr.bf16.mxu0 0
  %419 = vmatpush2.bf16.msra.mxu0 %v337
  %420 = vmatprep.subr.bf16.mxu0 0
  %421 = vmatpush2.bf16.msra.mxu0 %v336
  %422 = vmatprep.subr.bf16.mxu0 0
  %423 = vmatpush2.bf16.msra.mxu0 %v335
  %424 = vmatprep.subr.bf16.mxu0 0
  %425 = vmatpush2.bf16.msra.mxu0 %v334
  %426 = vmatprep.subr.bf16.mxu0 0
  %427 = vmatpush2.bf16.msra.mxu0 %v333
  %428 = vmatprep.subr.bf16.mxu0 0
  %429 = vmatpush2.bf16.msra.mxu0 %v332
  %430 = vmatprep.subr.bf16.mxu0 0
  %431 = vmatpush2.bf16.msra.mxu0 %v331
  %432 = vmatprep.subr.bf16.mxu0 0
  %433 = vmatpush2.bf16.msra.mxu0 %v330
  %434 = vmatprep.mubr.bf16.mxu0 %v143
  %435 = vmatmul.mubr.bf16.gmra.mxu0 %v142
  %v436 = vpop.f32.mrf.mxu0
  %v437 = vadd.f32 0.0, %v436
  %v438 = vpop.f32.mrf.mxu0
  %v439 = vpop.f32.mrf.mxu0
  %v440 = vadd.f32 0.0, %v439
  %v441 = vpop.f32.mrf.mxu0
  %442 = vmatprep.mubr.bf16.mxu0 %v148
  %443 = vmatmul.mubr.bf16.gmra.mxu0 %v147
  %v444 = vpop.f32.mrf.mxu0
  %v445 = vadd.f32 0.0, %v444
  %v446 = vpop.f32.mrf.mxu0
  %v447 = vpop.f32.mrf.mxu0
  %v448 = vadd.f32 0.0, %v447
  %v449 = vpop.f32.mrf.mxu0
  %450 = vdwg.mxu0
  %451 = vmatprep.subr.bf16.mxu0 0
  %452 = vmatpush1.bf16.msra.mxu0 %v345
  %453 = vmatprep.subr.bf16.mxu0 0
  %454 = vmatpush1.bf16.msra.mxu0 %v344
  %455 = vmatprep.subr.bf16.mxu0 0
  %456 = vmatpush1.bf16.msra.mxu0 %v343
  %457 = vmatprep.subr.bf16.mxu0 0
  %458 = vmatpush1.bf16.msra.mxu0 %v342
  %459 = vmatprep.subr.bf16.mxu0 0
  %460 = vmatpush1.bf16.msra.mxu0 %v341
  %461 = vmatprep.subr.bf16.mxu0 0
  %462 = vmatpush1.bf16.msra.mxu0 %v340
  %463 = vmatprep.subr.bf16.mxu0 0
  %464 = vmatpush1.bf16.msra.mxu0 %v339
  %465 = vmatprep.subr.bf16.mxu0 0
  %466 = vmatpush1.bf16.msra.mxu0 %v338
  %467 = vmatprep.subr.bf16.mxu0 0
  %468 = vmatpush2.bf16.msra.mxu0 %v353
  %469 = vmatprep.subr.bf16.mxu0 0
  %470 = vmatpush2.bf16.msra.mxu0 %v352
  %471 = vmatprep.subr.bf16.mxu0 0
  %472 = vmatpush2.bf16.msra.mxu0 %v351
  %473 = vmatprep.subr.bf16.mxu0 0
  %474 = vmatpush2.bf16.msra.mxu0 %v350
  %475 = vmatprep.subr.bf16.mxu0 0
  %476 = vmatpush2.bf16.msra.mxu0 %v349
  %477 = vmatprep.subr.bf16.mxu0 0
  %478 = vmatpush2.bf16.msra.mxu0 %v348
  %479 = vmatprep.subr.bf16.mxu0 0
  %480 = vmatpush2.bf16.msra.mxu0 %v347
  %481 = vmatprep.subr.bf16.mxu0 0
  %482 = vmatpush2.bf16.msra.mxu0 %v346
  %483 = vmatprep.mubr.bf16.mxu0 %v145
  %484 = vmatmul.mubr.bf16.gmra.mxu0 %v144
  %v485 = vpop.f32.mrf.mxu0
  %v486 = vadd.f32 %v437, %v485
  %v487 = vpop.f32.mrf.mxu0
  %v488 = vpop.f32.mrf.mxu0
  %v489 = vadd.f32 %v440, %v488
  %v490 = vpop.f32.mrf.mxu0
  %491 = vmatprep.mubr.bf16.mxu0 %v150
  %492 = vmatmul.mubr.bf16.gmra.mxu0 %v149
  %v493 = vpop.f32.mrf.mxu0
  %v494 = vadd.f32 %v445, %v493
  %v495 = vpop.f32.mrf.mxu0
  %v496 = vpop.f32.mrf.mxu0
  %v497 = vadd.f32 %v448, %v496
  %v498 = vpop.f32.mrf.mxu0
  %499 = vdwg.mxu0
  %500 = vmatprep.subr.bf16.mxu0 0
  %501 = vmatpush1.bf16.msra.mxu0 %v361
  %502 = vmatprep.subr.bf16.mxu0 0
  %503 = vmatpush1.bf16.msra.mxu0 %v360
  %504 = vmatprep.subr.bf16.mxu0 0
  %505 = vmatpush1.bf16.msra.mxu0 %v359
  %506 = vmatprep.subr.bf16.mxu0 0
  %507 = vmatpush1.bf16.msra.mxu0 %v358
  %508 = vmatprep.subr.bf16.mxu0 0
  %509 = vmatpush1.bf16.msra.mxu0 %v357
  %510 = vmatprep.subr.bf16.mxu0 0
  %511 = vmatpush1.bf16.msra.mxu0 %v356
  %512 = vmatprep.subr.bf16.mxu0 0
  %513 = vmatpush1.bf16.msra.mxu0 %v355
  %514 = vmatprep.subr.bf16.mxu0 0
  %515 = vmatpush1.bf16.msra.mxu0 %v354
  %516 = vmatprep.subr.bf16.mxu0 0
  %517 = vmatpush2.bf16.msra.mxu0 0
  %518 = vmatprep.subr.bf16.mxu0 0
  %519 = vmatpush2.bf16.msra.mxu0 0
  %520 = vmatprep.subr.bf16.mxu0 0
  %521 = vmatpush2.bf16.msra.mxu0 0
  %522 = vmatprep.subr.bf16.mxu0 0
  %523 = vmatpush2.bf16.msra.mxu0 0
  %524 = vmatprep.subr.bf16.mxu0 0
  %525 = vmatpush2.bf16.msra.mxu0 0
  %526 = vmatprep.subr.bf16.mxu0 0
  %527 = vmatpush2.bf16.msra.mxu0 0
  %528 = vmatprep.subr.bf16.mxu0 0
  %529 = vmatpush2.bf16.msra.mxu0 0
  %530 = vmatprep.subr.bf16.mxu0 0
  %531 = vmatpush2.bf16.msra.mxu0 0
  %532 = vmatprep.mubr.bf16.mxu0 0
  %533 = vmatmul.mubr.bf16.gmra.mxu0 %v146
  %v534 = vpop.f32.mrf.mxu0
  %v535 = vadd.f32 %v486, %v534
  %v536 = vpop.f32.mrf.mxu0
  %v537 = vpop.f32.mrf.mxu0
  %v538 = vadd.f32 %v489, %v537
  %v539 = vpop.f32.mrf.mxu0
  %540 = vmatprep.mubr.bf16.mxu0 0
  %541 = vmatmul.mubr.bf16.gmra.mxu0 %v151
  %v542 = vpop.f32.mrf.mxu0
  %v543 = vadd.f32 %v494, %v542
  %v544 = vpop.f32.mrf.mxu0
  %v545 = vpop.f32.mrf.mxu0
  %v546 = vadd.f32 %v497, %v545
  %v547 = vpop.f32.mrf.mxu0
  %548 = vdwg.mxu0
  %v549 = vld [vmem:[%s2] sm:$0x1]
  %v550 = vlaneseq
  %v551 = vshrl.u32 %v550, 7
  %v552 = vsub.s32 0, %v551
  %v553 = vrot.slane %v549, %v552
  %v554 = vmul.f32 %v535, %v553
  %v555 = vmul.f32 %v538, %v553
  %v556 = vmul.f32 %v543, %v553
  %v557 = vmul.f32 %v546, %v553
  %v558 = vld [vmem:[%s2 + $0x1] sm:$0x1]
  %v559 = vlaneseq
  %v560 = vshrl.u32 %v559, 7
  %v561 = vsub.s32 0, %v560
  %v562 = vrot.slane %v558, %v561
  %v563 = vadd.f32 %v554, %v562
  %v564 = vadd.f32 %v555, %v562
  %v565 = vadd.f32 %v556, %v562
  %v566 = vadd.f32 %v557, %v562
  %v567 = vld [vmem:[%s3] sm:$0xf]
  %v568 = vld [vmem:[%s3 + $0x4] sm:$0xf]
  %v569 = vld [vmem:[%s3 + $0x8] sm:$0xf]
  %v570 = vld [vmem:[%s3 + $0xc] sm:$0xf]
  %v571 = vunpack.c.l.bf16 %v567
  %v572 = vunpack.c.l.bf16 %v568
  %v573 = vunpack.c.l.bf16 %v569
  %v574 = vunpack.c.l.bf16 %v570
  %v575 = vadd.f32 %v563, %v571
  %v576 = vadd.f32 %v564, %v572
  %v577 = vadd.f32 %v565, %v573
  %v578 = vadd.f32 %v566, %v574
  %v579 = vmax.f32 %v575, 0.0
  %v580 = vmax.f32 %v576, 0.0
  %v581 = vmax.f32 %v577, 0.0
  %v582 = vmax.f32 %v578, 0.0
  %v583 = vpack.c.bf16 %v580, %v579
  %v584 = vpack.c.bf16 %v582, %v581
  %v587 = vunpack.c.l.b16 %v583
  %v588 = vunpack.c.h.b16 %v583
  %v589 = vunpack.c.l.b16 %v584
  %v590 = vunpack.c.h.b16 %v584
  %v591 = vpack.c.b16 %v587, %v587
  %v592 = vpack.c.b16 %v588, %v588
  %v593 = vpack.c.b16 %v589, %v589
  %v594 = vpack.c.b16 %v590, %v590
  %vm599 = vcmask 519168
  %600 = vst.msk [vmem:[%s4] sm:$0xf] %vm599, %v591
  %601 = vst.msk [vmem:[%s4 + $0x4] sm:$0xf] %vm599, %v592
  %602 = vst.msk [vmem:[%s4 + $0x8] sm:$0xf] %vm599, %v593
  %603 = vst.msk [vmem:[%s4 + $0xc] sm:$0xf] %vm599, %v594
  // Predicated region
  $region18: #{_lambda_.24} parent=0 // pred_check
    _
  $region19: #{_lambda_.24} parent=0 // pred_check_branch
    %605 = sbr.rel (0) target = $region21
  $region20: #{_lambda_.24} parent=0 // pred_region
    _
  $region21: #{_lambda_.24} parent=0 // pred_fallthru
    _
  // Predicated region
  $region22: #{_lambda_.24} parent=0 // pred_check
    _
  $region23: #{_lambda_.24} parent=0 // pred_check_branch
    %607 = sbr.rel (0) target = $region25
  $region24: #{_lambda_.24} parent=0 // pred_region
    _
  $region25: #{_lambda_.24} parent=0 // pred_fallthru
    _

// kernel: _lambda_.26
$region0: #{_lambda_.26}
  #allocation0 [shape = 'u32[]', space=smem, size = 0x4, offset = 0x4, fixed_abs, tag = 'smem constant byte address 0x4 - core index']
  #allocation1 [shape = 'u32[144,128]{1,0:T(1,128)}', space=vmem, size = 0x12000, scoped, tag = 'internal scratch']
  %s0 = inlined_call_operand.vmem [shape: bf16[16,128], index: 0, kind: input, shape index: {}]
  %s1 = inlined_call_operand.vmem [shape: bf16[128,128], index: 1, kind: input, shape index: {}]
  %s2 = inlined_call_operand.vmem [shape: f32[2,128], index: 2, kind: input, shape index: {}]
  %s3 = inlined_call_operand.vmem [shape: bf16[16,128], index: 3, kind: output, shape index: {}]
  %s4 = sld [smem:[#allocation0]]
  $region22: #{_lambda_.26} parent=0
    _
  %s6 = ssub.s32 1, %s4
  %s7 = scalar_select 0, %s6, %s4
  // Predicated region
  $region2: #{_lambda_.26} parent=0 // pred_check
    _
  $region3: #{_lambda_.26} parent=0 // pred_check_branch
    %9 = sbr.rel (0) target = $region5
  $region4: #{_lambda_.26} parent=0 // pred_region
    _
  $region5: #{_lambda_.26} parent=0 // pred_fallthru
    _
  // Predicated region
  $region6: #{_lambda_.26} parent=0 // pred_check
    _
  $region7: #{_lambda_.26} parent=0 // pred_check_branch
    %11 = sbr.rel (0) target = $region9
  $region8: #{_lambda_.26} parent=0 // pred_region
    _
  $region9: #{_lambda_.26} parent=0 // pred_fallthru
    _
  // Predicated region
  $region10: #{_lambda_.26} parent=0 // pred_check
    _
  $region11: #{_lambda_.26} parent=0 // pred_check_branch
    %13 = sbr.rel (0) target = $region13
  $region12: #{_lambda_.26} parent=0 // pred_region
    _
  $region13: #{_lambda_.26} parent=0 // pred_fallthru
    _
  %v15 = vld [vmem:[%s0] sm:$0xf]
  %v16 = vld [vmem:[%s0 + $0x4] sm:$0xf]
  %v17 = vld [vmem:[%s1] sm:$0xf]
  %v18 = vld [vmem:[%s1 + $0x4] sm:$0xf]
  %v19 = vld [vmem:[%s1 + $0x8] sm:$0xf]
  %v20 = vld [vmem:[%s1 + $0xc] sm:$0xf]
  %v21 = vld [vmem:[%s1 + $0x10] sm:$0xf]
  %v22 = vld [vmem:[%s1 + $0x14] sm:$0xf]
  %v23 = vld [vmem:[%s1 + $0x18] sm:$0xf]
  %v24 = vld [vmem:[%s1 + $0x1c] sm:$0xf]
  %v25 = vld [vmem:[%s1 + $0x20] sm:$0xf]
  %v26 = vld [vmem:[%s1 + $0x24] sm:$0xf]
  %v27 = vld [vmem:[%s1 + $0x28] sm:$0xf]
  %v28 = vld [vmem:[%s1 + $0x2c] sm:$0xf]
  %v29 = vld [vmem:[%s1 + $0x30] sm:$0xf]
  %v30 = vld [vmem:[%s1 + $0x34] sm:$0xf]
  %v31 = vld [vmem:[%s1 + $0x38] sm:$0xf]
  %v32 = vld [vmem:[%s1 + $0x3c] sm:$0xf]
  %v35 = vunpack.c.l.b16 %v15
  %v36 = vunpack.c.l.b16 %v16
  %v37 = vpack.c.b16 %v36, %v35
  %v55 = vunpack.c.l.b16 %v17
  %v56 = vunpack.c.l.b16 %v18
  %v57 = vunpack.c.l.b16 %v19
  %v58 = vunpack.c.l.b16 %v20
  %v59 = vunpack.c.l.b16 %v21
  %v60 = vunpack.c.l.b16 %v22
  %v61 = vunpack.c.l.b16 %v23
  %v62 = vunpack.c.l.b16 %v24
  %v63 = vunpack.c.l.b16 %v25
  %v64 = vunpack.c.l.b16 %v26
  %v65 = vunpack.c.l.b16 %v27
  %v66 = vunpack.c.l.b16 %v28
  %v67 = vunpack.c.l.b16 %v29
  %v68 = vunpack.c.l.b16 %v30
  %v69 = vunpack.c.l.b16 %v31
  %v70 = vunpack.c.l.b16 %v32
  %v71 = vpack.c.b16 %v56, %v55
  %v72 = vpack.c.b16 %v58, %v57
  %v73 = vpack.c.b16 %v60, %v59
  %v74 = vpack.c.b16 %v62, %v61
  %v75 = vpack.c.b16 %v64, %v63
  %v76 = vpack.c.b16 %v66, %v65
  %v77 = vpack.c.b16 %v68, %v67
  %v78 = vpack.c.b16 %v70, %v69
  %87 = vmatprep.subr.bf16.mxu0 0
  %88 = vmatpush1.bf16.msra.mxu0 %v78
  %89 = vmatprep.subr.bf16.mxu0 0
  %90 = vmatpush1.bf16.msra.mxu0 %v77
  %91 = vmatprep.subr.bf16.mxu0 0
  %92 = vmatpush1.bf16.msra.mxu0 %v76
  %93 = vmatprep.subr.bf16.mxu0 0
  %94 = vmatpush1.bf16.msra.mxu0 %v75
  %95 = vmatprep.subr.bf16.mxu0 0
  %96 = vmatpush1.bf16.msra.mxu0 %v74
  %97 = vmatprep.subr.bf16.mxu0 0
  %98 = vmatpush1.bf16.msra.mxu0 %v73
  %99 = vmatprep.subr.bf16.mxu0 0
  %100 = vmatpush1.bf16.msra.mxu0 %v72
  %101 = vmatprep.subr.bf16.mxu0 0
  %102 = vmatpush1.bf16.msra.mxu0 %v71
  %103 = vmatprep.subr.bf16.mxu0 0
  %104 = vmatpush2.bf16.msra.mxu0 0
  %105 = vmatprep.subr.bf16.mxu0 0
  %106 = vmatpush2.bf16.msra.mxu0 0
  %107 = vmatprep.subr.bf16.mxu0 0
  %108 = vmatpush2.bf16.msra.mxu0 0
  %109 = vmatprep.subr.bf16.mxu0 0
  %110 = vmatpush2.bf16.msra.mxu0 0
  %111 = vmatprep.subr.bf16.mxu0 0
  %112 = vmatpush2.bf16.msra.mxu0 0
  %113 = vmatprep.subr.bf16.mxu0 0
  %114 = vmatpush2.bf16.msra.mxu0 0
  %115 = vmatprep.subr.bf16.mxu0 0
  %116 = vmatpush2.bf16.msra.mxu0 0
  %117 = vmatprep.subr.bf16.mxu0 0
  %118 = vmatpush2.bf16.msra.mxu0 0
  %119 = vmatprep.mubr.bf16.mxu0 0
  %120 = vmatmul.mubr.bf16.gmra.mxu0 %v37
  %v121 = vpop.f32.mrf.mxu0
  %v122 = vadd.f32 0.0, %v121
  %v123 = vpop.f32.mrf.mxu0
  %v124 = vpop.f32.mrf.mxu0
  %v125 = vadd.f32 0.0, %v124
  %v126 = vpop.f32.mrf.mxu0
  %127 = vdwg.mxu0
  %v128 = vld [vmem:[%s2] sm:$0x1]
  %v129 = vlaneseq
  %v130 = vshrl.u32 %v129, 7
  %v131 = vsub.s32 0, %v130
  %v132 = vrot.slane %v128, %v131
  %v133 = vmul.f32 %v122, %v132
  %v134 = vmul.f32 %v125, %v132
  %v135 = vld [vmem:[%s2 + $0x1] sm:$0x1]
  %v136 = vlaneseq
  %v137 = vshrl.u32 %v136, 7
  %v138 = vsub.s32 0, %v137
  %v139 = vrot.slane %v135, %v138
  %v140 = vadd.f32 %v133, %v139
  %v141 = vadd.f32 %v134, %v139
  %v142 = vpack.c.bf16 %v141, %v140
  %v144 = vunpack.c.l.b16 %v142
  %v145 = vunpack.c.h.b16 %v142
  %v146 = vpack.c.b16 %v144, %v144
  %v147 = vpack.c.b16 %v145, %v145
  %150 = vst [vmem:[%s3] sm:$0xf] %v146
  %151 = vst [vmem:[%s3 + $0x4] sm:$0xf] %v147
  // Predicated region
  $region14: #{_lambda_.26} parent=0 // pred_check
    _
  $region15: #{_lambda_.26} parent=0 // pred_check_branch
    %153 = sbr.rel (0) target = $region17
  $region16: #{_lambda_.26} parent=0 // pred_region
    _
  $region17: #{_lambda_.26} parent=0 // pred_fallthru
    _
  // Predicated region
  $region18: #{_lambda_.26} parent=0 // pred_check
    _
  $region19: #{_lambda_.26} parent=0 // pred_check_branch
    %155 = sbr.rel (0) target = $region21
  $region20: #{_lambda_.26} parent=0 // pred_region
    _
  $region21: #{_lambda_.26} parent=0 // pred_fallthru
    _

// kernel: _lambda_.25
$region0: #{_lambda_.25}
  #allocation0 [shape = 'u32[]', space=smem, size = 0x4, offset = 0x4, fixed_abs, tag = 'smem constant byte address 0x4 - core index']
  #allocation1 [shape = 'u32[144,128]{1,0:T(1,128)}', space=vmem, size = 0x12000, scoped, tag = 'internal scratch']
  %s0 = inlined_call_operand.vmem [shape: bf16[16,640], index: 0, kind: input, shape index: {}]
  %s1 = inlined_call_operand.vmem [shape: bf16[640,128], index: 1, kind: input, shape index: {}]
  %s2 = inlined_call_operand.vmem [shape: f32[2,128], index: 2, kind: input, shape index: {}]
  %s3 = inlined_call_operand.vmem [shape: bf16[16,128], index: 3, kind: output, shape index: {}]
  %s4 = sld [smem:[#allocation0]]
  $region22: #{_lambda_.25} parent=0
    _
  %s6 = ssub.s32 1, %s4
  %s7 = scalar_select 0, %s6, %s4
  // Predicated region
  $region2: #{_lambda_.25} parent=0 // pred_check
    _
  $region3: #{_lambda_.25} parent=0 // pred_check_branch
    %9 = sbr.rel (0) target = $region5
  $region4: #{_lambda_.25} parent=0 // pred_region
    _
  $region5: #{_lambda_.25} parent=0 // pred_fallthru
    _
  // Predicated region
  $region6: #{_lambda_.25} parent=0 // pred_check
    _
  $region7: #{_lambda_.25} parent=0 // pred_check_branch
    %11 = sbr.rel (0) target = $region9
  $region8: #{_lambda_.25} parent=0 // pred_region
    _
  $region9: #{_lambda_.25} parent=0 // pred_fallthru
    _
  // Predicated region
  $region10: #{_lambda_.25} parent=0 // pred_check
    _
  $region11: #{_lambda_.25} parent=0 // pred_check_branch
    %13 = sbr.rel (0) target = $region13
  $region12: #{_lambda_.25} parent=0 // pred_region
    _
  $region13: #{_lambda_.25} parent=0 // pred_fallthru
    _
  %v15 = vld [vmem:[%s0] sm:$0xff]
  %v16 = vld [vmem:[%s0 + $0x8] sm:$0xff]
  %v17 = vld [vmem:[%s0 + $0x10] sm:$0xf]
  %v18 = vld [vmem:[%s0 + $0x14] sm:$0xff]
  %v19 = vld [vmem:[%s0 + $0x1c] sm:$0xff]
  %v20 = vld [vmem:[%s0 + $0x24] sm:$0xf]
  %v21 = vld [vmem:[%s1] sm:$0xf]
  %v22 = vld [vmem:[%s1 + $0x4] sm:$0xf]
  %v23 = vld [vmem:[%s1 + $0x8] sm:$0xf]
  %v24 = vld [vmem:[%s1 + $0xc] sm:$0xf]
  %v25 = vld [vmem:[%s1 + $0x10] sm:$0xf]
  %v26 = vld [vmem:[%s1 + $0x14] sm:$0xf]
  %v27 = vld [vmem:[%s1 + $0x18] sm:$0xf]
  %v28 = vld [vmem:[%s1 + $0x1c] sm:$0xf]
  %v29 = vld [vmem:[%s1 + $0x20] sm:$0xf]
  %v30 = vld [vmem:[%s1 + $0x24] sm:$0xf]
  %v31 = vld [vmem:[%s1 + $0x28] sm:$0xf]
  %v32 = vld [vmem:[%s1 + $0x2c] sm:$0xf]
  %v33 = vld [vmem:[%s1 + $0x30] sm:$0xf]
  %v34 = vld [vmem:[%s1 + $0x34] sm:$0xf]
  %v35 = vld [vmem:[%s1 + $0x38] sm:$0xf]
  %v36 = vld [vmem:[%s1 + $0x3c] sm:$0xf]
  %v37 = vld [vmem:[%s1 + $0x40] sm:$0xf]
  %v38 = vld [vmem:[%s1 + $0x44] sm:$0xf]
  %v39 = vld [vmem:[%s1 + $0x48] sm:$0xf]
  %v40 = vld [vmem:[%s1 + $0x4c] sm:$0xf]
  %v41 = vld [vmem:[%s1 + $0x50] sm:$0xf]
  %v42 = vld [vmem:[%s1 + $0x54] sm:$0xf]
  %v43 = vld [vmem:[%s1 + $0x58] sm:$0xf]
  %v44 = vld [vmem:[%s1 + $0x5c] sm:$0xf]
  %v45 = vld [vmem:[%s1 + $0x60] sm:$0xf]
  %v46 = vld [vmem:[%s1 + $0x64] sm:$0xf]
  %v47 = vld [vmem:[%s1 + $0x68] sm:$0xf]
  %v48 = vld [vmem:[%s1 + $0x6c] sm:$0xf]
  %v49 = vld [vmem:[%s1 + $0x70] sm:$0xf]
  %v50 = vld [vmem:[%s1 + $0x74] sm:$0xf]
  %v51 = vld [vmem:[%s1 + $0x78] sm:$0xf]
  %v52 = vld [vmem:[%s1 + $0x7c] sm:$0xf]
  %v53 = vld [vmem:[%s1 + $0x80] sm:$0xf]
  %v54 = vld [vmem:[%s1 + $0x84] sm:$0xf]
  %v55 = vld [vmem:[%s1 + $0x88] sm:$0xf]
  %v56 = vld [vmem:[%s1 + $0x8c] sm:$0xf]
  %v57 = vld [vmem:[%s1 + $0x90] sm:$0xf]
  %v58 = vld [vmem:[%s1 + $0x94] sm:$0xf]
  %v59 = vld [vmem:[%s1 + $0x98] sm:$0xf]
  %v60 = vld [vmem:[%s1 + $0x9c] sm:$0xf]
  %v61 = vld [vmem:[%s1 + $0xa0] sm:$0xf]
  %v62 = vld [vmem:[%s1 + $0xa4] sm:$0xf]
  %v63 = vld [vmem:[%s1 + $0xa8] sm:$0xf]
  %v64 = vld [vmem:[%s1 + $0xac] sm:$0xf]
  %v65 = vld [vmem:[%s1 + $0xb0] sm:$0xf]
  %v66 = vld [vmem:[%s1 + $0xb4] sm:$0xf]
  %v67 = vld [vmem:[%s1 + $0xb8] sm:$0xf]
  %v68 = vld [vmem:[%s1 + $0xbc] sm:$0xf]
  %v69 = vld [vmem:[%s1 + $0xc0] sm:$0xf]
  %v70 = vld [vmem:[%s1 + $0xc4] sm:$0xf]
  %v71 = vld [vmem:[%s1 + $0xc8] sm:$0xf]
  %v72 = vld [vmem:[%s1 + $0xcc] sm:$0xf]
  %v73 = vld [vmem:[%s1 + $0xd0] sm:$0xf]
  %v74 = vld [vmem:[%s1 + $0xd4] sm:$0xf]
  %v75 = vld [vmem:[%s1 + $0xd8] sm:$0xf]
  %v76 = vld [vmem:[%s1 + $0xdc] sm:$0xf]
  %v77 = vld [vmem:[%s1 + $0xe0] sm:$0xf]
  %v78 = vld [vmem:[%s1 + $0xe4] sm:$0xf]
  %v79 = vld [vmem:[%s1 + $0xe8] sm:$0xf]
  %v80 = vld [vmem:[%s1 + $0xec] sm:$0xf]
  %v81 = vld [vmem:[%s1 + $0xf0] sm:$0xf]
  %v82 = vld [vmem:[%s1 + $0xf4] sm:$0xf]
  %v83 = vld [vmem:[%s1 + $0xf8] sm:$0xf]
  %v84 = vld [vmem:[%s1 + $0xfc] sm:$0xf]
  %v85 = vld [vmem:[%s1 + $0x100] sm:$0xf]
  %v86 = vld [vmem:[%s1 + $0x104] sm:$0xf]
  %v87 = vld [vmem:[%s1 + $0x108] sm:$0xf]
  %v88 = vld [vmem:[%s1 + $0x10c] sm:$0xf]
  %v89 = vld [vmem:[%s1 + $0x110] sm:$0xf]
  %v90 = vld [vmem:[%s1 + $0x114] sm:$0xf]
  %v91 = vld [vmem:[%s1 + $0x118] sm:$0xf]
  %v92 = vld [vmem:[%s1 + $0x11c] sm:$0xf]
  %v93 = vld [vmem:[%s1 + $0x120] sm:$0xf]
  %v94 = vld [vmem:[%s1 + $0x124] sm:$0xf]
  %v95 = vld [vmem:[%s1 + $0x128] sm:$0xf]
  %v96 = vld [vmem:[%s1 + $0x12c] sm:$0xf]
  %v97 = vld [vmem:[%s1 + $0x130] sm:$0xf]
  %v98 = vld [vmem:[%s1 + $0x134] sm:$0xf]
  %v99 = vld [vmem:[%s1 + $0x138] sm:$0xf]
  %v100 = vld [vmem:[%s1 + $0x13c] sm:$0xf]
  %v107 = vunpack.c.l.b16 %v15
  %v108 = vunpack.c.h.b16 %v15
  %v109 = vunpack.c.l.b16 %v16
  %v110 = vunpack.c.h.b16 %v16
  %v111 = vunpack.c.l.b16 %v17
  %v112 = vunpack.c.l.b16 %v18
  %v113 = vunpack.c.h.b16 %v18
  %v114 = vunpack.c.l.b16 %v19
  %v115 = vunpack.c.h.b16 %v19
  %v116 = vunpack.c.l.b16 %v20
  %v117 = vpack.c.b16 %v112, %v107
  %v118 = vpack.c.b16 %v113, %v108
  %v119 = vpack.c.b16 %v114, %v109
  %v120 = vpack.c.b16 %v115, %v110
  %v121 = vpack.c.b16 %v116, %v111
  %v207 = vunpack.c.l.b16 %v21
  %v208 = vunpack.c.l.b16 %v22
  %v209 = vunpack.c.l.b16 %v23
  %v210 = vunpack.c.l.b16 %v24
  %v211 = vunpack.c.l.b16 %v25
  %v212 = vunpack.c.l.b16 %v26
  %v213 = vunpack.c.l.b16 %v27
  %v214 = vunpack.c.l.b16 %v28
  %v215 = vunpack.c.l.b16 %v29
  %v216 = vunpack.c.l.b16 %v30
  %v217 = vunpack.c.l.b16 %v31
  %v218 = vunpack.c.l.b16 %v32
  %v219 = vunpack.c.l.b16 %v33
  %v220 = vunpack.c.l.b16 %v34
  %v221 = vunpack.c.l.b16 %v35
  %v222 = vunpack.c.l.b16 %v36
  %v223 = vunpack.c.l.b16 %v37
  %v224 = vunpack.c.l.b16 %v38
  %v225 = vunpack.c.l.b16 %v39
  %v226 = vunpack.c.l.b16 %v40
  %v227 = vunpack.c.l.b16 %v41
  %v228 = vunpack.c.l.b16 %v42
  %v229 = vunpack.c.l.b16 %v43
  %v230 = vunpack.c.l.b16 %v44
  %v231 = vunpack.c.l.b16 %v45
  %v232 = vunpack.c.l.b16 %v46
  %v233 = vunpack.c.l.b16 %v47
  %v234 = vunpack.c.l.b16 %v48
  %v235 = vunpack.c.l.b16 %v49
  %v236 = vunpack.c.l.b16 %v50
  %v237 = vunpack.c.l.b16 %v51
  %v238 = vunpack.c.l.b16 %v52
  %v239 = vunpack.c.l.b16 %v53
  %v240 = vunpack.c.l.b16 %v54
  %v241 = vunpack.c.l.b16 %v55
  %v242 = vunpack.c.l.b16 %v56
  %v243 = vunpack.c.l.b16 %v57
  %v244 = vunpack.c.l.b16 %v58
  %v245 = vunpack.c.l.b16 %v59
  %v246 = vunpack.c.l.b16 %v60
  %v247 = vunpack.c.l.b16 %v61
  %v248 = vunpack.c.l.b16 %v62
  %v249 = vunpack.c.l.b16 %v63
  %v250 = vunpack.c.l.b16 %v64
  %v251 = vunpack.c.l.b16 %v65
  %v252 = vunpack.c.l.b16 %v66
  %v253 = vunpack.c.l.b16 %v67
  %v254 = vunpack.c.l.b16 %v68
  %v255 = vunpack.c.l.b16 %v69
  %v256 = vunpack.c.l.b16 %v70
  %v257 = vunpack.c.l.b16 %v71
  %v258 = vunpack.c.l.b16 %v72
  %v259 = vunpack.c.l.b16 %v73
  %v260 = vunpack.c.l.b16 %v74
  %v261 = vunpack.c.l.b16 %v75
  %v262 = vunpack.c.l.b16 %v76
  %v263 = vunpack.c.l.b16 %v77
  %v264 = vunpack.c.l.b16 %v78
  %v265 = vunpack.c.l.b16 %v79
  %v266 = vunpack.c.l.b16 %v80
  %v267 = vunpack.c.l.b16 %v81
  %v268 = vunpack.c.l.b16 %v82
  %v269 = vunpack.c.l.b16 %v83
  %v270 = vunpack.c.l.b16 %v84
  %v271 = vunpack.c.l.b16 %v85
  %v272 = vunpack.c.l.b16 %v86
  %v273 = vunpack.c.l.b16 %v87
  %v274 = vunpack.c.l.b16 %v88
  %v275 = vunpack.c.l.b16 %v89
  %v276 = vunpack.c.l.b16 %v90
  %v277 = vunpack.c.l.b16 %v91
  %v278 = vunpack.c.l.b16 %v92
  %v279 = vunpack.c.l.b16 %v93
  %v280 = vunpack.c.l.b16 %v94
  %v281 = vunpack.c.l.b16 %v95
  %v282 = vunpack.c.l.b16 %v96
  %v283 = vunpack.c.l.b16 %v97
  %v284 = vunpack.c.l.b16 %v98
  %v285 = vunpack.c.l.b16 %v99
  %v286 = vunpack.c.l.b16 %v100
  %v287 = vpack.c.b16 %v208, %v207
  %v288 = vpack.c.b16 %v210, %v209
  %v289 = vpack.c.b16 %v212, %v211
  %v290 = vpack.c.b16 %v214, %v213
  %v291 = vpack.c.b16 %v216, %v215
  %v292 = vpack.c.b16 %v218, %v217
  %v293 = vpack.c.b16 %v220, %v219
  %v294 = vpack.c.b16 %v222, %v221
  %v295 = vpack.c.b16 %v224, %v223
  %v296 = vpack.c.b16 %v226, %v225
  %v297 = vpack.c.b16 %v228, %v227
  %v298 = vpack.c.b16 %v230, %v229
  %v299 = vpack.c.b16 %v232, %v231
  %v300 = vpack.c.b16 %v234, %v233
  %v301 = vpack.c.b16 %v236, %v235
  %v302 = vpack.c.b16 %v238, %v237
  %v303 = vpack.c.b16 %v240, %v239
  %v304 = vpack.c.b16 %v242, %v241
  %v305 = vpack.c.b16 %v244, %v243
  %v306 = vpack.c.b16 %v246, %v245
  %v307 = vpack.c.b16 %v248, %v247
  %v308 = vpack.c.b16 %v250, %v249
  %v309 = vpack.c.b16 %v252, %v251
  %v310 = vpack.c.b16 %v254, %v253
  %v311 = vpack.c.b16 %v256, %v255
  %v312 = vpack.c.b16 %v258, %v257
  %v313 = vpack.c.b16 %v260, %v259
  %v314 = vpack.c.b16 %v262, %v261
  %v315 = vpack.c.b16 %v264, %v263
  %v316 = vpack.c.b16 %v266, %v265
  %v317 = vpack.c.b16 %v268, %v267
  %v318 = vpack.c.b16 %v270, %v269
  %v319 = vpack.c.b16 %v272, %v271
  %v320 = vpack.c.b16 %v274, %v273
  %v321 = vpack.c.b16 %v276, %v275
  %v322 = vpack.c.b16 %v278, %v277
  %v323 = vpack.c.b16 %v280, %v279
  %v324 = vpack.c.b16 %v282, %v281
  %v325 = vpack.c.b16 %v284, %v283
  %v326 = vpack.c.b16 %v286, %v285
  %367 = vmatprep.subr.bf16.mxu0 0
  %368 = vmatpush1.bf16.msra.mxu0 %v294
  %369 = vmatprep.subr.bf16.mxu0 0
  %370 = vmatpush1.bf16.msra.mxu0 %v293
  %371 = vmatprep.subr.bf16.mxu0 0
  %372 = vmatpush1.bf16.msra.mxu0 %v292
  %373 = vmatprep.subr.bf16.mxu0 0
  %374 = vmatpush1.bf16.msra.mxu0 %v291
  %375 = vmatprep.subr.bf16.mxu0 0
  %376 = vmatpush1.bf16.msra.mxu0 %v290
  %377 = vmatprep.subr.bf16.mxu0 0
  %378 = vmatpush1.bf16.msra.mxu0 %v289
  %379 = vmatprep.subr.bf16.mxu0 0
  %380 = vmatpush1.bf16.msra.mxu0 %v288
  %381 = vmatprep.subr.bf16.mxu0 0
  %382 = vmatpush1.bf16.msra.mxu0 %v287
  %383 = vmatprep.subr.bf16.mxu0 0
  %384 = vmatpush2.bf16.msra.mxu0 %v302
  %385 = vmatprep.subr.bf16.mxu0 0
  %386 = vmatpush2.bf16.msra.mxu0 %v301
  %387 = vmatprep.subr.bf16.mxu0 0
  %388 = vmatpush2.bf16.msra.mxu0 %v300
  %389 = vmatprep.subr.bf16.mxu0 0
  %390 = vmatpush2.bf16.msra.mxu0 %v299
  %391 = vmatprep.subr.bf16.mxu0 0
  %392 = vmatpush2.bf16.msra.mxu0 %v298
  %393 = vmatprep.subr.bf16.mxu0 0
  %394 = vmatpush2.bf16.msra.mxu0 %v297
  %395 = vmatprep.subr.bf16.mxu0 0
  %396 = vmatpush2.bf16.msra.mxu0 %v296
  %397 = vmatprep.subr.bf16.mxu0 0
  %398 = vmatpush2.bf16.msra.mxu0 %v295
  %399 = vmatprep.mubr.bf16.mxu0 %v118
  %400 = vmatmul.mubr.bf16.gmra.mxu0 %v117
  %v401 = vpop.f32.mrf.mxu0
  %v402 = vadd.f32 0.0, %v401
  %v403 = vpop.f32.mrf.mxu0
  %v404 = vpop.f32.mrf.mxu0
  %v405 = vadd.f32 0.0, %v404
  %v406 = vpop.f32.mrf.mxu0
  %407 = vdwg.mxu0
  %408 = vmatprep.subr.bf16.mxu0 0
  %409 = vmatpush1.bf16.msra.mxu0 %v310
  %410 = vmatprep.subr.bf16.mxu0 0
  %411 = vmatpush1.bf16.msra.mxu0 %v309
  %412 = vmatprep.subr.bf16.mxu0 0
  %413 = vmatpush1.bf16.msra.mxu0 %v308
  %414 = vmatprep.subr.bf16.mxu0 0
  %415 = vmatpush1.bf16.msra.mxu0 %v307
  %416 = vmatprep.subr.bf16.mxu0 0
  %417 = vmatpush1.bf16.msra.mxu0 %v306
  %418 = vmatprep.subr.bf16.mxu0 0
  %419 = vmatpush1.bf16.msra.mxu0 %v305
  %420 = vmatprep.subr.bf16.mxu0 0
  %421 = vmatpush1.bf16.msra.mxu0 %v304
  %422 = vmatprep.subr.bf16.mxu0 0
  %423 = vmatpush1.bf16.msra.mxu0 %v303
  %424 = vmatprep.subr.bf16.mxu0 0
  %425 = vmatpush2.bf16.msra.mxu0 %v318
  %426 = vmatprep.subr.bf16.mxu0 0
  %427 = vmatpush2.bf16.msra.mxu0 %v317
  %428 = vmatprep.subr.bf16.mxu0 0
  %429 = vmatpush2.bf16.msra.mxu0 %v316
  %430 = vmatprep.subr.bf16.mxu0 0
  %431 = vmatpush2.bf16.msra.mxu0 %v315
  %432 = vmatprep.subr.bf16.mxu0 0
  %433 = vmatpush2.bf16.msra.mxu0 %v314
  %434 = vmatprep.subr.bf16.mxu0 0
  %435 = vmatpush2.bf16.msra.mxu0 %v313
  %436 = vmatprep.subr.bf16.mxu0 0
  %437 = vmatpush2.bf16.msra.mxu0 %v312
  %438 = vmatprep.subr.bf16.mxu0 0
  %439 = vmatpush2.bf16.msra.mxu0 %v311
  %440 = vmatprep.mubr.bf16.mxu0 %v120
  %441 = vmatmul.mubr.bf16.gmra.mxu0 %v119
  %v442 = vpop.f32.mrf.mxu0
  %v443 = vadd.f32 %v402, %v442
  %v444 = vpop.f32.mrf.mxu0
  %v445 = vpop.f32.mrf.mxu0
  %v446 = vadd.f32 %v405, %v445
  %v447 = vpop.f32.mrf.mxu0
  %448 = vdwg.mxu0
  %449 = vmatprep.subr.bf16.mxu0 0
  %450 = vmatpush1.bf16.msra.mxu0 %v326
  %451 = vmatprep.subr.bf16.mxu0 0
  %452 = vmatpush1.bf16.msra.mxu0 %v325
  %453 = vmatprep.subr.bf16.mxu0 0
  %454 = vmatpush1.bf16.msra.mxu0 %v324
  %455 = vmatprep.subr.bf16.mxu0 0
  %456 = vmatpush1.bf16.msra.mxu0 %v323
  %457 = vmatprep.subr.bf16.mxu0 0
  %458 = vmatpush1.bf16.msra.mxu0 %v322
  %459 = vmatprep.subr.bf16.mxu0 0
  %460 = vmatpush1.bf16.msra.mxu0 %v321
  %461 = vmatprep.subr.bf16.mxu0 0
  %462 = vmatpush1.bf16.msra.mxu0 %v320
  %463 = vmatprep.subr.bf16.mxu0 0
  %464 = vmatpush1.bf16.msra.mxu0 %v319
  %465 = vmatprep.subr.bf16.mxu0 0
  %466 = vmatpush2.bf16.msra.mxu0 0
  %467 = vmatprep.subr.bf16.mxu0 0
  %468 = vmatpush2.bf16.msra.mxu0 0
  %469 = vmatprep.subr.bf16.mxu0 0
  %470 = vmatpush2.bf16.msra.mxu0 0
  %471 = vmatprep.subr.bf16.mxu0 0
  %472 = vmatpush2.bf16.msra.mxu0 0
  %473 = vmatprep.subr.bf16.mxu0 0
  %474 = vmatpush2.bf16.msra.mxu0 0
  %475 = vmatprep.subr.bf16.mxu0 0
  %476 = vmatpush2.bf16.msra.mxu0 0
  %477 = vmatprep.subr.bf16.mxu0 0
  %478 = vmatpush2.bf16.msra.mxu0 0
  %479 = vmatprep.subr.bf16.mxu0 0
  %480 = vmatpush2.bf16.msra.mxu0 0
  %481 = vmatprep.mubr.bf16.mxu0 0
  %482 = vmatmul.mubr.bf16.gmra.mxu0 %v121
  %v483 = vpop.f32.mrf.mxu0
  %v484 = vadd.f32 %v443, %v483
  %v485 = vpop.f32.mrf.mxu0
  %v486 = vpop.f32.mrf.mxu0
  %v487 = vadd.f32 %v446, %v486
  %v488 = vpop.f32.mrf.mxu0
  %489 = vdwg.mxu0
  %v490 = vld [vmem:[%s2] sm:$0x1]
  %v491 = vlaneseq
  %v492 = vshrl.u32 %v491, 7
  %v493 = vsub.s32 0, %v492
  %v494 = vrot.slane %v490, %v493
  %v495 = vmul.f32 %v484, %v494
  %v496 = vmul.f32 %v487, %v494
  %v497 = vld [vmem:[%s2 + $0x1] sm:$0x1]
  %v498 = vlaneseq
  %v499 = vshrl.u32 %v498, 7
  %v500 = vsub.s32 0, %v499
  %v501 = vrot.slane %v497, %v500
  %v502 = vadd.f32 %v495, %v501
  %v503 = vadd.f32 %v496, %v501
  %v504 = vmax.f32 %v502, 0.0
  %v505 = vmax.f32 %v503, 0.0
  %v506 = vpack.c.bf16 %v505, %v504
  %v508 = vunpack.c.l.b16 %v506
  %v509 = vunpack.c.h.b16 %v506
  %v510 = vpack.c.b16 %v508, %v508
  %v511 = vpack.c.b16 %v509, %v509
  %514 = vst [vmem:[%s3] sm:$0xf] %v510
  %515 = vst [vmem:[%s3 + $0x4] sm:$0xf] %v511
  // Predicated region
  $region14: #{_lambda_.25} parent=0 // pred_check
    _
  $region15: #{_lambda_.25} parent=0 // pred_check_branch
    %517 = sbr.rel (0) target = $region17
  $region16: #{_lambda_.25} parent=0 // pred_region
    _
  $region17: #{_lambda_.25} parent=0 // pred_fallthru
    _
  // Predicated region
  $region18: #{_lambda_.25} parent=0 // pred_check
    _
  $region19: #{_lambda_.25} parent=0 // pred_check_branch
    %519 = sbr.rel (0) target = $region21
  $region20: #{_lambda_.25} parent=0 // pred_region
    _
  $region21: #{_lambda_.25} parent=0 // pred_fallthru
    _

// kernel: _lambda_.27
$region0: #{_lambda_.27}
  #allocation0 [shape = 'u32[]', space=smem, size = 0x4, offset = 0x4, fixed_abs, tag = 'smem constant byte address 0x4 - core index']
  #allocation1 [shape = 'u32[144,128]{1,0:T(1,128)}', space=vmem, size = 0x12000, scoped, tag = 'internal scratch']
  %s0 = inlined_call_operand.vmem [shape: bf16[16,1152], index: 0, kind: input, shape index: {}]
  %s1 = inlined_call_operand.vmem [shape: bf16[1152,128], index: 1, kind: input, shape index: {}]
  %s2 = inlined_call_operand.vmem [shape: f32[2,128], index: 2, kind: input, shape index: {}]
  %s3 = inlined_call_operand.vmem [shape: bf16[16,128], index: 3, kind: input, shape index: {}]
  %s4 = inlined_call_operand.vmem [shape: bf16[16,128], index: 4, kind: output, shape index: {}]
  %s5 = sld [smem:[#allocation0]]
  $region26: #{_lambda_.27} parent=0
    _
  %s7 = ssub.s32 1, %s5
  %s8 = scalar_select 0, %s7, %s5
  // Predicated region
  $region2: #{_lambda_.27} parent=0 // pred_check
    _
  $region3: #{_lambda_.27} parent=0 // pred_check_branch
    %10 = sbr.rel (0) target = $region5
  $region4: #{_lambda_.27} parent=0 // pred_region
    _
  $region5: #{_lambda_.27} parent=0 // pred_fallthru
    _
  // Predicated region
  $region6: #{_lambda_.27} parent=0 // pred_check
    _
  $region7: #{_lambda_.27} parent=0 // pred_check_branch
    %12 = sbr.rel (0) target = $region9
  $region8: #{_lambda_.27} parent=0 // pred_region
    _
  $region9: #{_lambda_.27} parent=0 // pred_fallthru
    _
  // Predicated region
  $region10: #{_lambda_.27} parent=0 // pred_check
    _
  $region11: #{_lambda_.27} parent=0 // pred_check_branch
    %14 = sbr.rel (0) target = $region13
  $region12: #{_lambda_.27} parent=0 // pred_region
    _
  $region13: #{_lambda_.27} parent=0 // pred_fallthru
    _
  // Predicated region
  $region14: #{_lambda_.27} parent=0 // pred_check
    _
  $region15: #{_lambda_.27} parent=0 // pred_check_branch
    %16 = sbr.rel (0) target = $region17
  $region16: #{_lambda_.27} parent=0 // pred_region
    _
  $region17: #{_lambda_.27} parent=0 // pred_fallthru
    _
  %v18 = vld [vmem:[%s0] sm:$0xff]
  %v19 = vld [vmem:[%s0 + $0x8] sm:$0xff]
  %v20 = vld [vmem:[%s0 + $0x10] sm:$0xff]
  %v21 = vld [vmem:[%s0 + $0x18] sm:$0xff]
  %v22 = vld [vmem:[%s0 + $0x20] sm:$0xf]
  %v23 = vld [vmem:[%s0 + $0x24] sm:$0xff]
  %v24 = vld [vmem:[%s0 + $0x2c] sm:$0xff]
  %v25 = vld [vmem:[%s0 + $0x34] sm:$0xff]
  %v26 = vld [vmem:[%s0 + $0x3c] sm:$0xff]
  %v27 = vld [vmem:[%s0 + $0x44] sm:$0xf]
  %v28 = vld [vmem:[%s1] sm:$0xf]
  %v29 = vld [vmem:[%s1 + $0x4] sm:$0xf]
  %v30 = vld [vmem:[%s1 + $0x8] sm:$0xf]
  %v31 = vld [vmem:[%s1 + $0xc] sm:$0xf]
  %v32 = vld [vmem:[%s1 + $0x10] sm:$0xf]
  %v33 = vld [vmem:[%s1 + $0x14] sm:$0xf]
  %v34 = vld [vmem:[%s1 + $0x18] sm:$0xf]
  %v35 = vld [vmem:[%s1 + $0x1c] sm:$0xf]
  %v36 = vld [vmem:[%s1 + $0x20] sm:$0xf]
  %v37 = vld [vmem:[%s1 + $0x24] sm:$0xf]
  %v38 = vld [vmem:[%s1 + $0x28] sm:$0xf]
  %v39 = vld [vmem:[%s1 + $0x2c] sm:$0xf]
  %v40 = vld [vmem:[%s1 + $0x30] sm:$0xf]
  %v41 = vld [vmem:[%s1 + $0x34] sm:$0xf]
  %v42 = vld [vmem:[%s1 + $0x38] sm:$0xf]
  %v43 = vld [vmem:[%s1 + $0x3c] sm:$0xf]
  %v44 = vld [vmem:[%s1 + $0x40] sm:$0xf]
  %v45 = vld [vmem:[%s1 + $0x44] sm:$0xf]
  %v46 = vld [vmem:[%s1 + $0x48] sm:$0xf]
  %v47 = vld [vmem:[%s1 + $0x4c] sm:$0xf]
  %v48 = vld [vmem:[%s1 + $0x50] sm:$0xf]
  %v49 = vld [vmem:[%s1 + $0x54] sm:$0xf]
  %v50 = vld [vmem:[%s1 + $0x58] sm:$0xf]
  %v51 = vld [vmem:[%s1 + $0x5c] sm:$0xf]
  %v52 = vld [vmem:[%s1 + $0x60] sm:$0xf]
  %v53 = vld [vmem:[%s1 + $0x64] sm:$0xf]
  %v54 = vld [vmem:[%s1 + $0x68] sm:$0xf]
  %v55 = vld [vmem:[%s1 + $0x6c] sm:$0xf]
  %v56 = vld [vmem:[%s1 + $0x70] sm:$0xf]
  %v57 = vld [vmem:[%s1 + $0x74] sm:$0xf]
  %v58 = vld [vmem:[%s1 + $0x78] sm:$0xf]
  %v59 = vld [vmem:[%s1 + $0x7c] sm:$0xf]
  %v60 = vld [vmem:[%s1 + $0x80] sm:$0xf]
  %v61 = vld [vmem:[%s1 + $0x84] sm:$0xf]
  %v62 = vld [vmem:[%s1 + $0x88] sm:$0xf]
  %v63 = vld [vmem:[%s1 + $0x8c] sm:$0xf]
  %v64 = vld [vmem:[%s1 + $0x90] sm:$0xf]
  %v65 = vld [vmem:[%s1 + $0x94] sm:$0xf]
  %v66 = vld [vmem:[%s1 + $0x98] sm:$0xf]
  %v67 = vld [vmem:[%s1 + $0x9c] sm:$0xf]
  %v68 = vld [vmem:[%s1 + $0xa0] sm:$0xf]
  %v69 = vld [vmem:[%s1 + $0xa4] sm:$0xf]
  %v70 = vld [vmem:[%s1 + $0xa8] sm:$0xf]
  %v71 = vld [vmem:[%s1 + $0xac] sm:$0xf]
  %v72 = vld [vmem:[%s1 + $0xb0] sm:$0xf]
  %v73 = vld [vmem:[%s1 + $0xb4] sm:$0xf]
  %v74 = vld [vmem:[%s1 + $0xb8] sm:$0xf]
  %v75 = vld [vmem:[%s1 + $0xbc] sm:$0xf]
  %v76 = vld [vmem:[%s1 + $0xc0] sm:$0xf]
  %v77 = vld [vmem:[%s1 + $0xc4] sm:$0xf]
  %v78 = vld [vmem:[%s1 + $0xc8] sm:$0xf]
  %v79 = vld [vmem:[%s1 + $0xcc] sm:$0xf]
  %v80 = vld [vmem:[%s1 + $0xd0] sm:$0xf]
  %v81 = vld [vmem:[%s1 + $0xd4] sm:$0xf]
  %v82 = vld [vmem:[%s1 + $0xd8] sm:$0xf]
  %v83 = vld [vmem:[%s1 + $0xdc] sm:$0xf]
  %v84 = vld [vmem:[%s1 + $0xe0] sm:$0xf]
  %v85 = vld [vmem:[%s1 + $0xe4] sm:$0xf]
  %v86 = vld [vmem:[%s1 + $0xe8] sm:$0xf]
  %v87 = vld [vmem:[%s1 + $0xec] sm:$0xf]
  %v88 = vld [vmem:[%s1 + $0xf0] sm:$0xf]
  %v89 = vld [vmem:[%s1 + $0xf4] sm:$0xf]
  %v90 = vld [vmem:[%s1 + $0xf8] sm:$0xf]
  %v91 = vld [vmem:[%s1 + $0xfc] sm:$0xf]
  %v92 = vld [vmem:[%s1 + $0x100] sm:$0xf]
  %v93 = vld [vmem:[%s1 + $0x104] sm:$0xf]
  %v94 = vld [vmem:[%s1 + $0x108] sm:$0xf]
  %v95 = vld [vmem:[%s1 + $0x10c] sm:$0xf]
  %v96 = vld [vmem:[%s1 + $0x110] sm:$0xf]
  %v97 = vld [vmem:[%s1 + $0x114] sm:$0xf]
  %v98 = vld [vmem:[%s1 + $0x118] sm:$0xf]
  %v99 = vld [vmem:[%s1 + $0x11c] sm:$0xf]
  %v100 = vld [vmem:[%s1 + $0x120] sm:$0xf]
  %v101 = vld [vmem:[%s1 + $0x124] sm:$0xf]
  %v102 = vld [vmem:[%s1 + $0x128] sm:$0xf]
  %v103 = vld [vmem:[%s1 + $0x12c] sm:$0xf]
  %v104 = vld [vmem:[%s1 + $0x130] sm:$0xf]
  %v105 = vld [vmem:[%s1 + $0x134] sm:$0xf]
  %v106 = vld [vmem:[%s1 + $0x138] sm:$0xf]
  %v107 = vld [vmem:[%s1 + $0x13c] sm:$0xf]
  %v108 = vld [vmem:[%s1 + $0x140] sm:$0xf]
  %v109 = vld [vmem:[%s1 + $0x144] sm:$0xf]
  %v110 = vld [vmem:[%s1 + $0x148] sm:$0xf]
  %v111 = vld [vmem:[%s1 + $0x14c] sm:$0xf]
  %v112 = vld [vmem:[%s1 + $0x150] sm:$0xf]
  %v113 = vld [vmem:[%s1 + $0x154] sm:$0xf]
  %v114 = vld [vmem:[%s1 + $0x158] sm:$0xf]
  %v115 = vld [vmem:[%s1 + $0x15c] sm:$0xf]
  %v116 = vld [vmem:[%s1 + $0x160] sm:$0xf]
  %v117 = vld [vmem:[%s1 + $0x164] sm:$0xf]
  %v118 = vld [vmem:[%s1 + $0x168] sm:$0xf]
  %v119 = vld [vmem:[%s1 + $0x16c] sm:$0xf]
  %v120 = vld [vmem:[%s1 + $0x170] sm:$0xf]
  %v121 = vld [vmem:[%s1 + $0x174] sm:$0xf]
  %v122 = vld [vmem:[%s1 + $0x178] sm:$0xf]
  %v123 = vld [vmem:[%s1 + $0x17c] sm:$0xf]
  %v124 = vld [vmem:[%s1 + $0x180] sm:$0xf]
  %v125 = vld [vmem:[%s1 + $0x184] sm:$0xf]
  %v126 = vld [vmem:[%s1 + $0x188] sm:$0xf]
  %v127 = vld [vmem:[%s1 + $0x18c] sm:$0xf]
  %v128 = vld [vmem:[%s1 + $0x190] sm:$0xf]
  %v129 = vld [vmem:[%s1 + $0x194] sm:$0xf]
  %v130 = vld [vmem:[%s1 + $0x198] sm:$0xf]
  %v131 = vld [vmem:[%s1 + $0x19c] sm:$0xf]
  %v132 = vld [vmem:[%s1 + $0x1a0] sm:$0xf]
  %v133 = vld [vmem:[%s1 + $0x1a4] sm:$0xf]
  %v134 = vld [vmem:[%s1 + $0x1a8] sm:$0xf]
  %v135 = vld [vmem:[%s1 + $0x1ac] sm:$0xf]
  %v136 = vld [vmem:[%s1 + $0x1b0] sm:$0xf]
  %v137 = vld [vmem:[%s1 + $0x1b4] sm:$0xf]
  %v138 = vld [vmem:[%s1 + $0x1b8] sm:$0xf]
  %v139 = vld [vmem:[%s1 + $0x1bc] sm:$0xf]
  %v140 = vld [vmem:[%s1 + $0x1c0] sm:$0xf]
  %v141 = vld [vmem:[%s1 + $0x1c4] sm:$0xf]
  %v142 = vld [vmem:[%s1 + $0x1c8] sm:$0xf]
  %v143 = vld [vmem:[%s1 + $0x1cc] sm:$0xf]
  %v144 = vld [vmem:[%s1 + $0x1d0] sm:$0xf]
  %v145 = vld [vmem:[%s1 + $0x1d4] sm:$0xf]
  %v146 = vld [vmem:[%s1 + $0x1d8] sm:$0xf]
  %v147 = vld [vmem:[%s1 + $0x1dc] sm:$0xf]
  %v148 = vld [vmem:[%s1 + $0x1e0] sm:$0xf]
  %v149 = vld [vmem:[%s1 + $0x1e4] sm:$0xf]
  %v150 = vld [vmem:[%s1 + $0x1e8] sm:$0xf]
  %v151 = vld [vmem:[%s1 + $0x1ec] sm:$0xf]
  %v152 = vld [vmem:[%s1 + $0x1f0] sm:$0xf]
  %v153 = vld [vmem:[%s1 + $0x1f4] sm:$0xf]
  %v154 = vld [vmem:[%s1 + $0x1f8] sm:$0xf]
  %v155 = vld [vmem:[%s1 + $0x1fc] sm:$0xf]
  %v156 = vld [vmem:[%s1 + $0x200] sm:$0xf]
  %v157 = vld [vmem:[%s1 + $0x204] sm:$0xf]
  %v158 = vld [vmem:[%s1 + $0x208] sm:$0xf]
  %v159 = vld [vmem:[%s1 + $0x20c] sm:$0xf]
  %v160 = vld [vmem:[%s1 + $0x210] sm:$0xf]
  %v161 = vld [vmem:[%s1 + $0x214] sm:$0xf]
  %v162 = vld [vmem:[%s1 + $0x218] sm:$0xf]
  %v163 = vld [vmem:[%s1 + $0x21c] sm:$0xf]
  %v164 = vld [vmem:[%s1 + $0x220] sm:$0xf]
  %v165 = vld [vmem:[%s1 + $0x224] sm:$0xf]
  %v166 = vld [vmem:[%s1 + $0x228] sm:$0xf]
  %v167 = vld [vmem:[%s1 + $0x22c] sm:$0xf]
  %v168 = vld [vmem:[%s1 + $0x230] sm:$0xf]
  %v169 = vld [vmem:[%s1 + $0x234] sm:$0xf]
  %v170 = vld [vmem:[%s1 + $0x238] sm:$0xf]
  %v171 = vld [vmem:[%s1 + $0x23c] sm:$0xf]
  %v182 = vunpack.c.l.b16 %v18
  %v183 = vunpack.c.h.b16 %v18
  %v184 = vunpack.c.l.b16 %v19
  %v185 = vunpack.c.h.b16 %v19
  %v186 = vunpack.c.l.b16 %v20
  %v187 = vunpack.c.h.b16 %v20
  %v188 = vunpack.c.l.b16 %v21
  %v189 = vunpack.c.h.b16 %v21
  %v190 = vunpack.c.l.b16 %v22
  %v191 = vunpack.c.l.b16 %v23
  %v192 = vunpack.c.h.b16 %v23
  %v193 = vunpack.c.l.b16 %v24
  %v194 = vunpack.c.h.b16 %v24
  %v195 = vunpack.c.l.b16 %v25
  %v196 = vunpack.c.h.b16 %v25
  %v197 = vunpack.c.l.b16 %v26
  %v198 = vunpack.c.h.b16 %v26
  %v199 = vunpack.c.l.b16 %v27
  %v200 = vpack.c.b16 %v191, %v182
  %v201 = vpack.c.b16 %v192, %v183
  %v202 = vpack.c.b16 %v193, %v184
  %v203 = vpack.c.b16 %v194, %v185
  %v204 = vpack.c.b16 %v195, %v186
  %v205 = vpack.c.b16 %v196, %v187
  %v206 = vpack.c.b16 %v197, %v188
  %v207 = vpack.c.b16 %v198, %v189
  %v208 = vpack.c.b16 %v199, %v190
  %v362 = vunpack.c.l.b16 %v28
  %v363 = vunpack.c.l.b16 %v29
  %v364 = vunpack.c.l.b16 %v30
  %v365 = vunpack.c.l.b16 %v31
  %v366 = vunpack.c.l.b16 %v32
  %v367 = vunpack.c.l.b16 %v33
  %v368 = vunpack.c.l.b16 %v34
  %v369 = vunpack.c.l.b16 %v35
  %v370 = vunpack.c.l.b16 %v36
  %v371 = vunpack.c.l.b16 %v37
  %v372 = vunpack.c.l.b16 %v38
  %v373 = vunpack.c.l.b16 %v39
  %v374 = vunpack.c.l.b16 %v40
  %v375 = vunpack.c.l.b16 %v41
  %v376 = vunpack.c.l.b16 %v42
  %v377 = vunpack.c.l.b16 %v43
  %v378 = vunpack.c.l.b16 %v44
  %v379 = vunpack.c.l.b16 %v45
  %v380 = vunpack.c.l.b16 %v46
  %v381 = vunpack.c.l.b16 %v47
  %v382 = vunpack.c.l.b16 %v48
  %v383 = vunpack.c.l.b16 %v49
  %v384 = vunpack.c.l.b16 %v50
  %v385 = vunpack.c.l.b16 %v51
  %v386 = vunpack.c.l.b16 %v52
  %v387 = vunpack.c.l.b16 %v53
  %v388 = vunpack.c.l.b16 %v54
  %v389 = vunpack.c.l.b16 %v55
  %v390 = vunpack.c.l.b16 %v56
  %v391 = vunpack.c.l.b16 %v57
  %v392 = vunpack.c.l.b16 %v58
  %v393 = vunpack.c.l.b16 %v59
  %v394 = vunpack.c.l.b16 %v60
  %v395 = vunpack.c.l.b16 %v61
  %v396 = vunpack.c.l.b16 %v62
  %v397 = vunpack.c.l.b16 %v63
  %v398 = vunpack.c.l.b16 %v64
  %v399 = vunpack.c.l.b16 %v65
  %v400 = vunpack.c.l.b16 %v66
  %v401 = vunpack.c.l.b16 %v67
  %v402 = vunpack.c.l.b16 %v68
  %v403 = vunpack.c.l.b16 %v69
  %v404 = vunpack.c.l.b16 %v70
  %v405 = vunpack.c.l.b16 %v71
  %v406 = vunpack.c.l.b16 %v72
  %v407 = vunpack.c.l.b16 %v73
  %v408 = vunpack.c.l.b16 %v74
  %v409 = vunpack.c.l.b16 %v75
  %v410 = vunpack.c.l.b16 %v76
  %v411 = vunpack.c.l.b16 %v77
  %v412 = vunpack.c.l.b16 %v78
  %v413 = vunpack.c.l.b16 %v79
  %v414 = vunpack.c.l.b16 %v80
  %v415 = vunpack.c.l.b16 %v81
  %v416 = vunpack.c.l.b16 %v82
  %v417 = vunpack.c.l.b16 %v83
  %v418 = vunpack.c.l.b16 %v84
  %v419 = vunpack.c.l.b16 %v85
  %v420 = vunpack.c.l.b16 %v86
  %v421 = vunpack.c.l.b16 %v87
  %v422 = vunpack.c.l.b16 %v88
  %v423 = vunpack.c.l.b16 %v89
  %v424 = vunpack.c.l.b16 %v90
  %v425 = vunpack.c.l.b16 %v91
  %v426 = vunpack.c.l.b16 %v92
  %v427 = vunpack.c.l.b16 %v93
  %v428 = vunpack.c.l.b16 %v94
  %v429 = vunpack.c.l.b16 %v95
  %v430 = vunpack.c.l.b16 %v96
  %v431 = vunpack.c.l.b16 %v97
  %v432 = vunpack.c.l.b16 %v98
  %v433 = vunpack.c.l.b16 %v99
  %v434 = vunpack.c.l.b16 %v100
  %v435 = vunpack.c.l.b16 %v101
  %v436 = vunpack.c.l.b16 %v102
  %v437 = vunpack.c.l.b16 %v103
  %v438 = vunpack.c.l.b16 %v104
  %v439 = vunpack.c.l.b16 %v105
  %v440 = vunpack.c.l.b16 %v106
  %v441 = vunpack.c.l.b16 %v107
  %v442 = vunpack.c.l.b16 %v108
  %v443 = vunpack.c.l.b16 %v109
  %v444 = vunpack.c.l.b16 %v110
  %v445 = vunpack.c.l.b16 %v111
  %v446 = vunpack.c.l.b16 %v112
  %v447 = vunpack.c.l.b16 %v113
  %v448 = vunpack.c.l.b16 %v114
  %v449 = vunpack.c.l.b16 %v115
  %v450 = vunpack.c.l.b16 %v116
  %v451 = vunpack.c.l.b16 %v117
  %v452 = vunpack.c.l.b16 %v118
  %v453 = vunpack.c.l.b16 %v119
  %v454 = vunpack.c.l.b16 %v120
  %v455 = vunpack.c.l.b16 %v121
  %v456 = vunpack.c.l.b16 %v122
  %v457 = vunpack.c.l.b16 %v123
  %v458 = vunpack.c.l.b16 %v124
  %v459 = vunpack.c.l.b16 %v125
  %v460 = vunpack.c.l.b16 %v126
  %v461 = vunpack.c.l.b16 %v127
  %v462 = vunpack.c.l.b16 %v128
  %v463 = vunpack.c.l.b16 %v129
  %v464 = vunpack.c.l.b16 %v130
  %v465 = vunpack.c.l.b16 %v131
  %v466 = vunpack.c.l.b16 %v132
  %v467 = vunpack.c.l.b16 %v133
  %v468 = vunpack.c.l.b16 %v134
  %v469 = vunpack.c.l.b16 %v135
  %v470 = vunpack.c.l.b16 %v136
  %v471 = vunpack.c.l.b16 %v137
  %v472 = vunpack.c.l.b16 %v138
  %v473 = vunpack.c.l.b16 %v139
  %v474 = vunpack.c.l.b16 %v140
  %v475 = vunpack.c.l.b16 %v141
  %v476 = vunpack.c.l.b16 %v142
  %v477 = vunpack.c.l.b16 %v143
  %v478 = vunpack.c.l.b16 %v144
  %v479 = vunpack.c.l.b16 %v145
  %v480 = vunpack.c.l.b16 %v146
  %v481 = vunpack.c.l.b16 %v147
  %v482 = vunpack.c.l.b16 %v148
  %v483 = vunpack.c.l.b16 %v149
  %v484 = vunpack.c.l.b16 %v150
  %v485 = vunpack.c.l.b16 %v151
  %v486 = vunpack.c.l.b16 %v152
  %v487 = vunpack.c.l.b16 %v153
  %v488 = vunpack.c.l.b16 %v154
  %v489 = vunpack.c.l.b16 %v155
  %v490 = vunpack.c.l.b16 %v156
  %v491 = vunpack.c.l.b16 %v157
  %v492 = vunpack.c.l.b16 %v158
  %v493 = vunpack.c.l.b16 %v159
  %v494 = vunpack.c.l.b16 %v160
  %v495 = vunpack.c.l.b16 %v161
  %v496 = vunpack.c.l.b16 %v162
  %v497 = vunpack.c.l.b16 %v163
  %v498 = vunpack.c.l.b16 %v164
  %v499 = vunpack.c.l.b16 %v165
  %v500 = vunpack.c.l.b16 %v166
  %v501 = vunpack.c.l.b16 %v167
  %v502 = vunpack.c.l.b16 %v168
  %v503 = vunpack.c.l.b16 %v169
  %v504 = vunpack.c.l.b16 %v170
  %v505 = vunpack.c.l.b16 %v171
  %v506 = vpack.c.b16 %v363, %v362
  %v507 = vpack.c.b16 %v365, %v364
  %v508 = vpack.c.b16 %v367, %v366
  %v509 = vpack.c.b16 %v369, %v368
  %v510 = vpack.c.b16 %v371, %v370
  %v511 = vpack.c.b16 %v373, %v372
  %v512 = vpack.c.b16 %v375, %v374
  %v513 = vpack.c.b16 %v377, %v376
  %v514 = vpack.c.b16 %v379, %v378
  %v515 = vpack.c.b16 %v381, %v380
  %v516 = vpack.c.b16 %v383, %v382
  %v517 = vpack.c.b16 %v385, %v384
  %v518 = vpack.c.b16 %v387, %v386
  %v519 = vpack.c.b16 %v389, %v388
  %v520 = vpack.c.b16 %v391, %v390
  %v521 = vpack.c.b16 %v393, %v392
  %v522 = vpack.c.b16 %v395, %v394
  %v523 = vpack.c.b16 %v397, %v396
  %v524 = vpack.c.b16 %v399, %v398
  %v525 = vpack.c.b16 %v401, %v400
  %v526 = vpack.c.b16 %v403, %v402
  %v527 = vpack.c.b16 %v405, %v404
  %v528 = vpack.c.b16 %v407, %v406
  %v529 = vpack.c.b16 %v409, %v408
  %v530 = vpack.c.b16 %v411, %v410
  %v531 = vpack.c.b16 %v413, %v412
  %v532 = vpack.c.b16 %v415, %v414
  %v533 = vpack.c.b16 %v417, %v416
  %v534 = vpack.c.b16 %v419, %v418
  %v535 = vpack.c.b16 %v421, %v420
  %v536 = vpack.c.b16 %v423, %v422
  %v537 = vpack.c.b16 %v425, %v424
  %v538 = vpack.c.b16 %v427, %v426
  %v539 = vpack.c.b16 %v429, %v428
  %v540 = vpack.c.b16 %v431, %v430
  %v541 = vpack.c.b16 %v433, %v432
  %v542 = vpack.c.b16 %v435, %v434
  %v543 = vpack.c.b16 %v437, %v436
  %v544 = vpack.c.b16 %v439, %v438
  %v545 = vpack.c.b16 %v441, %v440
  %v546 = vpack.c.b16 %v443, %v442
  %v547 = vpack.c.b16 %v445, %v444
  %v548 = vpack.c.b16 %v447, %v446
  %v549 = vpack.c.b16 %v449, %v448
  %v550 = vpack.c.b16 %v451, %v450
  %v551 = vpack.c.b16 %v453, %v452
  %v552 = vpack.c.b16 %v455, %v454
  %v553 = vpack.c.b16 %v457, %v456
  %v554 = vpack.c.b16 %v459, %v458
  %v555 = vpack.c.b16 %v461, %v460
  %v556 = vpack.c.b16 %v463, %v462
  %v557 = vpack.c.b16 %v465, %v464
  %v558 = vpack.c.b16 %v467, %v466
  %v559 = vpack.c.b16 %v469, %v468
  %v560 = vpack.c.b16 %v471, %v470
  %v561 = vpack.c.b16 %v473, %v472
  %v562 = vpack.c.b16 %v475, %v474
  %v563 = vpack.c.b16 %v477, %v476
  %v564 = vpack.c.b16 %v479, %v478
  %v565 = vpack.c.b16 %v481, %v480
  %v566 = vpack.c.b16 %v483, %v482
  %v567 = vpack.c.b16 %v485, %v484
  %v568 = vpack.c.b16 %v487, %v486
  %v569 = vpack.c.b16 %v489, %v488
  %v570 = vpack.c.b16 %v491, %v490
  %v571 = vpack.c.b16 %v493, %v492
  %v572 = vpack.c.b16 %v495, %v494
  %v573 = vpack.c.b16 %v497, %v496
  %v574 = vpack.c.b16 %v499, %v498
  %v575 = vpack.c.b16 %v501, %v500
  %v576 = vpack.c.b16 %v503, %v502
  %v577 = vpack.c.b16 %v505, %v504
  %650 = vmatprep.subr.bf16.mxu0 0
  %651 = vmatpush1.bf16.msra.mxu0 %v513
  %652 = vmatprep.subr.bf16.mxu0 0
  %653 = vmatpush1.bf16.msra.mxu0 %v512
  %654 = vmatprep.subr.bf16.mxu0 0
  %655 = vmatpush1.bf16.msra.mxu0 %v511
  %656 = vmatprep.subr.bf16.mxu0 0
  %657 = vmatpush1.bf16.msra.mxu0 %v510
  %658 = vmatprep.subr.bf16.mxu0 0
  %659 = vmatpush1.bf16.msra.mxu0 %v509
  %660 = vmatprep.subr.bf16.mxu0 0
  %661 = vmatpush1.bf16.msra.mxu0 %v508
  %662 = vmatprep.subr.bf16.mxu0 0
  %663 = vmatpush1.bf16.msra.mxu0 %v507
  %664 = vmatprep.subr.bf16.mxu0 0
  %665 = vmatpush1.bf16.msra.mxu0 %v506
  %666 = vmatprep.subr.bf16.mxu0 0
  %667 = vmatpush2.bf16.msra.mxu0 %v521
  %668 = vmatprep.subr.bf16.mxu0 0
  %669 = vmatpush2.bf16.msra.mxu0 %v520
  %670 = vmatprep.subr.bf16.mxu0 0
  %671 = vmatpush2.bf16.msra.mxu0 %v519
  %672 = vmatprep.subr.bf16.mxu0 0
  %673 = vmatpush2.bf16.msra.mxu0 %v518
  %674 = vmatprep.subr.bf16.mxu0 0
  %675 = vmatpush2.bf16.msra.mxu0 %v517
  %676 = vmatprep.subr.bf16.mxu0 0
  %677 = vmatpush2.bf16.msra.mxu0 %v516
  %678 = vmatprep.subr.bf16.mxu0 0
  %679 = vmatpush2.bf16.msra.mxu0 %v515
  %680 = vmatprep.subr.bf16.mxu0 0
  %681 = vmatpush2.bf16.msra.mxu0 %v514
  %682 = vmatprep.mubr.bf16.mxu0 %v201
  %683 = vmatmul.mubr.bf16.gmra.mxu0 %v200
  %v684 = vpop.f32.mrf.mxu0
  %v685 = vadd.f32 0.0, %v684
  %v686 = vpop.f32.mrf.mxu0
  %v687 = vpop.f32.mrf.mxu0
  %v688 = vadd.f32 0.0, %v687
  %v689 = vpop.f32.mrf.mxu0
  %690 = vdwg.mxu0
  %691 = vmatprep.subr.bf16.mxu0 0
  %692 = vmatpush1.bf16.msra.mxu0 %v529
  %693 = vmatprep.subr.bf16.mxu0 0
  %694 = vmatpush1.bf16.msra.mxu0 %v528
  %695 = vmatprep.subr.bf16.mxu0 0
  %696 = vmatpush1.bf16.msra.mxu0 %v527
  %697 = vmatprep.subr.bf16.mxu0 0
  %698 = vmatpush1.bf16.msra.mxu0 %v526
  %699 = vmatprep.subr.bf16.mxu0 0
  %700 = vmatpush1.bf16.msra.mxu0 %v525
  %701 = vmatprep.subr.bf16.mxu0 0
  %702 = vmatpush1.bf16.msra.mxu0 %v524
  %703 = vmatprep.subr.bf16.mxu0 0
  %704 = vmatpush1.bf16.msra.mxu0 %v523
  %705 = vmatprep.subr.bf16.mxu0 0
  %706 = vmatpush1.bf16.msra.mxu0 %v522
  %707 = vmatprep.subr.bf16.mxu0 0
  %708 = vmatpush2.bf16.msra.mxu0 %v537
  %709 = vmatprep.subr.bf16.mxu0 0
  %710 = vmatpush2.bf16.msra.mxu0 %v536
  %711 = vmatprep.subr.bf16.mxu0 0
  %712 = vmatpush2.bf16.msra.mxu0 %v535
  %713 = vmatprep.subr.bf16.mxu0 0
  %714 = vmatpush2.bf16.msra.mxu0 %v534
  %715 = vmatprep.subr.bf16.mxu0 0
  %716 = vmatpush2.bf16.msra.mxu0 %v533
  %717 = vmatprep.subr.bf16.mxu0 0
  %718 = vmatpush2.bf16.msra.mxu0 %v532
  %719 = vmatprep.subr.bf16.mxu0 0
  %720 = vmatpush2.bf16.msra.mxu0 %v531
  %721 = vmatprep.subr.bf16.mxu0 0
  %722 = vmatpush2.bf16.msra.mxu0 %v530
  %723 = vmatprep.mubr.bf16.mxu0 %v203
  %724 = vmatmul.mubr.bf16.gmra.mxu0 %v202
  %v725 = vpop.f32.mrf.mxu0
  %v726 = vadd.f32 %v685, %v725
  %v727 = vpop.f32.mrf.mxu0
  %v728 = vpop.f32.mrf.mxu0
  %v729 = vadd.f32 %v688, %v728
  %v730 = vpop.f32.mrf.mxu0
  %731 = vdwg.mxu0
  %732 = vmatprep.subr.bf16.mxu0 0
  %733 = vmatpush1.bf16.msra.mxu0 %v545
  %734 = vmatprep.subr.bf16.mxu0 0
  %735 = vmatpush1.bf16.msra.mxu0 %v544
  %736 = vmatprep.subr.bf16.mxu0 0
  %737 = vmatpush1.bf16.msra.mxu0 %v543
  %738 = vmatprep.subr.bf16.mxu0 0
  %739 = vmatpush1.bf16.msra.mxu0 %v542
  %740 = vmatprep.subr.bf16.mxu0 0
  %741 = vmatpush1.bf16.msra.mxu0 %v541
  %742 = vmatprep.subr.bf16.mxu0 0
  %743 = vmatpush1.bf16.msra.mxu0 %v540
  %744 = vmatprep.subr.bf16.mxu0 0
  %745 = vmatpush1.bf16.msra.mxu0 %v539
  %746 = vmatprep.subr.bf16.mxu0 0
  %747 = vmatpush1.bf16.msra.mxu0 %v538
  %748 = vmatprep.subr.bf16.mxu0 0
  %749 = vmatpush2.bf16.msra.mxu0 %v553
  %750 = vmatprep.subr.bf16.mxu0 0
  %751 = vmatpush2.bf16.msra.mxu0 %v552
  %752 = vmatprep.subr.bf16.mxu0 0
  %753 = vmatpush2.bf16.msra.mxu0 %v551
  %754 = vmatprep.subr.bf16.mxu0 0
  %755 = vmatpush2.bf16.msra.mxu0 %v550
  %756 = vmatprep.subr.bf16.mxu0 0
  %757 = vmatpush2.bf16.msra.mxu0 %v549
  %758 = vmatprep.subr.bf16.mxu0 0
  %759 = vmatpush2.bf16.msra.mxu0 %v548
  %760 = vmatprep.subr.bf16.mxu0 0
  %761 = vmatpush2.bf16.msra.mxu0 %v547
  %762 = vmatprep.subr.bf16.mxu0 0
  %763 = vmatpush2.bf16.msra.mxu0 %v546
  %764 = vmatprep.mubr.bf16.mxu0 %v205
  %765 = vmatmul.mubr.bf16.gmra.mxu0 %v204
  %v766 = vpop.f32.mrf.mxu0
  %v767 = vadd.f32 %v726, %v766
  %v768 = vpop.f32.mrf.mxu0
  %v769 = vpop.f32.mrf.mxu0
  %v770 = vadd.f32 %v729, %v769
  %v771 = vpop.f32.mrf.mxu0
  %772 = vdwg.mxu0
  %773 = vmatprep.subr.bf16.mxu0 0
  %774 = vmatpush1.bf16.msra.mxu0 %v561
  %775 = vmatprep.subr.bf16.mxu0 0
  %776 = vmatpush1.bf16.msra.mxu0 %v560
  %777 = vmatprep.subr.bf16.mxu0 0
  %778 = vmatpush1.bf16.msra.mxu0 %v559
  %779 = vmatprep.subr.bf16.mxu0 0
  %780 = vmatpush1.bf16.msra.mxu0 %v558
  %781 = vmatprep.subr.bf16.mxu0 0
  %782 = vmatpush1.bf16.msra.mxu0 %v557
  %783 = vmatprep.subr.bf16.mxu0 0
  %784 = vmatpush1.bf16.msra.mxu0 %v556
  %785 = vmatprep.subr.bf16.mxu0 0
  %786 = vmatpush1.bf16.msra.mxu0 %v555
  %787 = vmatprep.subr.bf16.mxu0 0
  %788 = vmatpush1.bf16.msra.mxu0 %v554
  %789 = vmatprep.subr.bf16.mxu0 0
  %790 = vmatpush2.bf16.msra.mxu0 %v569
  %791 = vmatprep.subr.bf16.mxu0 0
  %792 = vmatpush2.bf16.msra.mxu0 %v568
  %793 = vmatprep.subr.bf16.mxu0 0
  %794 = vmatpush2.bf16.msra.mxu0 %v567
  %795 = vmatprep.subr.bf16.mxu0 0
  %796 = vmatpush2.bf16.msra.mxu0 %v566
  %797 = vmatprep.subr.bf16.mxu0 0
  %798 = vmatpush2.bf16.msra.mxu0 %v565
  %799 = vmatprep.subr.bf16.mxu0 0
  %800 = vmatpush2.bf16.msra.mxu0 %v564
  %801 = vmatprep.subr.bf16.mxu0 0
  %802 = vmatpush2.bf16.msra.mxu0 %v563
  %803 = vmatprep.subr.bf16.mxu0 0
  %804 = vmatpush2.bf16.msra.mxu0 %v562
  %805 = vmatprep.mubr.bf16.mxu0 %v207
  %806 = vmatmul.mubr.bf16.gmra.mxu0 %v206
  %v807 = vpop.f32.mrf.mxu0
  %v808 = vadd.f32 %v767, %v807
  %v809 = vpop.f32.mrf.mxu0
  %v810 = vpop.f32.mrf.mxu0
  %v811 = vadd.f32 %v770, %v810
  %v812 = vpop.f32.mrf.mxu0
  %813 = vdwg.mxu0
  %814 = vmatprep.subr.bf16.mxu0 0
  %815 = vmatpush1.bf16.msra.mxu0 %v577
  %816 = vmatprep.subr.bf16.mxu0 0
  %817 = vmatpush1.bf16.msra.mxu0 %v576
  %818 = vmatprep.subr.bf16.mxu0 0
  %819 = vmatpush1.bf16.msra.mxu0 %v575
  %820 = vmatprep.subr.bf16.mxu0 0
  %821 = vmatpush1.bf16.msra.mxu0 %v574
  %822 = vmatprep.subr.bf16.mxu0 0
  %823 = vmatpush1.bf16.msra.mxu0 %v573
  %824 = vmatprep.subr.bf16.mxu0 0
  %825 = vmatpush1.bf16.msra.mxu0 %v572
  %826 = vmatprep.subr.bf16.mxu0 0
  %827 = vmatpush1.bf16.msra.mxu0 %v571
  %828 = vmatprep.subr.bf16.mxu0 0
  %829 = vmatpush1.bf16.msra.mxu0 %v570
  %830 = vmatprep.subr.bf16.mxu0 0
  %831 = vmatpush2.bf16.msra.mxu0 0
  %832 = vmatprep.subr.bf16.mxu0 0
  %833 = vmatpush2.bf16.msra.mxu0 0
  %834 = vmatprep.subr.bf16.mxu0 0
  %835 = vmatpush2.bf16.msra.mxu0 0
  %836 = vmatprep.subr.bf16.mxu0 0
  %837 = vmatpush2.bf16.msra.mxu0 0
  %838 = vmatprep.subr.bf16.mxu0 0
  %839 = vmatpush2.bf16.msra.mxu0 0
  %840 = vmatprep.subr.bf16.mxu0 0
  %841 = vmatpush2.bf16.msra.mxu0 0
  %842 = vmatprep.subr.bf16.mxu0 0
  %843 = vmatpush2.bf16.msra.mxu0 0
  %844 = vmatprep.subr.bf16.mxu0 0
  %845 = vmatpush2.bf16.msra.mxu0 0
  %846 = vmatprep.mubr.bf16.mxu0 0
  %847 = vmatmul.mubr.bf16.gmra.mxu0 %v208
  %v848 = vpop.f32.mrf.mxu0
  %v849 = vadd.f32 %v808, %v848
  %v850 = vpop.f32.mrf.mxu0
  %v851 = vpop.f32.mrf.mxu0
  %v852 = vadd.f32 %v811, %v851
  %v853 = vpop.f32.mrf.mxu0
  %854 = vdwg.mxu0
  %v855 = vld [vmem:[%s2] sm:$0x1]
  %v856 = vlaneseq
  %v857 = vshrl.u32 %v856, 7
  %v858 = vsub.s32 0, %v857
  %v859 = vrot.slane %v855, %v858
  %v860 = vmul.f32 %v849, %v859
  %v861 = vmul.f32 %v852, %v859
  %v862 = vld [vmem:[%s2 + $0x1] sm:$0x1]
  %v863 = vlaneseq
  %v864 = vshrl.u32 %v863, 7
  %v865 = vsub.s32 0, %v864
  %v866 = vrot.slane %v862, %v865
  %v867 = vadd.f32 %v860, %v866
  %v868 = vadd.f32 %v861, %v866
  %v869 = vld [vmem:[%s3] sm:$0xf]
  %v870 = vld [vmem:[%s3 + $0x4] sm:$0xf]
  %v871 = vunpack.c.l.bf16 %v869
  %v872 = vunpack.c.l.bf16 %v870
  %v873 = vadd.f32 %v867, %v871
  %v874 = vadd.f32 %v868, %v872
  %v875 = vmax.f32 %v873, 0.0
  %v876 = vmax.f32 %v874, 0.0
  %v877 = vpack.c.bf16 %v876, %v875
  %v879 = vunpack.c.l.b16 %v877
  %v880 = vunpack.c.h.b16 %v877
  %v881 = vpack.c.b16 %v879, %v879
  %v882 = vpack.c.b16 %v880, %v880
  %885 = vst [vmem:[%s4] sm:$0xf] %v881
  %886 = vst [vmem:[%s4 + $0x4] sm:$0xf] %v882
  // Predicated region
  $region18: #{_lambda_.27} parent=0 // pred_check
    _
  $region19: #{_lambda_.27} parent=0 // pred_check_branch
    %888 = sbr.rel (0) target = $region21
  $region20: #{_lambda_.27} parent=0 // pred_region
    _
  $region21: #{_lambda_.27} parent=0 // pred_fallthru
    _
  // Predicated region
  $region22: #{_lambda_.27} parent=0 // pred_check
    _
  $region23: #{_lambda_.27} parent=0 // pred_check_branch
    %890 = sbr.rel (0) target = $region25
  $region24: #{_lambda_.27} parent=0 // pred_region
    _
  $region25: #{_lambda_.27} parent=0 // pred_fallthru
    _

// kernel: _lambda_.28
$region0: #{_lambda_.28}
  #allocation0 [shape = 'u32[]', space=smem, size = 0x4, offset = 0x4, fixed_abs, tag = 'smem constant byte address 0x4 - core index']
  #allocation1 [shape = 'u32[144,128]{1,0:T(1,128)}', space=vmem, size = 0x12000, scoped, tag = 'internal scratch']
  %s0 = inlined_call_operand.vmem [shape: bf16[16,1152], index: 0, kind: input, shape index: {}]
  %s1 = inlined_call_operand.vmem [shape: bf16[1152,128], index: 1, kind: input, shape index: {}]
  %s2 = inlined_call_operand.vmem [shape: f32[2,128], index: 2, kind: input, shape index: {}]
  %s3 = inlined_call_operand.vmem [shape: bf16[16,128], index: 3, kind: output, shape index: {}]
  %s4 = sld [smem:[#allocation0]]
  $region22: #{_lambda_.28} parent=0
    _
  %s6 = ssub.s32 1, %s4
  %s7 = scalar_select 0, %s6, %s4
  // Predicated region
  $region2: #{_lambda_.28} parent=0 // pred_check
    _
  $region3: #{_lambda_.28} parent=0 // pred_check_branch
    %9 = sbr.rel (0) target = $region5
  $region4: #{_lambda_.28} parent=0 // pred_region
    _
  $region5: #{_lambda_.28} parent=0 // pred_fallthru
    _
  // Predicated region
  $region6: #{_lambda_.28} parent=0 // pred_check
    _
  $region7: #{_lambda_.28} parent=0 // pred_check_branch
    %11 = sbr.rel (0) target = $region9
  $region8: #{_lambda_.28} parent=0 // pred_region
    _
  $region9: #{_lambda_.28} parent=0 // pred_fallthru
    _
  // Predicated region
  $region10: #{_lambda_.28} parent=0 // pred_check
    _
  $region11: #{_lambda_.28} parent=0 // pred_check_branch
    %13 = sbr.rel (0) target = $region13
  $region12: #{_lambda_.28} parent=0 // pred_region
    _
  $region13: #{_lambda_.28} parent=0 // pred_fallthru
    _
  %v15 = vld [vmem:[%s0] sm:$0xff]
  %v16 = vld [vmem:[%s0 + $0x8] sm:$0xff]
  %v17 = vld [vmem:[%s0 + $0x10] sm:$0xff]
  %v18 = vld [vmem:[%s0 + $0x18] sm:$0xff]
  %v19 = vld [vmem:[%s0 + $0x20] sm:$0xf]
  %v20 = vld [vmem:[%s0 + $0x24] sm:$0xff]
  %v21 = vld [vmem:[%s0 + $0x2c] sm:$0xff]
  %v22 = vld [vmem:[%s0 + $0x34] sm:$0xff]
  %v23 = vld [vmem:[%s0 + $0x3c] sm:$0xff]
  %v24 = vld [vmem:[%s0 + $0x44] sm:$0xf]
  %v25 = vld [vmem:[%s1] sm:$0xf]
  %v26 = vld [vmem:[%s1 + $0x4] sm:$0xf]
  %v27 = vld [vmem:[%s1 + $0x8] sm:$0xf]
  %v28 = vld [vmem:[%s1 + $0xc] sm:$0xf]
  %v29 = vld [vmem:[%s1 + $0x10] sm:$0xf]
  %v30 = vld [vmem:[%s1 + $0x14] sm:$0xf]
  %v31 = vld [vmem:[%s1 + $0x18] sm:$0xf]
  %v32 = vld [vmem:[%s1 + $0x1c] sm:$0xf]
  %v33 = vld [vmem:[%s1 + $0x20] sm:$0xf]
  %v34 = vld [vmem:[%s1 + $0x24] sm:$0xf]
  %v35 = vld [vmem:[%s1 + $0x28] sm:$0xf]
  %v36 = vld [vmem:[%s1 + $0x2c] sm:$0xf]
  %v37 = vld [vmem:[%s1 + $0x30] sm:$0xf]
  %v38 = vld [vmem:[%s1 + $0x34] sm:$0xf]
  %v39 = vld [vmem:[%s1 + $0x38] sm:$0xf]
  %v40 = vld [vmem:[%s1 + $0x3c] sm:$0xf]
  %v41 = vld [vmem:[%s1 + $0x40] sm:$0xf]
  %v42 = vld [vmem:[%s1 + $0x44] sm:$0xf]
  %v43 = vld [vmem:[%s1 + $0x48] sm:$0xf]
  %v44 = vld [vmem:[%s1 + $0x4c] sm:$0xf]
  %v45 = vld [vmem:[%s1 + $0x50] sm:$0xf]
  %v46 = vld [vmem:[%s1 + $0x54] sm:$0xf]
  %v47 = vld [vmem:[%s1 + $0x58] sm:$0xf]
  %v48 = vld [vmem:[%s1 + $0x5c] sm:$0xf]
  %v49 = vld [vmem:[%s1 + $0x60] sm:$0xf]
  %v50 = vld [vmem:[%s1 + $0x64] sm:$0xf]
  %v51 = vld [vmem:[%s1 + $0x68] sm:$0xf]
  %v52 = vld [vmem:[%s1 + $0x6c] sm:$0xf]
  %v53 = vld [vmem:[%s1 + $0x70] sm:$0xf]
  %v54 = vld [vmem:[%s1 + $0x74] sm:$0xf]
  %v55 = vld [vmem:[%s1 + $0x78] sm:$0xf]
  %v56 = vld [vmem:[%s1 + $0x7c] sm:$0xf]
  %v57 = vld [vmem:[%s1 + $0x80] sm:$0xf]
  %v58 = vld [vmem:[%s1 + $0x84] sm:$0xf]
  %v59 = vld [vmem:[%s1 + $0x88] sm:$0xf]
  %v60 = vld [vmem:[%s1 + $0x8c] sm:$0xf]
  %v61 = vld [vmem:[%s1 + $0x90] sm:$0xf]
  %v62 = vld [vmem:[%s1 + $0x94] sm:$0xf]
  %v63 = vld [vmem:[%s1 + $0x98] sm:$0xf]
  %v64 = vld [vmem:[%s1 + $0x9c] sm:$0xf]
  %v65 = vld [vmem:[%s1 + $0xa0] sm:$0xf]
  %v66 = vld [vmem:[%s1 + $0xa4] sm:$0xf]
  %v67 = vld [vmem:[%s1 + $0xa8] sm:$0xf]
  %v68 = vld [vmem:[%s1 + $0xac] sm:$0xf]
  %v69 = vld [vmem:[%s1 + $0xb0] sm:$0xf]
  %v70 = vld [vmem:[%s1 + $0xb4] sm:$0xf]
  %v71 = vld [vmem:[%s1 + $0xb8] sm:$0xf]
  %v72 = vld [vmem:[%s1 + $0xbc] sm:$0xf]
  %v73 = vld [vmem:[%s1 + $0xc0] sm:$0xf]
  %v74 = vld [vmem:[%s1 + $0xc4] sm:$0xf]
  %v75 = vld [vmem:[%s1 + $0xc8] sm:$0xf]
  %v76 = vld [vmem:[%s1 + $0xcc] sm:$0xf]
  %v77 = vld [vmem:[%s1 + $0xd0] sm:$0xf]
  %v78 = vld [vmem:[%s1 + $0xd4] sm:$0xf]
  %v79 = vld [vmem:[%s1 + $0xd8] sm:$0xf]
  %v80 = vld [vmem:[%s1 + $0xdc] sm:$0xf]
  %v81 = vld [vmem:[%s1 + $0xe0] sm:$0xf]
  %v82 = vld [vmem:[%s1 + $0xe4] sm:$0xf]
  %v83 = vld [vmem:[%s1 + $0xe8] sm:$0xf]
  %v84 = vld [vmem:[%s1 + $0xec] sm:$0xf]
  %v85 = vld [vmem:[%s1 + $0xf0] sm:$0xf]
  %v86 = vld [vmem:[%s1 + $0xf4] sm:$0xf]
  %v87 = vld [vmem:[%s1 + $0xf8] sm:$0xf]
  %v88 = vld [vmem:[%s1 + $0xfc] sm:$0xf]
  %v89 = vld [vmem:[%s1 + $0x100] sm:$0xf]
  %v90 = vld [vmem:[%s1 + $0x104] sm:$0xf]
  %v91 = vld [vmem:[%s1 + $0x108] sm:$0xf]
  %v92 = vld [vmem:[%s1 + $0x10c] sm:$0xf]
  %v93 = vld [vmem:[%s1 + $0x110] sm:$0xf]
  %v94 = vld [vmem:[%s1 + $0x114] sm:$0xf]
  %v95 = vld [vmem:[%s1 + $0x118] sm:$0xf]
  %v96 = vld [vmem:[%s1 + $0x11c] sm:$0xf]
  %v97 = vld [vmem:[%s1 + $0x120] sm:$0xf]
  %v98 = vld [vmem:[%s1 + $0x124] sm:$0xf]
  %v99 = vld [vmem:[%s1 + $0x128] sm:$0xf]
  %v100 = vld [vmem:[%s1 + $0x12c] sm:$0xf]
  %v101 = vld [vmem:[%s1 + $0x130] sm:$0xf]
  %v102 = vld [vmem:[%s1 + $0x134] sm:$0xf]
  %v103 = vld [vmem:[%s1 + $0x138] sm:$0xf]
  %v104 = vld [vmem:[%s1 + $0x13c] sm:$0xf]
  %v105 = vld [vmem:[%s1 + $0x140] sm:$0xf]
  %v106 = vld [vmem:[%s1 + $0x144] sm:$0xf]
  %v107 = vld [vmem:[%s1 + $0x148] sm:$0xf]
  %v108 = vld [vmem:[%s1 + $0x14c] sm:$0xf]
  %v109 = vld [vmem:[%s1 + $0x150] sm:$0xf]
  %v110 = vld [vmem:[%s1 + $0x154] sm:$0xf]
  %v111 = vld [vmem:[%s1 + $0x158] sm:$0xf]
  %v112 = vld [vmem:[%s1 + $0x15c] sm:$0xf]
  %v113 = vld [vmem:[%s1 + $0x160] sm:$0xf]
  %v114 = vld [vmem:[%s1 + $0x164] sm:$0xf]
  %v115 = vld [vmem:[%s1 + $0x168] sm:$0xf]
  %v116 = vld [vmem:[%s1 + $0x16c] sm:$0xf]
  %v117 = vld [vmem:[%s1 + $0x170] sm:$0xf]
  %v118 = vld [vmem:[%s1 + $0x174] sm:$0xf]
  %v119 = vld [vmem:[%s1 + $0x178] sm:$0xf]
  %v120 = vld [vmem:[%s1 + $0x17c] sm:$0xf]
  %v121 = vld [vmem:[%s1 + $0x180] sm:$0xf]
  %v122 = vld [vmem:[%s1 + $0x184] sm:$0xf]
  %v123 = vld [vmem:[%s1 + $0x188] sm:$0xf]
  %v124 = vld [vmem:[%s1 + $0x18c] sm:$0xf]
  %v125 = vld [vmem:[%s1 + $0x190] sm:$0xf]
  %v126 = vld [vmem:[%s1 + $0x194] sm:$0xf]
  %v127 = vld [vmem:[%s1 + $0x198] sm:$0xf]
  %v128 = vld [vmem:[%s1 + $0x19c] sm:$0xf]
  %v129 = vld [vmem:[%s1 + $0x1a0] sm:$0xf]
  %v130 = vld [vmem:[%s1 + $0x1a4] sm:$0xf]
  %v131 = vld [vmem:[%s1 + $0x1a8] sm:$0xf]
  %v132 = vld [vmem:[%s1 + $0x1ac] sm:$0xf]
  %v133 = vld [vmem:[%s1 + $0x1b0] sm:$0xf]
  %v134 = vld [vmem:[%s1 + $0x1b4] sm:$0xf]
  %v135 = vld [vmem:[%s1 + $0x1b8] sm:$0xf]
  %v136 = vld [vmem:[%s1 + $0x1bc] sm:$0xf]
  %v137 = vld [vmem:[%s1 + $0x1c0] sm:$0xf]
  %v138 = vld [vmem:[%s1 + $0x1c4] sm:$0xf]
  %v139 = vld [vmem:[%s1 + $0x1c8] sm:$0xf]
  %v140 = vld [vmem:[%s1 + $0x1cc] sm:$0xf]
  %v141 = vld [vmem:[%s1 + $0x1d0] sm:$0xf]
  %v142 = vld [vmem:[%s1 + $0x1d4] sm:$0xf]
  %v143 = vld [vmem:[%s1 + $0x1d8] sm:$0xf]
  %v144 = vld [vmem:[%s1 + $0x1dc] sm:$0xf]
  %v145 = vld [vmem:[%s1 + $0x1e0] sm:$0xf]
  %v146 = vld [vmem:[%s1 + $0x1e4] sm:$0xf]
  %v147 = vld [vmem:[%s1 + $0x1e8] sm:$0xf]
  %v148 = vld [vmem:[%s1 + $0x1ec] sm:$0xf]
  %v149 = vld [vmem:[%s1 + $0x1f0] sm:$0xf]
  %v150 = vld [vmem:[%s1 + $0x1f4] sm:$0xf]
  %v151 = vld [vmem:[%s1 + $0x1f8] sm:$0xf]
  %v152 = vld [vmem:[%s1 + $0x1fc] sm:$0xf]
  %v153 = vld [vmem:[%s1 + $0x200] sm:$0xf]
  %v154 = vld [vmem:[%s1 + $0x204] sm:$0xf]
  %v155 = vld [vmem:[%s1 + $0x208] sm:$0xf]
  %v156 = vld [vmem:[%s1 + $0x20c] sm:$0xf]
  %v157 = vld [vmem:[%s1 + $0x210] sm:$0xf]
  %v158 = vld [vmem:[%s1 + $0x214] sm:$0xf]
  %v159 = vld [vmem:[%s1 + $0x218] sm:$0xf]
  %v160 = vld [vmem:[%s1 + $0x21c] sm:$0xf]
  %v161 = vld [vmem:[%s1 + $0x220] sm:$0xf]
  %v162 = vld [vmem:[%s1 + $0x224] sm:$0xf]
  %v163 = vld [vmem:[%s1 + $0x228] sm:$0xf]
  %v164 = vld [vmem:[%s1 + $0x22c] sm:$0xf]
  %v165 = vld [vmem:[%s1 + $0x230] sm:$0xf]
  %v166 = vld [vmem:[%s1 + $0x234] sm:$0xf]
  %v167 = vld [vmem:[%s1 + $0x238] sm:$0xf]
  %v168 = vld [vmem:[%s1 + $0x23c] sm:$0xf]
  %v179 = vunpack.c.l.b16 %v15
  %v180 = vunpack.c.h.b16 %v15
  %v181 = vunpack.c.l.b16 %v16
  %v182 = vunpack.c.h.b16 %v16
  %v183 = vunpack.c.l.b16 %v17
  %v184 = vunpack.c.h.b16 %v17
  %v185 = vunpack.c.l.b16 %v18
  %v186 = vunpack.c.h.b16 %v18
  %v187 = vunpack.c.l.b16 %v19
  %v188 = vunpack.c.l.b16 %v20
  %v189 = vunpack.c.h.b16 %v20
  %v190 = vunpack.c.l.b16 %v21
  %v191 = vunpack.c.h.b16 %v21
  %v192 = vunpack.c.l.b16 %v22
  %v193 = vunpack.c.h.b16 %v22
  %v194 = vunpack.c.l.b16 %v23
  %v195 = vunpack.c.h.b16 %v23
  %v196 = vunpack.c.l.b16 %v24
  %v197 = vpack.c.b16 %v188, %v179
  %v198 = vpack.c.b16 %v189, %v180
  %v199 = vpack.c.b16 %v190, %v181
  %v200 = vpack.c.b16 %v191, %v182
  %v201 = vpack.c.b16 %v192, %v183
  %v202 = vpack.c.b16 %v193, %v184
  %v203 = vpack.c.b16 %v194, %v185
  %v204 = vpack.c.b16 %v195, %v186
  %v205 = vpack.c.b16 %v196, %v187
  %v359 = vunpack.c.l.b16 %v25
  %v360 = vunpack.c.l.b16 %v26
  %v361 = vunpack.c.l.b16 %v27
  %v362 = vunpack.c.l.b16 %v28
  %v363 = vunpack.c.l.b16 %v29
  %v364 = vunpack.c.l.b16 %v30
  %v365 = vunpack.c.l.b16 %v31
  %v366 = vunpack.c.l.b16 %v32
  %v367 = vunpack.c.l.b16 %v33
  %v368 = vunpack.c.l.b16 %v34
  %v369 = vunpack.c.l.b16 %v35
  %v370 = vunpack.c.l.b16 %v36
  %v371 = vunpack.c.l.b16 %v37
  %v372 = vunpack.c.l.b16 %v38
  %v373 = vunpack.c.l.b16 %v39
  %v374 = vunpack.c.l.b16 %v40
  %v375 = vunpack.c.l.b16 %v41
  %v376 = vunpack.c.l.b16 %v42
  %v377 = vunpack.c.l.b16 %v43
  %v378 = vunpack.c.l.b16 %v44
  %v379 = vunpack.c.l.b16 %v45
  %v380 = vunpack.c.l.b16 %v46
  %v381 = vunpack.c.l.b16 %v47
  %v382 = vunpack.c.l.b16 %v48
  %v383 = vunpack.c.l.b16 %v49
  %v384 = vunpack.c.l.b16 %v50
  %v385 = vunpack.c.l.b16 %v51
  %v386 = vunpack.c.l.b16 %v52
  %v387 = vunpack.c.l.b16 %v53
  %v388 = vunpack.c.l.b16 %v54
  %v389 = vunpack.c.l.b16 %v55
  %v390 = vunpack.c.l.b16 %v56
  %v391 = vunpack.c.l.b16 %v57
  %v392 = vunpack.c.l.b16 %v58
  %v393 = vunpack.c.l.b16 %v59
  %v394 = vunpack.c.l.b16 %v60
  %v395 = vunpack.c.l.b16 %v61
  %v396 = vunpack.c.l.b16 %v62
  %v397 = vunpack.c.l.b16 %v63
  %v398 = vunpack.c.l.b16 %v64
  %v399 = vunpack.c.l.b16 %v65
  %v400 = vunpack.c.l.b16 %v66
  %v401 = vunpack.c.l.b16 %v67
  %v402 = vunpack.c.l.b16 %v68
  %v403 = vunpack.c.l.b16 %v69
  %v404 = vunpack.c.l.b16 %v70
  %v405 = vunpack.c.l.b16 %v71
  %v406 = vunpack.c.l.b16 %v72
  %v407 = vunpack.c.l.b16 %v73
  %v408 = vunpack.c.l.b16 %v74
  %v409 = vunpack.c.l.b16 %v75
  %v410 = vunpack.c.l.b16 %v76
  %v411 = vunpack.c.l.b16 %v77
  %v412 = vunpack.c.l.b16 %v78
  %v413 = vunpack.c.l.b16 %v79
  %v414 = vunpack.c.l.b16 %v80
  %v415 = vunpack.c.l.b16 %v81
  %v416 = vunpack.c.l.b16 %v82
  %v417 = vunpack.c.l.b16 %v83
  %v418 = vunpack.c.l.b16 %v84
  %v419 = vunpack.c.l.b16 %v85
  %v420 = vunpack.c.l.b16 %v86
  %v421 = vunpack.c.l.b16 %v87
  %v422 = vunpack.c.l.b16 %v88
  %v423 = vunpack.c.l.b16 %v89
  %v424 = vunpack.c.l.b16 %v90
  %v425 = vunpack.c.l.b16 %v91
  %v426 = vunpack.c.l.b16 %v92
  %v427 = vunpack.c.l.b16 %v93
  %v428 = vunpack.c.l.b16 %v94
  %v429 = vunpack.c.l.b16 %v95
  %v430 = vunpack.c.l.b16 %v96
  %v431 = vunpack.c.l.b16 %v97
  %v432 = vunpack.c.l.b16 %v98
  %v433 = vunpack.c.l.b16 %v99
  %v434 = vunpack.c.l.b16 %v100
  %v435 = vunpack.c.l.b16 %v101
  %v436 = vunpack.c.l.b16 %v102
  %v437 = vunpack.c.l.b16 %v103
  %v438 = vunpack.c.l.b16 %v104
  %v439 = vunpack.c.l.b16 %v105
  %v440 = vunpack.c.l.b16 %v106
  %v441 = vunpack.c.l.b16 %v107
  %v442 = vunpack.c.l.b16 %v108
  %v443 = vunpack.c.l.b16 %v109
  %v444 = vunpack.c.l.b16 %v110
  %v445 = vunpack.c.l.b16 %v111
  %v446 = vunpack.c.l.b16 %v112
  %v447 = vunpack.c.l.b16 %v113
  %v448 = vunpack.c.l.b16 %v114
  %v449 = vunpack.c.l.b16 %v115
  %v450 = vunpack.c.l.b16 %v116
  %v451 = vunpack.c.l.b16 %v117
  %v452 = vunpack.c.l.b16 %v118
  %v453 = vunpack.c.l.b16 %v119
  %v454 = vunpack.c.l.b16 %v120
  %v455 = vunpack.c.l.b16 %v121
  %v456 = vunpack.c.l.b16 %v122
  %v457 = vunpack.c.l.b16 %v123
  %v458 = vunpack.c.l.b16 %v124
  %v459 = vunpack.c.l.b16 %v125
  %v460 = vunpack.c.l.b16 %v126
  %v461 = vunpack.c.l.b16 %v127
  %v462 = vunpack.c.l.b16 %v128
  %v463 = vunpack.c.l.b16 %v129
  %v464 = vunpack.c.l.b16 %v130
  %v465 = vunpack.c.l.b16 %v131
  %v466 = vunpack.c.l.b16 %v132
  %v467 = vunpack.c.l.b16 %v133
  %v468 = vunpack.c.l.b16 %v134
  %v469 = vunpack.c.l.b16 %v135
  %v470 = vunpack.c.l.b16 %v136
  %v471 = vunpack.c.l.b16 %v137
  %v472 = vunpack.c.l.b16 %v138
  %v473 = vunpack.c.l.b16 %v139
  %v474 = vunpack.c.l.b16 %v140
  %v475 = vunpack.c.l.b16 %v141
  %v476 = vunpack.c.l.b16 %v142
  %v477 = vunpack.c.l.b16 %v143
  %v478 = vunpack.c.l.b16 %v144
  %v479 = vunpack.c.l.b16 %v145
  %v480 = vunpack.c.l.b16 %v146
  %v481 = vunpack.c.l.b16 %v147
  %v482 = vunpack.c.l.b16 %v148
  %v483 = vunpack.c.l.b16 %v149
  %v484 = vunpack.c.l.b16 %v150
  %v485 = vunpack.c.l.b16 %v151
  %v486 = vunpack.c.l.b16 %v152
  %v487 = vunpack.c.l.b16 %v153
  %v488 = vunpack.c.l.b16 %v154
  %v489 = vunpack.c.l.b16 %v155
  %v490 = vunpack.c.l.b16 %v156
  %v491 = vunpack.c.l.b16 %v157
  %v492 = vunpack.c.l.b16 %v158
  %v493 = vunpack.c.l.b16 %v159
  %v494 = vunpack.c.l.b16 %v160
  %v495 = vunpack.c.l.b16 %v161
  %v496 = vunpack.c.l.b16 %v162
  %v497 = vunpack.c.l.b16 %v163
  %v498 = vunpack.c.l.b16 %v164
  %v499 = vunpack.c.l.b16 %v165
  %v500 = vunpack.c.l.b16 %v166
  %v501 = vunpack.c.l.b16 %v167
  %v502 = vunpack.c.l.b16 %v168
  %v503 = vpack.c.b16 %v360, %v359
  %v504 = vpack.c.b16 %v362, %v361
  %v505 = vpack.c.b16 %v364, %v363
  %v506 = vpack.c.b16 %v366, %v365
  %v507 = vpack.c.b16 %v368, %v367
  %v508 = vpack.c.b16 %v370, %v369
  %v509 = vpack.c.b16 %v372, %v371
  %v510 = vpack.c.b16 %v374, %v373
  %v511 = vpack.c.b16 %v376, %v375
  %v512 = vpack.c.b16 %v378, %v377
  %v513 = vpack.c.b16 %v380, %v379
  %v514 = vpack.c.b16 %v382, %v381
  %v515 = vpack.c.b16 %v384, %v383
  %v516 = vpack.c.b16 %v386, %v385
  %v517 = vpack.c.b16 %v388, %v387
  %v518 = vpack.c.b16 %v390, %v389
  %v519 = vpack.c.b16 %v392, %v391
  %v520 = vpack.c.b16 %v394, %v393
  %v521 = vpack.c.b16 %v396, %v395
  %v522 = vpack.c.b16 %v398, %v397
  %v523 = vpack.c.b16 %v400, %v399
  %v524 = vpack.c.b16 %v402, %v401
  %v525 = vpack.c.b16 %v404, %v403
  %v526 = vpack.c.b16 %v406, %v405
  %v527 = vpack.c.b16 %v408, %v407
  %v528 = vpack.c.b16 %v410, %v409
  %v529 = vpack.c.b16 %v412, %v411
  %v530 = vpack.c.b16 %v414, %v413
  %v531 = vpack.c.b16 %v416, %v415
  %v532 = vpack.c.b16 %v418, %v417
  %v533 = vpack.c.b16 %v420, %v419
  %v534 = vpack.c.b16 %v422, %v421
  %v535 = vpack.c.b16 %v424, %v423
  %v536 = vpack.c.b16 %v426, %v425
  %v537 = vpack.c.b16 %v428, %v427
  %v538 = vpack.c.b16 %v430, %v429
  %v539 = vpack.c.b16 %v432, %v431
  %v540 = vpack.c.b16 %v434, %v433
  %v541 = vpack.c.b16 %v436, %v435
  %v542 = vpack.c.b16 %v438, %v437
  %v543 = vpack.c.b16 %v440, %v439
  %v544 = vpack.c.b16 %v442, %v441
  %v545 = vpack.c.b16 %v444, %v443
  %v546 = vpack.c.b16 %v446, %v445
  %v547 = vpack.c.b16 %v448, %v447
  %v548 = vpack.c.b16 %v450, %v449
  %v549 = vpack.c.b16 %v452, %v451
  %v550 = vpack.c.b16 %v454, %v453
  %v551 = vpack.c.b16 %v456, %v455
  %v552 = vpack.c.b16 %v458, %v457
  %v553 = vpack.c.b16 %v460, %v459
  %v554 = vpack.c.b16 %v462, %v461
  %v555 = vpack.c.b16 %v464, %v463
  %v556 = vpack.c.b16 %v466, %v465
  %v557 = vpack.c.b16 %v468, %v467
  %v558 = vpack.c.b16 %v470, %v469
  %v559 = vpack.c.b16 %v472, %v471
  %v560 = vpack.c.b16 %v474, %v473
  %v561 = vpack.c.b16 %v476, %v475
  %v562 = vpack.c.b16 %v478, %v477
  %v563 = vpack.c.b16 %v480, %v479
  %v564 = vpack.c.b16 %v482, %v481
  %v565 = vpack.c.b16 %v484, %v483
  %v566 = vpack.c.b16 %v486, %v485
  %v567 = vpack.c.b16 %v488, %v487
  %v568 = vpack.c.b16 %v490, %v489
  %v569 = vpack.c.b16 %v492, %v491
  %v570 = vpack.c.b16 %v494, %v493
  %v571 = vpack.c.b16 %v496, %v495
  %v572 = vpack.c.b16 %v498, %v497
  %v573 = vpack.c.b16 %v500, %v499
  %v574 = vpack.c.b16 %v502, %v501
  %647 = vmatprep.subr.bf16.mxu0 0
  %648 = vmatpush1.bf16.msra.mxu0 %v510
  %649 = vmatprep.subr.bf16.mxu0 0
  %650 = vmatpush1.bf16.msra.mxu0 %v509
  %651 = vmatprep.subr.bf16.mxu0 0
  %652 = vmatpush1.bf16.msra.mxu0 %v508
  %653 = vmatprep.subr.bf16.mxu0 0
  %654 = vmatpush1.bf16.msra.mxu0 %v507
  %655 = vmatprep.subr.bf16.mxu0 0
  %656 = vmatpush1.bf16.msra.mxu0 %v506
  %657 = vmatprep.subr.bf16.mxu0 0
  %658 = vmatpush1.bf16.msra.mxu0 %v505
  %659 = vmatprep.subr.bf16.mxu0 0
  %660 = vmatpush1.bf16.msra.mxu0 %v504
  %661 = vmatprep.subr.bf16.mxu0 0
  %662 = vmatpush1.bf16.msra.mxu0 %v503
  %663 = vmatprep.subr.bf16.mxu0 0
  %664 = vmatpush2.bf16.msra.mxu0 %v518
  %665 = vmatprep.subr.bf16.mxu0 0
  %666 = vmatpush2.bf16.msra.mxu0 %v517
  %667 = vmatprep.subr.bf16.mxu0 0
  %668 = vmatpush2.bf16.msra.mxu0 %v516
  %669 = vmatprep.subr.bf16.mxu0 0
  %670 = vmatpush2.bf16.msra.mxu0 %v515
  %671 = vmatprep.subr.bf16.mxu0 0
  %672 = vmatpush2.bf16.msra.mxu0 %v514
  %673 = vmatprep.subr.bf16.mxu0 0
  %674 = vmatpush2.bf16.msra.mxu0 %v513
  %675 = vmatprep.subr.bf16.mxu0 0
  %676 = vmatpush2.bf16.msra.mxu0 %v512
  %677 = vmatprep.subr.bf16.mxu0 0
  %678 = vmatpush2.bf16.msra.mxu0 %v511
  %679 = vmatprep.mubr.bf16.mxu0 %v198
  %680 = vmatmul.mubr.bf16.gmra.mxu0 %v197
  %v681 = vpop.f32.mrf.mxu0
  %v682 = vadd.f32 0.0, %v681
  %v683 = vpop.f32.mrf.mxu0
  %v684 = vpop.f32.mrf.mxu0
  %v685 = vadd.f32 0.0, %v684
  %v686 = vpop.f32.mrf.mxu0
  %687 = vdwg.mxu0
  %688 = vmatprep.subr.bf16.mxu0 0
  %689 = vmatpush1.bf16.msra.mxu0 %v526
  %690 = vmatprep.subr.bf16.mxu0 0
  %691 = vmatpush1.bf16.msra.mxu0 %v525
  %692 = vmatprep.subr.bf16.mxu0 0
  %693 = vmatpush1.bf16.msra.mxu0 %v524
  %694 = vmatprep.subr.bf16.mxu0 0
  %695 = vmatpush1.bf16.msra.mxu0 %v523
  %696 = vmatprep.subr.bf16.mxu0 0
  %697 = vmatpush1.bf16.msra.mxu0 %v522
  %698 = vmatprep.subr.bf16.mxu0 0
  %699 = vmatpush1.bf16.msra.mxu0 %v521
  %700 = vmatprep.subr.bf16.mxu0 0
  %701 = vmatpush1.bf16.msra.mxu0 %v520
  %702 = vmatprep.subr.bf16.mxu0 0
  %703 = vmatpush1.bf16.msra.mxu0 %v519
  %704 = vmatprep.subr.bf16.mxu0 0
  %705 = vmatpush2.bf16.msra.mxu0 %v534
  %706 = vmatprep.subr.bf16.mxu0 0
  %707 = vmatpush2.bf16.msra.mxu0 %v533
  %708 = vmatprep.subr.bf16.mxu0 0
  %709 = vmatpush2.bf16.msra.mxu0 %v532
  %710 = vmatprep.subr.bf16.mxu0 0
  %711 = vmatpush2.bf16.msra.mxu0 %v531
  %712 = vmatprep.subr.bf16.mxu0 0
  %713 = vmatpush2.bf16.msra.mxu0 %v530
  %714 = vmatprep.subr.bf16.mxu0 0
  %715 = vmatpush2.bf16.msra.mxu0 %v529
  %716 = vmatprep.subr.bf16.mxu0 0
  %717 = vmatpush2.bf16.msra.mxu0 %v528
  %718 = vmatprep.subr.bf16.mxu0 0
  %719 = vmatpush2.bf16.msra.mxu0 %v527
  %720 = vmatprep.mubr.bf16.mxu0 %v200
  %721 = vmatmul.mubr.bf16.gmra.mxu0 %v199
  %v722 = vpop.f32.mrf.mxu0
  %v723 = vadd.f32 %v682, %v722
  %v724 = vpop.f32.mrf.mxu0
  %v725 = vpop.f32.mrf.mxu0
  %v726 = vadd.f32 %v685, %v725
  %v727 = vpop.f32.mrf.mxu0
  %728 = vdwg.mxu0
  %729 = vmatprep.subr.bf16.mxu0 0
  %730 = vmatpush1.bf16.msra.mxu0 %v542
  %731 = vmatprep.subr.bf16.mxu0 0
  %732 = vmatpush1.bf16.msra.mxu0 %v541
  %733 = vmatprep.subr.bf16.mxu0 0
  %734 = vmatpush1.bf16.msra.mxu0 %v540
  %735 = vmatprep.subr.bf16.mxu0 0
  %736 = vmatpush1.bf16.msra.mxu0 %v539
  %737 = vmatprep.subr.bf16.mxu0 0
  %738 = vmatpush1.bf16.msra.mxu0 %v538
  %739 = vmatprep.subr.bf16.mxu0 0
  %740 = vmatpush1.bf16.msra.mxu0 %v537
  %741 = vmatprep.subr.bf16.mxu0 0
  %742 = vmatpush1.bf16.msra.mxu0 %v536
  %743 = vmatprep.subr.bf16.mxu0 0
  %744 = vmatpush1.bf16.msra.mxu0 %v535
  %745 = vmatprep.subr.bf16.mxu0 0
  %746 = vmatpush2.bf16.msra.mxu0 %v550
  %747 = vmatprep.subr.bf16.mxu0 0
  %748 = vmatpush2.bf16.msra.mxu0 %v549
  %749 = vmatprep.subr.bf16.mxu0 0
  %750 = vmatpush2.bf16.msra.mxu0 %v548
  %751 = vmatprep.subr.bf16.mxu0 0
  %752 = vmatpush2.bf16.msra.mxu0 %v547
  %753 = vmatprep.subr.bf16.mxu0 0
  %754 = vmatpush2.bf16.msra.mxu0 %v546
  %755 = vmatprep.subr.bf16.mxu0 0
  %756 = vmatpush2.bf16.msra.mxu0 %v545
  %757 = vmatprep.subr.bf16.mxu0 0
  %758 = vmatpush2.bf16.msra.mxu0 %v544
  %759 = vmatprep.subr.bf16.mxu0 0
  %760 = vmatpush2.bf16.msra.mxu0 %v543
  %761 = vmatprep.mubr.bf16.mxu0 %v202
  %762 = vmatmul.mubr.bf16.gmra.mxu0 %v201
  %v763 = vpop.f32.mrf.mxu0
  %v764 = vadd.f32 %v723, %v763
  %v765 = vpop.f32.mrf.mxu0
  %v766 = vpop.f32.mrf.mxu0
  %v767 = vadd.f32 %v726, %v766
  %v768 = vpop.f32.mrf.mxu0
  %769 = vdwg.mxu0
  %770 = vmatprep.subr.bf16.mxu0 0
  %771 = vmatpush1.bf16.msra.mxu0 %v558
  %772 = vmatprep.subr.bf16.mxu0 0
  %773 = vmatpush1.bf16.msra.mxu0 %v557
  %774 = vmatprep.subr.bf16.mxu0 0
  %775 = vmatpush1.bf16.msra.mxu0 %v556
  %776 = vmatprep.subr.bf16.mxu0 0
  %777 = vmatpush1.bf16.msra.mxu0 %v555
  %778 = vmatprep.subr.bf16.mxu0 0
  %779 = vmatpush1.bf16.msra.mxu0 %v554
  %780 = vmatprep.subr.bf16.mxu0 0
  %781 = vmatpush1.bf16.msra.mxu0 %v553
  %782 = vmatprep.subr.bf16.mxu0 0
  %783 = vmatpush1.bf16.msra.mxu0 %v552
  %784 = vmatprep.subr.bf16.mxu0 0
  %785 = vmatpush1.bf16.msra.mxu0 %v551
  %786 = vmatprep.subr.bf16.mxu0 0
  %787 = vmatpush2.bf16.msra.mxu0 %v566
  %788 = vmatprep.subr.bf16.mxu0 0
  %789 = vmatpush2.bf16.msra.mxu0 %v565
  %790 = vmatprep.subr.bf16.mxu0 0
  %791 = vmatpush2.bf16.msra.mxu0 %v564
  %792 = vmatprep.subr.bf16.mxu0 0
  %793 = vmatpush2.bf16.msra.mxu0 %v563
  %794 = vmatprep.subr.bf16.mxu0 0
  %795 = vmatpush2.bf16.msra.mxu0 %v562
  %796 = vmatprep.subr.bf16.mxu0 0
  %797 = vmatpush2.bf16.msra.mxu0 %v561
  %798 = vmatprep.subr.bf16.mxu0 0
  %799 = vmatpush2.bf16.msra.mxu0 %v560
  %800 = vmatprep.subr.bf16.mxu0 0
  %801 = vmatpush2.bf16.msra.mxu0 %v559
  %802 = vmatprep.mubr.bf16.mxu0 %v204
  %803 = vmatmul.mubr.bf16.gmra.mxu0 %v203
  %v804 = vpop.f32.mrf.mxu0
  %v805 = vadd.f32 %v764, %v804
  %v806 = vpop.f32.mrf.mxu0
  %v807 = vpop.f32.mrf.mxu0
  %v808 = vadd.f32 %v767, %v807
  %v809 = vpop.f32.mrf.mxu0
  %810 = vdwg.mxu0
  %811 = vmatprep.subr.bf16.mxu0 0
  %812 = vmatpush1.bf16.msra.mxu0 %v574
  %813 = vmatprep.subr.bf16.mxu0 0
  %814 = vmatpush1.bf16.msra.mxu0 %v573
  %815 = vmatprep.subr.bf16.mxu0 0
  %816 = vmatpush1.bf16.msra.mxu0 %v572
  %817 = vmatprep.subr.bf16.mxu0 0
  %818 = vmatpush1.bf16.msra.mxu0 %v571
  %819 = vmatprep.subr.bf16.mxu0 0
  %820 = vmatpush1.bf16.msra.mxu0 %v570
  %821 = vmatprep.subr.bf16.mxu0 0
  %822 = vmatpush1.bf16.msra.mxu0 %v569
  %823 = vmatprep.subr.bf16.mxu0 0
  %824 = vmatpush1.bf16.msra.mxu0 %v568
  %825 = vmatprep.subr.bf16.mxu0 0
  %826 = vmatpush1.bf16.msra.mxu0 %v567
  %827 = vmatprep.subr.bf16.mxu0 0
  %828 = vmatpush2.bf16.msra.mxu0 0
  %829 = vmatprep.subr.bf16.mxu0 0
  %830 = vmatpush2.bf16.msra.mxu0 0
  %831 = vmatprep.subr.bf16.mxu0 0
  %832 = vmatpush2.bf16.msra.mxu0 0
  %833 = vmatprep.subr.bf16.mxu0 0
  %834 = vmatpush2.bf16.msra.mxu0 0
  %835 = vmatprep.subr.bf16.mxu0 0
  %836 = vmatpush2.bf16.msra.mxu0 0
  %837 = vmatprep.subr.bf16.mxu0 0
  %838 = vmatpush2.bf16.msra.mxu0 0
  %839 = vmatprep.subr.bf16.mxu0 0
  %840 = vmatpush2.bf16.msra.mxu0 0
  %841 = vmatprep.subr.bf16.mxu0 0
  %842 = vmatpush2.bf16.msra.mxu0 0
  %843 = vmatprep.mubr.bf16.mxu0 0
  %844 = vmatmul.mubr.bf16.gmra.mxu0 %v205
  %v845 = vpop.f32.mrf.mxu0
  %v846 = vadd.f32 %v805, %v845
  %v847 = vpop.f32.mrf.mxu0
  %v848 = vpop.f32.mrf.mxu0
  %v849 = vadd.f32 %v808, %v848
  %v850 = vpop.f32.mrf.mxu0
  %851 = vdwg.mxu0
  %v852 = vld [vmem:[%s2] sm:$0x1]
  %v853 = vlaneseq
  %v854 = vshrl.u32 %v853, 7
  %v855 = vsub.s32 0, %v854
  %v856 = vrot.slane %v852, %v855
  %v857 = vmul.f32 %v846, %v856
  %v858 = vmul.f32 %v849, %v856
  %v859 = vld [vmem:[%s2 + $0x1] sm:$0x1]
  %v860 = vlaneseq
  %v861 = vshrl.u32 %v860, 7
  %v862 = vsub.s32 0, %v861
  %v863 = vrot.slane %v859, %v862
  %v864 = vadd.f32 %v857, %v863
  %v865 = vadd.f32 %v858, %v863
  %v866 = vmax.f32 %v864, 0.0
  %v867 = vmax.f32 %v865, 0.0
  %v868 = vpack.c.bf16 %v867, %v866
  %v870 = vunpack.c.l.b16 %v868
  %v871 = vunpack.c.h.b16 %v868
  %v872 = vpack.c.b16 %v870, %v870
  %v873 = vpack.c.b16 %v871, %v871
  %876 = vst [vmem:[%s3] sm:$0xf] %v872
  %877 = vst [vmem:[%s3 + $0x4] sm:$0xf] %v873
  // Predicated region
  $region14: #{_lambda_.28} parent=0 // pred_check
    _
  $region15: #{_lambda_.28} parent=0 // pred_check_branch
    %879 = sbr.rel (0) target = $region17
  $region16: #{_lambda_.28} parent=0 // pred_region
    _
  $region17: #{_lambda_.28} parent=0 // pred_fallthru
    _
  // Predicated region
  $region18: #{_lambda_.28} parent=0 // pred_check
    _
  $region19: #{_lambda_.28} parent=0 // pred_check_branch
    %881 = sbr.rel (0) target = $region21
  $region20: #{_lambda_.28} parent=0 // pred_region
    _
  $region21: #{_lambda_.28} parent=0 // pred_fallthru
    _

// kernel: _lambda_.29
$region0: #{_lambda_.29}
  #allocation0 [shape = 'u32[]', space=smem, size = 0x4, offset = 0x4, fixed_abs, tag = 'smem constant byte address 0x4 - core index']
  #allocation1 [shape = 'u32[144,128]{1,0:T(1,128)}', space=vmem, size = 0x12000, scoped, tag = 'internal scratch']
  %s0 = inlined_call_operand.vmem [shape: bf16[32,384], index: 0, kind: input, shape index: {}]
  %s1 = inlined_call_operand.vmem [shape: bf16[384,128], index: 1, kind: input, shape index: {}]
  %s2 = inlined_call_operand.vmem [shape: f32[2,128], index: 2, kind: input, shape index: {}]
  %s3 = inlined_call_operand.vmem [shape: bf16[32,128], index: 3, kind: output, shape index: {}]
  %s4 = sld [smem:[#allocation0]]
  $region22: #{_lambda_.29} parent=0
    _
  %s6 = ssub.s32 1, %s4
  %s7 = scalar_select 0, %s6, %s4
  // Predicated region
  $region2: #{_lambda_.29} parent=0 // pred_check
    _
  $region3: #{_lambda_.29} parent=0 // pred_check_branch
    %9 = sbr.rel (0) target = $region5
  $region4: #{_lambda_.29} parent=0 // pred_region
    _
  $region5: #{_lambda_.29} parent=0 // pred_fallthru
    _
  // Predicated region
  $region6: #{_lambda_.29} parent=0 // pred_check
    _
  $region7: #{_lambda_.29} parent=0 // pred_check_branch
    %11 = sbr.rel (0) target = $region9
  $region8: #{_lambda_.29} parent=0 // pred_region
    _
  $region9: #{_lambda_.29} parent=0 // pred_fallthru
    _
  // Predicated region
  $region10: #{_lambda_.29} parent=0 // pred_check
    _
  $region11: #{_lambda_.29} parent=0 // pred_check_branch
    %13 = sbr.rel (0) target = $region13
  $region12: #{_lambda_.29} parent=0 // pred_region
    _
  $region13: #{_lambda_.29} parent=0 // pred_fallthru
    _
  %v15 = vld [vmem:[%s0] sm:$0xff]
  %v16 = vld [vmem:[%s0 + $0x8] sm:$0xf]
  %v17 = vld [vmem:[%s0 + $0xc] sm:$0xff]
  %v18 = vld [vmem:[%s0 + $0x14] sm:$0xf]
  %v19 = vld [vmem:[%s0 + $0x18] sm:$0xff]
  %v20 = vld [vmem:[%s0 + $0x20] sm:$0xf]
  %v21 = vld [vmem:[%s0 + $0x24] sm:$0xff]
  %v22 = vld [vmem:[%s0 + $0x2c] sm:$0xf]
  %v23 = vld [vmem:[%s1] sm:$0xf]
  %v24 = vld [vmem:[%s1 + $0x4] sm:$0xf]
  %v25 = vld [vmem:[%s1 + $0x8] sm:$0xf]
  %v26 = vld [vmem:[%s1 + $0xc] sm:$0xf]
  %v27 = vld [vmem:[%s1 + $0x10] sm:$0xf]
  %v28 = vld [vmem:[%s1 + $0x14] sm:$0xf]
  %v29 = vld [vmem:[%s1 + $0x18] sm:$0xf]
  %v30 = vld [vmem:[%s1 + $0x1c] sm:$0xf]
  %v31 = vld [vmem:[%s1 + $0x20] sm:$0xf]
  %v32 = vld [vmem:[%s1 + $0x24] sm:$0xf]
  %v33 = vld [vmem:[%s1 + $0x28] sm:$0xf]
  %v34 = vld [vmem:[%s1 + $0x2c] sm:$0xf]
  %v35 = vld [vmem:[%s1 + $0x30] sm:$0xf]
  %v36 = vld [vmem:[%s1 + $0x34] sm:$0xf]
  %v37 = vld [vmem:[%s1 + $0x38] sm:$0xf]
  %v38 = vld [vmem:[%s1 + $0x3c] sm:$0xf]
  %v39 = vld [vmem:[%s1 + $0x40] sm:$0xf]
  %v40 = vld [vmem:[%s1 + $0x44] sm:$0xf]
  %v41 = vld [vmem:[%s1 + $0x48] sm:$0xf]
  %v42 = vld [vmem:[%s1 + $0x4c] sm:$0xf]
  %v43 = vld [vmem:[%s1 + $0x50] sm:$0xf]
  %v44 = vld [vmem:[%s1 + $0x54] sm:$0xf]
  %v45 = vld [vmem:[%s1 + $0x58] sm:$0xf]
  %v46 = vld [vmem:[%s1 + $0x5c] sm:$0xf]
  %v47 = vld [vmem:[%s1 + $0x60] sm:$0xf]
  %v48 = vld [vmem:[%s1 + $0x64] sm:$0xf]
  %v49 = vld [vmem:[%s1 + $0x68] sm:$0xf]
  %v50 = vld [vmem:[%s1 + $0x6c] sm:$0xf]
  %v51 = vld [vmem:[%s1 + $0x70] sm:$0xf]
  %v52 = vld [vmem:[%s1 + $0x74] sm:$0xf]
  %v53 = vld [vmem:[%s1 + $0x78] sm:$0xf]
  %v54 = vld [vmem:[%s1 + $0x7c] sm:$0xf]
  %v55 = vld [vmem:[%s1 + $0x80] sm:$0xf]
  %v56 = vld [vmem:[%s1 + $0x84] sm:$0xf]
  %v57 = vld [vmem:[%s1 + $0x88] sm:$0xf]
  %v58 = vld [vmem:[%s1 + $0x8c] sm:$0xf]
  %v59 = vld [vmem:[%s1 + $0x90] sm:$0xf]
  %v60 = vld [vmem:[%s1 + $0x94] sm:$0xf]
  %v61 = vld [vmem:[%s1 + $0x98] sm:$0xf]
  %v62 = vld [vmem:[%s1 + $0x9c] sm:$0xf]
  %v63 = vld [vmem:[%s1 + $0xa0] sm:$0xf]
  %v64 = vld [vmem:[%s1 + $0xa4] sm:$0xf]
  %v65 = vld [vmem:[%s1 + $0xa8] sm:$0xf]
  %v66 = vld [vmem:[%s1 + $0xac] sm:$0xf]
  %v67 = vld [vmem:[%s1 + $0xb0] sm:$0xf]
  %v68 = vld [vmem:[%s1 + $0xb4] sm:$0xf]
  %v69 = vld [vmem:[%s1 + $0xb8] sm:$0xf]
  %v70 = vld [vmem:[%s1 + $0xbc] sm:$0xf]
  %v79 = vunpack.c.l.b16 %v15
  %v80 = vunpack.c.h.b16 %v15
  %v81 = vunpack.c.l.b16 %v16
  %v82 = vunpack.c.l.b16 %v17
  %v83 = vunpack.c.h.b16 %v17
  %v84 = vunpack.c.l.b16 %v18
  %v85 = vunpack.c.l.b16 %v19
  %v86 = vunpack.c.h.b16 %v19
  %v87 = vunpack.c.l.b16 %v20
  %v88 = vunpack.c.l.b16 %v21
  %v89 = vunpack.c.h.b16 %v21
  %v90 = vunpack.c.l.b16 %v22
  %v91 = vpack.c.b16 %v82, %v79
  %v92 = vpack.c.b16 %v83, %v80
  %v93 = vpack.c.b16 %v84, %v81
  %v94 = vpack.c.b16 %v88, %v85
  %v95 = vpack.c.b16 %v89, %v86
  %v96 = vpack.c.b16 %v90, %v87
  %v151 = vunpack.c.l.b16 %v23
  %v152 = vunpack.c.l.b16 %v24
  %v153 = vunpack.c.l.b16 %v25
  %v154 = vunpack.c.l.b16 %v26
  %v155 = vunpack.c.l.b16 %v27
  %v156 = vunpack.c.l.b16 %v28
  %v157 = vunpack.c.l.b16 %v29
  %v158 = vunpack.c.l.b16 %v30
  %v159 = vunpack.c.l.b16 %v31
  %v160 = vunpack.c.l.b16 %v32
  %v161 = vunpack.c.l.b16 %v33
  %v162 = vunpack.c.l.b16 %v34
  %v163 = vunpack.c.l.b16 %v35
  %v164 = vunpack.c.l.b16 %v36
  %v165 = vunpack.c.l.b16 %v37
  %v166 = vunpack.c.l.b16 %v38
  %v167 = vunpack.c.l.b16 %v39
  %v168 = vunpack.c.l.b16 %v40
  %v169 = vunpack.c.l.b16 %v41
  %v170 = vunpack.c.l.b16 %v42
  %v171 = vunpack.c.l.b16 %v43
  %v172 = vunpack.c.l.b16 %v44
  %v173 = vunpack.c.l.b16 %v45
  %v174 = vunpack.c.l.b16 %v46
  %v175 = vunpack.c.l.b16 %v47
  %v176 = vunpack.c.l.b16 %v48
  %v177 = vunpack.c.l.b16 %v49
  %v178 = vunpack.c.l.b16 %v50
  %v179 = vunpack.c.l.b16 %v51
  %v180 = vunpack.c.l.b16 %v52
  %v181 = vunpack.c.l.b16 %v53
  %v182 = vunpack.c.l.b16 %v54
  %v183 = vunpack.c.l.b16 %v55
  %v184 = vunpack.c.l.b16 %v56
  %v185 = vunpack.c.l.b16 %v57
  %v186 = vunpack.c.l.b16 %v58
  %v187 = vunpack.c.l.b16 %v59
  %v188 = vunpack.c.l.b16 %v60
  %v189 = vunpack.c.l.b16 %v61
  %v190 = vunpack.c.l.b16 %v62
  %v191 = vunpack.c.l.b16 %v63
  %v192 = vunpack.c.l.b16 %v64
  %v193 = vunpack.c.l.b16 %v65
  %v194 = vunpack.c.l.b16 %v66
  %v195 = vunpack.c.l.b16 %v67
  %v196 = vunpack.c.l.b16 %v68
  %v197 = vunpack.c.l.b16 %v69
  %v198 = vunpack.c.l.b16 %v70
  %v199 = vpack.c.b16 %v152, %v151
  %v200 = vpack.c.b16 %v154, %v153
  %v201 = vpack.c.b16 %v156, %v155
  %v202 = vpack.c.b16 %v158, %v157
  %v203 = vpack.c.b16 %v160, %v159
  %v204 = vpack.c.b16 %v162, %v161
  %v205 = vpack.c.b16 %v164, %v163
  %v206 = vpack.c.b16 %v166, %v165
  %v207 = vpack.c.b16 %v168, %v167
  %v208 = vpack.c.b16 %v170, %v169
  %v209 = vpack.c.b16 %v172, %v171
  %v210 = vpack.c.b16 %v174, %v173
  %v211 = vpack.c.b16 %v176, %v175
  %v212 = vpack.c.b16 %v178, %v177
  %v213 = vpack.c.b16 %v180, %v179
  %v214 = vpack.c.b16 %v182, %v181
  %v215 = vpack.c.b16 %v184, %v183
  %v216 = vpack.c.b16 %v186, %v185
  %v217 = vpack.c.b16 %v188, %v187
  %v218 = vpack.c.b16 %v190, %v189
  %v219 = vpack.c.b16 %v192, %v191
  %v220 = vpack.c.b16 %v194, %v193
  %v221 = vpack.c.b16 %v196, %v195
  %v222 = vpack.c.b16 %v198, %v197
  %247 = vmatprep.subr.bf16.mxu0 0
  %248 = vmatpush1.bf16.msra.mxu0 %v206
  %249 = vmatprep.subr.bf16.mxu0 0
  %250 = vmatpush1.bf16.msra.mxu0 %v205
  %251 = vmatprep.subr.bf16.mxu0 0
  %252 = vmatpush1.bf16.msra.mxu0 %v204
  %253 = vmatprep.subr.bf16.mxu0 0
  %254 = vmatpush1.bf16.msra.mxu0 %v203
  %255 = vmatprep.subr.bf16.mxu0 0
  %256 = vmatpush1.bf16.msra.mxu0 %v202
  %257 = vmatprep.subr.bf16.mxu0 0
  %258 = vmatpush1.bf16.msra.mxu0 %v201
  %259 = vmatprep.subr.bf16.mxu0 0
  %260 = vmatpush1.bf16.msra.mxu0 %v200
  %261 = vmatprep.subr.bf16.mxu0 0
  %262 = vmatpush1.bf16.msra.mxu0 %v199
  %263 = vmatprep.subr.bf16.mxu0 0
  %264 = vmatpush2.bf16.msra.mxu0 %v214
  %265 = vmatprep.subr.bf16.mxu0 0
  %266 = vmatpush2.bf16.msra.mxu0 %v213
  %267 = vmatprep.subr.bf16.mxu0 0
  %268 = vmatpush2.bf16.msra.mxu0 %v212
  %269 = vmatprep.subr.bf16.mxu0 0
  %270 = vmatpush2.bf16.msra.mxu0 %v211
  %271 = vmatprep.subr.bf16.mxu0 0
  %272 = vmatpush2.bf16.msra.mxu0 %v210
  %273 = vmatprep.subr.bf16.mxu0 0
  %274 = vmatpush2.bf16.msra.mxu0 %v209
  %275 = vmatprep.subr.bf16.mxu0 0
  %276 = vmatpush2.bf16.msra.mxu0 %v208
  %277 = vmatprep.subr.bf16.mxu0 0
  %278 = vmatpush2.bf16.msra.mxu0 %v207
  %279 = vmatprep.mubr.bf16.mxu0 %v92
  %280 = vmatmul.mubr.bf16.gmra.mxu0 %v91
  %v281 = vpop.f32.mrf.mxu0
  %v282 = vadd.f32 0.0, %v281
  %v283 = vpop.f32.mrf.mxu0
  %v284 = vpop.f32.mrf.mxu0
  %v285 = vadd.f32 0.0, %v284
  %v286 = vpop.f32.mrf.mxu0
  %287 = vmatprep.mubr.bf16.mxu0 %v95
  %288 = vmatmul.mubr.bf16.gmra.mxu0 %v94
  %v289 = vpop.f32.mrf.mxu0
  %v290 = vadd.f32 0.0, %v289
  %v291 = vpop.f32.mrf.mxu0
  %v292 = vpop.f32.mrf.mxu0
  %v293 = vadd.f32 0.0, %v292
  %v294 = vpop.f32.mrf.mxu0
  %295 = vdwg.mxu0
  %296 = vmatprep.subr.bf16.mxu0 0
  %297 = vmatpush1.bf16.msra.mxu0 %v222
  %298 = vmatprep.subr.bf16.mxu0 0
  %299 = vmatpush1.bf16.msra.mxu0 %v221
  %300 = vmatprep.subr.bf16.mxu0 0
  %301 = vmatpush1.bf16.msra.mxu0 %v220
  %302 = vmatprep.subr.bf16.mxu0 0
  %303 = vmatpush1.bf16.msra.mxu0 %v219
  %304 = vmatprep.subr.bf16.mxu0 0
  %305 = vmatpush1.bf16.msra.mxu0 %v218
  %306 = vmatprep.subr.bf16.mxu0 0
  %307 = vmatpush1.bf16.msra.mxu0 %v217
  %308 = vmatprep.subr.bf16.mxu0 0
  %309 = vmatpush1.bf16.msra.mxu0 %v216
  %310 = vmatprep.subr.bf16.mxu0 0
  %311 = vmatpush1.bf16.msra.mxu0 %v215
  %312 = vmatprep.subr.bf16.mxu0 0
  %313 = vmatpush2.bf16.msra.mxu0 0
  %314 = vmatprep.subr.bf16.mxu0 0
  %315 = vmatpush2.bf16.msra.mxu0 0
  %316 = vmatprep.subr.bf16.mxu0 0
  %317 = vmatpush2.bf16.msra.mxu0 0
  %318 = vmatprep.subr.bf16.mxu0 0
  %319 = vmatpush2.bf16.msra.mxu0 0
  %320 = vmatprep.subr.bf16.mxu0 0
  %321 = vmatpush2.bf16.msra.mxu0 0
  %322 = vmatprep.subr.bf16.mxu0 0
  %323 = vmatpush2.bf16.msra.mxu0 0
  %324 = vmatprep.subr.bf16.mxu0 0
  %325 = vmatpush2.bf16.msra.mxu0 0
  %326 = vmatprep.subr.bf16.mxu0 0
  %327 = vmatpush2.bf16.msra.mxu0 0
  %328 = vmatprep.mubr.bf16.mxu0 0
  %329 = vmatmul.mubr.bf16.gmra.mxu0 %v93
  %v330 = vpop.f32.mrf.mxu0
  %v331 = vadd.f32 %v282, %v330
  %v332 = vpop.f32.mrf.mxu0
  %v333 = vpop.f32.mrf.mxu0
  %v334 = vadd.f32 %v285, %v333
  %v335 = vpop.f32.mrf.mxu0
  %336 = vmatprep.mubr.bf16.mxu0 0
  %337 = vmatmul.mubr.bf16.gmra.mxu0 %v96
  %v338 = vpop.f32.mrf.mxu0
  %v339 = vadd.f32 %v290, %v338
  %v340 = vpop.f32.mrf.mxu0
  %v341 = vpop.f32.mrf.mxu0
  %v342 = vadd.f32 %v293, %v341
  %v343 = vpop.f32.mrf.mxu0
  %344 = vdwg.mxu0
  %v345 = vld [vmem:[%s2] sm:$0x1]
  %v346 = vlaneseq
  %v347 = vshrl.u32 %v346, 7
  %v348 = vsub.s32 0, %v347
  %v349 = vrot.slane %v345, %v348
  %v350 = vmul.f32 %v331, %v349
  %v351 = vmul.f32 %v334, %v349
  %v352 = vmul.f32 %v339, %v349
  %v353 = vmul.f32 %v342, %v349
  %v354 = vld [vmem:[%s2 + $0x1] sm:$0x1]
  %v355 = vlaneseq
  %v356 = vshrl.u32 %v355, 7
  %v357 = vsub.s32 0, %v356
  %v358 = vrot.slane %v354, %v357
  %v359 = vadd.f32 %v350, %v358
  %v360 = vadd.f32 %v351, %v358
  %v361 = vadd.f32 %v352, %v358
  %v362 = vadd.f32 %v353, %v358
  %v363 = vmax.f32 %v359, 0.0
  %v364 = vmax.f32 %v360, 0.0
  %v365 = vmax.f32 %v361, 0.0
  %v366 = vmax.f32 %v362, 0.0
  %v367 = vpack.c.bf16 %v364, %v363
  %v368 = vpack.c.bf16 %v366, %v365
  %v371 = vunpack.c.l.b16 %v367
  %v372 = vunpack.c.h.b16 %v367
  %v373 = vunpack.c.l.b16 %v368
  %v374 = vunpack.c.h.b16 %v368
  %v375 = vpack.c.b16 %v371, %v371
  %v376 = vpack.c.b16 %v372, %v372
  %v377 = vpack.c.b16 %v373, %v373
  %v378 = vpack.c.b16 %v374, %v374
  %383 = vst [vmem:[%s3] sm:$0xf] %v375
  %384 = vst [vmem:[%s3 + $0x4] sm:$0xf] %v376
  %385 = vst [vmem:[%s3 + $0x8] sm:$0xf] %v377
  %386 = vst [vmem:[%s3 + $0xc] sm:$0xf] %v378
  // Predicated region
  $region14: #{_lambda_.29} parent=0 // pred_check
    _
  $region15: #{_lambda_.29} parent=0 // pred_check_branch
    %388 = sbr.rel (0) target = $region17
  $region16: #{_lambda_.29} parent=0 // pred_region
    _
  $region17: #{_lambda_.29} parent=0 // pred_fallthru
    _
  // Predicated region
  $region18: #{_lambda_.29} parent=0 // pred_check
    _
  $region19: #{_lambda_.29} parent=0 // pred_check_branch
    %390 = sbr.rel (0) target = $region21
  $region20: #{_lambda_.29} parent=0 // pred_region
    _
  $region21: #{_lambda_.29} parent=0 // pred_fallthru
    _

// kernel: _lambda_.30
$region0: #{_lambda_.30}
  #allocation0 [shape = 'u32[]', space=smem, size = 0x4, offset = 0x4, fixed_abs, tag = 'smem constant byte address 0x4 - core index']
  #allocation1 [shape = 'u32[144,128]{1,0:T(1,128)}', space=vmem, size = 0x12000, scoped, tag = 'internal scratch']
  %s0 = inlined_call_operand.vmem [shape: bf16[128,384], index: 0, kind: input, shape index: {}]
  %s1 = inlined_call_operand.vmem [shape: bf16[384,128], index: 1, kind: input, shape index: {}]
  %s2 = inlined_call_operand.vmem [shape: f32[2,128], index: 2, kind: input, shape index: {}]
  %s3 = inlined_call_operand.vmem [shape: bf16[128,128], index: 3, kind: output, shape index: {}]
  %s4 = sld [smem:[#allocation0]]
  $region22: #{_lambda_.30} parent=0
    _
  %s6 = ssub.s32 1, %s4
  %s7 = scalar_select 0, %s6, %s4
  // Predicated region
  $region2: #{_lambda_.30} parent=0 // pred_check
    _
  $region3: #{_lambda_.30} parent=0 // pred_check_branch
    %9 = sbr.rel (0) target = $region5
  $region4: #{_lambda_.30} parent=0 // pred_region
    _
  $region5: #{_lambda_.30} parent=0 // pred_fallthru
    _
  // Predicated region
  $region6: #{_lambda_.30} parent=0 // pred_check
    _
  $region7: #{_lambda_.30} parent=0 // pred_check_branch
    %11 = sbr.rel (0) target = $region9
  $region8: #{_lambda_.30} parent=0 // pred_region
    _
  $region9: #{_lambda_.30} parent=0 // pred_fallthru
    _
  // Predicated region
  $region10: #{_lambda_.30} parent=0 // pred_check
    _
  $region11: #{_lambda_.30} parent=0 // pred_check_branch
    %13 = sbr.rel (0) target = $region13
  $region12: #{_lambda_.30} parent=0 // pred_region
    _
  $region13: #{_lambda_.30} parent=0 // pred_fallthru
    _
  %v15 = vld [vmem:[%s0] sm:$0xff]
  %v16 = vld [vmem:[%s0 + $0x8] sm:$0xf]
  %v17 = vld [vmem:[%s0 + $0xc] sm:$0xff]
  %v18 = vld [vmem:[%s0 + $0x14] sm:$0xf]
  %v19 = vld [vmem:[%s0 + $0x18] sm:$0xff]
  %v20 = vld [vmem:[%s0 + $0x20] sm:$0xf]
  %v21 = vld [vmem:[%s0 + $0x24] sm:$0xff]
  %v22 = vld [vmem:[%s0 + $0x2c] sm:$0xf]
  %v23 = vld [vmem:[%s0 + $0x30] sm:$0xff]
  %v24 = vld [vmem:[%s0 + $0x38] sm:$0xf]
  %v25 = vld [vmem:[%s0 + $0x3c] sm:$0xff]
  %v26 = vld [vmem:[%s0 + $0x44] sm:$0xf]
  %v27 = vld [vmem:[%s0 + $0x48] sm:$0xff]
  %v28 = vld [vmem:[%s0 + $0x50] sm:$0xf]
  %v29 = vld [vmem:[%s0 + $0x54] sm:$0xff]
  %v30 = vld [vmem:[%s0 + $0x5c] sm:$0xf]
  %v31 = vld [vmem:[%s0 + $0x60] sm:$0xff]
  %v32 = vld [vmem:[%s0 + $0x68] sm:$0xf]
  %v33 = vld [vmem:[%s0 + $0x6c] sm:$0xff]
  %v34 = vld [vmem:[%s0 + $0x74] sm:$0xf]
  %v35 = vld [vmem:[%s0 + $0x78] sm:$0xff]
  %v36 = vld [vmem:[%s0 + $0x80] sm:$0xf]
  %v37 = vld [vmem:[%s0 + $0x84] sm:$0xff]
  %v38 = vld [vmem:[%s0 + $0x8c] sm:$0xf]
  %v39 = vld [vmem:[%s0 + $0x90] sm:$0xff]
  %v40 = vld [vmem:[%s0 + $0x98] sm:$0xf]
  %v41 = vld [vmem:[%s0 + $0x9c] sm:$0xff]
  %v42 = vld [vmem:[%s0 + $0xa4] sm:$0xf]
  %v43 = vld [vmem:[%s0 + $0xa8] sm:$0xff]
  %v44 = vld [vmem:[%s0 + $0xb0] sm:$0xf]
  %v45 = vld [vmem:[%s0 + $0xb4] sm:$0xff]
  %v46 = vld [vmem:[%s0 + $0xbc] sm:$0xf]
  %v47 = vld [vmem:[%s1] sm:$0xf]
  %v48 = vld [vmem:[%s1 + $0x4] sm:$0xf]
  %v49 = vld [vmem:[%s1 + $0x8] sm:$0xf]
  %v50 = vld [vmem:[%s1 + $0xc] sm:$0xf]
  %v51 = vld [vmem:[%s1 + $0x10] sm:$0xf]
  %v52 = vld [vmem:[%s1 + $0x14] sm:$0xf]
  %v53 = vld [vmem:[%s1 + $0x18] sm:$0xf]
  %v54 = vld [vmem:[%s1 + $0x1c] sm:$0xf]
  %v55 = vld [vmem:[%s1 + $0x20] sm:$0xf]
  %v56 = vld [vmem:[%s1 + $0x24] sm:$0xf]
  %v57 = vld [vmem:[%s1 + $0x28] sm:$0xf]
  %v58 = vld [vmem:[%s1 + $0x2c] sm:$0xf]
  %v59 = vld [vmem:[%s1 + $0x30] sm:$0xf]
  %v60 = vld [vmem:[%s1 + $0x34] sm:$0xf]
  %v61 = vld [vmem:[%s1 + $0x38] sm:$0xf]
  %v62 = vld [vmem:[%s1 + $0x3c] sm:$0xf]
  %v63 = vld [vmem:[%s1 + $0x40] sm:$0xf]
  %v64 = vld [vmem:[%s1 + $0x44] sm:$0xf]
  %v65 = vld [vmem:[%s1 + $0x48] sm:$0xf]
  %v66 = vld [vmem:[%s1 + $0x4c] sm:$0xf]
  %v67 = vld [vmem:[%s1 + $0x50] sm:$0xf]
  %v68 = vld [vmem:[%s1 + $0x54] sm:$0xf]
  %v69 = vld [vmem:[%s1 + $0x58] sm:$0xf]
  %v70 = vld [vmem:[%s1 + $0x5c] sm:$0xf]
  %v71 = vld [vmem:[%s1 + $0x60] sm:$0xf]
  %v72 = vld [vmem:[%s1 + $0x64] sm:$0xf]
  %v73 = vld [vmem:[%s1 + $0x68] sm:$0xf]
  %v74 = vld [vmem:[%s1 + $0x6c] sm:$0xf]
  %v75 = vld [vmem:[%s1 + $0x70] sm:$0xf]
  %v76 = vld [vmem:[%s1 + $0x74] sm:$0xf]
  %v77 = vld [vmem:[%s1 + $0x78] sm:$0xf]
  %v78 = vld [vmem:[%s1 + $0x7c] sm:$0xf]
  %v79 = vld [vmem:[%s1 + $0x80] sm:$0xf]
  %v80 = vld [vmem:[%s1 + $0x84] sm:$0xf]
  %v81 = vld [vmem:[%s1 + $0x88] sm:$0xf]
  %v82 = vld [vmem:[%s1 + $0x8c] sm:$0xf]
  %v83 = vld [vmem:[%s1 + $0x90] sm:$0xf]
  %v84 = vld [vmem:[%s1 + $0x94] sm:$0xf]
  %v85 = vld [vmem:[%s1 + $0x98] sm:$0xf]
  %v86 = vld [vmem:[%s1 + $0x9c] sm:$0xf]
  %v87 = vld [vmem:[%s1 + $0xa0] sm:$0xf]
  %v88 = vld [vmem:[%s1 + $0xa4] sm:$0xf]
  %v89 = vld [vmem:[%s1 + $0xa8] sm:$0xf]
  %v90 = vld [vmem:[%s1 + $0xac] sm:$0xf]
  %v91 = vld [vmem:[%s1 + $0xb0] sm:$0xf]
  %v92 = vld [vmem:[%s1 + $0xb4] sm:$0xf]
  %v93 = vld [vmem:[%s1 + $0xb8] sm:$0xf]
  %v94 = vld [vmem:[%s1 + $0xbc] sm:$0xf]
  %v127 = vunpack.c.l.b16 %v15
  %v128 = vunpack.c.h.b16 %v15
  %v129 = vunpack.c.l.b16 %v16
  %v130 = vunpack.c.l.b16 %v17
  %v131 = vunpack.c.h.b16 %v17
  %v132 = vunpack.c.l.b16 %v18
  %v133 = vunpack.c.l.b16 %v19
  %v134 = vunpack.c.h.b16 %v19
  %v135 = vunpack.c.l.b16 %v20
  %v136 = vunpack.c.l.b16 %v21
  %v137 = vunpack.c.h.b16 %v21
  %v138 = vunpack.c.l.b16 %v22
  %v139 = vunpack.c.l.b16 %v23
  %v140 = vunpack.c.h.b16 %v23
  %v141 = vunpack.c.l.b16 %v24
  %v142 = vunpack.c.l.b16 %v25
  %v143 = vunpack.c.h.b16 %v25
  %v144 = vunpack.c.l.b16 %v26
  %v145 = vunpack.c.l.b16 %v27
  %v146 = vunpack.c.h.b16 %v27
  %v147 = vunpack.c.l.b16 %v28
  %v148 = vunpack.c.l.b16 %v29
  %v149 = vunpack.c.h.b16 %v29
  %v150 = vunpack.c.l.b16 %v30
  %v151 = vunpack.c.l.b16 %v31
  %v152 = vunpack.c.h.b16 %v31
  %v153 = vunpack.c.l.b16 %v32
  %v154 = vunpack.c.l.b16 %v33
  %v155 = vunpack.c.h.b16 %v33
  %v156 = vunpack.c.l.b16 %v34
  %v157 = vunpack.c.l.b16 %v35
  %v158 = vunpack.c.h.b16 %v35
  %v159 = vunpack.c.l.b16 %v36
  %v160 = vunpack.c.l.b16 %v37
  %v161 = vunpack.c.h.b16 %v37
  %v162 = vunpack.c.l.b16 %v38
  %v163 = vunpack.c.l.b16 %v39
  %v164 = vunpack.c.h.b16 %v39
  %v165 = vunpack.c.l.b16 %v40
  %v166 = vunpack.c.l.b16 %v41
  %v167 = vunpack.c.h.b16 %v41
  %v168 = vunpack.c.l.b16 %v42
  %v169 = vunpack.c.l.b16 %v43
  %v170 = vunpack.c.h.b16 %v43
  %v171 = vunpack.c.l.b16 %v44
  %v172 = vunpack.c.l.b16 %v45
  %v173 = vunpack.c.h.b16 %v45
  %v174 = vunpack.c.l.b16 %v46
  %v175 = vpack.c.b16 %v130, %v127
  %v176 = vpack.c.b16 %v131, %v128
  %v177 = vpack.c.b16 %v132, %v129
  %v178 = vpack.c.b16 %v136, %v133
  %v179 = vpack.c.b16 %v137, %v134
  %v180 = vpack.c.b16 %v138, %v135
  %v181 = vpack.c.b16 %v142, %v139
  %v182 = vpack.c.b16 %v143, %v140
  %v183 = vpack.c.b16 %v144, %v141
  %v184 = vpack.c.b16 %v148, %v145
  %v185 = vpack.c.b16 %v149, %v146
  %v186 = vpack.c.b16 %v150, %v147
  %v187 = vpack.c.b16 %v154, %v151
  %v188 = vpack.c.b16 %v155, %v152
  %v189 = vpack.c.b16 %v156, %v153
  %v190 = vpack.c.b16 %v160, %v157
  %v191 = vpack.c.b16 %v161, %v158
  %v192 = vpack.c.b16 %v162, %v159
  %v193 = vpack.c.b16 %v166, %v163
  %v194 = vpack.c.b16 %v167, %v164
  %v195 = vpack.c.b16 %v168, %v165
  %v196 = vpack.c.b16 %v172, %v169
  %v197 = vpack.c.b16 %v173, %v170
  %v198 = vpack.c.b16 %v174, %v171
  %v271 = vunpack.c.l.b16 %v47
  %v272 = vunpack.c.l.b16 %v48
  %v273 = vunpack.c.l.b16 %v49
  %v274 = vunpack.c.l.b16 %v50
  %v275 = vunpack.c.l.b16 %v51
  %v276 = vunpack.c.l.b16 %v52
  %v277 = vunpack.c.l.b16 %v53
  %v278 = vunpack.c.l.b16 %v54
  %v279 = vunpack.c.l.b16 %v55
  %v280 = vunpack.c.l.b16 %v56
  %v281 = vunpack.c.l.b16 %v57
  %v282 = vunpack.c.l.b16 %v58
  %v283 = vunpack.c.l.b16 %v59
  %v284 = vunpack.c.l.b16 %v60
  %v285 = vunpack.c.l.b16 %v61
  %v286 = vunpack.c.l.b16 %v62
  %v287 = vunpack.c.l.b16 %v63
  %v288 = vunpack.c.l.b16 %v64
  %v289 = vunpack.c.l.b16 %v65
  %v290 = vunpack.c.l.b16 %v66
  %v291 = vunpack.c.l.b16 %v67
  %v292 = vunpack.c.l.b16 %v68
  %v293 = vunpack.c.l.b16 %v69
  %v294 = vunpack.c.l.b16 %v70
  %v295 = vunpack.c.l.b16 %v71
  %v296 = vunpack.c.l.b16 %v72
  %v297 = vunpack.c.l.b16 %v73
  %v298 = vunpack.c.l.b16 %v74
  %v299 = vunpack.c.l.b16 %v75
  %v300 = vunpack.c.l.b16 %v76
  %v301 = vunpack.c.l.b16 %v77
  %v302 = vunpack.c.l.b16 %v78
  %v303 = vunpack.c.l.b16 %v79
  %v304 = vunpack.c.l.b16 %v80
  %v305 = vunpack.c.l.b16 %v81
  %v306 = vunpack.c.l.b16 %v82
  %v307 = vunpack.c.l.b16 %v83
  %v308 = vunpack.c.l.b16 %v84
  %v309 = vunpack.c.l.b16 %v85
  %v310 = vunpack.c.l.b16 %v86
  %v311 = vunpack.c.l.b16 %v87
  %v312 = vunpack.c.l.b16 %v88
  %v313 = vunpack.c.l.b16 %v89
  %v314 = vunpack.c.l.b16 %v90
  %v315 = vunpack.c.l.b16 %v91
  %v316 = vunpack.c.l.b16 %v92
  %v317 = vunpack.c.l.b16 %v93
  %v318 = vunpack.c.l.b16 %v94
  %v319 = vpack.c.b16 %v272, %v271
  %v320 = vpack.c.b16 %v274, %v273
  %v321 = vpack.c.b16 %v276, %v275
  %v322 = vpack.c.b16 %v278, %v277
  %v323 = vpack.c.b16 %v280, %v279
  %v324 = vpack.c.b16 %v282, %v281
  %v325 = vpack.c.b16 %v284, %v283
  %v326 = vpack.c.b16 %v286, %v285
  %v327 = vpack.c.b16 %v288, %v287
  %v328 = vpack.c.b16 %v290, %v289
  %v329 = vpack.c.b16 %v292, %v291
  %v330 = vpack.c.b16 %v294, %v293
  %v331 = vpack.c.b16 %v296, %v295
  %v332 = vpack.c.b16 %v298, %v297
  %v333 = vpack.c.b16 %v300, %v299
  %v334 = vpack.c.b16 %v302, %v301
  %v335 = vpack.c.b16 %v304, %v303
  %v336 = vpack.c.b16 %v306, %v305
  %v337 = vpack.c.b16 %v308, %v307
  %v338 = vpack.c.b16 %v310, %v309
  %v339 = vpack.c.b16 %v312, %v311
  %v340 = vpack.c.b16 %v314, %v313
  %v341 = vpack.c.b16 %v316, %v315
  %v342 = vpack.c.b16 %v318, %v317
  %367 = vmatprep.subr.bf16.mxu0 0
  %368 = vmatpush1.bf16.msra.mxu0 %v326
  %369 = vmatprep.subr.bf16.mxu0 0
  %370 = vmatpush1.bf16.msra.mxu0 %v325
  %371 = vmatprep.subr.bf16.mxu0 0
  %372 = vmatpush1.bf16.msra.mxu0 %v324
  %373 = vmatprep.subr.bf16.mxu0 0
  %374 = vmatpush1.bf16.msra.mxu0 %v323
  %375 = vmatprep.subr.bf16.mxu0 0
  %376 = vmatpush1.bf16.msra.mxu0 %v322
  %377 = vmatprep.subr.bf16.mxu0 0
  %378 = vmatpush1.bf16.msra.mxu0 %v321
  %379 = vmatprep.subr.bf16.mxu0 0
  %380 = vmatpush1.bf16.msra.mxu0 %v320
  %381 = vmatprep.subr.bf16.mxu0 0
  %382 = vmatpush1.bf16.msra.mxu0 %v319
  %383 = vmatprep.subr.bf16.mxu0 0
  %384 = vmatpush2.bf16.msra.mxu0 %v334
  %385 = vmatprep.subr.bf16.mxu0 0
  %386 = vmatpush2.bf16.msra.mxu0 %v333
  %387 = vmatprep.subr.bf16.mxu0 0
  %388 = vmatpush2.bf16.msra.mxu0 %v332
  %389 = vmatprep.subr.bf16.mxu0 0
  %390 = vmatpush2.bf16.msra.mxu0 %v331
  %391 = vmatprep.subr.bf16.mxu0 0
  %392 = vmatpush2.bf16.msra.mxu0 %v330
  %393 = vmatprep.subr.bf16.mxu0 0
  %394 = vmatpush2.bf16.msra.mxu0 %v329
  %395 = vmatprep.subr.bf16.mxu0 0
  %396 = vmatpush2.bf16.msra.mxu0 %v328
  %397 = vmatprep.subr.bf16.mxu0 0
  %398 = vmatpush2.bf16.msra.mxu0 %v327
  %399 = vmatprep.mubr.bf16.mxu0 %v176
  %400 = vmatmul.mubr.bf16.gmra.mxu0 %v175
  %v401 = vpop.f32.mrf.mxu0
  %v402 = vadd.f32 0.0, %v401
  %v403 = vpop.f32.mrf.mxu0
  %v404 = vpop.f32.mrf.mxu0
  %v405 = vadd.f32 0.0, %v404
  %v406 = vpop.f32.mrf.mxu0
  %407 = vmatprep.mubr.bf16.mxu0 %v179
  %408 = vmatmul.mubr.bf16.gmra.mxu0 %v178
  %v409 = vpop.f32.mrf.mxu0
  %v410 = vadd.f32 0.0, %v409
  %v411 = vpop.f32.mrf.mxu0
  %v412 = vpop.f32.mrf.mxu0
  %v413 = vadd.f32 0.0, %v412
  %v414 = vpop.f32.mrf.mxu0
  %415 = vmatprep.mubr.bf16.mxu0 %v182
  %416 = vmatmul.mubr.bf16.gmra.mxu0 %v181
  %v417 = vpop.f32.mrf.mxu0
  %v418 = vadd.f32 0.0, %v417
  %v419 = vpop.f32.mrf.mxu0
  %v420 = vpop.f32.mrf.mxu0
  %v421 = vadd.f32 0.0, %v420
  %v422 = vpop.f32.mrf.mxu0
  %423 = vmatprep.mubr.bf16.mxu0 %v185
  %424 = vmatmul.mubr.bf16.gmra.mxu0 %v184
  %v425 = vpop.f32.mrf.mxu0
  %v426 = vadd.f32 0.0, %v425
  %v427 = vpop.f32.mrf.mxu0
  %v428 = vpop.f32.mrf.mxu0
  %v429 = vadd.f32 0.0, %v428
  %v430 = vpop.f32.mrf.mxu0
  %431 = vmatprep.mubr.bf16.mxu0 %v188
  %432 = vmatmul.mubr.bf16.gmra.mxu0 %v187
  %v433 = vpop.f32.mrf.mxu0
  %v434 = vadd.f32 0.0, %v433
  %v435 = vpop.f32.mrf.mxu0
  %v436 = vpop.f32.mrf.mxu0
  %v437 = vadd.f32 0.0, %v436
  %v438 = vpop.f32.mrf.mxu0
  %439 = vmatprep.mubr.bf16.mxu0 %v191
  %440 = vmatmul.mubr.bf16.gmra.mxu0 %v190
  %v441 = vpop.f32.mrf.mxu0
  %v442 = vadd.f32 0.0, %v441
  %v443 = vpop.f32.mrf.mxu0
  %v444 = vpop.f32.mrf.mxu0
  %v445 = vadd.f32 0.0, %v444
  %v446 = vpop.f32.mrf.mxu0
  %447 = vmatprep.mubr.bf16.mxu0 %v194
  %448 = vmatmul.mubr.bf16.gmra.mxu0 %v193
  %v449 = vpop.f32.mrf.mxu0
  %v450 = vadd.f32 0.0, %v449
  %v451 = vpop.f32.mrf.mxu0
  %v452 = vpop.f32.mrf.mxu0
  %v453 = vadd.f32 0.0, %v452
  %v454 = vpop.f32.mrf.mxu0
  %455 = vmatprep.mubr.bf16.mxu0 %v197
  %456 = vmatmul.mubr.bf16.gmra.mxu0 %v196
  %v457 = vpop.f32.mrf.mxu0
  %v458 = vadd.f32 0.0, %v457
  %v459 = vpop.f32.mrf.mxu0
  %v460 = vpop.f32.mrf.mxu0
  %v461 = vadd.f32 0.0, %v460
  %v462 = vpop.f32.mrf.mxu0
  %463 = vdwg.mxu0
  %464 = vmatprep.subr.bf16.mxu0 0
  %465 = vmatpush1.bf16.msra.mxu0 %v342
  %466 = vmatprep.subr.bf16.mxu0 0
  %467 = vmatpush1.bf16.msra.mxu0 %v341
  %468 = vmatprep.subr.bf16.mxu0 0
  %469 = vmatpush1.bf16.msra.mxu0 %v340
  %470 = vmatprep.subr.bf16.mxu0 0
  %471 = vmatpush1.bf16.msra.mxu0 %v339
  %472 = vmatprep.subr.bf16.mxu0 0
  %473 = vmatpush1.bf16.msra.mxu0 %v338
  %474 = vmatprep.subr.bf16.mxu0 0
  %475 = vmatpush1.bf16.msra.mxu0 %v337
  %476 = vmatprep.subr.bf16.mxu0 0
  %477 = vmatpush1.bf16.msra.mxu0 %v336
  %478 = vmatprep.subr.bf16.mxu0 0
  %479 = vmatpush1.bf16.msra.mxu0 %v335
  %480 = vmatprep.subr.bf16.mxu0 0
  %481 = vmatpush2.bf16.msra.mxu0 0
  %482 = vmatprep.subr.bf16.mxu0 0
  %483 = vmatpush2.bf16.msra.mxu0 0
  %484 = vmatprep.subr.bf16.mxu0 0
  %485 = vmatpush2.bf16.msra.mxu0 0
  %486 = vmatprep.subr.bf16.mxu0 0
  %487 = vmatpush2.bf16.msra.mxu0 0
  %488 = vmatprep.subr.bf16.mxu0 0
  %489 = vmatpush2.bf16.msra.mxu0 0
  %490 = vmatprep.subr.bf16.mxu0 0
  %491 = vmatpush2.bf16.msra.mxu0 0
  %492 = vmatprep.subr.bf16.mxu0 0
  %493 = vmatpush2.bf16.msra.mxu0 0
  %494 = vmatprep.subr.bf16.mxu0 0
  %495 = vmatpush2.bf16.msra.mxu0 0
  %496 = vmatprep.mubr.bf16.mxu0 0
  %497 = vmatmul.mubr.bf16.gmra.mxu0 %v177
  %v498 = vpop.f32.mrf.mxu0
  %v499 = vadd.f32 %v402, %v498
  %v500 = vpop.f32.mrf.mxu0
  %v501 = vpop.f32.mrf.mxu0
  %v502 = vadd.f32 %v405, %v501
  %v503 = vpop.f32.mrf.mxu0
  %504 = vmatprep.mubr.bf16.mxu0 0
  %505 = vmatmul.mubr.bf16.gmra.mxu0 %v180
  %v506 = vpop.f32.mrf.mxu0
  %v507 = vadd.f32 %v410, %v506
  %v508 = vpop.f32.mrf.mxu0
  %v509 = vpop.f32.mrf.mxu0
  %v510 = vadd.f32 %v413, %v509
  %v511 = vpop.f32.mrf.mxu0
  %512 = vmatprep.mubr.bf16.mxu0 0
  %513 = vmatmul.mubr.bf16.gmra.mxu0 %v183
  %v514 = vpop.f32.mrf.mxu0
  %v515 = vadd.f32 %v418, %v514
  %v516 = vpop.f32.mrf.mxu0
  %v517 = vpop.f32.mrf.mxu0
  %v518 = vadd.f32 %v421, %v517
  %v519 = vpop.f32.mrf.mxu0
  %520 = vmatprep.mubr.bf16.mxu0 0
  %521 = vmatmul.mubr.bf16.gmra.mxu0 %v186
  %v522 = vpop.f32.mrf.mxu0
  %v523 = vadd.f32 %v426, %v522
  %v524 = vpop.f32.mrf.mxu0
  %v525 = vpop.f32.mrf.mxu0
  %v526 = vadd.f32 %v429, %v525
  %v527 = vpop.f32.mrf.mxu0
  %528 = vmatprep.mubr.bf16.mxu0 0
  %529 = vmatmul.mubr.bf16.gmra.mxu0 %v189
  %v530 = vpop.f32.mrf.mxu0
  %v531 = vadd.f32 %v434, %v530
  %v532 = vpop.f32.mrf.mxu0
  %v533 = vpop.f32.mrf.mxu0
  %v534 = vadd.f32 %v437, %v533
  %v535 = vpop.f32.mrf.mxu0
  %536 = vmatprep.mubr.bf16.mxu0 0
  %537 = vmatmul.mubr.bf16.gmra.mxu0 %v192
  %v538 = vpop.f32.mrf.mxu0
  %v539 = vadd.f32 %v442, %v538
  %v540 = vpop.f32.mrf.mxu0
  %v541 = vpop.f32.mrf.mxu0
  %v542 = vadd.f32 %v445, %v541
  %v543 = vpop.f32.mrf.mxu0
  %544 = vmatprep.mubr.bf16.mxu0 0
  %545 = vmatmul.mubr.bf16.gmra.mxu0 %v195
  %v546 = vpop.f32.mrf.mxu0
  %v547 = vadd.f32 %v450, %v546
  %v548 = vpop.f32.mrf.mxu0
  %v549 = vpop.f32.mrf.mxu0
  %v550 = vadd.f32 %v453, %v549
  %v551 = vpop.f32.mrf.mxu0
  %552 = vmatprep.mubr.bf16.mxu0 0
  %553 = vmatmul.mubr.bf16.gmra.mxu0 %v198
  %v554 = vpop.f32.mrf.mxu0
  %v555 = vadd.f32 %v458, %v554
  %v556 = vpop.f32.mrf.mxu0
  %v557 = vpop.f32.mrf.mxu0
  %v558 = vadd.f32 %v461, %v557
  %v559 = vpop.f32.mrf.mxu0
  %560 = vdwg.mxu0
  %v561 = vld [vmem:[%s2] sm:$0x1]
  %v562 = vlaneseq
  %v563 = vshrl.u32 %v562, 7
  %v564 = vsub.s32 0, %v563
  %v565 = vrot.slane %v561, %v564
  %v566 = vmul.f32 %v499, %v565
  %v567 = vmul.f32 %v502, %v565
  %v568 = vmul.f32 %v507, %v565
  %v569 = vmul.f32 %v510, %v565
  %v570 = vmul.f32 %v515, %v565
  %v571 = vmul.f32 %v518, %v565
  %v572 = vmul.f32 %v523, %v565
  %v573 = vmul.f32 %v526, %v565
  %v574 = vmul.f32 %v531, %v565
  %v575 = vmul.f32 %v534, %v565
  %v576 = vmul.f32 %v539, %v565
  %v577 = vmul.f32 %v542, %v565
  %v578 = vmul.f32 %v547, %v565
  %v579 = vmul.f32 %v550, %v565
  %v580 = vmul.f32 %v555, %v565
  %v581 = vmul.f32 %v558, %v565
  %v582 = vld [vmem:[%s2 + $0x1] sm:$0x1]
  %v583 = vlaneseq
  %v584 = vshrl.u32 %v583, 7
  %v585 = vsub.s32 0, %v584
  %v586 = vrot.slane %v582, %v585
  %v587 = vadd.f32 %v566, %v586
  %v588 = vadd.f32 %v567, %v586
  %v589 = vadd.f32 %v568, %v586
  %v590 = vadd.f32 %v569, %v586
  %v591 = vadd.f32 %v570, %v586
  %v592 = vadd.f32 %v571, %v586
  %v593 = vadd.f32 %v572, %v586
  %v594 = vadd.f32 %v573, %v586
  %v595 = vadd.f32 %v574, %v586
  %v596 = vadd.f32 %v575, %v586
  %v597 = vadd.f32 %v576, %v586
  %v598 = vadd.f32 %v577, %v586
  %v599 = vadd.f32 %v578, %v586
  %v600 = vadd.f32 %v579, %v586
  %v601 = vadd.f32 %v580, %v586
  %v602 = vadd.f32 %v581, %v586
  %v603 = vmax.f32 %v587, 0.0
  %v604 = vmax.f32 %v588, 0.0
  %v605 = vmax.f32 %v589, 0.0
  %v606 = vmax.f32 %v590, 0.0
  %v607 = vmax.f32 %v591, 0.0
  %v608 = vmax.f32 %v592, 0.0
  %v609 = vmax.f32 %v593, 0.0
  %v610 = vmax.f32 %v594, 0.0
  %v611 = vmax.f32 %v595, 0.0
  %v612 = vmax.f32 %v596, 0.0
  %v613 = vmax.f32 %v597, 0.0
  %v614 = vmax.f32 %v598, 0.0
  %v615 = vmax.f32 %v599, 0.0
  %v616 = vmax.f32 %v600, 0.0
  %v617 = vmax.f32 %v601, 0.0
  %v618 = vmax.f32 %v602, 0.0
  %v619 = vpack.c.bf16 %v604, %v603
  %v620 = vpack.c.bf16 %v606, %v605
  %v621 = vpack.c.bf16 %v608, %v607
  %v622 = vpack.c.bf16 %v610, %v609
  %v623 = vpack.c.bf16 %v612, %v611
  %v624 = vpack.c.bf16 %v614, %v613
  %v625 = vpack.c.bf16 %v616, %v615
  %v626 = vpack.c.bf16 %v618, %v617
  %v635 = vunpack.c.l.b16 %v619
  %v636 = vunpack.c.h.b16 %v619
  %v637 = vunpack.c.l.b16 %v620
  %v638 = vunpack.c.h.b16 %v620
  %v639 = vunpack.c.l.b16 %v621
  %v640 = vunpack.c.h.b16 %v621
  %v641 = vunpack.c.l.b16 %v622
  %v642 = vunpack.c.h.b16 %v622
  %v643 = vunpack.c.l.b16 %v623
  %v644 = vunpack.c.h.b16 %v623
  %v645 = vunpack.c.l.b16 %v624
  %v646 = vunpack.c.h.b16 %v624
  %v647 = vunpack.c.l.b16 %v625
  %v648 = vunpack.c.h.b16 %v625
  %v649 = vunpack.c.l.b16 %v626
  %v650 = vunpack.c.h.b16 %v626
  %v651 = vpack.c.b16 %v635, %v635
  %v652 = vpack.c.b16 %v636, %v636
  %v653 = vpack.c.b16 %v637, %v637
  %v654 = vpack.c.b16 %v638, %v638
  %v655 = vpack.c.b16 %v639, %v639
  %v656 = vpack.c.b16 %v640, %v640
  %v657 = vpack.c.b16 %v641, %v641
  %v658 = vpack.c.b16 %v642, %v642
  %v659 = vpack.c.b16 %v643, %v643
  %v660 = vpack.c.b16 %v644, %v644
  %v661 = vpack.c.b16 %v645, %v645
  %v662 = vpack.c.b16 %v646, %v646
  %v663 = vpack.c.b16 %v647, %v647
  %v664 = vpack.c.b16 %v648, %v648
  %v665 = vpack.c.b16 %v649, %v649
  %v666 = vpack.c.b16 %v650, %v650
  %683 = vst [vmem:[%s3] sm:$0xf] %v651
  %684 = vst [vmem:[%s3 + $0x4] sm:$0xf] %v652
  %685 = vst [vmem:[%s3 + $0x8] sm:$0xf] %v653
  %686 = vst [vmem:[%s3 + $0xc] sm:$0xf] %v654
  %687 = vst [vmem:[%s3 + $0x10] sm:$0xf] %v655
  %688 = vst [vmem:[%s3 + $0x14] sm:$0xf] %v656
  %689 = vst [vmem:[%s3 + $0x18] sm:$0xf] %v657
  %690 = vst [vmem:[%s3 + $0x1c] sm:$0xf] %v658
  %691 = vst [vmem:[%s3 + $0x20] sm:$0xf] %v659
  %692 = vst [vmem:[%s3 + $0x24] sm:$0xf] %v660
  %693 = vst [vmem:[%s3 + $0x28] sm:$0xf] %v661
  %694 = vst [vmem:[%s3 + $0x2c] sm:$0xf] %v662
  %695 = vst [vmem:[%s3 + $0x30] sm:$0xf] %v663
  %696 = vst [vmem:[%s3 + $0x34] sm:$0xf] %v664
  %697 = vst [vmem:[%s3 + $0x38] sm:$0xf] %v665
  %698 = vst [vmem:[%s3 + $0x3c] sm:$0xf] %v666
  // Predicated region
  $region14: #{_lambda_.30} parent=0 // pred_check
    _
  $region15: #{_lambda_.30} parent=0 // pred_check_branch
    %700 = sbr.rel (0) target = $region17
  $region16: #{_lambda_.30} parent=0 // pred_region
    _
  $region17: #{_lambda_.30} parent=0 // pred_fallthru
    _
  // Predicated region
  $region18: #{_lambda_.30} parent=0 // pred_check
    _
  $region19: #{_lambda_.30} parent=0 // pred_check_branch
    %702 = sbr.rel (0) target = $region21
  $region20: #{_lambda_.30} parent=0 // pred_region
    _
  $region21: #{_lambda_.30} parent=0 // pred_fallthru
    _

// kernel: _lambda_.31
$region0: #{_lambda_.31}
  #allocation0 [shape = 'u32[]', space=smem, size = 0x4, offset = 0x4, fixed_abs, tag = 'smem constant byte address 0x4 - core index']
  #allocation1 [shape = 'u32[144,128]{1,0:T(1,128)}', space=vmem, size = 0x12000, scoped, tag = 'internal scratch']
  %s0 = inlined_call_operand.vmem [shape: bf16[2,256,32], index: 0, kind: input, shape index: {}]
  %s1 = inlined_call_operand.vmem [shape: bf16[32,8], index: 1, kind: input, shape index: {}]
  %s2 = inlined_call_operand.vmem [shape: f32[1,8], index: 2, kind: input, shape index: {}]
  %s3 = inlined_call_operand.vmem [shape: f32[256,1], index: 3, kind: input, shape index: {}]
  %s4 = inlined_call_operand.vmem [shape: f32[256,1], index: 4, kind: input, shape index: {}]
  %s5 = inlined_call_operand.vmem [shape: f32[2,3,8], index: 5, kind: output, shape index: {}]
  %s6 = sld [smem:[#allocation0]]
  $region53: #{_lambda_.31} parent=0
    _
  %s8 = ssub.s32 1, %s6
  %s9 = scalar_select 0, %s8, %s6
  loop: start=0, step=1, limit=4
  $region2: #{_lambda_.31} parent=0 // loop_pre_header
    _
  $region3: #{_lambda_.31} parent=0 // loop_header
    %s11 = sphi 0, %s15
    %p12 = scmp.ge.s32.totalorder %s11, 4
    %s21 = sphi 0, %s23
    %s24 = sphi 0, %s21
    %s25 = sphi 0, %s24
    %s41 = sphi 0, %s25
    %s45 = sphi 0, %s45
    %s47 = sphi 0, %s45
    %s48 = sphi 0, %s47
    %s62 = sphi 0, %s48
    %s66 = sphi 0, %s66
    %s68 = sphi 0, %s66
    %s69 = sphi 0, %s68
    %s83 = sphi 0, %s69
    %s87 = sphi 0, %s87
    %s89 = sphi 0, %s87
    %s90 = sphi 0, %s89
    %s104 = sphi 0, %s90
    %s108 = sphi 0, %s108
    %s110 = sphi 0, %s108
    %s111 = sphi 0, %s110
    %s125 = sphi 0, %s111
    %s131 = sphi 0, %s133
    %s134 = sphi 0, %s131
    %s135 = sphi 0, %s134
    %s151 = sphi 0, %s135
  $region4: #{_lambda_.31} parent=0 // loop_header_branch
    %14 = sbr.rel (%p12) target = $region8
  $region5: #{_lambda_.31} parent=0 // loop_body
    %s16 = ssub.s32 %s11, 1
    %s17 = ssub.s32 %s11, 2
    %s18 = sadd.s32 %s11, 1
    %s19 = ssub.s32 %s11, %s18
    %p20 = scmp.eq.s32.totalorder %s19, 0
    %s22 = sadd.s32 %s21, 1
    %s23 = scalar_select %p20, %s21, %s22
    %p26 = pneg %p20
    %p27 = scmp.eq.s32.totalorder %s11, 1
    %p28 = por %p26, %p27
    %p29 = scmp.ne.s32.totalorder %s21, %s24
    %p30 = scmp.eq.s32.totalorder %s11, 0
    %p31 = por %p29, %p30
    %p32 = scmp.ne.s32.totalorder %s21, %s24
    %p33 = scmp.eq.s32.totalorder %s16, 1
    %p34 = por %p32, %p33
    %p35 = scmp.ne.s32.totalorder %s24, %s25
    %p36 = scmp.eq.s32.totalorder %s16, 0
    %p37 = por %p35, %p36
    %p38 = scmp.ne.s32.totalorder %s24, %s25
    %p39 = scmp.eq.s32.totalorder %s17, 1
    %p40 = por %p38, %p39
    %p42 = scmp.ne.s32.totalorder %s25, %s41
    %p43 = scmp.eq.s32.totalorder %s17, 0
    %p44 = por %p42, %p43
    %s46 = sadd.s32 %s45, 1
    %p49 = scmp.eq.s32.totalorder %s11, 1
    %p50 = scmp.ne.s32.totalorder %s45, %s47
    %p51 = scmp.eq.s32.totalorder %s11, 0
    %p52 = por %p50, %p51
    %p53 = scmp.ne.s32.totalorder %s45, %s47
    %p54 = scmp.eq.s32.totalorder %s16, 1
    %p55 = por %p53, %p54
    %p56 = scmp.ne.s32.totalorder %s47, %s48
    %p57 = scmp.eq.s32.totalorder %s16, 0
    %p58 = por %p56, %p57
    %p59 = scmp.ne.s32.totalorder %s47, %s48
    %p60 = scmp.eq.s32.totalorder %s17, 1
    %p61 = por %p59, %p60
    %p63 = scmp.ne.s32.totalorder %s48, %s62
    %p64 = scmp.eq.s32.totalorder %s17, 0
    %p65 = por %p63, %p64
    %s67 = sadd.s32 %s66, 1
    %p70 = scmp.eq.s32.totalorder %s11, 1
    %p71 = scmp.ne.s32.totalorder %s66, %s68
    %p72 = scmp.eq.s32.totalorder %s11, 0
    %p73 = por %p71, %p72
    %p74 = scmp.ne.s32.totalorder %s66, %s68
    %p75 = scmp.eq.s32.totalorder %s16, 1
    %p76 = por %p74, %p75
    %p77 = scmp.ne.s32.totalorder %s68, %s69
    %p78 = scmp.eq.s32.totalorder %s16, 0
    %p79 = por %p77, %p78
    %p80 = scmp.ne.s32.totalorder %s68, %s69
    %p81 = scmp.eq.s32.totalorder %s17, 1
    %p82 = por %p80, %p81
    %p84 = scmp.ne.s32.totalorder %s69, %s83
    %p85 = scmp.eq.s32.totalorder %s17, 0
    %p86 = por %p84, %p85
    %s88 = sadd.s32 %s87, 1
    %p91 = scmp.eq.s32.totalorder %s11, 1
    %p92 = scmp.ne.s32.totalorder %s87, %s89
    %p93 = scmp.eq.s32.totalorder %s11, 0
    %p94 = por %p92, %p93
    %p95 = scmp.ne.s32.totalorder %s87, %s89
    %p96 = scmp.eq.s32.totalorder %s16, 1
    %p97 = por %p95, %p96
    %p98 = scmp.ne.s32.totalorder %s89, %s90
    %p99 = scmp.eq.s32.totalorder %s16, 0
    %p100 = por %p98, %p99
    %p101 = scmp.ne.s32.totalorder %s89, %s90
    %p102 = scmp.eq.s32.totalorder %s17, 1
    %p103 = por %p101, %p102
    %p105 = scmp.ne.s32.totalorder %s90, %s104
    %p106 = scmp.eq.s32.totalorder %s17, 0
    %p107 = por %p105, %p106
    %s109 = sadd.s32 %s108, 1
    %p112 = scmp.eq.s32.totalorder %s11, 1
    %p113 = scmp.ne.s32.totalorder %s108, %s110
    %p114 = scmp.eq.s32.totalorder %s11, 0
    %p115 = por %p113, %p114
    %p116 = scmp.ne.s32.totalorder %s108, %s110
    %p117 = scmp.eq.s32.totalorder %s16, 1
    %p118 = por %p116, %p117
    %p119 = scmp.ne.s32.totalorder %s110, %s111
    %p120 = scmp.eq.s32.totalorder %s16, 0
    %p121 = por %p119, %p120
    %p122 = scmp.ne.s32.totalorder %s110, %s111
    %p123 = scmp.eq.s32.totalorder %s17, 1
    %p124 = por %p122, %p123
    %p126 = scmp.ne.s32.totalorder %s111, %s125
    %p127 = scmp.eq.s32.totalorder %s17, 0
    %p128 = por %p126, %p127
    %s129 = ssub.s32 %s11, %s18
    %p130 = scmp.eq.s32.totalorder %s129, 0
    %s132 = sadd.s32 %s131, 1
    %s133 = scalar_select %p130, %s131, %s132
    %p136 = pneg %p130
    %p137 = scmp.eq.s32.totalorder %s11, 1
    %p138 = por %p136, %p137
    %p139 = scmp.ne.s32.totalorder %s131, %s134
    %p140 = scmp.eq.s32.totalorder %s11, 0
    %p141 = por %p139, %p140
    %p142 = scmp.ne.s32.totalorder %s131, %s134
    %p143 = scmp.eq.s32.totalorder %s16, 1
    %p144 = por %p142, %p143
    %p145 = scmp.ne.s32.totalorder %s134, %s135
    %p146 = scmp.eq.s32.totalorder %s16, 0
    %p147 = por %p145, %p146
    %p148 = scmp.ne.s32.totalorder %s134, %s135
    %p149 = scmp.eq.s32.totalorder %s17, 1
    %p150 = por %p148, %p149
    %p152 = scmp.ne.s32.totalorder %s135, %s151
    %p153 = scmp.eq.s32.totalorder %s17, 0
    %p154 = por %p152, %p153
    %p155 = scmp.le.s32.totalorder 1, %s11
    %p156 = scmp.lt.s32.totalorder %s11, 3
    %p157 = pnand %p155, %p156
    %p158 = pneg %p157
    // Predicated region
    $region9: #{_lambda_.31} parent=5 // pred_check
      _
    $region10: #{_lambda_.31} parent=5 // pred_check_branch
      %160 = sbr.rel (%p157) target = $region12
    $region11: #{_lambda_.31} parent=5 // pred_region
      %s161 = ssub.s32 %s11, 1
      // Predicated region
      $region13: #{_lambda_.31} parent=11 // pred_check
        %p162 = pneg %p58
      $region14: #{_lambda_.31} parent=11 // pred_check_branch
        %164 = sbr.rel (%p162) target = $region16
      $region15: #{_lambda_.31} parent=11 // pred_region
        _
      $region16: #{_lambda_.31} parent=11 // pred_fallthru
        _
      // Predicated region
      $region17: #{_lambda_.31} parent=11 // pred_check
        %p165 = pneg %p79
      $region18: #{_lambda_.31} parent=11 // pred_check_branch
        %167 = sbr.rel (%p165) target = $region20
      $region19: #{_lambda_.31} parent=11 // pred_region
        _
      $region20: #{_lambda_.31} parent=11 // pred_fallthru
        _
      // Predicated region
      $region21: #{_lambda_.31} parent=11 // pred_check
        %p168 = pneg %p100
      $region22: #{_lambda_.31} parent=11 // pred_check_branch
        %170 = sbr.rel (%p168) target = $region24
      $region23: #{_lambda_.31} parent=11 // pred_region
        _
      $region24: #{_lambda_.31} parent=11 // pred_fallthru
        _
      // Predicated region
      $region25: #{_lambda_.31} parent=11 // pred_check
        %p171 = pneg %p121
      $region26: #{_lambda_.31} parent=11 // pred_check_branch
        %173 = sbr.rel (%p171) target = $region28
      $region27: #{_lambda_.31} parent=11 // pred_region
        _
      $region28: #{_lambda_.31} parent=11 // pred_fallthru
        _
    $region12: #{_lambda_.31} parent=5 // pred_fallthru
      _
    %p174 = scmp.lt.s32.totalorder %s11, 2
    // Predicated region
    $region29: #{_lambda_.31} parent=5 // pred_check
      %p175 = pneg %p174
    $region30: #{_lambda_.31} parent=5 // pred_check_branch
      %177 = sbr.rel (%p175) target = $region32
    $region31: #{_lambda_.31} parent=5 // pred_region
      // Predicated region
      $region33: #{_lambda_.31} parent=31 // pred_check
        %p178 = pneg %p31
      $region34: #{_lambda_.31} parent=31 // pred_check_branch
        %180 = sbr.rel (%p178) target = $region36
      $region35: #{_lambda_.31} parent=31 // pred_region
        %p181 = scmp.lt.s32.totalorder %s11, 1
        %s182 = scalar_select %p181, %s11, 1
        %s183 = smul.addr %s182, 32
        %s184 = smul.addr %s183, 4
        %s185 = scalar_lea.vmem %s0, %s184
      $region36: #{_lambda_.31} parent=31 // pred_fallthru
        _
    $region32: #{_lambda_.31} parent=5 // pred_fallthru
      _
    %p186 = scmp.le.s32.totalorder 1, %s11
    %p187 = scmp.lt.s32.totalorder %s11, 3
    %p188 = pnand %p186, %p187
    %p189 = pneg %p188
    // Predicated region
    $region37: #{_lambda_.31} parent=5 // pred_check
      _
    $region38: #{_lambda_.31} parent=5 // pred_check_branch
      %191 = sbr.rel (%p188) target = $region40
    $region39: #{_lambda_.31} parent=5 // pred_region
      %s192 = ssub.s32 %s11, 1
      %p193 = scmp.lt.s32.totalorder %s16, 1
      %s194 = scalar_select %p193, %s16, 1
      %s195 = smul.addr %s194, 32
      %s196 = smul.addr %s195, 4
      %s197 = scalar_lea.vmem %s0, %s196
      %p198 = pneg %p37
      %p199 = pneg %p34
      %p200 = pneg %p58
      %p201 = pneg %p55
      %p202 = pneg %p79
      %p203 = pneg %p76
      %p204 = pneg %p100
      %p205 = pneg %p97
      %p206 = pneg %p121
      %p207 = pneg %p118
      %p208 = pneg %p147
      %p209 = pneg %p144
      %p210 = scmp.lt.s32.totalorder %s16, 1
      %s211 = scalar_select %p210, %s16, 1
      %s212 = smul.addr %s211, 4
      %s213 = scalar_lea.vmem %s5, %s212
      %p214 = scmp.lt.s32.totalorder %s16, 1
      %s215 = scalar_select %p214, %s16, 1
      %s216 = smul.addr %s215, 32
      %s217 = smul.addr %s216, 4
      %s218 = scalar_lea.vmem %s0, %s217
      %p219 = scmp.lt.s32.totalorder %s16, 1
      %s220 = scalar_select %p219, %s16, 1
      %s221 = smul.addr %s220, 4
      %s222 = scalar_lea.vmem %s5, %s221
      %v224 = vld [vmem:[%s218] sm:$0xf]
      %v225 = vld [vmem:[%s218 + $0x4] sm:$0xf]
      %v226 = vld [vmem:[%s218 + $0x8] sm:$0xf]
      %v227 = vld [vmem:[%s218 + $0xc] sm:$0xf]
      %v228 = vld [vmem:[%s218 + $0x10] sm:$0xf]
      %v229 = vld [vmem:[%s218 + $0x14] sm:$0xf]
      %v230 = vld [vmem:[%s218 + $0x18] sm:$0xf]
      %v231 = vld [vmem:[%s218 + $0x1c] sm:$0xf]
      %v232 = vld [vmem:[%s218 + $0x20] sm:$0xf]
      %v233 = vld [vmem:[%s218 + $0x24] sm:$0xf]
      %v234 = vld [vmem:[%s218 + $0x28] sm:$0xf]
      %v235 = vld [vmem:[%s218 + $0x2c] sm:$0xf]
      %v236 = vld [vmem:[%s218 + $0x30] sm:$0xf]
      %v237 = vld [vmem:[%s218 + $0x34] sm:$0xf]
      %v238 = vld [vmem:[%s218 + $0x38] sm:$0xf]
      %v239 = vld [vmem:[%s218 + $0x3c] sm:$0xf]
      %v240 = vld [vmem:[%s218 + $0x40] sm:$0xf]
      %v241 = vld [vmem:[%s218 + $0x44] sm:$0xf]
      %v242 = vld [vmem:[%s218 + $0x48] sm:$0xf]
      %v243 = vld [vmem:[%s218 + $0x4c] sm:$0xf]
      %v244 = vld [vmem:[%s218 + $0x50] sm:$0xf]
      %v245 = vld [vmem:[%s218 + $0x54] sm:$0xf]
      %v246 = vld [vmem:[%s218 + $0x58] sm:$0xf]
      %v247 = vld [vmem:[%s218 + $0x5c] sm:$0xf]
      %v248 = vld [vmem:[%s218 + $0x60] sm:$0xf]
      %v249 = vld [vmem:[%s218 + $0x64] sm:$0xf]
      %v250 = vld [vmem:[%s218 + $0x68] sm:$0xf]
      %v251 = vld [vmem:[%s218 + $0x6c] sm:$0xf]
      %v252 = vld [vmem:[%s218 + $0x70] sm:$0xf]
      %v253 = vld [vmem:[%s218 + $0x74] sm:$0xf]
      %v254 = vld [vmem:[%s218 + $0x78] sm:$0xf]
      %v255 = vld [vmem:[%s218 + $0x7c] sm:$0xf]
      %v256 = vld [vmem:[%s1] sm:$0xf]
      %v257 = vld [vmem:[%s1 + $0x4] sm:$0xf]
      %v258 = vld [vmem:[%s1 + $0x8] sm:$0xf]
      %v259 = vld [vmem:[%s1 + $0xc] sm:$0xf]
      %v260 = vld [vmem:[%s2] sm:$0x1]
      %v262 = vlaneseq
      %v263 = vshrl.u32 %v262, 7
      %v264 = vsub.s32 0, %v263
      %v265 = vrot.slane %v260, %v264
      %v299 = vunpack.c.l.b16 %v224
      %v300 = vunpack.c.l.b16 %v225
      %v301 = vunpack.c.l.b16 %v226
      %v302 = vunpack.c.l.b16 %v227
      %v303 = vunpack.c.l.b16 %v228
      %v304 = vunpack.c.l.b16 %v229
      %v305 = vunpack.c.l.b16 %v230
      %v306 = vunpack.c.l.b16 %v231
      %v307 = vunpack.c.l.b16 %v232
      %v308 = vunpack.c.l.b16 %v233
      %v309 = vunpack.c.l.b16 %v234
      %v310 = vunpack.c.l.b16 %v235
      %v311 = vunpack.c.l.b16 %v236
      %v312 = vunpack.c.l.b16 %v237
      %v313 = vunpack.c.l.b16 %v238
      %v314 = vunpack.c.l.b16 %v239
      %v315 = vunpack.c.l.b16 %v240
      %v316 = vunpack.c.l.b16 %v241
      %v317 = vunpack.c.l.b16 %v242
      %v318 = vunpack.c.l.b16 %v243
      %v319 = vunpack.c.l.b16 %v244
      %v320 = vunpack.c.l.b16 %v245
      %v321 = vunpack.c.l.b16 %v246
      %v322 = vunpack.c.l.b16 %v247
      %v323 = vunpack.c.l.b16 %v248
      %v324 = vunpack.c.l.b16 %v249
      %v325 = vunpack.c.l.b16 %v250
      %v326 = vunpack.c.l.b16 %v251
      %v327 = vunpack.c.l.b16 %v252
      %v328 = vunpack.c.l.b16 %v253
      %v329 = vunpack.c.l.b16 %v254
      %v330 = vunpack.c.l.b16 %v255
      %v331 = vpack.c.b16 %v300, %v299
      %v332 = vpack.c.b16 %v302, %v301
      %v333 = vpack.c.b16 %v304, %v303
      %v334 = vpack.c.b16 %v306, %v305
      %v335 = vpack.c.b16 %v308, %v307
      %v336 = vpack.c.b16 %v310, %v309
      %v337 = vpack.c.b16 %v312, %v311
      %v338 = vpack.c.b16 %v314, %v313
      %v339 = vpack.c.b16 %v316, %v315
      %v340 = vpack.c.b16 %v318, %v317
      %v341 = vpack.c.b16 %v320, %v319
      %v342 = vpack.c.b16 %v322, %v321
      %v343 = vpack.c.b16 %v324, %v323
      %v344 = vpack.c.b16 %v326, %v325
      %v345 = vpack.c.b16 %v328, %v327
      %v346 = vpack.c.b16 %v330, %v329
      %v351 = vunpack.c.l.b16 %v256
      %v352 = vunpack.c.l.b16 %v257
      %v353 = vunpack.c.l.b16 %v258
      %v354 = vunpack.c.l.b16 %v259
      %v355 = vpack.c.b16 %v352, %v351
      %v356 = vpack.c.b16 %v354, %v353
      %vm359 = vcmask 261120
      %v361 = vsel %vm359, %v331, 0
      %v364 = vsel %vm359, %v332, 0
      %v367 = vsel %vm359, %v333, 0
      %v370 = vsel %vm359, %v334, 0
      %v373 = vsel %vm359, %v335, 0
      %v376 = vsel %vm359, %v336, 0
      %v379 = vsel %vm359, %v337, 0
      %v382 = vsel %vm359, %v338, 0
      %v385 = vsel %vm359, %v339, 0
      %v388 = vsel %vm359, %v340, 0
      %v391 = vsel %vm359, %v341, 0
      %v394 = vsel %vm359, %v342, 0
      %v397 = vsel %vm359, %v343, 0
      %v400 = vsel %vm359, %v344, 0
      %v403 = vsel %vm359, %v345, 0
      %v406 = vsel %vm359, %v346, 0
      %408 = vmatprep.subr.bf16.mxu0 0
      %409 = vmatpush1.bf16.msra.mxu0 0
      %410 = vmatprep.subr.bf16.mxu0 0
      %411 = vmatpush1.bf16.msra.mxu0 0
      %412 = vmatprep.subr.bf16.mxu0 0
      %413 = vmatpush1.bf16.msra.mxu0 0
      %414 = vmatprep.subr.bf16.mxu0 0
      %415 = vmatpush1.bf16.msra.mxu0 0
      %416 = vmatprep.subr.bf16.mxu0 0
      %417 = vmatpush1.bf16.msra.mxu0 0
      %418 = vmatprep.subr.bf16.mxu0 0
      %419 = vmatpush1.bf16.msra.mxu0 0
      %420 = vmatprep.subr.bf16.mxu0 0
      %421 = vmatpush1.bf16.msra.mxu0 %v356
      %422 = vmatprep.subr.bf16.mxu0 0
      %423 = vmatpush1.bf16.msra.mxu0 %v355
      %424 = vmatprep.subr.bf16.mxu0 0
      %425 = vmatpush2.bf16.msra.mxu0 0
      %426 = vmatprep.subr.bf16.mxu0 0
      %427 = vmatpush2.bf16.msra.mxu0 0
      %428 = vmatprep.subr.bf16.mxu0 0
      %429 = vmatpush2.bf16.msra.mxu0 0
      %430 = vmatprep.subr.bf16.mxu0 0
      %431 = vmatpush2.bf16.msra.mxu0 0
      %432 = vmatprep.subr.bf16.mxu0 0
      %433 = vmatpush2.bf16.msra.mxu0 0
      %434 = vmatprep.subr.bf16.mxu0 0
      %435 = vmatpush2.bf16.msra.mxu0 0
      %436 = vmatprep.subr.bf16.mxu0 0
      %437 = vmatpush2.bf16.msra.mxu0 0
      %438 = vmatprep.subr.bf16.mxu0 0
      %439 = vmatpush2.bf16.msra.mxu0 0
      %440 = vmatprep.mubr.bf16.mxu0 0
      %441 = vmatmul.mubr.bf16.gmra.mxu0 %v361
      %v442 = vpop.f32.mrf.mxu0
      %v443 = vadd.f32 %v265, %v442
      %v444 = vpop.f32.mrf.mxu0
      %v445 = vpop.f32.mrf.mxu0
      %v446 = vadd.f32 %v265, %v445
      %v447 = vpop.f32.mrf.mxu0
      %448 = vmatprep.mubr.bf16.mxu0 0
      %449 = vmatmul.mubr.bf16.gmra.mxu0 %v364
      %v450 = vpop.f32.mrf.mxu0
      %v451 = vadd.f32 %v265, %v450
      %v452 = vpop.f32.mrf.mxu0
      %v453 = vpop.f32.mrf.mxu0
      %v454 = vadd.f32 %v265, %v453
      %v455 = vpop.f32.mrf.mxu0
      %456 = vmatprep.mubr.bf16.mxu0 0
      %457 = vmatmul.mubr.bf16.gmra.mxu0 %v367
      %v458 = vpop.f32.mrf.mxu0
      %v459 = vadd.f32 %v265, %v458
      %v460 = vpop.f32.mrf.mxu0
      %v461 = vpop.f32.mrf.mxu0
      %v462 = vadd.f32 %v265, %v461
      %v463 = vpop.f32.mrf.mxu0
      %464 = vmatprep.mubr.bf16.mxu0 0
      %465 = vmatmul.mubr.bf16.gmra.mxu0 %v370
      %v466 = vpop.f32.mrf.mxu0
      %v467 = vadd.f32 %v265, %v466
      %v468 = vpop.f32.mrf.mxu0
      %v469 = vpop.f32.mrf.mxu0
      %v470 = vadd.f32 %v265, %v469
      %v471 = vpop.f32.mrf.mxu0
      %472 = vmatprep.mubr.bf16.mxu0 0
      %473 = vmatmul.mubr.bf16.gmra.mxu0 %v373
      %v474 = vpop.f32.mrf.mxu0
      %v475 = vadd.f32 %v265, %v474
      %v476 = vpop.f32.mrf.mxu0
      %v477 = vpop.f32.mrf.mxu0
      %v478 = vadd.f32 %v265, %v477
      %v479 = vpop.f32.mrf.mxu0
      %480 = vmatprep.mubr.bf16.mxu0 0
      %481 = vmatmul.mubr.bf16.gmra.mxu0 %v376
      %v482 = vpop.f32.mrf.mxu0
      %v483 = vadd.f32 %v265, %v482
      %v484 = vpop.f32.mrf.mxu0
      %v485 = vpop.f32.mrf.mxu0
      %v486 = vadd.f32 %v265, %v485
      %v487 = vpop.f32.mrf.mxu0
      %488 = vmatprep.mubr.bf16.mxu0 0
      %489 = vmatmul.mubr.bf16.gmra.mxu0 %v379
      %v490 = vpop.f32.mrf.mxu0
      %v491 = vadd.f32 %v265, %v490
      %v492 = vpop.f32.mrf.mxu0
      %v493 = vpop.f32.mrf.mxu0
      %v494 = vadd.f32 %v265, %v493
      %v495 = vpop.f32.mrf.mxu0
      %496 = vmatprep.mubr.bf16.mxu0 0
      %497 = vmatmul.mubr.bf16.gmra.mxu0 %v382
      %v498 = vpop.f32.mrf.mxu0
      %v499 = vadd.f32 %v265, %v498
      %v500 = vpop.f32.mrf.mxu0
      %v501 = vpop.f32.mrf.mxu0
      %v502 = vadd.f32 %v265, %v501
      %v503 = vpop.f32.mrf.mxu0
      %504 = vmatprep.mubr.bf16.mxu0 0
      %505 = vmatmul.mubr.bf16.gmra.mxu0 %v385
      %v506 = vpop.f32.mrf.mxu0
      %v507 = vadd.f32 %v265, %v506
      %v508 = vpop.f32.mrf.mxu0
      %v509 = vpop.f32.mrf.mxu0
      %v510 = vadd.f32 %v265, %v509
      %v511 = vpop.f32.mrf.mxu0
      %512 = vmatprep.mubr.bf16.mxu0 0
      %513 = vmatmul.mubr.bf16.gmra.mxu0 %v388
      %v514 = vpop.f32.mrf.mxu0
      %v515 = vadd.f32 %v265, %v514
      %v516 = vpop.f32.mrf.mxu0
      %v517 = vpop.f32.mrf.mxu0
      %v518 = vadd.f32 %v265, %v517
      %v519 = vpop.f32.mrf.mxu0
      %520 = vmatprep.mubr.bf16.mxu0 0
      %521 = vmatmul.mubr.bf16.gmra.mxu0 %v391
      %v522 = vpop.f32.mrf.mxu0
      %v523 = vadd.f32 %v265, %v522
      %v524 = vpop.f32.mrf.mxu0
      %v525 = vpop.f32.mrf.mxu0
      %v526 = vadd.f32 %v265, %v525
      %v527 = vpop.f32.mrf.mxu0
      %528 = vmatprep.mubr.bf16.mxu0 0
      %529 = vmatmul.mubr.bf16.gmra.mxu0 %v394
      %v530 = vpop.f32.mrf.mxu0
      %v531 = vadd.f32 %v265, %v530
      %v532 = vpop.f32.mrf.mxu0
      %v533 = vpop.f32.mrf.mxu0
      %v534 = vadd.f32 %v265, %v533
      %v535 = vpop.f32.mrf.mxu0
      %536 = vmatprep.mubr.bf16.mxu0 0
      %537 = vmatmul.mubr.bf16.gmra.mxu0 %v397
      %v538 = vpop.f32.mrf.mxu0
      %v539 = vadd.f32 %v265, %v538
      %v540 = vpop.f32.mrf.mxu0
      %v541 = vpop.f32.mrf.mxu0
      %v542 = vadd.f32 %v265, %v541
      %v543 = vpop.f32.mrf.mxu0
      %544 = vmatprep.mubr.bf16.mxu0 0
      %545 = vmatmul.mubr.bf16.gmra.mxu0 %v400
      %v546 = vpop.f32.mrf.mxu0
      %v547 = vadd.f32 %v265, %v546
      %v548 = vpop.f32.mrf.mxu0
      %v549 = vpop.f32.mrf.mxu0
      %v550 = vadd.f32 %v265, %v549
      %v551 = vpop.f32.mrf.mxu0
      %552 = vmatprep.mubr.bf16.mxu0 0
      %553 = vmatmul.mubr.bf16.gmra.mxu0 %v403
      %v554 = vpop.f32.mrf.mxu0
      %v555 = vadd.f32 %v265, %v554
      %v556 = vpop.f32.mrf.mxu0
      %v557 = vpop.f32.mrf.mxu0
      %v558 = vadd.f32 %v265, %v557
      %v559 = vpop.f32.mrf.mxu0
      %560 = vmatprep.mubr.bf16.mxu0 0
      %561 = vmatmul.mubr.bf16.gmra.mxu0 %v406
      %v562 = vpop.f32.mrf.mxu0
      %v563 = vadd.f32 %v265, %v562
      %v564 = vpop.f32.mrf.mxu0
      %v565 = vpop.f32.mrf.mxu0
      %v566 = vadd.f32 %v265, %v565
      %v567 = vpop.f32.mrf.mxu0
      %568 = vdwg.mxu0
      %v569 = vmul.f32 %v443, 0.5
      %v570 = vmul.f32 %v446, 0.5
      %v571 = vmul.f32 %v451, 0.5
      %v572 = vmul.f32 %v454, 0.5
      %v573 = vmul.f32 %v459, 0.5
      %v574 = vmul.f32 %v462, 0.5
      %v575 = vmul.f32 %v467, 0.5
      %v576 = vmul.f32 %v470, 0.5
      %v577 = vmul.f32 %v475, 0.5
      %v578 = vmul.f32 %v478, 0.5
      %v579 = vmul.f32 %v483, 0.5
      %v580 = vmul.f32 %v486, 0.5
      %v581 = vmul.f32 %v491, 0.5
      %v582 = vmul.f32 %v494, 0.5
      %v583 = vmul.f32 %v499, 0.5
      %v584 = vmul.f32 %v502, 0.5
      %v585 = vmul.f32 %v507, 0.5
      %v586 = vmul.f32 %v510, 0.5
      %v587 = vmul.f32 %v515, 0.5
      %v588 = vmul.f32 %v518, 0.5
      %v589 = vmul.f32 %v523, 0.5
      %v590 = vmul.f32 %v526, 0.5
      %v591 = vmul.f32 %v531, 0.5
      %v592 = vmul.f32 %v534, 0.5
      %v593 = vmul.f32 %v539, 0.5
      %v594 = vmul.f32 %v542, 0.5
      %v595 = vmul.f32 %v547, 0.5
      %v596 = vmul.f32 %v550, 0.5
      %v597 = vmul.f32 %v555, 0.5
      %v598 = vmul.f32 %v558, 0.5
      %v599 = vmul.f32 %v563, 0.5
      %v600 = vmul.f32 %v566, 0.5
      %v601 = vtanh.pop %v569
      %v602 = vtanh.pop %v570
      %v603 = vtanh.pop %v571
      %v604 = vtanh.pop %v572
      %v605 = vtanh.pop %v573
      %v606 = vtanh.pop %v574
      %v607 = vtanh.pop %v575
      %v608 = vtanh.pop %v576
      %v609 = vtanh.pop %v577
      %v610 = vtanh.pop %v578
      %v611 = vtanh.pop %v579
      %v612 = vtanh.pop %v580
      %v613 = vtanh.pop %v581
      %v614 = vtanh.pop %v582
      %v615 = vtanh.pop %v583
      %v616 = vtanh.pop %v584
      %v617 = vtanh.pop %v585
      %v618 = vtanh.pop %v586
      %v619 = vtanh.pop %v587
      %v620 = vtanh.pop %v588
      %v621 = vtanh.pop %v589
      %v622 = vtanh.pop %v590
      %v623 = vtanh.pop %v591
      %v624 = vtanh.pop %v592
      %v625 = vtanh.pop %v593
      %v626 = vtanh.pop %v594
      %v627 = vtanh.pop %v595
      %v628 = vtanh.pop %v596
      %v629 = vtanh.pop %v597
      %v630 = vtanh.pop %v598
      %v631 = vtanh.pop %v599
      %v632 = vtanh.pop %v600
      %v633 = vadd.f32 %v601, 1.0
      %v634 = vadd.f32 %v602, 1.0
      %v635 = vadd.f32 %v603, 1.0
      %v636 = vadd.f32 %v604, 1.0
      %v637 = vadd.f32 %v605, 1.0
      %v638 = vadd.f32 %v606, 1.0
      %v639 = vadd.f32 %v607, 1.0
      %v640 = vadd.f32 %v608, 1.0
      %v641 = vadd.f32 %v609, 1.0
      %v642 = vadd.f32 %v610, 1.0
      %v643 = vadd.f32 %v611, 1.0
      %v644 = vadd.f32 %v612, 1.0
      %v645 = vadd.f32 %v613, 1.0
      %v646 = vadd.f32 %v614, 1.0
      %v647 = vadd.f32 %v615, 1.0
      %v648 = vadd.f32 %v616, 1.0
      %v649 = vadd.f32 %v617, 1.0
      %v650 = vadd.f32 %v618, 1.0
      %v651 = vadd.f32 %v619, 1.0
      %v652 = vadd.f32 %v620, 1.0
      %v653 = vadd.f32 %v621, 1.0
      %v654 = vadd.f32 %v622, 1.0
      %v655 = vadd.f32 %v623, 1.0
      %v656 = vadd.f32 %v624, 1.0
      %v657 = vadd.f32 %v625, 1.0
      %v658 = vadd.f32 %v626, 1.0
      %v659 = vadd.f32 %v627, 1.0
      %v660 = vadd.f32 %v628, 1.0
      %v661 = vadd.f32 %v629, 1.0
      %v662 = vadd.f32 %v630, 1.0
      %v663 = vadd.f32 %v631, 1.0
      %v664 = vadd.f32 %v632, 1.0
      %v665 = vmul.f32 %v633, 0.5
      %v666 = vmul.f32 %v634, 0.5
      %v667 = vmul.f32 %v635, 0.5
      %v668 = vmul.f32 %v636, 0.5
      %v669 = vmul.f32 %v637, 0.5
      %v670 = vmul.f32 %v638, 0.5
      %v671 = vmul.f32 %v639, 0.5
      %v672 = vmul.f32 %v640, 0.5
      %v673 = vmul.f32 %v641, 0.5
      %v674 = vmul.f32 %v642, 0.5
      %v675 = vmul.f32 %v643, 0.5
      %v676 = vmul.f32 %v644, 0.5
      %v677 = vmul.f32 %v645, 0.5
      %v678 = vmul.f32 %v646, 0.5
      %v679 = vmul.f32 %v647, 0.5
      %v680 = vmul.f32 %v648, 0.5
      %v681 = vmul.f32 %v649, 0.5
      %v682 = vmul.f32 %v650, 0.5
      %v683 = vmul.f32 %v651, 0.5
      %v684 = vmul.f32 %v652, 0.5
      %v685 = vmul.f32 %v653, 0.5
      %v686 = vmul.f32 %v654, 0.5
      %v687 = vmul.f32 %v655, 0.5
      %v688 = vmul.f32 %v656, 0.5
      %v689 = vmul.f32 %v657, 0.5
      %v690 = vmul.f32 %v658, 0.5
      %v691 = vmul.f32 %v659, 0.5
      %v692 = vmul.f32 %v660, 0.5
      %v693 = vmul.f32 %v661, 0.5
      %v694 = vmul.f32 %v662, 0.5
      %v695 = vmul.f32 %v663, 0.5
      %v696 = vmul.f32 %v664, 0.5
      %vm697 = vcmask 64512
      %v698 = vsel %vm697, %v665, 0.0
      %v699 = vsel %vm697, %v666, 0.0
      %v700 = vadd.f32 %v698, %v699
      %v701 = vsel %vm697, %v667, 0.0
      %v702 = vadd.f32 %v700, %v701
      %v703 = vsel %vm697, %v668, 0.0
      %v704 = vadd.f32 %v702, %v703
      %v705 = vsel %vm697, %v669, 0.0
      %v706 = vadd.f32 %v704, %v705
      %v707 = vsel %vm697, %v670, 0.0
      %v708 = vadd.f32 %v706, %v707
      %v709 = vsel %vm697, %v671, 0.0
      %v710 = vadd.f32 %v708, %v709
      %v711 = vsel %vm697, %v672, 0.0
      %v712 = vadd.f32 %v710, %v711
      %v713 = vsel %vm697, %v673, 0.0
      %v714 = vadd.f32 %v712, %v713
      %v715 = vsel %vm697, %v674, 0.0
      %v716 = vadd.f32 %v714, %v715
      %v717 = vsel %vm697, %v675, 0.0
      %v718 = vadd.f32 %v716, %v717
      %v719 = vsel %vm697, %v676, 0.0
      %v720 = vadd.f32 %v718, %v719
      %v721 = vsel %vm697, %v677, 0.0
      %v722 = vadd.f32 %v720, %v721
      %v723 = vsel %vm697, %v678, 0.0
      %v724 = vadd.f32 %v722, %v723
      %v725 = vsel %vm697, %v679, 0.0
      %v726 = vadd.f32 %v724, %v725
      %v727 = vsel %vm697, %v680, 0.0
      %v728 = vadd.f32 %v726, %v727
      %v729 = vsel %vm697, %v681, 0.0
      %v730 = vadd.f32 %v728, %v729
      %v731 = vsel %vm697, %v682, 0.0
      %v732 = vadd.f32 %v730, %v731
      %v733 = vsel %vm697, %v683, 0.0
      %v734 = vadd.f32 %v732, %v733
      %v735 = vsel %vm697, %v684, 0.0
      %v736 = vadd.f32 %v734, %v735
      %v737 = vsel %vm697, %v685, 0.0
      %v738 = vadd.f32 %v736, %v737
      %v739 = vsel %vm697, %v686, 0.0
      %v740 = vadd.f32 %v738, %v739
      %v741 = vsel %vm697, %v687, 0.0
      %v742 = vadd.f32 %v740, %v741
      %v743 = vsel %vm697, %v688, 0.0
      %v744 = vadd.f32 %v742, %v743
      %v745 = vsel %vm697, %v689, 0.0
      %v746 = vadd.f32 %v744, %v745
      %v747 = vsel %vm697, %v690, 0.0
      %v748 = vadd.f32 %v746, %v747
      %v749 = vsel %vm697, %v691, 0.0
      %v750 = vadd.f32 %v748, %v749
      %v751 = vsel %vm697, %v692, 0.0
      %v752 = vadd.f32 %v750, %v751
      %v753 = vsel %vm697, %v693, 0.0
      %v754 = vadd.f32 %v752, %v753
      %v755 = vsel %vm697, %v694, 0.0
      %v756 = vadd.f32 %v754, %v755
      %v757 = vsel %vm697, %v695, 0.0
      %v758 = vadd.f32 %v756, %v757
      %v759 = vsel %vm697, %v696, 0.0
      %v760 = vadd.f32 %v758, %v759
      %v761 = vrot.slane %v760, 4
      %v762 = vadd.f32 %v760, %v761
      %v763 = vrot.slane %v762, 2
      %v764 = vadd.f32 %v762, %v763
      %v765 = vrot.slane %v764, 1
      %v766 = vadd.f32 %v764, %v765
      %v767 = vadd.f32 %v766, 1e-06
      %v768 = vrcp.pop %v767
      %v769 = vmul.f32 1.0, %v768
      %v770 = vld [vmem:[%s3] sm:$0xff]
      %v771 = vld [vmem:[%s3 + $0x8] sm:$0xff]
      %v772 = vld [vmem:[%s3 + $0x10] sm:$0xff]
      %v773 = vld [vmem:[%s3 + $0x18] sm:$0xff]
      %v774 = vld [vmem:[%s3 + $0x20] sm:$0xff]
      %v775 = vld [vmem:[%s3 + $0x28] sm:$0xff]
      %v776 = vld [vmem:[%s3 + $0x30] sm:$0xff]
      %v777 = vld [vmem:[%s3 + $0x38] sm:$0xff]
      %v778 = vld [vmem:[%s3 + $0x40] sm:$0xff]
      %v779 = vld [vmem:[%s3 + $0x48] sm:$0xff]
      %v780 = vld [vmem:[%s3 + $0x50] sm:$0xff]
      %v781 = vld [vmem:[%s3 + $0x58] sm:$0xff]
      %v782 = vld [vmem:[%s3 + $0x60] sm:$0xff]
      %v783 = vld [vmem:[%s3 + $0x68] sm:$0xff]
      %v784 = vld [vmem:[%s3 + $0x70] sm:$0xff]
      %v785 = vld [vmem:[%s3 + $0x78] sm:$0xff]
      %v786 = vld [vmem:[%s3 + $0x80] sm:$0xff]
      %v787 = vld [vmem:[%s3 + $0x88] sm:$0xff]
      %v788 = vld [vmem:[%s3 + $0x90] sm:$0xff]
      %v789 = vld [vmem:[%s3 + $0x98] sm:$0xff]
      %v790 = vld [vmem:[%s3 + $0xa0] sm:$0xff]
      %v791 = vld [vmem:[%s3 + $0xa8] sm:$0xff]
      %v792 = vld [vmem:[%s3 + $0xb0] sm:$0xff]
      %v793 = vld [vmem:[%s3 + $0xb8] sm:$0xff]
      %v794 = vld [vmem:[%s3 + $0xc0] sm:$0xff]
      %v795 = vld [vmem:[%s3 + $0xc8] sm:$0xff]
      %v796 = vld [vmem:[%s3 + $0xd0] sm:$0xff]
      %v797 = vld [vmem:[%s3 + $0xd8] sm:$0xff]
      %v798 = vld [vmem:[%s3 + $0xe0] sm:$0xff]
      %v799 = vld [vmem:[%s3 + $0xe8] sm:$0xff]
      %v800 = vld [vmem:[%s3 + $0xf0] sm:$0xff]
      %v801 = vld [vmem:[%s3 + $0xf8] sm:$0xff]
      %803 = vset.pattern.permute.xlu0 0
      %804 = vperm.xlu0 %803, %v770
      %v805 = vpop.permute.xlu0 %804
      %808 = vset.pattern.permute.xlu0 0
      %809 = vperm.xlu0 %808, %v771
      %v810 = vpop.permute.xlu0 %809
      %813 = vset.pattern.permute.xlu0 0
      %814 = vperm.xlu0 %813, %v772
      %v815 = vpop.permute.xlu0 %814
      %818 = vset.pattern.permute.xlu0 0
      %819 = vperm.xlu0 %818, %v773
      %v820 = vpop.permute.xlu0 %819
      %823 = vset.pattern.permute.xlu0 0
      %824 = vperm.xlu0 %823, %v774
      %v825 = vpop.permute.xlu0 %824
      %828 = vset.pattern.permute.xlu0 0
      %829 = vperm.xlu0 %828, %v775
      %v830 = vpop.permute.xlu0 %829
      %833 = vset.pattern.permute.xlu0 0
      %834 = vperm.xlu0 %833, %v776
      %v835 = vpop.permute.xlu0 %834
      %838 = vset.pattern.permute.xlu0 0
      %839 = vperm.xlu0 %838, %v777
      %v840 = vpop.permute.xlu0 %839
      %843 = vset.pattern.permute.xlu0 0
      %844 = vperm.xlu0 %843, %v778
      %v845 = vpop.permute.xlu0 %844
      %848 = vset.pattern.permute.xlu0 0
      %849 = vperm.xlu0 %848, %v779
      %v850 = vpop.permute.xlu0 %849
      %853 = vset.pattern.permute.xlu0 0
      %854 = vperm.xlu0 %853, %v780
      %v855 = vpop.permute.xlu0 %854
      %858 = vset.pattern.permute.xlu0 0
      %859 = vperm.xlu0 %858, %v781
      %v860 = vpop.permute.xlu0 %859
      %863 = vset.pattern.permute.xlu0 0
      %864 = vperm.xlu0 %863, %v782
      %v865 = vpop.permute.xlu0 %864
      %868 = vset.pattern.permute.xlu0 0
      %869 = vperm.xlu0 %868, %v783
      %v870 = vpop.permute.xlu0 %869
      %873 = vset.pattern.permute.xlu0 0
      %874 = vperm.xlu0 %873, %v784
      %v875 = vpop.permute.xlu0 %874
      %878 = vset.pattern.permute.xlu0 0
      %879 = vperm.xlu0 %878, %v785
      %v880 = vpop.permute.xlu0 %879
      %883 = vset.pattern.permute.xlu0 0
      %884 = vperm.xlu0 %883, %v786
      %v885 = vpop.permute.xlu0 %884
      %888 = vset.pattern.permute.xlu0 0
      %889 = vperm.xlu0 %888, %v787
      %v890 = vpop.permute.xlu0 %889
      %893 = vset.pattern.permute.xlu0 0
      %894 = vperm.xlu0 %893, %v788
      %v895 = vpop.permute.xlu0 %894
      %898 = vset.pattern.permute.xlu0 0
      %899 = vperm.xlu0 %898, %v789
      %v900 = vpop.permute.xlu0 %899
      %903 = vset.pattern.permute.xlu0 0
      %904 = vperm.xlu0 %903, %v790
      %v905 = vpop.permute.xlu0 %904
      %908 = vset.pattern.permute.xlu0 0
      %909 = vperm.xlu0 %908, %v791
      %v910 = vpop.permute.xlu0 %909
      %913 = vset.pattern.permute.xlu0 0
      %914 = vperm.xlu0 %913, %v792
      %v915 = vpop.permute.xlu0 %914
      %918 = vset.pattern.permute.xlu0 0
      %919 = vperm.xlu0 %918, %v793
      %v920 = vpop.permute.xlu0 %919
      %923 = vset.pattern.permute.xlu0 0
      %924 = vperm.xlu0 %923, %v794
      %v925 = vpop.permute.xlu0 %924
      %928 = vset.pattern.permute.xlu0 0
      %929 = vperm.xlu0 %928, %v795
      %v930 = vpop.permute.xlu0 %929
      %933 = vset.pattern.permute.xlu0 0
      %934 = vperm.xlu0 %933, %v796
      %v935 = vpop.permute.xlu0 %934
      %938 = vset.pattern.permute.xlu0 0
      %939 = vperm.xlu0 %938, %v797
      %v940 = vpop.permute.xlu0 %939
      %943 = vset.pattern.permute.xlu0 0
      %944 = vperm.xlu0 %943, %v798
      %v945 = vpop.permute.xlu0 %944
      %948 = vset.pattern.permute.xlu0 0
      %949 = vperm.xlu0 %948, %v799
      %v950 = vpop.permute.xlu0 %949
      %953 = vset.pattern.permute.xlu0 0
      %954 = vperm.xlu0 %953, %v800
      %v955 = vpop.permute.xlu0 %954
      %958 = vset.pattern.permute.xlu0 0
      %959 = vperm.xlu0 %958, %v801
      %v960 = vpop.permute.xlu0 %959
      %v962 = vmul.f32 %v665, %v805
      %v963 = vmul.f32 %v666, %v810
      %v964 = vmul.f32 %v667, %v815
      %v965 = vmul.f32 %v668, %v820
      %v966 = vmul.f32 %v669, %v825
      %v967 = vmul.f32 %v670, %v830
      %v968 = vmul.f32 %v671, %v835
      %v969 = vmul.f32 %v672, %v840
      %v970 = vmul.f32 %v673, %v845
      %v971 = vmul.f32 %v674, %v850
      %v972 = vmul.f32 %v675, %v855
      %v973 = vmul.f32 %v676, %v860
      %v974 = vmul.f32 %v677, %v865
      %v975 = vmul.f32 %v678, %v870
      %v976 = vmul.f32 %v679, %v875
      %v977 = vmul.f32 %v680, %v880
      %v978 = vmul.f32 %v681, %v885
      %v979 = vmul.f32 %v682, %v890
      %v980 = vmul.f32 %v683, %v895
      %v981 = vmul.f32 %v684, %v900
      %v982 = vmul.f32 %v685, %v905
      %v983 = vmul.f32 %v686, %v910
      %v984 = vmul.f32 %v687, %v915
      %v985 = vmul.f32 %v688, %v920
      %v986 = vmul.f32 %v689, %v925
      %v987 = vmul.f32 %v690, %v930
      %v988 = vmul.f32 %v691, %v935
      %v989 = vmul.f32 %v692, %v940
      %v990 = vmul.f32 %v693, %v945
      %v991 = vmul.f32 %v694, %v950
      %v992 = vmul.f32 %v695, %v955
      %v993 = vmul.f32 %v696, %v960
      %v994 = vsel %vm697, %v962, 0.0
      %v995 = vsel %vm697, %v963, 0.0
      %v996 = vadd.f32 %v994, %v995
      %v997 = vsel %vm697, %v964, 0.0
      %v998 = vadd.f32 %v996, %v997
      %v999 = vsel %vm697, %v965, 0.0
      %v1000 = vadd.f32 %v998, %v999
      %v1001 = vsel %vm697, %v966, 0.0
      %v1002 = vadd.f32 %v1000, %v1001
      %v1003 = vsel %vm697, %v967, 0.0
      %v1004 = vadd.f32 %v1002, %v1003
      %v1005 = vsel %vm697, %v968, 0.0
      %v1006 = vadd.f32 %v1004, %v1005
      %v1007 = vsel %vm697, %v969, 0.0
      %v1008 = vadd.f32 %v1006, %v1007
      %v1009 = vsel %vm697, %v970, 0.0
      %v1010 = vadd.f32 %v1008, %v1009
      %v1011 = vsel %vm697, %v971, 0.0
      %v1012 = vadd.f32 %v1010, %v1011
      %v1013 = vsel %vm697, %v972, 0.0
      %v1014 = vadd.f32 %v1012, %v1013
      %v1015 = vsel %vm697, %v973, 0.0
      %v1016 = vadd.f32 %v1014, %v1015
      %v1017 = vsel %vm697, %v974, 0.0
      %v1018 = vadd.f32 %v1016, %v1017
      %v1019 = vsel %vm697, %v975, 0.0
      %v1020 = vadd.f32 %v1018, %v1019
      %v1021 = vsel %vm697, %v976, 0.0
      %v1022 = vadd.f32 %v1020, %v1021
      %v1023 = vsel %vm697, %v977, 0.0
      %v1024 = vadd.f32 %v1022, %v1023
      %v1025 = vsel %vm697, %v978, 0.0
      %v1026 = vadd.f32 %v1024, %v1025
      %v1027 = vsel %vm697, %v979, 0.0
      %v1028 = vadd.f32 %v1026, %v1027
      %v1029 = vsel %vm697, %v980, 0.0
      %v1030 = vadd.f32 %v1028, %v1029
      %v1031 = vsel %vm697, %v981, 0.0
      %v1032 = vadd.f32 %v1030, %v1031
      %v1033 = vsel %vm697, %v982, 0.0
      %v1034 = vadd.f32 %v1032, %v1033
      %v1035 = vsel %vm697, %v983, 0.0
      %v1036 = vadd.f32 %v1034, %v1035
      %v1037 = vsel %vm697, %v984, 0.0
      %v1038 = vadd.f32 %v1036, %v1037
      %v1039 = vsel %vm697, %v985, 0.0
      %v1040 = vadd.f32 %v1038, %v1039
      %v1041 = vsel %vm697, %v986, 0.0
      %v1042 = vadd.f32 %v1040, %v1041
      %v1043 = vsel %vm697, %v987, 0.0
      %v1044 = vadd.f32 %v1042, %v1043
      %v1045 = vsel %vm697, %v988, 0.0
      %v1046 = vadd.f32 %v1044, %v1045
      %v1047 = vsel %vm697, %v989, 0.0
      %v1048 = vadd.f32 %v1046, %v1047
      %v1049 = vsel %vm697, %v990, 0.0
      %v1050 = vadd.f32 %v1048, %v1049
      %v1051 = vsel %vm697, %v991, 0.0
      %v1052 = vadd.f32 %v1050, %v1051
      %v1053 = vsel %vm697, %v992, 0.0
      %v1054 = vadd.f32 %v1052, %v1053
      %v1055 = vsel %vm697, %v993, 0.0
      %v1056 = vadd.f32 %v1054, %v1055
      %v1057 = vrot.slane %v1056, 4
      %v1058 = vadd.f32 %v1056, %v1057
      %v1059 = vrot.slane %v1058, 2
      %v1060 = vadd.f32 %v1058, %v1059
      %v1061 = vrot.slane %v1060, 1
      %v1062 = vadd.f32 %v1060, %v1061
      %v1063 = vmul.f32 %v1062, %v769
      %v1064 = vld [vmem:[%s4] sm:$0xff]
      %v1065 = vld [vmem:[%s4 + $0x8] sm:$0xff]
      %v1066 = vld [vmem:[%s4 + $0x10] sm:$0xff]
      %v1067 = vld [vmem:[%s4 + $0x18] sm:$0xff]
      %v1068 = vld [vmem:[%s4 + $0x20] sm:$0xff]
      %v1069 = vld [vmem:[%s4 + $0x28] sm:$0xff]
      %v1070 = vld [vmem:[%s4 + $0x30] sm:$0xff]
      %v1071 = vld [vmem:[%s4 + $0x38] sm:$0xff]
      %v1072 = vld [vmem:[%s4 + $0x40] sm:$0xff]
      %v1073 = vld [vmem:[%s4 + $0x48] sm:$0xff]
      %v1074 = vld [vmem:[%s4 + $0x50] sm:$0xff]
      %v1075 = vld [vmem:[%s4 + $0x58] sm:$0xff]
      %v1076 = vld [vmem:[%s4 + $0x60] sm:$0xff]
      %v1077 = vld [vmem:[%s4 + $0x68] sm:$0xff]
      %v1078 = vld [vmem:[%s4 + $0x70] sm:$0xff]
      %v1079 = vld [vmem:[%s4 + $0x78] sm:$0xff]
      %v1080 = vld [vmem:[%s4 + $0x80] sm:$0xff]
      %v1081 = vld [vmem:[%s4 + $0x88] sm:$0xff]
      %v1082 = vld [vmem:[%s4 + $0x90] sm:$0xff]
      %v1083 = vld [vmem:[%s4 + $0x98] sm:$0xff]
      %v1084 = vld [vmem:[%s4 + $0xa0] sm:$0xff]
      %v1085 = vld [vmem:[%s4 + $0xa8] sm:$0xff]
      %v1086 = vld [vmem:[%s4 + $0xb0] sm:$0xff]
      %v1087 = vld [vmem:[%s4 + $0xb8] sm:$0xff]
      %v1088 = vld [vmem:[%s4 + $0xc0] sm:$0xff]
      %v1089 = vld [vmem:[%s4 + $0xc8] sm:$0xff]
      %v1090 = vld [vmem:[%s4 + $0xd0] sm:$0xff]
      %v1091 = vld [vmem:[%s4 + $0xd8] sm:$0xff]
      %v1092 = vld [vmem:[%s4 + $0xe0] sm:$0xff]
      %v1093 = vld [vmem:[%s4 + $0xe8] sm:$0xff]
      %v1094 = vld [vmem:[%s4 + $0xf0] sm:$0xff]
      %v1095 = vld [vmem:[%s4 + $0xf8] sm:$0xff]
      %1097 = vset.pattern.permute.xlu0 0
      %1098 = vperm.xlu0 %1097, %v1064
      %v1099 = vpop.permute.xlu0 %1098
      %1102 = vset.pattern.permute.xlu0 0
      %1103 = vperm.xlu0 %1102, %v1065
      %v1104 = vpop.permute.xlu0 %1103
      %1107 = vset.pattern.permute.xlu0 0
      %1108 = vperm.xlu0 %1107, %v1066
      %v1109 = vpop.permute.xlu0 %1108
      %1112 = vset.pattern.permute.xlu0 0
      %1113 = vperm.xlu0 %1112, %v1067
      %v1114 = vpop.permute.xlu0 %1113
      %1117 = vset.pattern.permute.xlu0 0
      %1118 = vperm.xlu0 %1117, %v1068
      %v1119 = vpop.permute.xlu0 %1118
      %1122 = vset.pattern.permute.xlu0 0
      %1123 = vperm.xlu0 %1122, %v1069
      %v1124 = vpop.permute.xlu0 %1123
      %1127 = vset.pattern.permute.xlu0 0
      %1128 = vperm.xlu0 %1127, %v1070
      %v1129 = vpop.permute.xlu0 %1128
      %1132 = vset.pattern.permute.xlu0 0
      %1133 = vperm.xlu0 %1132, %v1071
      %v1134 = vpop.permute.xlu0 %1133
      %1137 = vset.pattern.permute.xlu0 0
      %1138 = vperm.xlu0 %1137, %v1072
      %v1139 = vpop.permute.xlu0 %1138
      %1142 = vset.pattern.permute.xlu0 0
      %1143 = vperm.xlu0 %1142, %v1073
      %v1144 = vpop.permute.xlu0 %1143
      %1147 = vset.pattern.permute.xlu0 0
      %1148 = vperm.xlu0 %1147, %v1074
      %v1149 = vpop.permute.xlu0 %1148
      %1152 = vset.pattern.permute.xlu0 0
      %1153 = vperm.xlu0 %1152, %v1075
      %v1154 = vpop.permute.xlu0 %1153
      %1157 = vset.pattern.permute.xlu0 0
      %1158 = vperm.xlu0 %1157, %v1076
      %v1159 = vpop.permute.xlu0 %1158
      %1162 = vset.pattern.permute.xlu0 0
      %1163 = vperm.xlu0 %1162, %v1077
      %v1164 = vpop.permute.xlu0 %1163
      %1167 = vset.pattern.permute.xlu0 0
      %1168 = vperm.xlu0 %1167, %v1078
      %v1169 = vpop.permute.xlu0 %1168
      %1172 = vset.pattern.permute.xlu0 0
      %1173 = vperm.xlu0 %1172, %v1079
      %v1174 = vpop.permute.xlu0 %1173
      %1177 = vset.pattern.permute.xlu0 0
      %1178 = vperm.xlu0 %1177, %v1080
      %v1179 = vpop.permute.xlu0 %1178
      %1182 = vset.pattern.permute.xlu0 0
      %1183 = vperm.xlu0 %1182, %v1081
      %v1184 = vpop.permute.xlu0 %1183
      %1187 = vset.pattern.permute.xlu0 0
      %1188 = vperm.xlu0 %1187, %v1082
      %v1189 = vpop.permute.xlu0 %1188
      %1192 = vset.pattern.permute.xlu0 0
      %1193 = vperm.xlu0 %1192, %v1083
      %v1194 = vpop.permute.xlu0 %1193
      %1197 = vset.pattern.permute.xlu0 0
      %1198 = vperm.xlu0 %1197, %v1084
      %v1199 = vpop.permute.xlu0 %1198
      %1202 = vset.pattern.permute.xlu0 0
      %1203 = vperm.xlu0 %1202, %v1085
      %v1204 = vpop.permute.xlu0 %1203
      %1207 = vset.pattern.permute.xlu0 0
      %1208 = vperm.xlu0 %1207, %v1086
      %v1209 = vpop.permute.xlu0 %1208
      %1212 = vset.pattern.permute.xlu0 0
      %1213 = vperm.xlu0 %1212, %v1087
      %v1214 = vpop.permute.xlu0 %1213
      %1217 = vset.pattern.permute.xlu0 0
      %1218 = vperm.xlu0 %1217, %v1088
      %v1219 = vpop.permute.xlu0 %1218
      %1222 = vset.pattern.permute.xlu0 0
      %1223 = vperm.xlu0 %1222, %v1089
      %v1224 = vpop.permute.xlu0 %1223
      %1227 = vset.pattern.permute.xlu0 0
      %1228 = vperm.xlu0 %1227, %v1090
      %v1229 = vpop.permute.xlu0 %1228
      %1232 = vset.pattern.permute.xlu0 0
      %1233 = vperm.xlu0 %1232, %v1091
      %v1234 = vpop.permute.xlu0 %1233
      %1237 = vset.pattern.permute.xlu0 0
      %1238 = vperm.xlu0 %1237, %v1092
      %v1239 = vpop.permute.xlu0 %1238
      %1242 = vset.pattern.permute.xlu0 0
      %1243 = vperm.xlu0 %1242, %v1093
      %v1244 = vpop.permute.xlu0 %1243
      %1247 = vset.pattern.permute.xlu0 0
      %1248 = vperm.xlu0 %1247, %v1094
      %v1249 = vpop.permute.xlu0 %1248
      %1252 = vset.pattern.permute.xlu0 0
      %1253 = vperm.xlu0 %1252, %v1095
      %v1254 = vpop.permute.xlu0 %1253
      %v1256 = vmul.f32 %v665, %v1099
      %v1257 = vmul.f32 %v666, %v1104
      %v1258 = vmul.f32 %v667, %v1109
      %v1259 = vmul.f32 %v668, %v1114
      %v1260 = vmul.f32 %v669, %v1119
      %v1261 = vmul.f32 %v670, %v1124
      %v1262 = vmul.f32 %v671, %v1129
      %v1263 = vmul.f32 %v672, %v1134
      %v1264 = vmul.f32 %v673, %v1139
      %v1265 = vmul.f32 %v674, %v1144
      %v1266 = vmul.f32 %v675, %v1149
      %v1267 = vmul.f32 %v676, %v1154
      %v1268 = vmul.f32 %v677, %v1159
      %v1269 = vmul.f32 %v678, %v1164
      %v1270 = vmul.f32 %v679, %v1169
      %v1271 = vmul.f32 %v680, %v1174
      %v1272 = vmul.f32 %v681, %v1179
      %v1273 = vmul.f32 %v682, %v1184
      %v1274 = vmul.f32 %v683, %v1189
      %v1275 = vmul.f32 %v684, %v1194
      %v1276 = vmul.f32 %v685, %v1199
      %v1277 = vmul.f32 %v686, %v1204
      %v1278 = vmul.f32 %v687, %v1209
      %v1279 = vmul.f32 %v688, %v1214
      %v1280 = vmul.f32 %v689, %v1219
      %v1281 = vmul.f32 %v690, %v1224
      %v1282 = vmul.f32 %v691, %v1229
      %v1283 = vmul.f32 %v692, %v1234
      %v1284 = vmul.f32 %v693, %v1239
      %v1285 = vmul.f32 %v694, %v1244
      %v1286 = vmul.f32 %v695, %v1249
      %v1287 = vmul.f32 %v696, %v1254
      %v1288 = vsel %vm697, %v1256, 0.0
      %v1289 = vsel %vm697, %v1257, 0.0
      %v1290 = vadd.f32 %v1288, %v1289
      %v1291 = vsel %vm697, %v1258, 0.0
      %v1292 = vadd.f32 %v1290, %v1291
      %v1293 = vsel %vm697, %v1259, 0.0
      %v1294 = vadd.f32 %v1292, %v1293
      %v1295 = vsel %vm697, %v1260, 0.0
      %v1296 = vadd.f32 %v1294, %v1295
      %v1297 = vsel %vm697, %v1261, 0.0
      %v1298 = vadd.f32 %v1296, %v1297
      %v1299 = vsel %vm697, %v1262, 0.0
      %v1300 = vadd.f32 %v1298, %v1299
      %v1301 = vsel %vm697, %v1263, 0.0
      %v1302 = vadd.f32 %v1300, %v1301
      %v1303 = vsel %vm697, %v1264, 0.0
      %v1304 = vadd.f32 %v1302, %v1303
      %v1305 = vsel %vm697, %v1265, 0.0
      %v1306 = vadd.f32 %v1304, %v1305
      %v1307 = vsel %vm697, %v1266, 0.0
      %v1308 = vadd.f32 %v1306, %v1307
      %v1309 = vsel %vm697, %v1267, 0.0
      %v1310 = vadd.f32 %v1308, %v1309
      %v1311 = vsel %vm697, %v1268, 0.0
      %v1312 = vadd.f32 %v1310, %v1311
      %v1313 = vsel %vm697, %v1269, 0.0
      %v1314 = vadd.f32 %v1312, %v1313
      %v1315 = vsel %vm697, %v1270, 0.0
      %v1316 = vadd.f32 %v1314, %v1315
      %v1317 = vsel %vm697, %v1271, 0.0
      %v1318 = vadd.f32 %v1316, %v1317
      %v1319 = vsel %vm697, %v1272, 0.0
      %v1320 = vadd.f32 %v1318, %v1319
      %v1321 = vsel %vm697, %v1273, 0.0
      %v1322 = vadd.f32 %v1320, %v1321
      %v1323 = vsel %vm697, %v1274, 0.0
      %v1324 = vadd.f32 %v1322, %v1323
      %v1325 = vsel %vm697, %v1275, 0.0
      %v1326 = vadd.f32 %v1324, %v1325
      %v1327 = vsel %vm697, %v1276, 0.0
      %v1328 = vadd.f32 %v1326, %v1327
      %v1329 = vsel %vm697, %v1277, 0.0
      %v1330 = vadd.f32 %v1328, %v1329
      %v1331 = vsel %vm697, %v1278, 0.0
      %v1332 = vadd.f32 %v1330, %v1331
      %v1333 = vsel %vm697, %v1279, 0.0
      %v1334 = vadd.f32 %v1332, %v1333
      %v1335 = vsel %vm697, %v1280, 0.0
      %v1336 = vadd.f32 %v1334, %v1335
      %v1337 = vsel %vm697, %v1281, 0.0
      %v1338 = vadd.f32 %v1336, %v1337
      %v1339 = vsel %vm697, %v1282, 0.0
      %v1340 = vadd.f32 %v1338, %v1339
      %v1341 = vsel %vm697, %v1283, 0.0
      %v1342 = vadd.f32 %v1340, %v1341
      %v1343 = vsel %vm697, %v1284, 0.0
      %v1344 = vadd.f32 %v1342, %v1343
      %v1345 = vsel %vm697, %v1285, 0.0
      %v1346 = vadd.f32 %v1344, %v1345
      %v1347 = vsel %vm697, %v1286, 0.0
      %v1348 = vadd.f32 %v1346, %v1347
      %v1349 = vsel %vm697, %v1287, 0.0
      %v1350 = vadd.f32 %v1348, %v1349
      %v1351 = vrot.slane %v1350, 4
      %v1352 = vadd.f32 %v1350, %v1351
      %v1353 = vrot.slane %v1352, 2
      %v1354 = vadd.f32 %v1352, %v1353
      %v1355 = vrot.slane %v1354, 1
      %v1356 = vadd.f32 %v1354, %v1355
      %v1357 = vmul.f32 %v1356, %v769
      %v1358 = vsel %vm697, %v665, -inf
      %v1359 = vsel %vm697, %v666, -inf
      %v1360 = vsel %vm697, %v667, -inf
      %v1361 = vsel %vm697, %v668, -inf
      %v1362 = vsel %vm697, %v669, -inf
      %v1363 = vmax.f32 %v1358, %v1362
      %v1364 = vsel %vm697, %v670, -inf
      %v1365 = vmax.f32 %v1359, %v1364
      %v1366 = vsel %vm697, %v671, -inf
      %v1367 = vmax.f32 %v1360, %v1366
      %v1368 = vsel %vm697, %v672, -inf
      %v1369 = vmax.f32 %v1361, %v1368
      %v1370 = vsel %vm697, %v673, -inf
      %v1371 = vmax.f32 %v1363, %v1370
      %v1372 = vsel %vm697, %v674, -inf
      %v1373 = vmax.f32 %v1365, %v1372
      %v1374 = vsel %vm697, %v675, -inf
      %v1375 = vmax.f32 %v1367, %v1374
      %v1376 = vsel %vm697, %v676, -inf
      %v1377 = vmax.f32 %v1369, %v1376
      %v1378 = vsel %vm697, %v677, -inf
      %v1379 = vmax.f32 %v1371, %v1378
      %v1380 = vsel %vm697, %v678, -inf
      %v1381 = vmax.f32 %v1373, %v1380
      %v1382 = vsel %vm697, %v679, -inf
      %v1383 = vmax.f32 %v1375, %v1382
      %v1384 = vsel %vm697, %v680, -inf
      %v1385 = vmax.f32 %v1377, %v1384
      %v1386 = vsel %vm697, %v681, -inf
      %v1387 = vmax.f32 %v1379, %v1386
      %v1388 = vsel %vm697, %v682, -inf
      %v1389 = vmax.f32 %v1381, %v1388
      %v1390 = vsel %vm697, %v683, -inf
      %v1391 = vmax.f32 %v1383, %v1390
      %v1392 = vsel %vm697, %v684, -inf
      %v1393 = vmax.f32 %v1385, %v1392
      %v1394 = vsel %vm697, %v685, -inf
      %v1395 = vmax.f32 %v1387, %v1394
      %v1396 = vsel %vm697, %v686, -inf
      %v1397 = vmax.f32 %v1389, %v1396
      %v1398 = vsel %vm697, %v687, -inf
      %v1399 = vmax.f32 %v1391, %v1398
      %v1400 = vsel %vm697, %v688, -inf
      %v1401 = vmax.f32 %v1393, %v1400
      %v1402 = vsel %vm697, %v689, -inf
      %v1403 = vmax.f32 %v1395, %v1402
      %v1404 = vsel %vm697, %v690, -inf
      %v1405 = vmax.f32 %v1397, %v1404
      %v1406 = vsel %vm697, %v691, -inf
      %v1407 = vmax.f32 %v1399, %v1406
      %v1408 = vsel %vm697, %v692, -inf
      %v1409 = vmax.f32 %v1401, %v1408
      %v1410 = vsel %vm697, %v693, -inf
      %v1411 = vmax.f32 %v1403, %v1410
      %v1412 = vsel %vm697, %v694, -inf
      %v1413 = vmax.f32 %v1405, %v1412
      %v1414 = vsel %vm697, %v695, -inf
      %v1415 = vmax.f32 %v1407, %v1414
      %v1416 = vsel %vm697, %v696, -inf
      %v1417 = vmax.f32 %v1409, %v1416
      %v1418 = vmax.f32 %v1411, %v1413
      %v1419 = vmax.f32 %v1415, %v1417
      %v1420 = vmax.f32 %v1418, %v1419
      %v1421 = vrot.slane %v1420, 4
      %v1422 = vmax.f32 %v1420, %v1421
      %v1423 = vrot.slane %v1422, 2
      %v1424 = vmax.f32 %v1422, %v1423
      %v1425 = vrot.slane %v1424, 1
      %v1426 = vmax.f32 %v1424, %v1425
      %vm1427 = vcmask 1040384
      %v1428 = vsel %vm1427, %v1063, %v1357
      %vm1429 = vcmask 1041408
      %v1430 = vsel %vm1429, %v1428, %v1426
      %vm1431 = vcmask 59392
      %1432 = vst.msk [vmem:[%s222] sm:$0x7] %vm1431, %v1430
      %p1433 = scmp.lt.s32.totalorder %s16, 1
      %s1434 = scalar_select %p1433, %s16, 1
      %s1435 = smul.addr %s1434, 4
      %s1436 = scalar_lea.vmem %s5, %s1435
      // Predicated region
      $region41: #{_lambda_.31} parent=39 // pred_check
        %p1437 = pneg %p144
      $region42: #{_lambda_.31} parent=39 // pred_check_branch
        %1439 = sbr.rel (%p1437) target = $region44
      $region43: #{_lambda_.31} parent=39 // pred_region
        _
      $region44: #{_lambda_.31} parent=39 // pred_fallthru
        _
    $region40: #{_lambda_.31} parent=5 // pred_fallthru
      _
    %p1440 = scmp.le.s32.totalorder 2, %s11
    // Predicated region
    $region45: #{_lambda_.31} parent=5 // pred_check
      %p1441 = pneg %p1440
    $region46: #{_lambda_.31} parent=5 // pred_check_branch
      %1443 = sbr.rel (%p1441) target = $region48
    $region47: #{_lambda_.31} parent=5 // pred_region
      %s1444 = ssub.s32 %s11, 2
      // Predicated region
      $region49: #{_lambda_.31} parent=47 // pred_check
        %p1445 = pneg %p150
      $region50: #{_lambda_.31} parent=47 // pred_check_branch
        %1447 = sbr.rel (%p1445) target = $region52
      $region51: #{_lambda_.31} parent=47 // pred_region
        %p1448 = scmp.lt.s32.totalorder %s17, 1
        %s1449 = scalar_select %p1448, %s17, 1
        %s1450 = smul.addr %s1449, 4
        %s1451 = scalar_lea.vmem %s5, %s1450
      $region52: #{_lambda_.31} parent=47 // pred_fallthru
        _
    $region48: #{_lambda_.31} parent=5 // pred_fallthru
      _
  $region6: #{_lambda_.31} parent=0 // loop_footer
    %s15 = sadd.s32 1, %s11
  $region7: #{_lambda_.31} parent=0 // loop_footer_branch
    %10 = sbr.rel target = $region3
  $region8: #{_lambda_.31} parent=0 // loop_exit
    _

</llo_original>
